<compile_context>
chip_gen: v6e
topology: v6e:2x2x1
jax: 0.10.0
libtpu: 0.0.40
codegen_flags: <defaults>
</compile_context>

<pallas_src>
import functools

import jax
import jax.numpy as jnp
from jax.experimental import pallas as pl
from jax.experimental.pallas import tpu as pltpu


# ------------------------------- the kernel --------------------------------

def _unet_block_kernel(x_ref, gamma_ref, beta_ref, p_avg_ref, masks_ref,
                       gn1_w_ref, gn1_b_ref, conv1_w_ref, conv1_b_ref,
                       gn2_w_ref, gn2_b_ref, conv2_w_ref, conv2_b_ref,
                       convr_w_ref, convr_b_ref,
                       o_ref, *, H, W, eps):
    """One (batch, res-block) grid step.

    grid = (B, R): axis 0 ("parallel") is the batch, axis 1 ("arbitrary") is
    the res-block index.  The output block index only depends on b, so the
    output VMEM tile is revisited across r and doubles as the activation
    carry -- intermediate activations never touch HBM.
    """
    HW = H * W
    f32 = jnp.float32
    bf16 = jnp.bfloat16
    r = pl.program_id(1)

    # Initialise the carried activation from the input on the first res block.
    @pl.when(r == 0)
    def _():
        o_ref[...] = x_ref[...]

    p_avg = p_avg_ref[...]          # (C, C) constant group-mean projector
    mask_l = masks_ref[0]           # (HW, 1): tap at x-1 is in-bounds
    mask_r = masks_ref[1]           # (HW, 1): tap at x+1 is in-bounds
    mask_t = masks_ref[2]           # (HW, 1): tap at y-1 is in-bounds
    mask_b = masks_ref[3]           # (HW, 1): tap at y+1 is in-bounds

    def group_norm(h, w_ref, b_ref):
        # per-channel sum / sum-of-squares, then one tiny matmul against the
        # constant group projector to reduce + broadcast within each group.
        csum = jnp.sum(h, axis=0, keepdims=True)                  # (1, C)
        csq = jnp.sum(h * h, axis=0, keepdims=True)               # (1, C)
        mean = jnp.dot(csum, p_avg, preferred_element_type=f32)   # (1, C)
        msq = jnp.dot(csq, p_avg, preferred_element_type=f32)     # (1, C)
        var = jnp.maximum(msq - mean * mean, 0.0)   # clamp: no rsqrt NaN
        scale = jax.lax.rsqrt(var + eps) * w_ref[0]                # (1, C)
        return (h - mean) * scale + b_ref[0]

    def silu(h):
        # exp and the approximate reciprocal both ride the EUP slot.
        return h * pl.reciprocal(1.0 + jnp.exp(-h), approx=True)

    def conv3x3(h, w_ref, b_ref):
        # 3x3 "same" conv, channels-last, on the flattened (HW, C) tile.
        #   dx taps: XLU rolls along the flattened axis + column masks,
        #            lane-concatenated into a (HW, 3C) patch (partial im2col)
        #   dy taps: rolls of the patch by +-W rows + row masks
        # => 3 matmuls with K = 3C; bf16 operands, f32 accumulation.
        left = mask_l * pltpu.roll(h, 1, 0)            # value of h[y, x-1]
        right = mask_r * pltpu.roll(h, HW - 1, 0)      # value of h[y, x+1]
        patch = jnp.concatenate([left, h, right], axis=-1)        # (HW, 3C)
        up = mask_t * pltpu.roll(patch, W, 0)          # row y-1 taps (ky = 0)
        down = mask_b * pltpu.roll(patch, HW - W, 0)   # row y+1 taps (ky = 2)
        acc = jnp.dot(up.astype(bf16), w_ref[0, 0],
                      preferred_element_type=f32)
        acc = acc + jnp.dot(patch.astype(bf16), w_ref[0, 1],
                            preferred_element_type=f32)
        acc = acc + jnp.dot(down.astype(bf16), w_ref[0, 2],
                            preferred_element_type=f32)
        return acc + b_ref[0]

    x = o_ref[0].astype(f32)                       # (HW, C) carried activation
    x = x * gamma_ref[0, 0] + beta_ref[0, 0]       # FiLM (gamma/beta from XLA)

    h = silu(group_norm(x, gn1_w_ref, gn1_b_ref))
    h = conv3x3(h, conv1_w_ref, conv1_b_ref)
    h = silu(group_norm(h, gn2_w_ref, gn2_b_ref))
    h = conv3x3(h, conv2_w_ref, conv2_b_ref)
    y = h + conv3x3(x, convr_w_ref, convr_b_ref)   # residual conv on FiLM out

    o_ref[0] = y.astype(o_ref.dtype)


# -------------------------------- wrapper -----------------------------------

def unet_block_no_attention(x, clip_embeddings, params, *, groups, eps=1e-5):
    """x: (B, C, H, W) NCHW (PyTorch layout); returns NCHW."""
    B, C, H, W = x.shape
    R = len(params)
    HW = H * W
    gs = C // groups
    f32 = jnp.float32
    hi = jax.lax.Precision.HIGHEST

    # FiLM gamma/beta depend only on the clip embedding: precompute in XLA
    # (one tiny matmul per block) and feed per-(r, b) rows to the kernel.
    film_w = jnp.stack([p["film_fc_w"] for p in params]).astype(f32)  # (R,2C,D)
    film_b = jnp.stack([p["film_fc_b"] for p in params]).astype(f32)  # (R,2C)
    y = jnp.einsum("bd,rcd->rbc", clip_embeddings.astype(f32), film_w,
                   precision=hi) + film_b[:, None, :]
    y = jnp.maximum(y, 0.0)                                           # (R,B,2C)
    gamma = y[:, :, :C][:, :, None, :]                                # (R,B,1,C)
    # the module's quirky beta: one scalar ([:, C:C+1]) broadcast over channels
    beta = jnp.broadcast_to(y[:, :, C:C + 1][:, :, None, :], (R, B, 1, C))

    # conv weights -> (R, 3, 3C, C) bf16; contraction row index = kx*C + ci
    def conv_w(key):
        w = jnp.stack([p[key] for p in params])        # (R, Co, Ci, 3, 3)
        w = jnp.transpose(w, (0, 3, 4, 2, 1))          # (R, ky, kx, Ci, Co)
        return w.reshape(R, 3, 3 * C, C).astype(jnp.bfloat16)

    def vec(key):                                      # (R, 1, C) f32
        return jnp.stack([p[key][None, :] for p in params]).astype(f32)

    conv1_w, conv2_w, convr_w = conv_w("conv1_w"), conv_w("conv2_w"), conv_w("convr_w")
    conv1_b, conv2_b, convr_b = vec("conv1_b"), vec("conv2_b"), vec("convr_b")
    gn1_w, gn1_b, gn2_w, gn2_b = vec("gn1_w"), vec("gn1_b"), vec("gn2_w"), vec("gn2_b")

    # constant group-mean projector: (1, C) sums @ p_avg -> per-channel means
    ch = jnp.arange(C)
    same_group = (ch[:, None] // gs) == (ch[None, :] // gs)
    p_avg = jnp.where(same_group, 1.0 / (gs * HW), 0.0).astype(f32)   # (C, C)

    # conv tap validity masks in the flattened (HW) layout (exact, trace time)
    yy, xx = jnp.meshgrid(jnp.arange(H), jnp.arange(W), indexing="ij")
    xx = xx.reshape(HW, 1)
    yy = yy.reshape(HW, 1)
    masks = jnp.stack([xx > 0, xx < W - 1, yy > 0, yy < H - 1]).astype(f32)

    x_flat = jnp.transpose(x, (0, 2, 3, 1)).reshape(B, HW, C)         # NHWC flat

    kernel = functools.partial(_unet_block_kernel, H=H, W=W, eps=eps)

    def const(shape):      # constants resident across the whole grid
        return pl.BlockSpec(shape, lambda b, r, _n=len(shape): (0,) * _n)

    def per_r(shape):      # one res block's weights, prefetched per r step
        return pl.BlockSpec((1,) + shape,
                            lambda b, r, _n=len(shape): (r,) + (0,) * _n)

    out = pl.pallas_call(
        kernel,
        out_shape=jax.ShapeDtypeStruct((B, HW, C), x.dtype),
        grid_spec=pltpu.PrefetchScalarGridSpec(
            num_scalar_prefetch=0,
            grid=(B, R),
            in_specs=[
                pl.BlockSpec((1, HW, C), lambda b, r: (b, 0, 0)),       # x
                pl.BlockSpec((1, 1, 1, C), lambda b, r: (r, b, 0, 0)),  # gamma
                pl.BlockSpec((1, 1, 1, C), lambda b, r: (r, b, 0, 0)),  # beta
                const((C, C)),                                          # p_avg
                const((4, HW, 1)),                                      # masks
                per_r((1, C)), per_r((1, C)),                           # gn1
                per_r((3, 3 * C, C)), per_r((1, C)),                    # conv1
                per_r((1, C)), per_r((1, C)),                           # gn2
                per_r((3, 3 * C, C)), per_r((1, C)),                    # conv2
                per_r((3, 3 * C, C)), per_r((1, C)),                    # conv_res
            ],
            out_specs=pl.BlockSpec((1, HW, C), lambda b, r: (b, 0, 0)),
        ),
        compiler_params=pltpu.CompilerParams(
            dimension_semantics=("parallel", "arbitrary")),
    )(x_flat, gamma, beta, p_avg, masks,
      gn1_w, gn1_b, conv1_w, conv1_b,
      gn2_w, gn2_b, conv2_w, conv2_b,
      convr_w, convr_b)

    return jnp.transpose(out.reshape(B, H, W, C), (0, 3, 1, 2))


# --------------------------- pure-JAX reference -----------------------------

def unet_block_no_attention_ref(x, clip_embeddings, params, *, groups, eps=1e-5):
    hi = jax.lax.Precision.HIGHEST

    def film(p, clip, img):
        C = img.shape[1]
        y = jnp.maximum(
            jnp.dot(clip, p["film_fc_w"].T, precision=hi) + p["film_fc_b"], 0.0)
        gamma = y[:, :C]
        beta = y[:, C:C + 1]        # single column, as in the PyTorch module
        return img * gamma[:, :, None, None] + beta[:, :, None, None]

    def group_norm(h, w, b):
        B, C, H, W = h.shape
        hg = h.reshape(B, groups, C // groups, H, W)
        mean = jnp.mean(hg, axis=(2, 3, 4), keepdims=True)
        var = jnp.mean((hg - mean) ** 2, axis=(2, 3, 4), keepdims=True)
        hn = ((hg - mean) / jnp.sqrt(var + eps)).reshape(B, C, H, W)
        return hn * w[None, :, None, None] + b[None, :, None, None]

    def conv3x3(h, w, b):
        out = jax.lax.conv_general_dilated(
            h, w, window_strides=(1, 1), padding="SAME",
            dimension_numbers=("NCHW", "OIHW", "NCHW"), precision=hi)
        return out + b[None, :, None, None]

    def silu(h):
        return h * jax.nn.sigmoid(h)

    for p in params:
        x = film(p, clip_embeddings, x)
        h = conv3x3(silu(group_norm(x, p["gn1_w"], p["gn1_b"])),
                    p["conv1_w"], p["conv1_b"])
        h = conv3x3(silu(group_norm(h, p["gn2_w"], p["gn2_b"])),
                    p["conv2_w"], p["conv2_b"])
        x = h + conv3x3(x, p["convr_w"], p["convr_b"])
    return x


# ----------------------------------- main ------------------------------------

if __name__ == "__main__":
    B, C, H, W = 2, 4, 16, 16
    CLIP_DIM = 32
    RES_BLOCKS = 2
    GROUPS = min(32, int(abs(C / 4)))        # matches the PyTorch module

    root = jax.random.PRNGKey(0)
    kx, kc, kp = jax.random.split(root, 3)
    x = jax.random.normal(kx, (B, C, H, W), jnp.float32)
    clip_emb = jax.random.normal(kc, (B, CLIP_DIM), jnp.float32)

    params = []
    for pkey in jax.random.split(kp, RES_BLOCKS):
        k = jax.random.split(pkey, 12)
        params.append({
            "film_fc_w": 0.1 * jax.random.normal(k[0], (2 * C, CLIP_DIM), jnp.float32),
            "film_fc_b": 0.1 * jax.random.normal(k[1], (2 * C,), jnp.float32),
            "gn1_w": 1.0 + 0.1 * jax.random.normal(k[2], (C,), jnp.float32),
            "gn1_b": 0.1 * jax.random.normal(k[3], (C,), jnp.float32),
            "conv1_w": 0.1 * jax.random.normal(k[4], (C, C, 3, 3), jnp.float32),
            "conv1_b": 0.1 * jax.random.normal(k[5], (C,), jnp.float32),
            "gn2_w": 1.0 + 0.1 * jax.random.normal(k[6], (C,), jnp.float32),
            "gn2_b": 0.1 * jax.random.normal(k[7], (C,), jnp.float32),
            "conv2_w": 0.1 * jax.random.normal(k[8], (C, C, 3, 3), jnp.float32),
            "conv2_b": 0.1 * jax.random.normal(k[9], (C,), jnp.float32),
            "convr_w": 0.1 * jax.random.normal(k[10], (C, C, 3, 3), jnp.float32),
            "convr_b": 0.1 * jax.random.normal(k[11], (C,), jnp.float32),
        })

    out = unet_block_no_attention(x, clip_emb, params, groups=GROUPS)
    out = jax.block_until_ready(out)

    ref = unet_block_no_attention_ref(x, clip_emb, params, groups=GROUPS)
    assert out.shape == (B, C, H, W)
    # Kernel matmuls use bf16 operands with f32 accumulation (per review);
    # the reference runs at HIGHEST precision.  Structural bugs (wrong tap,
    # wrong weight layout, roll direction) produce errors orders larger.
    err = jnp.max(jnp.abs(out - ref))
    assert jnp.allclose(out, ref, atol=5e-2, rtol=5e-2), f"max abs err {err}"

    print("KERNEL_OK")
</pallas_src>

<mosaic_0001>
module attributes {stable_mosaic.version = 11 : i64} {
  func.func @_unet_block_kernel(%arg0: i32, %arg1: i32, %arg2: memref<1x256x4xf32, #tpu.memory_space<vmem>>, %arg3: memref<1x1x1x4xf32, #tpu.memory_space<vmem>>, %arg4: memref<1x1x1x4xf32, #tpu.memory_space<vmem>>, %arg5: memref<4x4xf32, #tpu.memory_space<vmem>>, %arg6: memref<4x256x1xf32, #tpu.memory_space<vmem>>, %arg7: memref<1x1x4xf32, #tpu.memory_space<vmem>>, %arg8: memref<1x1x4xf32, #tpu.memory_space<vmem>>, %arg9: memref<1x3x12x4xbf16, #tpu.memory_space<vmem>>, %arg10: memref<1x1x4xf32, #tpu.memory_space<vmem>>, %arg11: memref<1x1x4xf32, #tpu.memory_space<vmem>>, %arg12: memref<1x1x4xf32, #tpu.memory_space<vmem>>, %arg13: memref<1x3x12x4xbf16, #tpu.memory_space<vmem>>, %arg14: memref<1x1x4xf32, #tpu.memory_space<vmem>>, %arg15: memref<1x3x12x4xbf16, #tpu.memory_space<vmem>>, %arg16: memref<1x1x4xf32, #tpu.memory_space<vmem>>, %arg17: memref<1x256x4xf32, #tpu.memory_space<vmem>>) attributes {dimension_semantics = [#tpu.dimension_semantics<parallel>, #tpu.dimension_semantics<arbitrary>], iteration_bounds = array<i64: 2, 2>, scalar_prefetch = 0 : i64, scratch_operands = 0 : i64, tpu.core_type = #tpu.core_type<tc>, window_params = [{transform_indices = @transform_0, window_bounds = array<i64: 1, 256, 4>}, {transform_indices = @transform_1, window_bounds = array<i64: 1, 1, 1, 4>}, {transform_indices = @transform_2, window_bounds = array<i64: 1, 1, 1, 4>}, {pipeline_mode = #tpu.pipeline_mode<synchronous>, transform_indices = @transform_3, window_bounds = array<i64: 4, 4>}, {pipeline_mode = #tpu.pipeline_mode<synchronous>, transform_indices = @transform_4, window_bounds = array<i64: 4, 256, 1>}, {transform_indices = @transform_5, window_bounds = array<i64: 1, 1, 4>}, {transform_indices = @transform_6, window_bounds = array<i64: 1, 1, 4>}, {transform_indices = @transform_7, window_bounds = array<i64: 1, 3, 12, 4>}, {transform_indices = @transform_8, window_bounds = array<i64: 1, 1, 4>}, {transform_indices = @transform_9, window_bounds = array<i64: 1, 1, 4>}, {transform_indices = @transform_10, window_bounds = array<i64: 1, 1, 4>}, {transform_indices = @transform_11, window_bounds = array<i64: 1, 3, 12, 4>}, {transform_indices = @transform_12, window_bounds = array<i64: 1, 1, 4>}, {transform_indices = @transform_13, window_bounds = array<i64: 1, 3, 12, 4>}, {transform_indices = @transform_14, window_bounds = array<i64: 1, 1, 4>}, {transform_indices = @transform_15, window_bounds = array<i64: 1, 256, 4>}]} {
    %c0_i32 = arith.constant 0 : i32
    %0 = arith.cmpi eq, %arg1, %c0_i32 : i32
    %1 = arith.extui %0 : i1 to i32
    %c0_i32_0 = arith.constant 0 : i32
    %2 = arith.cmpi ne, %1, %c0_i32_0 : i32
    scf.if %2 {
      %c0_114 = arith.constant 0 : index
      %c0_115 = arith.constant 0 : index
      %c0_116 = arith.constant 0 : index
      %183 = vector.load %arg2[%c0_114, %c0_115, %c0_116] : memref<1x256x4xf32, #tpu.memory_space<vmem>>, vector<1x256x4xf32>
      %c0_117 = arith.constant 0 : index
      %c0_118 = arith.constant 0 : index
      %c0_119 = arith.constant 0 : index
      %184 = vector.load %arg17[%c0_117, %c0_118, %c0_119] : memref<1x256x4xf32, #tpu.memory_space<vmem>>, vector<1x256x4xf32>
      tpu.vector_store %arg17[%c0_117, %c0_118, %c0_119], %183 {strides = array<i32>} : memref<1x256x4xf32, #tpu.memory_space<vmem>>, vector<1x256x4xf32>,
    } else {
    }
    %c0 = arith.constant 0 : index
    %c0_1 = arith.constant 0 : index
    %3 = vector.load %arg5[%c0, %c0_1] : memref<4x4xf32, #tpu.memory_space<vmem>>, vector<4x4xf32>
    %c0_2 = arith.constant 0 : index
    %c0_3 = arith.constant 0 : index
    %c0_4 = arith.constant 0 : index
    %4 = vector.load %arg6[%c0_2, %c0_3, %c0_4] : memref<4x256x1xf32, #tpu.memory_space<vmem>>, vector<1x256x1xf32>
    %5 = vector.shape_cast %4 : vector<1x256x1xf32> to vector<256x1xf32>
    %c1 = arith.constant 1 : index
    %c0_5 = arith.constant 0 : index
    %c0_6 = arith.constant 0 : index
    %6 = vector.load %arg6[%c1, %c0_5, %c0_6] : memref<4x256x1xf32, #tpu.memory_space<vmem>>, vector<1x256x1xf32>
    %7 = vector.shape_cast %6 : vector<1x256x1xf32> to vector<256x1xf32>
    %c2 = arith.constant 2 : index
    %c0_7 = arith.constant 0 : index
    %c0_8 = arith.constant 0 : index
    %8 = vector.load %arg6[%c2, %c0_7, %c0_8] : memref<4x256x1xf32, #tpu.memory_space<vmem>>, vector<1x256x1xf32>
    %9 = vector.shape_cast %8 : vector<1x256x1xf32> to vector<256x1xf32>
    %c3 = arith.constant 3 : index
    %c0_9 = arith.constant 0 : index
    %c0_10 = arith.constant 0 : index
    %10 = vector.load %arg6[%c3, %c0_9, %c0_10] : memref<4x256x1xf32, #tpu.memory_space<vmem>>, vector<1x256x1xf32>
    %11 = vector.shape_cast %10 : vector<1x256x1xf32> to vector<256x1xf32>
    %c0_11 = arith.constant 0 : index
    %c0_12 = arith.constant 0 : index
    %c0_13 = arith.constant 0 : index
    %12 = vector.load %arg17[%c0_11, %c0_12, %c0_13] : memref<1x256x4xf32, #tpu.memory_space<vmem>>, vector<1x256x4xf32>
    %13 = vector.shape_cast %12 : vector<1x256x4xf32> to vector<256x4xf32>
    %c0_14 = arith.constant 0 : index
    %c0_15 = arith.constant 0 : index
    %c0_16 = arith.constant 0 : index
    %c0_17 = arith.constant 0 : index
    %14 = vector.load %arg3[%c0_14, %c0_15, %c0_16, %c0_17] : memref<1x1x1x4xf32, #tpu.memory_space<vmem>>, vector<1x1x1x4xf32>
    %15 = vector.shape_cast %14 : vector<1x1x1x4xf32> to vector<1x4xf32>
    %16 = vector.broadcast %15 : vector<1x4xf32> to vector<256x4xf32>
    %17 = arith.mulf %13, %16 : vector<256x4xf32>
    %c0_18 = arith.constant 0 : index
    %c0_19 = arith.constant 0 : index
    %c0_20 = arith.constant 0 : index
    %c0_21 = arith.constant 0 : index
    %18 = vector.load %arg4[%c0_18, %c0_19, %c0_20, %c0_21] : memref<1x1x1x4xf32, #tpu.memory_space<vmem>>, vector<1x1x1x4xf32>
    %19 = vector.shape_cast %18 : vector<1x1x1x4xf32> to vector<1x4xf32>
    %20 = vector.broadcast %19 : vector<1x4xf32> to vector<256x4xf32>
    %21 = arith.addf %17, %20 : vector<256x4xf32>
    %cst = arith.constant dense<0.000000e+00> : vector<4xf32>
    %22 = vector.multi_reduction <add>, %21, %cst [0] : vector<256x4xf32> to vector<4xf32>
    %23 = vector.shape_cast %22 : vector<4xf32> to vector<1x4xf32>
    %24 = arith.mulf %21, %21 : vector<256x4xf32>
    %cst_22 = arith.constant dense<0.000000e+00> : vector<4xf32>
    %25 = vector.multi_reduction <add>, %24, %cst_22 [0] : vector<256x4xf32> to vector<4xf32>
    %26 = vector.shape_cast %25 : vector<4xf32> to vector<1x4xf32>
    %cst_23 = arith.constant dense<0.000000e+00> : vector<1x4xf32>
    %27 = tpu.matmul %23, %3, %cst_23 {dimension_numbers = #tpu.dot_dimension_numbers<[1], [0], [0], [1], [0, 0, 1, 1], [], []>} : vector<1x4xf32>, vector<4x4xf32>, vector<1x4xf32> -> vector<1x4xf32>
    %cst_24 = arith.constant dense<0.000000e+00> : vector<1x4xf32>
    %28 = tpu.matmul %26, %3, %cst_24 {dimension_numbers = #tpu.dot_dimension_numbers<[1], [0], [0], [1], [0, 0, 1, 1], [], []>} : vector<1x4xf32>, vector<4x4xf32>, vector<1x4xf32> -> vector<1x4xf32>
    %29 = arith.mulf %27, %27 : vector<1x4xf32>
    %30 = arith.subf %28, %29 : vector<1x4xf32>
    %cst_25 = arith.constant 0.000000e+00 : f32
    %31 = vector.broadcast %cst_25 : f32 to vector<1x4xf32>
    %32 = arith.maximumf %30, %31 : vector<1x4xf32>
    %cst_26 = arith.constant 9.99999974E-6 : f32
    %33 = vector.broadcast %cst_26 : f32 to vector<1x4xf32>
    %34 = arith.addf %32, %33 : vector<1x4xf32>
    %35 = math.rsqrt %34 : vector<1x4xf32>
    %c0_27 = arith.constant 0 : index
    %c0_28 = arith.constant 0 : index
    %c0_29 = arith.constant 0 : index
    %36 = vector.load %arg7[%c0_27, %c0_28, %c0_29] : memref<1x1x4xf32, #tpu.memory_space<vmem>>, vector<1x1x4xf32>
    %37 = vector.shape_cast %36 : vector<1x1x4xf32> to vector<1x4xf32>
    %38 = arith.mulf %35, %37 : vector<1x4xf32>
    %39 = vector.broadcast %27 : vector<1x4xf32> to vector<256x4xf32>
    %40 = arith.subf %21, %39 : vector<256x4xf32>
    %41 = vector.broadcast %38 : vector<1x4xf32> to vector<256x4xf32>
    %42 = arith.mulf %40, %41 : vector<256x4xf32>
    %c0_30 = arith.constant 0 : index
    %c0_31 = arith.constant 0 : index
    %c0_32 = arith.constant 0 : index
    %43 = vector.load %arg8[%c0_30, %c0_31, %c0_32] : memref<1x1x4xf32, #tpu.memory_space<vmem>>, vector<1x1x4xf32>
    %44 = vector.shape_cast %43 : vector<1x1x4xf32> to vector<1x4xf32>
    %45 = vector.broadcast %44 : vector<1x4xf32> to vector<256x4xf32>
    %46 = arith.addf %42, %45 : vector<256x4xf32>
    %cst_33 = arith.constant 0.000000e+00 : f32
    %47 = vector.broadcast %cst_33 : f32 to vector<256x4xf32>
    %48 = arith.subf %47, %46 : vector<256x4xf32>
    %49 = math.exp %48 : vector<256x4xf32>
    %cst_34 = arith.constant 1.000000e+00 : f32
    %50 = vector.broadcast %cst_34 : f32 to vector<256x4xf32>
    %51 = arith.addf %50, %49 : vector<256x4xf32>
    %52 = tpu.reciprocal %51 {approx = true} : vector<256x4xf32> -> vector<256x4xf32>
    %53 = arith.mulf %46, %52 : vector<256x4xf32>
    %c1_i32 = arith.constant 1 : i32
    %54 = tpu.dynamic_rotate %53 by %c1_i32 dim 0 : vector<256x4xf32>, i32 -> vector<256x4xf32>
    %55 = vector.broadcast %5 : vector<256x1xf32> to vector<256x4xf32>
    %56 = arith.mulf %55, %54 : vector<256x4xf32>
    %c255_i32 = arith.constant 255 : i32
    %57 = tpu.dynamic_rotate %53 by %c255_i32 dim 0 : vector<256x4xf32>, i32 -> vector<256x4xf32>
    %58 = vector.broadcast %7 : vector<256x1xf32> to vector<256x4xf32>
    %59 = arith.mulf %58, %57 : vector<256x4xf32>
    %60 = tpu.concatenate %56, %53, %59 in 1 : vector<256x4xf32>, vector<256x4xf32>, vector<256x4xf32> -> vector<256x12xf32>
    %c16_i32 = arith.constant 16 : i32
    %61 = tpu.dynamic_rotate %60 by %c16_i32 dim 0 : vector<256x12xf32>, i32 -> vector<256x12xf32>
    %62 = vector.broadcast %9 : vector<256x1xf32> to vector<256x12xf32>
    %63 = arith.mulf %62, %61 : vector<256x12xf32>
    %c240_i32 = arith.constant 240 : i32
    %64 = tpu.dynamic_rotate %60 by %c240_i32 dim 0 : vector<256x12xf32>, i32 -> vector<256x12xf32>
    %65 = vector.broadcast %11 : vector<256x1xf32> to vector<256x12xf32>
    %66 = arith.mulf %65, %64 : vector<256x12xf32>
    %67 = arith.truncf %63 : vector<256x12xf32> to vector<256x12xbf16>
    %c0_35 = arith.constant 0 : index
    %c0_36 = arith.constant 0 : index
    %c0_37 = arith.constant 0 : index
    %c0_38 = arith.constant 0 : index
    %68 = vector.load %arg9[%c0_35, %c0_36, %c0_37, %c0_38] : memref<1x3x12x4xbf16, #tpu.memory_space<vmem>>, vector<1x1x12x4xbf16>
    %69 = vector.shape_cast %68 : vector<1x1x12x4xbf16> to vector<12x4xbf16>
    %cst_39 = arith.constant dense<0.000000e+00> : vector<256x4xf32>
    %70 = tpu.matmul %67, %69, %cst_39 {dimension_numbers = #tpu.dot_dimension_numbers<[1], [0], [0], [1], [0, 0, 1, 1], [], []>} : vector<256x12xbf16>, vector<12x4xbf16>, vector<256x4xf32> -> vector<256x4xf32>
    %71 = arith.truncf %60 : vector<256x12xf32> to vector<256x12xbf16>
    %c0_40 = arith.constant 0 : index
    %c1_41 = arith.constant 1 : index
    %c0_42 = arith.constant 0 : index
    %c0_43 = arith.constant 0 : index
    %72 = vector.load %arg9[%c0_40, %c1_41, %c0_42, %c0_43] : memref<1x3x12x4xbf16, #tpu.memory_space<vmem>>, vector<1x1x12x4xbf16>
    %73 = vector.shape_cast %72 : vector<1x1x12x4xbf16> to vector<12x4xbf16>
    %cst_44 = arith.constant dense<0.000000e+00> : vector<256x4xf32>
    %74 = tpu.matmul %71, %73, %cst_44 {dimension_numbers = #tpu.dot_dimension_numbers<[1], [0], [0], [1], [0, 0, 1, 1], [], []>} : vector<256x12xbf16>, vector<12x4xbf16>, vector<256x4xf32> -> vector<256x4xf32>
    %75 = arith.addf %70, %74 : vector<256x4xf32>
    %76 = arith.truncf %66 : vector<256x12xf32> to vector<256x12xbf16>
    %c0_45 = arith.constant 0 : index
    %c2_46 = arith.constant 2 : index
    %c0_47 = arith.constant 0 : index
    %c0_48 = arith.constant 0 : index
    %77 = vector.load %arg9[%c0_45, %c2_46, %c0_47, %c0_48] : memref<1x3x12x4xbf16, #tpu.memory_space<vmem>>, vector<1x1x12x4xbf16>
    %78 = vector.shape_cast %77 : vector<1x1x12x4xbf16> to vector<12x4xbf16>
    %cst_49 = arith.constant dense<0.000000e+00> : vector<256x4xf32>
    %79 = tpu.matmul %76, %78, %cst_49 {dimension_numbers = #tpu.dot_dimension_numbers<[1], [0], [0], [1], [0, 0, 1, 1], [], []>} : vector<256x12xbf16>, vector<12x4xbf16>, vector<256x4xf32> -> vector<256x4xf32>
    %80 = arith.addf %75, %79 : vector<256x4xf32>
    %c0_50 = arith.constant 0 : index
    %c0_51 = arith.constant 0 : index
    %c0_52 = arith.constant 0 : index
    %81 = vector.load %arg10[%c0_50, %c0_51, %c0_52] : memref<1x1x4xf32, #tpu.memory_space<vmem>>, vector<1x1x4xf32>
    %82 = vector.shape_cast %81 : vector<1x1x4xf32> to vector<1x4xf32>
    %83 = vector.broadcast %82 : vector<1x4xf32> to vector<256x4xf32>
    %84 = arith.addf %80, %83 : vector<256x4xf32>
    %cst_53 = arith.constant dense<0.000000e+00> : vector<4xf32>
    %85 = vector.multi_reduction <add>, %84, %cst_53 [0] : vector<256x4xf32> to vector<4xf32>
    %86 = vector.shape_cast %85 : vector<4xf32> to vector<1x4xf32>
    %87 = arith.mulf %84, %84 : vector<256x4xf32>
    %cst_54 = arith.constant dense<0.000000e+00> : vector<4xf32>
    %88 = vector.multi_reduction <add>, %87, %cst_54 [0] : vector<256x4xf32> to vector<4xf32>
    %89 = vector.shape_cast %88 : vector<4xf32> to vector<1x4xf32>
    %cst_55 = arith.constant dense<0.000000e+00> : vector<1x4xf32>
    %90 = tpu.matmul %86, %3, %cst_55 {dimension_numbers = #tpu.dot_dimension_numbers<[1], [0], [0], [1], [0, 0, 1, 1], [], []>} : vector<1x4xf32>, vector<4x4xf32>, vector<1x4xf32> -> vector<1x4xf32>
    %cst_56 = arith.constant dense<0.000000e+00> : vector<1x4xf32>
    %91 = tpu.matmul %89, %3, %cst_56 {dimension_numbers = #tpu.dot_dimension_numbers<[1], [0], [0], [1], [0, 0, 1, 1], [], []>} : vector<1x4xf32>, vector<4x4xf32>, vector<1x4xf32> -> vector<1x4xf32>
    %92 = arith.mulf %90, %90 : vector<1x4xf32>
    %93 = arith.subf %91, %92 : vector<1x4xf32>
    %cst_57 = arith.constant 0.000000e+00 : f32
    %94 = vector.broadcast %cst_57 : f32 to vector<1x4xf32>
    %95 = arith.maximumf %93, %94 : vector<1x4xf32>
    %cst_58 = arith.constant 9.99999974E-6 : f32
    %96 = vector.broadcast %cst_58 : f32 to vector<1x4xf32>
    %97 = arith.addf %95, %96 : vector<1x4xf32>
    %98 = math.rsqrt %97 : vector<1x4xf32>
    %c0_59 = arith.constant 0 : index
    %c0_60 = arith.constant 0 : index
    %c0_61 = arith.constant 0 : index
    %99 = vector.load %arg11[%c0_59, %c0_60, %c0_61] : memref<1x1x4xf32, #tpu.memory_space<vmem>>, vector<1x1x4xf32>
    %100 = vector.shape_cast %99 : vector<1x1x4xf32> to vector<1x4xf32>
    %101 = arith.mulf %98, %100 : vector<1x4xf32>
    %102 = vector.broadcast %90 : vector<1x4xf32> to vector<256x4xf32>
    %103 = arith.subf %84, %102 : vector<256x4xf32>
    %104 = vector.broadcast %101 : vector<1x4xf32> to vector<256x4xf32>
    %105 = arith.mulf %103, %104 : vector<256x4xf32>
    %c0_62 = arith.constant 0 : index
    %c0_63 = arith.constant 0 : index
    %c0_64 = arith.constant 0 : index
    %106 = vector.load %arg12[%c0_62, %c0_63, %c0_64] : memref<1x1x4xf32, #tpu.memory_space<vmem>>, vector<1x1x4xf32>
    %107 = vector.shape_cast %106 : vector<1x1x4xf32> to vector<1x4xf32>
    %108 = vector.broadcast %107 : vector<1x4xf32> to vector<256x4xf32>
    %109 = arith.addf %105, %108 : vector<256x4xf32>
    %cst_65 = arith.constant 0.000000e+00 : f32
    %110 = vector.broadcast %cst_65 : f32 to vector<256x4xf32>
    %111 = arith.subf %110, %109 : vector<256x4xf32>
    %112 = math.exp %111 : vector<256x4xf32>
    %cst_66 = arith.constant 1.000000e+00 : f32
    %113 = vector.broadcast %cst_66 : f32 to vector<256x4xf32>
    %114 = arith.addf %113, %112 : vector<256x4xf32>
    %115 = tpu.reciprocal %114 {approx = true} : vector<256x4xf32> -> vector<256x4xf32>
    %116 = arith.mulf %109, %115 : vector<256x4xf32>
    %c1_i32_67 = arith.constant 1 : i32
    %117 = tpu.dynamic_rotate %116 by %c1_i32_67 dim 0 : vector<256x4xf32>, i32 -> vector<256x4xf32>
    %118 = vector.broadcast %5 : vector<256x1xf32> to vector<256x4xf32>
    %119 = arith.mulf %118, %117 : vector<256x4xf32>
    %c255_i32_68 = arith.constant 255 : i32
    %120 = tpu.dynamic_rotate %116 by %c255_i32_68 dim 0 : vector<256x4xf32>, i32 -> vector<256x4xf32>
    %121 = vector.broadcast %7 : vector<256x1xf32> to vector<256x4xf32>
    %122 = arith.mulf %121, %120 : vector<256x4xf32>
    %123 = tpu.concatenate %119, %116, %122 in 1 : vector<256x4xf32>, vector<256x4xf32>, vector<256x4xf32> -> vector<256x12xf32>
    %c16_i32_69 = arith.constant 16 : i32
    %124 = tpu.dynamic_rotate %123 by %c16_i32_69 dim 0 : vector<256x12xf32>, i32 -> vector<256x12xf32>
    %125 = vector.broadcast %9 : vector<256x1xf32> to vector<256x12xf32>
    %126 = arith.mulf %125, %124 : vector<256x12xf32>
    %c240_i32_70 = arith.constant 240 : i32
    %127 = tpu.dynamic_rotate %123 by %c240_i32_70 dim 0 : vector<256x12xf32>, i32 -> vector<256x12xf32>
    %128 = vector.broadcast %11 : vector<256x1xf32> to vector<256x12xf32>
    %129 = arith.mulf %128, %127 : vector<256x12xf32>
    %130 = arith.truncf %126 : vector<256x12xf32> to vector<256x12xbf16>
    %c0_71 = arith.constant 0 : index
    %c0_72 = arith.constant 0 : index
    %c0_73 = arith.constant 0 : index
    %c0_74 = arith.constant 0 : index
    %131 = vector.load %arg13[%c0_71, %c0_72, %c0_73, %c0_74] : memref<1x3x12x4xbf16, #tpu.memory_space<vmem>>, vector<1x1x12x4xbf16>
    %132 = vector.shape_cast %131 : vector<1x1x12x4xbf16> to vector<12x4xbf16>
    %cst_75 = arith.constant dense<0.000000e+00> : vector<256x4xf32>
    %133 = tpu.matmul %130, %132, %cst_75 {dimension_numbers = #tpu.dot_dimension_numbers<[1], [0], [0], [1], [0, 0, 1, 1], [], []>} : vector<256x12xbf16>, vector<12x4xbf16>, vector<256x4xf32> -> vector<256x4xf32>
    %134 = arith.truncf %123 : vector<256x12xf32> to vector<256x12xbf16>
    %c0_76 = arith.constant 0 : index
    %c1_77 = arith.constant 1 : index
    %c0_78 = arith.constant 0 : index
    %c0_79 = arith.constant 0 : index
    %135 = vector.load %arg13[%c0_76, %c1_77, %c0_78, %c0_79] : memref<1x3x12x4xbf16, #tpu.memory_space<vmem>>, vector<1x1x12x4xbf16>
    %136 = vector.shape_cast %135 : vector<1x1x12x4xbf16> to vector<12x4xbf16>
    %cst_80 = arith.constant dense<0.000000e+00> : vector<256x4xf32>
    %137 = tpu.matmul %134, %136, %cst_80 {dimension_numbers = #tpu.dot_dimension_numbers<[1], [0], [0], [1], [0, 0, 1, 1], [], []>} : vector<256x12xbf16>, vector<12x4xbf16>, vector<256x4xf32> -> vector<256x4xf32>
    %138 = arith.addf %133, %137 : vector<256x4xf32>
    %139 = arith.truncf %129 : vector<256x12xf32> to vector<256x12xbf16>
    %c0_81 = arith.constant 0 : index
    %c2_82 = arith.constant 2 : index
    %c0_83 = arith.constant 0 : index
    %c0_84 = arith.constant 0 : index
    %140 = vector.load %arg13[%c0_81, %c2_82, %c0_83, %c0_84] : memref<1x3x12x4xbf16, #tpu.memory_space<vmem>>, vector<1x1x12x4xbf16>
    %141 = vector.shape_cast %140 : vector<1x1x12x4xbf16> to vector<12x4xbf16>
    %cst_85 = arith.constant dense<0.000000e+00> : vector<256x4xf32>
    %142 = tpu.matmul %139, %141, %cst_85 {dimension_numbers = #tpu.dot_dimension_numbers<[1], [0], [0], [1], [0, 0, 1, 1], [], []>} : vector<256x12xbf16>, vector<12x4xbf16>, vector<256x4xf32> -> vector<256x4xf32>
    %143 = arith.addf %138, %142 : vector<256x4xf32>
    %c0_86 = arith.constant 0 : index
    %c0_87 = arith.constant 0 : index
    %c0_88 = arith.constant 0 : index
    %144 = vector.load %arg14[%c0_86, %c0_87, %c0_88] : memref<1x1x4xf32, #tpu.memory_space<vmem>>, vector<1x1x4xf32>
    %145 = vector.shape_cast %144 : vector<1x1x4xf32> to vector<1x4xf32>
    %146 = vector.broadcast %145 : vector<1x4xf32> to vector<256x4xf32>
    %147 = arith.addf %143, %146 : vector<256x4xf32>
    %c1_i32_89 = arith.constant 1 : i32
    %148 = tpu.dynamic_rotate %21 by %c1_i32_89 dim 0 : vector<256x4xf32>, i32 -> vector<256x4xf32>
    %149 = vector.broadcast %5 : vector<256x1xf32> to vector<256x4xf32>
    %150 = arith.mulf %149, %148 : vector<256x4xf32>
    %c255_i32_90 = arith.constant 255 : i32
    %151 = tpu.dynamic_rotate %21 by %c255_i32_90 dim 0 : vector<256x4xf32>, i32 -> vector<256x4xf32>
    %152 = vector.broadcast %7 : vector<256x1xf32> to vector<256x4xf32>
    %153 = arith.mulf %152, %151 : vector<256x4xf32>
    %154 = tpu.concatenate %150, %21, %153 in 1 : vector<256x4xf32>, vector<256x4xf32>, vector<256x4xf32> -> vector<256x12xf32>
    %c16_i32_91 = arith.constant 16 : i32
    %155 = tpu.dynamic_rotate %154 by %c16_i32_91 dim 0 : vector<256x12xf32>, i32 -> vector<256x12xf32>
    %156 = vector.broadcast %9 : vector<256x1xf32> to vector<256x12xf32>
    %157 = arith.mulf %156, %155 : vector<256x12xf32>
    %c240_i32_92 = arith.constant 240 : i32
    %158 = tpu.dynamic_rotate %154 by %c240_i32_92 dim 0 : vector<256x12xf32>, i32 -> vector<256x12xf32>
    %159 = vector.broadcast %11 : vector<256x1xf32> to vector<256x12xf32>
    %160 = arith.mulf %159, %158 : vector<256x12xf32>
    %161 = arith.truncf %157 : vector<256x12xf32> to vector<256x12xbf16>
    %c0_93 = arith.constant 0 : index
    %c0_94 = arith.constant 0 : index
    %c0_95 = arith.constant 0 : index
    %c0_96 = arith.constant 0 : index
    %162 = vector.load %arg15[%c0_93, %c0_94, %c0_95, %c0_96] : memref<1x3x12x4xbf16, #tpu.memory_space<vmem>>, vector<1x1x12x4xbf16>
    %163 = vector.shape_cast %162 : vector<1x1x12x4xbf16> to vector<12x4xbf16>
    %cst_97 = arith.constant dense<0.000000e+00> : vector<256x4xf32>
    %164 = tpu.matmul %161, %163, %cst_97 {dimension_numbers = #tpu.dot_dimension_numbers<[1], [0], [0], [1], [0, 0, 1, 1], [], []>} : vector<256x12xbf16>, vector<12x4xbf16>, vector<256x4xf32> -> vector<256x4xf32>
    %165 = arith.truncf %154 : vector<256x12xf32> to vector<256x12xbf16>
    %c0_98 = arith.constant 0 : index
    %c1_99 = arith.constant 1 : index
    %c0_100 = arith.constant 0 : index
    %c0_101 = arith.constant 0 : index
    %166 = vector.load %arg15[%c0_98, %c1_99, %c0_100, %c0_101] : memref<1x3x12x4xbf16, #tpu.memory_space<vmem>>, vector<1x1x12x4xbf16>
    %167 = vector.shape_cast %166 : vector<1x1x12x4xbf16> to vector<12x4xbf16>
    %cst_102 = arith.constant dense<0.000000e+00> : vector<256x4xf32>
    %168 = tpu.matmul %165, %167, %cst_102 {dimension_numbers = #tpu.dot_dimension_numbers<[1], [0], [0], [1], [0, 0, 1, 1], [], []>} : vector<256x12xbf16>, vector<12x4xbf16>, vector<256x4xf32> -> vector<256x4xf32>
    %169 = arith.addf %164, %168 : vector<256x4xf32>
    %170 = arith.truncf %160 : vector<256x12xf32> to vector<256x12xbf16>
    %c0_103 = arith.constant 0 : index
    %c2_104 = arith.constant 2 : index
    %c0_105 = arith.constant 0 : index
    %c0_106 = arith.constant 0 : index
    %171 = vector.load %arg15[%c0_103, %c2_104, %c0_105, %c0_106] : memref<1x3x12x4xbf16, #tpu.memory_space<vmem>>, vector<1x1x12x4xbf16>
    %172 = vector.shape_cast %171 : vector<1x1x12x4xbf16> to vector<12x4xbf16>
    %cst_107 = arith.constant dense<0.000000e+00> : vector<256x4xf32>
    %173 = tpu.matmul %170, %172, %cst_107 {dimension_numbers = #tpu.dot_dimension_numbers<[1], [0], [0], [1], [0, 0, 1, 1], [], []>} : vector<256x12xbf16>, vector<12x4xbf16>, vector<256x4xf32> -> vector<256x4xf32>
    %174 = arith.addf %169, %173 : vector<256x4xf32>
    %c0_108 = arith.constant 0 : index
    %c0_109 = arith.constant 0 : index
    %c0_110 = arith.constant 0 : index
    %175 = vector.load %arg16[%c0_108, %c0_109, %c0_110] : memref<1x1x4xf32, #tpu.memory_space<vmem>>, vector<1x1x4xf32>
    %176 = vector.shape_cast %175 : vector<1x1x4xf32> to vector<1x4xf32>
    %177 = vector.broadcast %176 : vector<1x4xf32> to vector<256x4xf32>
    %178 = arith.addf %174, %177 : vector<256x4xf32>
    %179 = arith.addf %147, %178 : vector<256x4xf32>
    %c0_111 = arith.constant 0 : index
    %c0_112 = arith.constant 0 : index
    %c0_113 = arith.constant 0 : index
    %180 = vector.load %arg17[%c0_111, %c0_112, %c0_113] : memref<1x256x4xf32, #tpu.memory_space<vmem>>, vector<1x256x4xf32>
    %181 = vector.shape_cast %180 : vector<1x256x4xf32> to vector<256x4xf32>
    %182 = vector.shape_cast %179 : vector<256x4xf32> to vector<1x256x4xf32>
    tpu.vector_store %arg17[%c0_111, %c0_112, %c0_113], %182 {strides = array<i32>} : memref<1x256x4xf32, #tpu.memory_space<vmem>>, vector<1x256x4xf32>,
    return
  }
  func.func @transform_0(%arg0: i32, %arg1: i32) -> (i32, i32, i32) {
    %c0_i32 = arith.constant 0 : i32
    %c0_i32_0 = arith.constant 0 : i32
    %c0_i32_1 = arith.constant 0 : i32
    return %arg0, %c0_i32, %c0_i32_0 : i32, i32, i32
  }
  func.func @transform_1(%arg0: i32, %arg1: i32) -> (i32, i32, i32, i32) {
    %c0_i32 = arith.constant 0 : i32
    %c0_i32_0 = arith.constant 0 : i32
    %c0_i32_1 = arith.constant 0 : i32
    return %arg1, %arg0, %c0_i32, %c0_i32_0 : i32, i32, i32, i32
  }
  func.func @transform_2(%arg0: i32, %arg1: i32) -> (i32, i32, i32, i32) {
    %c0_i32 = arith.constant 0 : i32
    %c0_i32_0 = arith.constant 0 : i32
    %c0_i32_1 = arith.constant 0 : i32
    return %arg1, %arg0, %c0_i32, %c0_i32_0 : i32, i32, i32, i32
  }
  func.func @transform_3(%arg0: i32, %arg1: i32) -> (i32, i32) {
    %c0_i32 = arith.constant 0 : i32
    %c0_i32_0 = arith.constant 0 : i32
    %c0_i32_1 = arith.constant 0 : i32
    return %c0_i32, %c0_i32_0 : i32, i32
  }
  func.func @transform_4(%arg0: i32, %arg1: i32) -> (i32, i32, i32) {
    %c0_i32 = arith.constant 0 : i32
    %c0_i32_0 = arith.constant 0 : i32
    %c0_i32_1 = arith.constant 0 : i32
    %c0_i32_2 = arith.constant 0 : i32
    return %c0_i32, %c0_i32_0, %c0_i32_1 : i32, i32, i32
  }
  func.func @transform_5(%arg0: i32, %arg1: i32) -> (i32, i32, i32) {
    %c0_i32 = arith.constant 0 : i32
    %c0_i32_0 = arith.constant 0 : i32
    %c0_i32_1 = arith.constant 0 : i32
    return %arg1, %c0_i32, %c0_i32_0 : i32, i32, i32
  }
  func.func @transform_6(%arg0: i32, %arg1: i32) -> (i32, i32, i32) {
    %c0_i32 = arith.constant 0 : i32
    %c0_i32_0 = arith.constant 0 : i32
    %c0_i32_1 = arith.constant 0 : i32
    return %arg1, %c0_i32, %c0_i32_0 : i32, i32, i32
  }
  func.func @transform_7(%arg0: i32, %arg1: i32) -> (i32, i32, i32, i32) {
    %c0_i32 = arith.constant 0 : i32
    %c0_i32_0 = arith.constant 0 : i32
    %c0_i32_1 = arith.constant 0 : i32
    %c0_i32_2 = arith.constant 0 : i32
    return %arg1, %c0_i32, %c0_i32_0, %c0_i32_1 : i32, i32, i32, i32
  }
  func.func @transform_8(%arg0: i32, %arg1: i32) -> (i32, i32, i32) {
    %c0_i32 = arith.constant 0 : i32
    %c0_i32_0 = arith.constant 0 : i32
    %c0_i32_1 = arith.constant 0 : i32
    return %arg1, %c0_i32, %c0_i32_0 : i32, i32, i32
  }
  func.func @transform_9(%arg0: i32, %arg1: i32) -> (i32, i32, i32) {
    %c0_i32 = arith.constant 0 : i32
    %c0_i32_0 = arith.constant 0 : i32
    %c0_i32_1 = arith.constant 0 : i32
    return %arg1, %c0_i32, %c0_i32_0 : i32, i32, i32
  }
  func.func @transform_10(%arg0: i32, %arg1: i32) -> (i32, i32, i32) {
    %c0_i32 = arith.constant 0 : i32
    %c0_i32_0 = arith.constant 0 : i32
    %c0_i32_1 = arith.constant 0 : i32
    return %arg1, %c0_i32, %c0_i32_0 : i32, i32, i32
  }
  func.func @transform_11(%arg0: i32, %arg1: i32) -> (i32, i32, i32, i32) {
    %c0_i32 = arith.constant 0 : i32
    %c0_i32_0 = arith.constant 0 : i32
    %c0_i32_1 = arith.constant 0 : i32
    %c0_i32_2 = arith.constant 0 : i32
    return %arg1, %c0_i32, %c0_i32_0, %c0_i32_1 : i32, i32, i32, i32
  }
  func.func @transform_12(%arg0: i32, %arg1: i32) -> (i32, i32, i32) {
    %c0_i32 = arith.constant 0 : i32
    %c0_i32_0 = arith.constant 0 : i32
    %c0_i32_1 = arith.constant 0 : i32
    return %arg1, %c0_i32, %c0_i32_0 : i32, i32, i32
  }
  func.func @transform_13(%arg0: i32, %arg1: i32) -> (i32, i32, i32, i32) {
    %c0_i32 = arith.constant 0 : i32
    %c0_i32_0 = arith.constant 0 : i32
    %c0_i32_1 = arith.constant 0 : i32
    %c0_i32_2 = arith.constant 0 : i32
    return %arg1, %c0_i32, %c0_i32_0, %c0_i32_1 : i32, i32, i32, i32
  }
  func.func @transform_14(%arg0: i32, %arg1: i32) -> (i32, i32, i32) {
    %c0_i32 = arith.constant 0 : i32
    %c0_i32_0 = arith.constant 0 : i32
    %c0_i32_1 = arith.constant 0 : i32
    return %arg1, %c0_i32, %c0_i32_0 : i32, i32, i32
  }
  func.func @transform_15(%arg0: i32, %arg1: i32) -> (i32, i32, i32) {
    %c0_i32 = arith.constant 0 : i32
    %c0_i32_0 = arith.constant 0 : i32
    %c0_i32_1 = arith.constant 0 : i32
    return %arg0, %c0_i32, %c0_i32_0 : i32, i32, i32
  }
}

</mosaic_0001>

<llo_original>
// kernel: tpu_custom_call.1
$region0: #{tpu_custom_call.1}
  #allocation0 [shape = 'u32[]', space=smem, size = 0x4, offset = 0x4, fixed_abs, tag = 'smem constant byte address 0x4 - core index']
  #allocation1 [shape = 'u32[144,128]{1,0:T(1,128)}', space=vmem, size = 0x12000, scoped, tag = 'internal scratch']
  %s0 = inlined_call_operand.vmem [shape: f32[2,256,4], index: 0, kind: input, shape index: {}]
  %s1 = inlined_call_operand.vmem [shape: f32[2,2,1,4], index: 1, kind: input, shape index: {}]
  %s2 = inlined_call_operand.vmem [shape: f32[2,2,1,4], index: 2, kind: input, shape index: {}]
  %s3 = inlined_call_operand.vmem [shape: f32[4,4], index: 3, kind: input, shape index: {}]
  %s4 = inlined_call_operand.vmem [shape: f32[4,256,1], index: 4, kind: input, shape index: {}]
  %s5 = inlined_call_operand.vmem [shape: f32[2,1,4], index: 5, kind: input, shape index: {}]
  %s6 = inlined_call_operand.vmem [shape: f32[2,1,4], index: 6, kind: input, shape index: {}]
  %s7 = inlined_call_operand.vmem [shape: bf16[2,3,12,4], index: 7, kind: input, shape index: {}]
  %s8 = inlined_call_operand.vmem [shape: f32[2,1,4], index: 8, kind: input, shape index: {}]
  %s9 = inlined_call_operand.vmem [shape: f32[2,1,4], index: 9, kind: input, shape index: {}]
  %s10 = inlined_call_operand.vmem [shape: f32[2,1,4], index: 10, kind: input, shape index: {}]
  %s11 = inlined_call_operand.vmem [shape: bf16[2,3,12,4], index: 11, kind: input, shape index: {}]
  %s12 = inlined_call_operand.vmem [shape: f32[2,1,4], index: 12, kind: input, shape index: {}]
  %s13 = inlined_call_operand.vmem [shape: bf16[2,3,12,4], index: 13, kind: input, shape index: {}]
  %s14 = inlined_call_operand.vmem [shape: f32[2,1,4], index: 14, kind: input, shape index: {}]
  %s15 = inlined_call_operand.vmem [shape: f32[2,256,4], index: 15, kind: output, shape index: {}]
  %s16 = sld [smem:[#allocation0]]
  $region97: #{tpu_custom_call.1} parent=0
    _
  %s18 = ssub.s32 1, %s16
  %s19 = scalar_select 0, %s18, %s16
  loop: start=0, step=1, limit=6
  $region2: #{tpu_custom_call.1} parent=0 // loop_pre_header
    _
  $region3: #{tpu_custom_call.1} parent=0 // loop_header
    %s21 = sphi 0, %s25
    %p22 = scmp.ge.s32.totalorder %s21, 6
    %s28 = sphi 0, %s40
    %s29 = sphi 0, %s36
    %s30 = sphi 0, %s28
    %s31 = sphi 0, %s29
    %s32 = sphi 0, %s30
    %s33 = sphi 0, %s31
    %s43 = sphi 0, %s45
    %s46 = sphi 0, %s43
    %s47 = sphi 0, %s46
    %s63 = sphi 0, %s47
    %s71 = sphi 0, %s73
    %s74 = sphi 0, %s71
    %s75 = sphi 0, %s74
    %s91 = sphi 0, %s75
    %s99 = sphi 0, %s101
    %s102 = sphi 0, %s99
    %s103 = sphi 0, %s102
    %s119 = sphi 0, %s103
    %s123 = sphi 0, %s123
    %s125 = sphi 0, %s123
    %s126 = sphi 0, %s125
    %s140 = sphi 0, %s126
    %s144 = sphi 0, %s144
    %s146 = sphi 0, %s144
    %s147 = sphi 0, %s146
    %s161 = sphi 0, %s147
    %s167 = sphi 0, %s169
    %s170 = sphi 0, %s167
    %s171 = sphi 0, %s170
    %s187 = sphi 0, %s171
    %s193 = sphi 0, %s195
    %s196 = sphi 0, %s193
    %s197 = sphi 0, %s196
    %s213 = sphi 0, %s197
    %s219 = sphi 0, %s221
    %s222 = sphi 0, %s219
    %s223 = sphi 0, %s222
    %s239 = sphi 0, %s223
    %s245 = sphi 0, %s247
    %s248 = sphi 0, %s245
    %s249 = sphi 0, %s248
    %s265 = sphi 0, %s249
    %s271 = sphi 0, %s273
    %s274 = sphi 0, %s271
    %s275 = sphi 0, %s274
    %s291 = sphi 0, %s275
    %s297 = sphi 0, %s299
    %s300 = sphi 0, %s297
    %s301 = sphi 0, %s300
    %s317 = sphi 0, %s301
    %s323 = sphi 0, %s325
    %s326 = sphi 0, %s323
    %s327 = sphi 0, %s326
    %s343 = sphi 0, %s327
    %s349 = sphi 0, %s351
    %s352 = sphi 0, %s349
    %s353 = sphi 0, %s352
    %s369 = sphi 0, %s353
    %s375 = sphi 0, %s377
    %s378 = sphi 0, %s375
    %s379 = sphi 0, %s378
    %s395 = sphi 0, %s379
    %s401 = sphi 0, %s403
    %s404 = sphi 0, %s401
    %s405 = sphi 0, %s404
    %s421 = sphi 0, %s405
    %s427 = sphi 0, %s429
    %s430 = sphi 0, %s427
    %s431 = sphi 0, %s430
    %s447 = sphi 0, %s431
  $region4: #{tpu_custom_call.1} parent=0 // loop_header_branch
    %24 = sbr.rel (%p22) target = $region8
  $region5: #{tpu_custom_call.1} parent=0 // loop_body
    %s26 = ssub.s32 %s21, 1
    %s27 = ssub.s32 %s21, 2
    %s34 = sadd.s32 1, %s29
    %p35 = scmp.ge.s32.totalorder %s34, 2
    %s36 = scalar_select %p35, 0, %s34
    %s37 = sadd.s32 1, %s28
    %s38 = scalar_select %p35, %s37, %s28
    %p39 = scmp.ge.s32.totalorder %s38, 2
    %s40 = scalar_select %p39, 0, %s38
    %s41 = ssub.s32 %s28, %s40
    %p42 = scmp.eq.s32.totalorder %s41, 0
    %s44 = sadd.s32 %s43, 1
    %s45 = scalar_select %p42, %s43, %s44
    %p48 = pneg %p42
    %p49 = scmp.eq.s32.totalorder %s21, 3
    %p50 = por %p48, %p49
    %p51 = scmp.ne.s32.totalorder %s43, %s46
    %p52 = scmp.eq.s32.totalorder %s21, 0
    %p53 = por %p51, %p52
    %p54 = scmp.ne.s32.totalorder %s43, %s46
    %p55 = scmp.eq.s32.totalorder %s26, 3
    %p56 = por %p54, %p55
    %p57 = scmp.ne.s32.totalorder %s46, %s47
    %p58 = scmp.eq.s32.totalorder %s26, 0
    %p59 = por %p57, %p58
    %p60 = scmp.ne.s32.totalorder %s46, %s47
    %p61 = scmp.eq.s32.totalorder %s27, 3
    %p62 = por %p60, %p61
    %p64 = scmp.ne.s32.totalorder %s47, %s63
    %p65 = scmp.eq.s32.totalorder %s27, 0
    %p66 = por %p64, %p65
    %s67 = ssub.s32 %s29, %s36
    %s68 = ssub.s32 %s28, %s40
    %s69 = sor.u32 %s67, %s68
    %p70 = scmp.eq.s32.totalorder %s69, 0
    %s72 = sadd.s32 %s71, 1
    %s73 = scalar_select %p70, %s71, %s72
    %p76 = pneg %p70
    %p77 = scmp.eq.s32.totalorder %s21, 3
    %p78 = por %p76, %p77
    %p79 = scmp.ne.s32.totalorder %s71, %s74
    %p80 = scmp.eq.s32.totalorder %s21, 0
    %p81 = por %p79, %p80
    %p82 = scmp.ne.s32.totalorder %s71, %s74
    %p83 = scmp.eq.s32.totalorder %s26, 3
    %p84 = por %p82, %p83
    %p85 = scmp.ne.s32.totalorder %s74, %s75
    %p86 = scmp.eq.s32.totalorder %s26, 0
    %p87 = por %p85, %p86
    %p88 = scmp.ne.s32.totalorder %s74, %s75
    %p89 = scmp.eq.s32.totalorder %s27, 3
    %p90 = por %p88, %p89
    %p92 = scmp.ne.s32.totalorder %s75, %s91
    %p93 = scmp.eq.s32.totalorder %s27, 0
    %p94 = por %p92, %p93
    %s95 = ssub.s32 %s29, %s36
    %s96 = ssub.s32 %s28, %s40
    %s97 = sor.u32 %s95, %s96
    %p98 = scmp.eq.s32.totalorder %s97, 0
    %s100 = sadd.s32 %s99, 1
    %s101 = scalar_select %p98, %s99, %s100
    %p104 = pneg %p98
    %p105 = scmp.eq.s32.totalorder %s21, 3
    %p106 = por %p104, %p105
    %p107 = scmp.ne.s32.totalorder %s99, %s102
    %p108 = scmp.eq.s32.totalorder %s21, 0
    %p109 = por %p107, %p108
    %p110 = scmp.ne.s32.totalorder %s99, %s102
    %p111 = scmp.eq.s32.totalorder %s26, 3
    %p112 = por %p110, %p111
    %p113 = scmp.ne.s32.totalorder %s102, %s103
    %p114 = scmp.eq.s32.totalorder %s26, 0
    %p115 = por %p113, %p114
    %p116 = scmp.ne.s32.totalorder %s102, %s103
    %p117 = scmp.eq.s32.totalorder %s27, 3
    %p118 = por %p116, %p117
    %p120 = scmp.ne.s32.totalorder %s103, %s119
    %p121 = scmp.eq.s32.totalorder %s27, 0
    %p122 = por %p120, %p121
    %s124 = sadd.s32 %s123, 1
    %p127 = scmp.eq.s32.totalorder %s21, 3
    %p128 = scmp.ne.s32.totalorder %s123, %s125
    %p129 = scmp.eq.s32.totalorder %s21, 0
    %p130 = por %p128, %p129
    %p131 = scmp.ne.s32.totalorder %s123, %s125
    %p132 = scmp.eq.s32.totalorder %s26, 3
    %p133 = por %p131, %p132
    %p134 = scmp.ne.s32.totalorder %s125, %s126
    %p135 = scmp.eq.s32.totalorder %s26, 0
    %p136 = por %p134, %p135
    %p137 = scmp.ne.s32.totalorder %s125, %s126
    %p138 = scmp.eq.s32.totalorder %s27, 3
    %p139 = por %p137, %p138
    %p141 = scmp.ne.s32.totalorder %s126, %s140
    %p142 = scmp.eq.s32.totalorder %s27, 0
    %p143 = por %p141, %p142
    %s145 = sadd.s32 %s144, 1
    %p148 = scmp.eq.s32.totalorder %s21, 3
    %p149 = scmp.ne.s32.totalorder %s144, %s146
    %p150 = scmp.eq.s32.totalorder %s21, 0
    %p151 = por %p149, %p150
    %p152 = scmp.ne.s32.totalorder %s144, %s146
    %p153 = scmp.eq.s32.totalorder %s26, 3
    %p154 = por %p152, %p153
    %p155 = scmp.ne.s32.totalorder %s146, %s147
    %p156 = scmp.eq.s32.totalorder %s26, 0
    %p157 = por %p155, %p156
    %p158 = scmp.ne.s32.totalorder %s146, %s147
    %p159 = scmp.eq.s32.totalorder %s27, 3
    %p160 = por %p158, %p159
    %p162 = scmp.ne.s32.totalorder %s147, %s161
    %p163 = scmp.eq.s32.totalorder %s27, 0
    %p164 = por %p162, %p163
    %s165 = ssub.s32 %s29, %s36
    %p166 = scmp.eq.s32.totalorder %s165, 0
    %s168 = sadd.s32 %s167, 1
    %s169 = scalar_select %p166, %s167, %s168
    %p172 = pneg %p166
    %p173 = scmp.eq.s32.totalorder %s21, 3
    %p174 = por %p172, %p173
    %p175 = scmp.ne.s32.totalorder %s167, %s170
    %p176 = scmp.eq.s32.totalorder %s21, 0
    %p177 = por %p175, %p176
    %p178 = scmp.ne.s32.totalorder %s167, %s170
    %p179 = scmp.eq.s32.totalorder %s26, 3
    %p180 = por %p178, %p179
    %p181 = scmp.ne.s32.totalorder %s170, %s171
    %p182 = scmp.eq.s32.totalorder %s26, 0
    %p183 = por %p181, %p182
    %p184 = scmp.ne.s32.totalorder %s170, %s171
    %p185 = scmp.eq.s32.totalorder %s27, 3
    %p186 = por %p184, %p185
    %p188 = scmp.ne.s32.totalorder %s171, %s187
    %p189 = scmp.eq.s32.totalorder %s27, 0
    %p190 = por %p188, %p189
    %s191 = ssub.s32 %s29, %s36
    %p192 = scmp.eq.s32.totalorder %s191, 0
    %s194 = sadd.s32 %s193, 1
    %s195 = scalar_select %p192, %s193, %s194
    %p198 = pneg %p192
    %p199 = scmp.eq.s32.totalorder %s21, 3
    %p200 = por %p198, %p199
    %p201 = scmp.ne.s32.totalorder %s193, %s196
    %p202 = scmp.eq.s32.totalorder %s21, 0
    %p203 = por %p201, %p202
    %p204 = scmp.ne.s32.totalorder %s193, %s196
    %p205 = scmp.eq.s32.totalorder %s26, 3
    %p206 = por %p204, %p205
    %p207 = scmp.ne.s32.totalorder %s196, %s197
    %p208 = scmp.eq.s32.totalorder %s26, 0
    %p209 = por %p207, %p208
    %p210 = scmp.ne.s32.totalorder %s196, %s197
    %p211 = scmp.eq.s32.totalorder %s27, 3
    %p212 = por %p210, %p211
    %p214 = scmp.ne.s32.totalorder %s197, %s213
    %p215 = scmp.eq.s32.totalorder %s27, 0
    %p216 = por %p214, %p215
    %s217 = ssub.s32 %s29, %s36
    %p218 = scmp.eq.s32.totalorder %s217, 0
    %s220 = sadd.s32 %s219, 1
    %s221 = scalar_select %p218, %s219, %s220
    %p224 = pneg %p218
    %p225 = scmp.eq.s32.totalorder %s21, 3
    %p226 = por %p224, %p225
    %p227 = scmp.ne.s32.totalorder %s219, %s222
    %p228 = scmp.eq.s32.totalorder %s21, 0
    %p229 = por %p227, %p228
    %p230 = scmp.ne.s32.totalorder %s219, %s222
    %p231 = scmp.eq.s32.totalorder %s26, 3
    %p232 = por %p230, %p231
    %p233 = scmp.ne.s32.totalorder %s222, %s223
    %p234 = scmp.eq.s32.totalorder %s26, 0
    %p235 = por %p233, %p234
    %p236 = scmp.ne.s32.totalorder %s222, %s223
    %p237 = scmp.eq.s32.totalorder %s27, 3
    %p238 = por %p236, %p237
    %p240 = scmp.ne.s32.totalorder %s223, %s239
    %p241 = scmp.eq.s32.totalorder %s27, 0
    %p242 = por %p240, %p241
    %s243 = ssub.s32 %s29, %s36
    %p244 = scmp.eq.s32.totalorder %s243, 0
    %s246 = sadd.s32 %s245, 1
    %s247 = scalar_select %p244, %s245, %s246
    %p250 = pneg %p244
    %p251 = scmp.eq.s32.totalorder %s21, 3
    %p252 = por %p250, %p251
    %p253 = scmp.ne.s32.totalorder %s245, %s248
    %p254 = scmp.eq.s32.totalorder %s21, 0
    %p255 = por %p253, %p254
    %p256 = scmp.ne.s32.totalorder %s245, %s248
    %p257 = scmp.eq.s32.totalorder %s26, 3
    %p258 = por %p256, %p257
    %p259 = scmp.ne.s32.totalorder %s248, %s249
    %p260 = scmp.eq.s32.totalorder %s26, 0
    %p261 = por %p259, %p260
    %p262 = scmp.ne.s32.totalorder %s248, %s249
    %p263 = scmp.eq.s32.totalorder %s27, 3
    %p264 = por %p262, %p263
    %p266 = scmp.ne.s32.totalorder %s249, %s265
    %p267 = scmp.eq.s32.totalorder %s27, 0
    %p268 = por %p266, %p267
    %s269 = ssub.s32 %s29, %s36
    %p270 = scmp.eq.s32.totalorder %s269, 0
    %s272 = sadd.s32 %s271, 1
    %s273 = scalar_select %p270, %s271, %s272
    %p276 = pneg %p270
    %p277 = scmp.eq.s32.totalorder %s21, 3
    %p278 = por %p276, %p277
    %p279 = scmp.ne.s32.totalorder %s271, %s274
    %p280 = scmp.eq.s32.totalorder %s21, 0
    %p281 = por %p279, %p280
    %p282 = scmp.ne.s32.totalorder %s271, %s274
    %p283 = scmp.eq.s32.totalorder %s26, 3
    %p284 = por %p282, %p283
    %p285 = scmp.ne.s32.totalorder %s274, %s275
    %p286 = scmp.eq.s32.totalorder %s26, 0
    %p287 = por %p285, %p286
    %p288 = scmp.ne.s32.totalorder %s274, %s275
    %p289 = scmp.eq.s32.totalorder %s27, 3
    %p290 = por %p288, %p289
    %p292 = scmp.ne.s32.totalorder %s275, %s291
    %p293 = scmp.eq.s32.totalorder %s27, 0
    %p294 = por %p292, %p293
    %s295 = ssub.s32 %s29, %s36
    %p296 = scmp.eq.s32.totalorder %s295, 0
    %s298 = sadd.s32 %s297, 1
    %s299 = scalar_select %p296, %s297, %s298
    %p302 = pneg %p296
    %p303 = scmp.eq.s32.totalorder %s21, 3
    %p304 = por %p302, %p303
    %p305 = scmp.ne.s32.totalorder %s297, %s300
    %p306 = scmp.eq.s32.totalorder %s21, 0
    %p307 = por %p305, %p306
    %p308 = scmp.ne.s32.totalorder %s297, %s300
    %p309 = scmp.eq.s32.totalorder %s26, 3
    %p310 = por %p308, %p309
    %p311 = scmp.ne.s32.totalorder %s300, %s301
    %p312 = scmp.eq.s32.totalorder %s26, 0
    %p313 = por %p311, %p312
    %p314 = scmp.ne.s32.totalorder %s300, %s301
    %p315 = scmp.eq.s32.totalorder %s27, 3
    %p316 = por %p314, %p315
    %p318 = scmp.ne.s32.totalorder %s301, %s317
    %p319 = scmp.eq.s32.totalorder %s27, 0
    %p320 = por %p318, %p319
    %s321 = ssub.s32 %s29, %s36
    %p322 = scmp.eq.s32.totalorder %s321, 0
    %s324 = sadd.s32 %s323, 1
    %s325 = scalar_select %p322, %s323, %s324
    %p328 = pneg %p322
    %p329 = scmp.eq.s32.totalorder %s21, 3
    %p330 = por %p328, %p329
    %p331 = scmp.ne.s32.totalorder %s323, %s326
    %p332 = scmp.eq.s32.totalorder %s21, 0
    %p333 = por %p331, %p332
    %p334 = scmp.ne.s32.totalorder %s323, %s326
    %p335 = scmp.eq.s32.totalorder %s26, 3
    %p336 = por %p334, %p335
    %p337 = scmp.ne.s32.totalorder %s326, %s327
    %p338 = scmp.eq.s32.totalorder %s26, 0
    %p339 = por %p337, %p338
    %p340 = scmp.ne.s32.totalorder %s326, %s327
    %p341 = scmp.eq.s32.totalorder %s27, 3
    %p342 = por %p340, %p341
    %p344 = scmp.ne.s32.totalorder %s327, %s343
    %p345 = scmp.eq.s32.totalorder %s27, 0
    %p346 = por %p344, %p345
    %s347 = ssub.s32 %s29, %s36
    %p348 = scmp.eq.s32.totalorder %s347, 0
    %s350 = sadd.s32 %s349, 1
    %s351 = scalar_select %p348, %s349, %s350
    %p354 = pneg %p348
    %p355 = scmp.eq.s32.totalorder %s21, 3
    %p356 = por %p354, %p355
    %p357 = scmp.ne.s32.totalorder %s349, %s352
    %p358 = scmp.eq.s32.totalorder %s21, 0
    %p359 = por %p357, %p358
    %p360 = scmp.ne.s32.totalorder %s349, %s352
    %p361 = scmp.eq.s32.totalorder %s26, 3
    %p362 = por %p360, %p361
    %p363 = scmp.ne.s32.totalorder %s352, %s353
    %p364 = scmp.eq.s32.totalorder %s26, 0
    %p365 = por %p363, %p364
    %p366 = scmp.ne.s32.totalorder %s352, %s353
    %p367 = scmp.eq.s32.totalorder %s27, 3
    %p368 = por %p366, %p367
    %p370 = scmp.ne.s32.totalorder %s353, %s369
    %p371 = scmp.eq.s32.totalorder %s27, 0
    %p372 = por %p370, %p371
    %s373 = ssub.s32 %s29, %s36
    %p374 = scmp.eq.s32.totalorder %s373, 0
    %s376 = sadd.s32 %s375, 1
    %s377 = scalar_select %p374, %s375, %s376
    %p380 = pneg %p374
    %p381 = scmp.eq.s32.totalorder %s21, 3
    %p382 = por %p380, %p381
    %p383 = scmp.ne.s32.totalorder %s375, %s378
    %p384 = scmp.eq.s32.totalorder %s21, 0
    %p385 = por %p383, %p384
    %p386 = scmp.ne.s32.totalorder %s375, %s378
    %p387 = scmp.eq.s32.totalorder %s26, 3
    %p388 = por %p386, %p387
    %p389 = scmp.ne.s32.totalorder %s378, %s379
    %p390 = scmp.eq.s32.totalorder %s26, 0
    %p391 = por %p389, %p390
    %p392 = scmp.ne.s32.totalorder %s378, %s379
    %p393 = scmp.eq.s32.totalorder %s27, 3
    %p394 = por %p392, %p393
    %p396 = scmp.ne.s32.totalorder %s379, %s395
    %p397 = scmp.eq.s32.totalorder %s27, 0
    %p398 = por %p396, %p397
    %s399 = ssub.s32 %s29, %s36
    %p400 = scmp.eq.s32.totalorder %s399, 0
    %s402 = sadd.s32 %s401, 1
    %s403 = scalar_select %p400, %s401, %s402
    %p406 = pneg %p400
    %p407 = scmp.eq.s32.totalorder %s21, 3
    %p408 = por %p406, %p407
    %p409 = scmp.ne.s32.totalorder %s401, %s404
    %p410 = scmp.eq.s32.totalorder %s21, 0
    %p411 = por %p409, %p410
    %p412 = scmp.ne.s32.totalorder %s401, %s404
    %p413 = scmp.eq.s32.totalorder %s26, 3
    %p414 = por %p412, %p413
    %p415 = scmp.ne.s32.totalorder %s404, %s405
    %p416 = scmp.eq.s32.totalorder %s26, 0
    %p417 = por %p415, %p416
    %p418 = scmp.ne.s32.totalorder %s404, %s405
    %p419 = scmp.eq.s32.totalorder %s27, 3
    %p420 = por %p418, %p419
    %p422 = scmp.ne.s32.totalorder %s405, %s421
    %p423 = scmp.eq.s32.totalorder %s27, 0
    %p424 = por %p422, %p423
    %s425 = ssub.s32 %s28, %s40
    %p426 = scmp.eq.s32.totalorder %s425, 0
    %s428 = sadd.s32 %s427, 1
    %s429 = scalar_select %p426, %s427, %s428
    %p432 = pneg %p426
    %p433 = scmp.eq.s32.totalorder %s21, 3
    %p434 = por %p432, %p433
    %p435 = scmp.ne.s32.totalorder %s427, %s430
    %p436 = scmp.eq.s32.totalorder %s21, 0
    %p437 = por %p435, %p436
    %p438 = scmp.ne.s32.totalorder %s427, %s430
    %p439 = scmp.eq.s32.totalorder %s26, 3
    %p440 = por %p438, %p439
    %p441 = scmp.ne.s32.totalorder %s430, %s431
    %p442 = scmp.eq.s32.totalorder %s26, 0
    %p443 = por %p441, %p442
    %p444 = scmp.ne.s32.totalorder %s430, %s431
    %p445 = scmp.eq.s32.totalorder %s27, 3
    %p446 = por %p444, %p445
    %p448 = scmp.ne.s32.totalorder %s431, %s447
    %p449 = scmp.eq.s32.totalorder %s27, 0
    %p450 = por %p448, %p449
    %p451 = scmp.le.s32.totalorder 1, %s21
    %p452 = scmp.lt.s32.totalorder %s21, 5
    %p453 = pnand %p451, %p452
    %p454 = pneg %p453
    // Predicated region
    $region9: #{tpu_custom_call.1} parent=5 // pred_check
      _
    $region10: #{tpu_custom_call.1} parent=5 // pred_check_branch
      %456 = sbr.rel (%p453) target = $region12
    $region11: #{tpu_custom_call.1} parent=5 // pred_region
      %s457 = ssub.s32 %s21, 1
      // Predicated region
      $region13: #{tpu_custom_call.1} parent=11 // pred_check
        %p458 = pneg %p136
      $region14: #{tpu_custom_call.1} parent=11 // pred_check_branch
        %460 = sbr.rel (%p458) target = $region16
      $region15: #{tpu_custom_call.1} parent=11 // pred_region
        _
      $region16: #{tpu_custom_call.1} parent=11 // pred_fallthru
        _
      // Predicated region
      $region17: #{tpu_custom_call.1} parent=11 // pred_check
        %p461 = pneg %p157
      $region18: #{tpu_custom_call.1} parent=11 // pred_check_branch
        %463 = sbr.rel (%p461) target = $region20
      $region19: #{tpu_custom_call.1} parent=11 // pred_region
        _
      $region20: #{tpu_custom_call.1} parent=11 // pred_fallthru
        _
    $region12: #{tpu_custom_call.1} parent=5 // pred_fallthru
      _
    %p464 = scmp.lt.s32.totalorder %s21, 4
    // Predicated region
    $region21: #{tpu_custom_call.1} parent=5 // pred_check
      %p465 = pneg %p464
    $region22: #{tpu_custom_call.1} parent=5 // pred_check_branch
      %467 = sbr.rel (%p465) target = $region24
    $region23: #{tpu_custom_call.1} parent=5 // pred_region
      // Predicated region
      $region25: #{tpu_custom_call.1} parent=23 // pred_check
        %p468 = pneg %p53
      $region26: #{tpu_custom_call.1} parent=23 // pred_check_branch
        %470 = sbr.rel (%p468) target = $region28
      $region27: #{tpu_custom_call.1} parent=23 // pred_region
        %p471 = scmp.lt.s32.totalorder %s28, 1
        %s472 = scalar_select %p471, %s28, 1
        %s473 = smul.addr %s472, 32
        %s474 = smul.addr %s473, 8
        %s475 = scalar_lea.vmem %s0, %s474
      $region28: #{tpu_custom_call.1} parent=23 // pred_fallthru
        _
      // Predicated region
      $region29: #{tpu_custom_call.1} parent=23 // pred_check
        %p476 = pneg %p81
      $region30: #{tpu_custom_call.1} parent=23 // pred_check_branch
        %478 = sbr.rel (%p476) target = $region32
      $region31: #{tpu_custom_call.1} parent=23 // pred_region
        %p479 = scmp.lt.s32.totalorder %s29, 1
        %s480 = scalar_select %p479, %s29, 1
        %p481 = scmp.lt.s32.totalorder %s28, 1
        %s482 = scalar_select %p481, %s28, 1
        %s483 = smul.addr %s480, 2
        %s484 = sadd.s32 %s482, %s483
        %s485 = scalar_lea.vmem %s1, %s484
      $region32: #{tpu_custom_call.1} parent=23 // pred_fallthru
        _
      // Predicated region
      $region33: #{tpu_custom_call.1} parent=23 // pred_check
        %p486 = pneg %p109
      $region34: #{tpu_custom_call.1} parent=23 // pred_check_branch
        %488 = sbr.rel (%p486) target = $region36
      $region35: #{tpu_custom_call.1} parent=23 // pred_region
        %p489 = scmp.lt.s32.totalorder %s29, 1
        %s490 = scalar_select %p489, %s29, 1
        %p491 = scmp.lt.s32.totalorder %s28, 1
        %s492 = scalar_select %p491, %s28, 1
        %s493 = smul.addr %s490, 2
        %s494 = sadd.s32 %s492, %s493
        %s495 = scalar_lea.vmem %s2, %s494
      $region36: #{tpu_custom_call.1} parent=23 // pred_fallthru
        _
      // Predicated region
      $region37: #{tpu_custom_call.1} parent=23 // pred_check
        %p496 = pneg %p177
      $region38: #{tpu_custom_call.1} parent=23 // pred_check_branch
        %498 = sbr.rel (%p496) target = $region40
      $region39: #{tpu_custom_call.1} parent=23 // pred_region
        %p499 = scmp.lt.s32.totalorder %s29, 1
        %s500 = scalar_select %p499, %s29, 1
        %s501 = scalar_lea.vmem %s5, %s500
      $region40: #{tpu_custom_call.1} parent=23 // pred_fallthru
        _
      // Predicated region
      $region41: #{tpu_custom_call.1} parent=23 // pred_check
        %p502 = pneg %p203
      $region42: #{tpu_custom_call.1} parent=23 // pred_check_branch
        %504 = sbr.rel (%p502) target = $region44
      $region43: #{tpu_custom_call.1} parent=23 // pred_region
        %p505 = scmp.lt.s32.totalorder %s29, 1
        %s506 = scalar_select %p505, %s29, 1
        %s507 = scalar_lea.vmem %s6, %s506
      $region44: #{tpu_custom_call.1} parent=23 // pred_fallthru
        _
      // Predicated region
      $region45: #{tpu_custom_call.1} parent=23 // pred_check
        %p508 = pneg %p229
      $region46: #{tpu_custom_call.1} parent=23 // pred_check_branch
        %510 = sbr.rel (%p508) target = $region48
      $region47: #{tpu_custom_call.1} parent=23 // pred_region
        %p511 = scmp.lt.s32.totalorder %s29, 1
        %s512 = scalar_select %p511, %s29, 1
        %s513 = smul.addr %s512, 6
        %s514 = smul.addr %s513, 4
        %s515 = scalar_lea.vmem %s7, %s514
      $region48: #{tpu_custom_call.1} parent=23 // pred_fallthru
        _
      // Predicated region
      $region49: #{tpu_custom_call.1} parent=23 // pred_check
        %p516 = pneg %p255
      $region50: #{tpu_custom_call.1} parent=23 // pred_check_branch
        %518 = sbr.rel (%p516) target = $region52
      $region51: #{tpu_custom_call.1} parent=23 // pred_region
        %p519 = scmp.lt.s32.totalorder %s29, 1
        %s520 = scalar_select %p519, %s29, 1
        %s521 = scalar_lea.vmem %s8, %s520
      $region52: #{tpu_custom_call.1} parent=23 // pred_fallthru
        _
      // Predicated region
      $region53: #{tpu_custom_call.1} parent=23 // pred_check
        %p522 = pneg %p281
      $region54: #{tpu_custom_call.1} parent=23 // pred_check_branch
        %524 = sbr.rel (%p522) target = $region56
      $region55: #{tpu_custom_call.1} parent=23 // pred_region
        %p525 = scmp.lt.s32.totalorder %s29, 1
        %s526 = scalar_select %p525, %s29, 1
        %s527 = scalar_lea.vmem %s9, %s526
      $region56: #{tpu_custom_call.1} parent=23 // pred_fallthru
        _
      // Predicated region
      $region57: #{tpu_custom_call.1} parent=23 // pred_check
        %p528 = pneg %p307
      $region58: #{tpu_custom_call.1} parent=23 // pred_check_branch
        %530 = sbr.rel (%p528) target = $region60
      $region59: #{tpu_custom_call.1} parent=23 // pred_region
        %p531 = scmp.lt.s32.totalorder %s29, 1
        %s532 = scalar_select %p531, %s29, 1
        %s533 = scalar_lea.vmem %s10, %s532
      $region60: #{tpu_custom_call.1} parent=23 // pred_fallthru
        _
      // Predicated region
      $region61: #{tpu_custom_call.1} parent=23 // pred_check
        %p534 = pneg %p333
      $region62: #{tpu_custom_call.1} parent=23 // pred_check_branch
        %536 = sbr.rel (%p534) target = $region64
      $region63: #{tpu_custom_call.1} parent=23 // pred_region
        %p537 = scmp.lt.s32.totalorder %s29, 1
        %s538 = scalar_select %p537, %s29, 1
        %s539 = smul.addr %s538, 6
        %s540 = smul.addr %s539, 4
        %s541 = scalar_lea.vmem %s11, %s540
      $region64: #{tpu_custom_call.1} parent=23 // pred_fallthru
        _
      // Predicated region
      $region65: #{tpu_custom_call.1} parent=23 // pred_check
        %p542 = pneg %p359
      $region66: #{tpu_custom_call.1} parent=23 // pred_check_branch
        %544 = sbr.rel (%p542) target = $region68
      $region67: #{tpu_custom_call.1} parent=23 // pred_region
        %p545 = scmp.lt.s32.totalorder %s29, 1
        %s546 = scalar_select %p545, %s29, 1
        %s547 = scalar_lea.vmem %s12, %s546
      $region68: #{tpu_custom_call.1} parent=23 // pred_fallthru
        _
      // Predicated region
      $region69: #{tpu_custom_call.1} parent=23 // pred_check
        %p548 = pneg %p385
      $region70: #{tpu_custom_call.1} parent=23 // pred_check_branch
        %550 = sbr.rel (%p548) target = $region72
      $region71: #{tpu_custom_call.1} parent=23 // pred_region
        %p551 = scmp.lt.s32.totalorder %s29, 1
        %s552 = scalar_select %p551, %s29, 1
        %s553 = smul.addr %s552, 6
        %s554 = smul.addr %s553, 4
        %s555 = scalar_lea.vmem %s13, %s554
      $region72: #{tpu_custom_call.1} parent=23 // pred_fallthru
        _
      // Predicated region
      $region73: #{tpu_custom_call.1} parent=23 // pred_check
        %p556 = pneg %p411
      $region74: #{tpu_custom_call.1} parent=23 // pred_check_branch
        %558 = sbr.rel (%p556) target = $region76
      $region75: #{tpu_custom_call.1} parent=23 // pred_region
        %p559 = scmp.lt.s32.totalorder %s29, 1
        %s560 = scalar_select %p559, %s29, 1
        %s561 = scalar_lea.vmem %s14, %s560
      $region76: #{tpu_custom_call.1} parent=23 // pred_fallthru
        _
    $region24: #{tpu_custom_call.1} parent=5 // pred_fallthru
      _
    %p562 = scmp.le.s32.totalorder 1, %s21
    %p563 = scmp.lt.s32.totalorder %s21, 5
    %p564 = pnand %p562, %p563
    %p565 = pneg %p564
    // Predicated region
    $region77: #{tpu_custom_call.1} parent=5 // pred_check
      _
    $region78: #{tpu_custom_call.1} parent=5 // pred_check_branch
      %567 = sbr.rel (%p564) target = $region80
    $region79: #{tpu_custom_call.1} parent=5 // pred_region
      %s568 = ssub.s32 %s21, 1
      %p569 = scmp.lt.s32.totalorder %s30, 1
      %s570 = scalar_select %p569, %s30, 1
      %s571 = smul.addr %s570, 32
      %s572 = smul.addr %s571, 8
      %s573 = scalar_lea.vmem %s0, %s572
      %p574 = pneg %p59
      %p575 = pneg %p56
      %p576 = scmp.lt.s32.totalorder %s31, 1
      %s577 = scalar_select %p576, %s31, 1
      %p578 = scmp.lt.s32.totalorder %s30, 1
      %s579 = scalar_select %p578, %s30, 1
      %s580 = smul.addr %s577, 2
      %s581 = sadd.s32 %s579, %s580
      %s582 = scalar_lea.vmem %s1, %s581
      %p583 = pneg %p87
      %p584 = pneg %p84
      %p585 = scmp.lt.s32.totalorder %s31, 1
      %s586 = scalar_select %p585, %s31, 1
      %p587 = scmp.lt.s32.totalorder %s30, 1
      %s588 = scalar_select %p587, %s30, 1
      %s589 = smul.addr %s586, 2
      %s590 = sadd.s32 %s588, %s589
      %s591 = scalar_lea.vmem %s2, %s590
      %p592 = pneg %p115
      %p593 = pneg %p112
      %p594 = pneg %p136
      %p595 = pneg %p133
      %p596 = pneg %p157
      %p597 = pneg %p154
      %p598 = scmp.lt.s32.totalorder %s31, 1
      %s599 = scalar_select %p598, %s31, 1
      %s600 = scalar_lea.vmem %s5, %s599
      %p601 = pneg %p183
      %p602 = pneg %p180
      %p603 = scmp.lt.s32.totalorder %s31, 1
      %s604 = scalar_select %p603, %s31, 1
      %s605 = scalar_lea.vmem %s6, %s604
      %p606 = pneg %p209
      %p607 = pneg %p206
      %p608 = scmp.lt.s32.totalorder %s31, 1
      %s609 = scalar_select %p608, %s31, 1
      %s610 = smul.addr %s609, 6
      %s611 = smul.addr %s610, 4
      %s612 = scalar_lea.vmem %s7, %s611
      %p613 = pneg %p235
      %p614 = pneg %p232
      %p615 = scmp.lt.s32.totalorder %s31, 1
      %s616 = scalar_select %p615, %s31, 1
      %s617 = scalar_lea.vmem %s8, %s616
      %p618 = pneg %p261
      %p619 = pneg %p258
      %p620 = scmp.lt.s32.totalorder %s31, 1
      %s621 = scalar_select %p620, %s31, 1
      %s622 = scalar_lea.vmem %s9, %s621
      %p623 = pneg %p287
      %p624 = pneg %p284
      %p625 = scmp.lt.s32.totalorder %s31, 1
      %s626 = scalar_select %p625, %s31, 1
      %s627 = scalar_lea.vmem %s10, %s626
      %p628 = pneg %p313
      %p629 = pneg %p310
      %p630 = scmp.lt.s32.totalorder %s31, 1
      %s631 = scalar_select %p630, %s31, 1
      %s632 = smul.addr %s631, 6
      %s633 = smul.addr %s632, 4
      %s634 = scalar_lea.vmem %s11, %s633
      %p635 = pneg %p339
      %p636 = pneg %p336
      %p637 = scmp.lt.s32.totalorder %s31, 1
      %s638 = scalar_select %p637, %s31, 1
      %s639 = scalar_lea.vmem %s12, %s638
      %p640 = pneg %p365
      %p641 = pneg %p362
      %p642 = scmp.lt.s32.totalorder %s31, 1
      %s643 = scalar_select %p642, %s31, 1
      %s644 = smul.addr %s643, 6
      %s645 = smul.addr %s644, 4
      %s646 = scalar_lea.vmem %s13, %s645
      %p647 = pneg %p391
      %p648 = pneg %p388
      %p649 = scmp.lt.s32.totalorder %s31, 1
      %s650 = scalar_select %p649, %s31, 1
      %s651 = scalar_lea.vmem %s14, %s650
      %p652 = pneg %p417
      %p653 = pneg %p414
      %p654 = pneg %p443
      %p655 = pneg %p440
      %p656 = scmp.lt.s32.totalorder %s30, 1
      %s657 = scalar_select %p656, %s30, 1
      %s658 = smul.addr %s657, 32
      %s659 = smul.addr %s658, 8
      %s660 = scalar_lea.vmem %s15, %s659
      %p661 = scmp.lt.s32.totalorder %s30, 1
      %s662 = scalar_select %p661, %s30, 1
      %s663 = smul.addr %s662, 32
      %s664 = smul.addr %s663, 8
      %s665 = scalar_lea.vmem %s0, %s664
      %p666 = scmp.lt.s32.totalorder %s31, 1
      %s667 = scalar_select %p666, %s31, 1
      %p668 = scmp.lt.s32.totalorder %s30, 1
      %s669 = scalar_select %p668, %s30, 1
      %s670 = smul.addr %s667, 2
      %s671 = sadd.s32 %s669, %s670
      %s672 = scalar_lea.vmem %s1, %s671
      %p673 = scmp.lt.s32.totalorder %s31, 1
      %s674 = scalar_select %p673, %s31, 1
      %p675 = scmp.lt.s32.totalorder %s30, 1
      %s676 = scalar_select %p675, %s30, 1
      %s677 = smul.addr %s674, 2
      %s678 = sadd.s32 %s676, %s677
      %s679 = scalar_lea.vmem %s2, %s678
      %p680 = scmp.lt.s32.totalorder %s31, 1
      %s681 = scalar_select %p680, %s31, 1
      %s682 = scalar_lea.vmem %s5, %s681
      %p683 = scmp.lt.s32.totalorder %s31, 1
      %s684 = scalar_select %p683, %s31, 1
      %s685 = scalar_lea.vmem %s6, %s684
      %p686 = scmp.lt.s32.totalorder %s31, 1
      %s687 = scalar_select %p686, %s31, 1
      %s688 = smul.addr %s687, 6
      %s689 = smul.addr %s688, 4
      %s690 = scalar_lea.vmem %s7, %s689
      %p691 = scmp.lt.s32.totalorder %s31, 1
      %s692 = scalar_select %p691, %s31, 1
      %s693 = scalar_lea.vmem %s8, %s692
      %p694 = scmp.lt.s32.totalorder %s31, 1
      %s695 = scalar_select %p694, %s31, 1
      %s696 = scalar_lea.vmem %s9, %s695
      %p697 = scmp.lt.s32.totalorder %s31, 1
      %s698 = scalar_select %p697, %s31, 1
      %s699 = scalar_lea.vmem %s10, %s698
      %p700 = scmp.lt.s32.totalorder %s31, 1
      %s701 = scalar_select %p700, %s31, 1
      %s702 = smul.addr %s701, 6
      %s703 = smul.addr %s702, 4
      %s704 = scalar_lea.vmem %s11, %s703
      %p705 = scmp.lt.s32.totalorder %s31, 1
      %s706 = scalar_select %p705, %s31, 1
      %s707 = scalar_lea.vmem %s12, %s706
      %p708 = scmp.lt.s32.totalorder %s31, 1
      %s709 = scalar_select %p708, %s31, 1
      %s710 = smul.addr %s709, 6
      %s711 = smul.addr %s710, 4
      %s712 = scalar_lea.vmem %s13, %s711
      %p713 = scmp.lt.s32.totalorder %s31, 1
      %s714 = scalar_select %p713, %s31, 1
      %s715 = scalar_lea.vmem %s14, %s714
      %p716 = scmp.lt.s32.totalorder %s30, 1
      %s717 = scalar_select %p716, %s30, 1
      %s718 = smul.addr %s717, 32
      %s719 = smul.addr %s718, 8
      %s720 = scalar_lea.vmem %s15, %s719
      %p722 = scmp.eq.s32.totalorder %s31, 0
      // Predicated region
      $region81: #{tpu_custom_call.1} parent=79 // pred_check
        %p723 = pneg %p722
      $region82: #{tpu_custom_call.1} parent=79 // pred_check_branch
        %725 = sbr.rel (%p723) target = $region84
      $region83: #{tpu_custom_call.1} parent=79 // pred_region
        %v726 = vld [vmem:[%s665] sm:$0xff]
        %v727 = vld [vmem:[%s665 + $0x8] sm:$0xff]
        %v728 = vld [vmem:[%s665 + $0x10] sm:$0xff]
        %v729 = vld [vmem:[%s665 + $0x18] sm:$0xff]
        %v730 = vld [vmem:[%s665 + $0x20] sm:$0xff]
        %v731 = vld [vmem:[%s665 + $0x28] sm:$0xff]
        %v732 = vld [vmem:[%s665 + $0x30] sm:$0xff]
        %v733 = vld [vmem:[%s665 + $0x38] sm:$0xff]
        %v734 = vld [vmem:[%s665 + $0x40] sm:$0xff]
        %v735 = vld [vmem:[%s665 + $0x48] sm:$0xff]
        %v736 = vld [vmem:[%s665 + $0x50] sm:$0xff]
        %v737 = vld [vmem:[%s665 + $0x58] sm:$0xff]
        %v738 = vld [vmem:[%s665 + $0x60] sm:$0xff]
        %v739 = vld [vmem:[%s665 + $0x68] sm:$0xff]
        %v740 = vld [vmem:[%s665 + $0x70] sm:$0xff]
        %v741 = vld [vmem:[%s665 + $0x78] sm:$0xff]
        %v742 = vld [vmem:[%s665 + $0x80] sm:$0xff]
        %v743 = vld [vmem:[%s665 + $0x88] sm:$0xff]
        %v744 = vld [vmem:[%s665 + $0x90] sm:$0xff]
        %v745 = vld [vmem:[%s665 + $0x98] sm:$0xff]
        %v746 = vld [vmem:[%s665 + $0xa0] sm:$0xff]
        %v747 = vld [vmem:[%s665 + $0xa8] sm:$0xff]
        %v748 = vld [vmem:[%s665 + $0xb0] sm:$0xff]
        %v749 = vld [vmem:[%s665 + $0xb8] sm:$0xff]
        %v750 = vld [vmem:[%s665 + $0xc0] sm:$0xff]
        %v751 = vld [vmem:[%s665 + $0xc8] sm:$0xff]
        %v752 = vld [vmem:[%s665 + $0xd0] sm:$0xff]
        %v753 = vld [vmem:[%s665 + $0xd8] sm:$0xff]
        %v754 = vld [vmem:[%s665 + $0xe0] sm:$0xff]
        %v755 = vld [vmem:[%s665 + $0xe8] sm:$0xff]
        %v756 = vld [vmem:[%s665 + $0xf0] sm:$0xff]
        %v757 = vld [vmem:[%s665 + $0xf8] sm:$0xff]
        %vm758 = vcmask 31744
        %759 = vst.msk [vmem:[%s720] sm:$0xff] %vm758, %v726
        %760 = vst.msk [vmem:[%s720 + $0x8] sm:$0xff] %vm758, %v727
        %761 = vst.msk [vmem:[%s720 + $0x10] sm:$0xff] %vm758, %v728
        %762 = vst.msk [vmem:[%s720 + $0x18] sm:$0xff] %vm758, %v729
        %763 = vst.msk [vmem:[%s720 + $0x20] sm:$0xff] %vm758, %v730
        %764 = vst.msk [vmem:[%s720 + $0x28] sm:$0xff] %vm758, %v731
        %765 = vst.msk [vmem:[%s720 + $0x30] sm:$0xff] %vm758, %v732
        %766 = vst.msk [vmem:[%s720 + $0x38] sm:$0xff] %vm758, %v733
        %767 = vst.msk [vmem:[%s720 + $0x40] sm:$0xff] %vm758, %v734
        %768 = vst.msk [vmem:[%s720 + $0x48] sm:$0xff] %vm758, %v735
        %769 = vst.msk [vmem:[%s720 + $0x50] sm:$0xff] %vm758, %v736
        %770 = vst.msk [vmem:[%s720 + $0x58] sm:$0xff] %vm758, %v737
        %771 = vst.msk [vmem:[%s720 + $0x60] sm:$0xff] %vm758, %v738
        %772 = vst.msk [vmem:[%s720 + $0x68] sm:$0xff] %vm758, %v739
        %773 = vst.msk [vmem:[%s720 + $0x70] sm:$0xff] %vm758, %v740
        %774 = vst.msk [vmem:[%s720 + $0x78] sm:$0xff] %vm758, %v741
        %775 = vst.msk [vmem:[%s720 + $0x80] sm:$0xff] %vm758, %v742
        %776 = vst.msk [vmem:[%s720 + $0x88] sm:$0xff] %vm758, %v743
        %777 = vst.msk [vmem:[%s720 + $0x90] sm:$0xff] %vm758, %v744
        %778 = vst.msk [vmem:[%s720 + $0x98] sm:$0xff] %vm758, %v745
        %779 = vst.msk [vmem:[%s720 + $0xa0] sm:$0xff] %vm758, %v746
        %780 = vst.msk [vmem:[%s720 + $0xa8] sm:$0xff] %vm758, %v747
        %781 = vst.msk [vmem:[%s720 + $0xb0] sm:$0xff] %vm758, %v748
        %782 = vst.msk [vmem:[%s720 + $0xb8] sm:$0xff] %vm758, %v749
        %783 = vst.msk [vmem:[%s720 + $0xc0] sm:$0xff] %vm758, %v750
        %784 = vst.msk [vmem:[%s720 + $0xc8] sm:$0xff] %vm758, %v751
        %785 = vst.msk [vmem:[%s720 + $0xd0] sm:$0xff] %vm758, %v752
        %786 = vst.msk [vmem:[%s720 + $0xd8] sm:$0xff] %vm758, %v753
        %787 = vst.msk [vmem:[%s720 + $0xe0] sm:$0xff] %vm758, %v754
        %788 = vst.msk [vmem:[%s720 + $0xe8] sm:$0xff] %vm758, %v755
        %789 = vst.msk [vmem:[%s720 + $0xf0] sm:$0xff] %vm758, %v756
        %790 = vst.msk [vmem:[%s720 + $0xf8] sm:$0xff] %vm758, %v757
      $region84: #{tpu_custom_call.1} parent=79 // pred_fallthru
        _
      %v791 = vld [vmem:[%s3] sm:$0xf]
      %v792 = vld [vmem:[%s4] sm:$0xff]
      %v793 = vld [vmem:[%s4 + $0x8] sm:$0xff]
      %v794 = vld [vmem:[%s4 + $0x10] sm:$0xff]
      %v795 = vld [vmem:[%s4 + $0x18] sm:$0xff]
      %v796 = vld [vmem:[%s4 + $0x20] sm:$0xff]
      %v797 = vld [vmem:[%s4 + $0x28] sm:$0xff]
      %v798 = vld [vmem:[%s4 + $0x30] sm:$0xff]
      %v799 = vld [vmem:[%s4 + $0x38] sm:$0xff]
      %v800 = vld [vmem:[%s4 + $0x40] sm:$0xff]
      %v801 = vld [vmem:[%s4 + $0x48] sm:$0xff]
      %v802 = vld [vmem:[%s4 + $0x50] sm:$0xff]
      %v803 = vld [vmem:[%s4 + $0x58] sm:$0xff]
      %v804 = vld [vmem:[%s4 + $0x60] sm:$0xff]
      %v805 = vld [vmem:[%s4 + $0x68] sm:$0xff]
      %v806 = vld [vmem:[%s4 + $0x70] sm:$0xff]
      %v807 = vld [vmem:[%s4 + $0x78] sm:$0xff]
      %v808 = vld [vmem:[%s4 + $0x80] sm:$0xff]
      %v809 = vld [vmem:[%s4 + $0x88] sm:$0xff]
      %v810 = vld [vmem:[%s4 + $0x90] sm:$0xff]
      %v811 = vld [vmem:[%s4 + $0x98] sm:$0xff]
      %v812 = vld [vmem:[%s4 + $0xa0] sm:$0xff]
      %v813 = vld [vmem:[%s4 + $0xa8] sm:$0xff]
      %v814 = vld [vmem:[%s4 + $0xb0] sm:$0xff]
      %v815 = vld [vmem:[%s4 + $0xb8] sm:$0xff]
      %v816 = vld [vmem:[%s4 + $0xc0] sm:$0xff]
      %v817 = vld [vmem:[%s4 + $0xc8] sm:$0xff]
      %v818 = vld [vmem:[%s4 + $0xd0] sm:$0xff]
      %v819 = vld [vmem:[%s4 + $0xd8] sm:$0xff]
      %v820 = vld [vmem:[%s4 + $0xe0] sm:$0xff]
      %v821 = vld [vmem:[%s4 + $0xe8] sm:$0xff]
      %v822 = vld [vmem:[%s4 + $0xf0] sm:$0xff]
      %v823 = vld [vmem:[%s4 + $0xf8] sm:$0xff]
      %s824 = scalar_lea.vmem %s4, 256
      %v825 = vld [vmem:[%s824] sm:$0xff]
      %v826 = vld [vmem:[%s824 + $0x8] sm:$0xff]
      %v827 = vld [vmem:[%s824 + $0x10] sm:$0xff]
      %v828 = vld [vmem:[%s824 + $0x18] sm:$0xff]
      %v829 = vld [vmem:[%s824 + $0x20] sm:$0xff]
      %v830 = vld [vmem:[%s824 + $0x28] sm:$0xff]
      %v831 = vld [vmem:[%s824 + $0x30] sm:$0xff]
      %v832 = vld [vmem:[%s824 + $0x38] sm:$0xff]
      %v833 = vld [vmem:[%s824 + $0x40] sm:$0xff]
      %v834 = vld [vmem:[%s824 + $0x48] sm:$0xff]
      %v835 = vld [vmem:[%s824 + $0x50] sm:$0xff]
      %v836 = vld [vmem:[%s824 + $0x58] sm:$0xff]
      %v837 = vld [vmem:[%s824 + $0x60] sm:$0xff]
      %v838 = vld [vmem:[%s824 + $0x68] sm:$0xff]
      %v839 = vld [vmem:[%s824 + $0x70] sm:$0xff]
      %v840 = vld [vmem:[%s824 + $0x78] sm:$0xff]
      %v841 = vld [vmem:[%s824 + $0x80] sm:$0xff]
      %v842 = vld [vmem:[%s824 + $0x88] sm:$0xff]
      %v843 = vld [vmem:[%s824 + $0x90] sm:$0xff]
      %v844 = vld [vmem:[%s824 + $0x98] sm:$0xff]
      %v845 = vld [vmem:[%s824 + $0xa0] sm:$0xff]
      %v846 = vld [vmem:[%s824 + $0xa8] sm:$0xff]
      %v847 = vld [vmem:[%s824 + $0xb0] sm:$0xff]
      %v848 = vld [vmem:[%s824 + $0xb8] sm:$0xff]
      %v849 = vld [vmem:[%s824 + $0xc0] sm:$0xff]
      %v850 = vld [vmem:[%s824 + $0xc8] sm:$0xff]
      %v851 = vld [vmem:[%s824 + $0xd0] sm:$0xff]
      %v852 = vld [vmem:[%s824 + $0xd8] sm:$0xff]
      %v853 = vld [vmem:[%s824 + $0xe0] sm:$0xff]
      %v854 = vld [vmem:[%s824 + $0xe8] sm:$0xff]
      %v855 = vld [vmem:[%s824 + $0xf0] sm:$0xff]
      %v856 = vld [vmem:[%s824 + $0xf8] sm:$0xff]
      %s857 = scalar_lea.vmem %s4, 512
      %v858 = vld [vmem:[%s857] sm:$0xff]
      %v859 = vld [vmem:[%s857 + $0x8] sm:$0xff]
      %v860 = vld [vmem:[%s857 + $0x10] sm:$0xff]
      %v861 = vld [vmem:[%s857 + $0x18] sm:$0xff]
      %v862 = vld [vmem:[%s857 + $0x20] sm:$0xff]
      %v863 = vld [vmem:[%s857 + $0x28] sm:$0xff]
      %v864 = vld [vmem:[%s857 + $0x30] sm:$0xff]
      %v865 = vld [vmem:[%s857 + $0x38] sm:$0xff]
      %v866 = vld [vmem:[%s857 + $0x40] sm:$0xff]
      %v867 = vld [vmem:[%s857 + $0x48] sm:$0xff]
      %v868 = vld [vmem:[%s857 + $0x50] sm:$0xff]
      %v869 = vld [vmem:[%s857 + $0x58] sm:$0xff]
      %v870 = vld [vmem:[%s857 + $0x60] sm:$0xff]
      %v871 = vld [vmem:[%s857 + $0x68] sm:$0xff]
      %v872 = vld [vmem:[%s857 + $0x70] sm:$0xff]
      %v873 = vld [vmem:[%s857 + $0x78] sm:$0xff]
      %v874 = vld [vmem:[%s857 + $0x80] sm:$0xff]
      %v875 = vld [vmem:[%s857 + $0x88] sm:$0xff]
      %v876 = vld [vmem:[%s857 + $0x90] sm:$0xff]
      %v877 = vld [vmem:[%s857 + $0x98] sm:$0xff]
      %v878 = vld [vmem:[%s857 + $0xa0] sm:$0xff]
      %v879 = vld [vmem:[%s857 + $0xa8] sm:$0xff]
      %v880 = vld [vmem:[%s857 + $0xb0] sm:$0xff]
      %v881 = vld [vmem:[%s857 + $0xb8] sm:$0xff]
      %v882 = vld [vmem:[%s857 + $0xc0] sm:$0xff]
      %v883 = vld [vmem:[%s857 + $0xc8] sm:$0xff]
      %v884 = vld [vmem:[%s857 + $0xd0] sm:$0xff]
      %v885 = vld [vmem:[%s857 + $0xd8] sm:$0xff]
      %v886 = vld [vmem:[%s857 + $0xe0] sm:$0xff]
      %v887 = vld [vmem:[%s857 + $0xe8] sm:$0xff]
      %v888 = vld [vmem:[%s857 + $0xf0] sm:$0xff]
      %v889 = vld [vmem:[%s857 + $0xf8] sm:$0xff]
      %s890 = scalar_lea.vmem %s4, 768
      %v891 = vld [vmem:[%s890] sm:$0xff]
      %v892 = vld [vmem:[%s890 + $0x8] sm:$0xff]
      %v893 = vld [vmem:[%s890 + $0x10] sm:$0xff]
      %v894 = vld [vmem:[%s890 + $0x18] sm:$0xff]
      %v895 = vld [vmem:[%s890 + $0x20] sm:$0xff]
      %v896 = vld [vmem:[%s890 + $0x28] sm:$0xff]
      %v897 = vld [vmem:[%s890 + $0x30] sm:$0xff]
      %v898 = vld [vmem:[%s890 + $0x38] sm:$0xff]
      %v899 = vld [vmem:[%s890 + $0x40] sm:$0xff]
      %v900 = vld [vmem:[%s890 + $0x48] sm:$0xff]
      %v901 = vld [vmem:[%s890 + $0x50] sm:$0xff]
      %v902 = vld [vmem:[%s890 + $0x58] sm:$0xff]
      %v903 = vld [vmem:[%s890 + $0x60] sm:$0xff]
      %v904 = vld [vmem:[%s890 + $0x68] sm:$0xff]
      %v905 = vld [vmem:[%s890 + $0x70] sm:$0xff]
      %v906 = vld [vmem:[%s890 + $0x78] sm:$0xff]
      %v907 = vld [vmem:[%s890 + $0x80] sm:$0xff]
      %v908 = vld [vmem:[%s890 + $0x88] sm:$0xff]
      %v909 = vld [vmem:[%s890 + $0x90] sm:$0xff]
      %v910 = vld [vmem:[%s890 + $0x98] sm:$0xff]
      %v911 = vld [vmem:[%s890 + $0xa0] sm:$0xff]
      %v912 = vld [vmem:[%s890 + $0xa8] sm:$0xff]
      %v913 = vld [vmem:[%s890 + $0xb0] sm:$0xff]
      %v914 = vld [vmem:[%s890 + $0xb8] sm:$0xff]
      %v915 = vld [vmem:[%s890 + $0xc0] sm:$0xff]
      %v916 = vld [vmem:[%s890 + $0xc8] sm:$0xff]
      %v917 = vld [vmem:[%s890 + $0xd0] sm:$0xff]
      %v918 = vld [vmem:[%s890 + $0xd8] sm:$0xff]
      %v919 = vld [vmem:[%s890 + $0xe0] sm:$0xff]
      %v920 = vld [vmem:[%s890 + $0xe8] sm:$0xff]
      %v921 = vld [vmem:[%s890 + $0xf0] sm:$0xff]
      %v922 = vld [vmem:[%s890 + $0xf8] sm:$0xff]
      %v923 = vld [vmem:[%s720] sm:$0xff]
      %v924 = vld [vmem:[%s720 + $0x8] sm:$0xff]
      %v925 = vld [vmem:[%s720 + $0x10] sm:$0xff]
      %v926 = vld [vmem:[%s720 + $0x18] sm:$0xff]
      %v927 = vld [vmem:[%s720 + $0x20] sm:$0xff]
      %v928 = vld [vmem:[%s720 + $0x28] sm:$0xff]
      %v929 = vld [vmem:[%s720 + $0x30] sm:$0xff]
      %v930 = vld [vmem:[%s720 + $0x38] sm:$0xff]
      %v931 = vld [vmem:[%s720 + $0x40] sm:$0xff]
      %v932 = vld [vmem:[%s720 + $0x48] sm:$0xff]
      %v933 = vld [vmem:[%s720 + $0x50] sm:$0xff]
      %v934 = vld [vmem:[%s720 + $0x58] sm:$0xff]
      %v935 = vld [vmem:[%s720 + $0x60] sm:$0xff]
      %v936 = vld [vmem:[%s720 + $0x68] sm:$0xff]
      %v937 = vld [vmem:[%s720 + $0x70] sm:$0xff]
      %v938 = vld [vmem:[%s720 + $0x78] sm:$0xff]
      %v939 = vld [vmem:[%s720 + $0x80] sm:$0xff]
      %v940 = vld [vmem:[%s720 + $0x88] sm:$0xff]
      %v941 = vld [vmem:[%s720 + $0x90] sm:$0xff]
      %v942 = vld [vmem:[%s720 + $0x98] sm:$0xff]
      %v943 = vld [vmem:[%s720 + $0xa0] sm:$0xff]
      %v944 = vld [vmem:[%s720 + $0xa8] sm:$0xff]
      %v945 = vld [vmem:[%s720 + $0xb0] sm:$0xff]
      %v946 = vld [vmem:[%s720 + $0xb8] sm:$0xff]
      %v947 = vld [vmem:[%s720 + $0xc0] sm:$0xff]
      %v948 = vld [vmem:[%s720 + $0xc8] sm:$0xff]
      %v949 = vld [vmem:[%s720 + $0xd0] sm:$0xff]
      %v950 = vld [vmem:[%s720 + $0xd8] sm:$0xff]
      %v951 = vld [vmem:[%s720 + $0xe0] sm:$0xff]
      %v952 = vld [vmem:[%s720 + $0xe8] sm:$0xff]
      %v953 = vld [vmem:[%s720 + $0xf0] sm:$0xff]
      %v954 = vld [vmem:[%s720 + $0xf8] sm:$0xff]
      %v955 = vld [vmem:[%s672] sm:$0x1]
      %v957 = vlaneseq
      %v958 = vshrl.u32 %v957, 7
      %v959 = vsub.s32 0, %v958
      %v960 = vrot.slane %v955, %v959
      %v962 = vmul.f32 %v923, %v960
      %v963 = vmul.f32 %v924, %v960
      %v964 = vmul.f32 %v925, %v960
      %v965 = vmul.f32 %v926, %v960
      %v966 = vmul.f32 %v927, %v960
      %v967 = vmul.f32 %v928, %v960
      %v968 = vmul.f32 %v929, %v960
      %v969 = vmul.f32 %v930, %v960
      %v970 = vmul.f32 %v931, %v960
      %v971 = vmul.f32 %v932, %v960
      %v972 = vmul.f32 %v933, %v960
      %v973 = vmul.f32 %v934, %v960
      %v974 = vmul.f32 %v935, %v960
      %v975 = vmul.f32 %v936, %v960
      %v976 = vmul.f32 %v937, %v960
      %v977 = vmul.f32 %v938, %v960
      %v978 = vmul.f32 %v939, %v960
      %v979 = vmul.f32 %v940, %v960
      %v980 = vmul.f32 %v941, %v960
      %v981 = vmul.f32 %v942, %v960
      %v982 = vmul.f32 %v943, %v960
      %v983 = vmul.f32 %v944, %v960
      %v984 = vmul.f32 %v945, %v960
      %v985 = vmul.f32 %v946, %v960
      %v986 = vmul.f32 %v947, %v960
      %v987 = vmul.f32 %v948, %v960
      %v988 = vmul.f32 %v949, %v960
      %v989 = vmul.f32 %v950, %v960
      %v990 = vmul.f32 %v951, %v960
      %v991 = vmul.f32 %v952, %v960
      %v992 = vmul.f32 %v953, %v960
      %v993 = vmul.f32 %v954, %v960
      %v994 = vld [vmem:[%s679] sm:$0x1]
      %v996 = vlaneseq
      %v997 = vshrl.u32 %v996, 7
      %v998 = vsub.s32 0, %v997
      %v999 = vrot.slane %v994, %v998
      %v1001 = vadd.f32 %v962, %v999
      %v1002 = vadd.f32 %v963, %v999
      %v1003 = vadd.f32 %v964, %v999
      %v1004 = vadd.f32 %v965, %v999
      %v1005 = vadd.f32 %v966, %v999
      %v1006 = vadd.f32 %v967, %v999
      %v1007 = vadd.f32 %v968, %v999
      %v1008 = vadd.f32 %v969, %v999
      %v1009 = vadd.f32 %v970, %v999
      %v1010 = vadd.f32 %v971, %v999
      %v1011 = vadd.f32 %v972, %v999
      %v1012 = vadd.f32 %v973, %v999
      %v1013 = vadd.f32 %v974, %v999
      %v1014 = vadd.f32 %v975, %v999
      %v1015 = vadd.f32 %v976, %v999
      %v1016 = vadd.f32 %v977, %v999
      %v1017 = vadd.f32 %v978, %v999
      %v1018 = vadd.f32 %v979, %v999
      %v1019 = vadd.f32 %v980, %v999
      %v1020 = vadd.f32 %v981, %v999
      %v1021 = vadd.f32 %v982, %v999
      %v1022 = vadd.f32 %v983, %v999
      %v1023 = vadd.f32 %v984, %v999
      %v1024 = vadd.f32 %v985, %v999
      %v1025 = vadd.f32 %v986, %v999
      %v1026 = vadd.f32 %v987, %v999
      %v1027 = vadd.f32 %v988, %v999
      %v1028 = vadd.f32 %v989, %v999
      %v1029 = vadd.f32 %v990, %v999
      %v1030 = vadd.f32 %v991, %v999
      %v1031 = vadd.f32 %v992, %v999
      %v1032 = vadd.f32 %v993, %v999
      %vm1033 = vcmask 31744
      %v1034 = vsel %vm1033, %v1001, 0.0
      %v1035 = vsel %vm1033, %v1002, 0.0
      %v1036 = vadd.f32 %v1034, %v1035
      %v1037 = vsel %vm1033, %v1003, 0.0
      %v1038 = vadd.f32 %v1036, %v1037
      %v1039 = vsel %vm1033, %v1004, 0.0
      %v1040 = vadd.f32 %v1038, %v1039
      %v1041 = vsel %vm1033, %v1005, 0.0
      %v1042 = vadd.f32 %v1040, %v1041
      %v1043 = vsel %vm1033, %v1006, 0.0
      %v1044 = vadd.f32 %v1042, %v1043
      %v1045 = vsel %vm1033, %v1007, 0.0
      %v1046 = vadd.f32 %v1044, %v1045
      %v1047 = vsel %vm1033, %v1008, 0.0
      %v1048 = vadd.f32 %v1046, %v1047
      %v1049 = vsel %vm1033, %v1009, 0.0
      %v1050 = vadd.f32 %v1048, %v1049
      %v1051 = vsel %vm1033, %v1010, 0.0
      %v1052 = vadd.f32 %v1050, %v1051
      %v1053 = vsel %vm1033, %v1011, 0.0
      %v1054 = vadd.f32 %v1052, %v1053
      %v1055 = vsel %vm1033, %v1012, 0.0
      %v1056 = vadd.f32 %v1054, %v1055
      %v1057 = vsel %vm1033, %v1013, 0.0
      %v1058 = vadd.f32 %v1056, %v1057
      %v1059 = vsel %vm1033, %v1014, 0.0
      %v1060 = vadd.f32 %v1058, %v1059
      %v1061 = vsel %vm1033, %v1015, 0.0
      %v1062 = vadd.f32 %v1060, %v1061
      %v1063 = vsel %vm1033, %v1016, 0.0
      %v1064 = vadd.f32 %v1062, %v1063
      %v1065 = vsel %vm1033, %v1017, 0.0
      %v1066 = vadd.f32 %v1064, %v1065
      %v1067 = vsel %vm1033, %v1018, 0.0
      %v1068 = vadd.f32 %v1066, %v1067
      %v1069 = vsel %vm1033, %v1019, 0.0
      %v1070 = vadd.f32 %v1068, %v1069
      %v1071 = vsel %vm1033, %v1020, 0.0
      %v1072 = vadd.f32 %v1070, %v1071
      %v1073 = vsel %vm1033, %v1021, 0.0
      %v1074 = vadd.f32 %v1072, %v1073
      %v1075 = vsel %vm1033, %v1022, 0.0
      %v1076 = vadd.f32 %v1074, %v1075
      %v1077 = vsel %vm1033, %v1023, 0.0
      %v1078 = vadd.f32 %v1076, %v1077
      %v1079 = vsel %vm1033, %v1024, 0.0
      %v1080 = vadd.f32 %v1078, %v1079
      %v1081 = vsel %vm1033, %v1025, 0.0
      %v1082 = vadd.f32 %v1080, %v1081
      %v1083 = vsel %vm1033, %v1026, 0.0
      %v1084 = vadd.f32 %v1082, %v1083
      %v1085 = vsel %vm1033, %v1027, 0.0
      %v1086 = vadd.f32 %v1084, %v1085
      %v1087 = vsel %vm1033, %v1028, 0.0
      %v1088 = vadd.f32 %v1086, %v1087
      %v1089 = vsel %vm1033, %v1029, 0.0
      %v1090 = vadd.f32 %v1088, %v1089
      %v1091 = vsel %vm1033, %v1030, 0.0
      %v1092 = vadd.f32 %v1090, %v1091
      %v1093 = vsel %vm1033, %v1031, 0.0
      %v1094 = vadd.f32 %v1092, %v1093
      %v1095 = vsel %vm1033, %v1032, 0.0
      %v1096 = vadd.f32 %v1094, %v1095
      %v1097 = vrot.slane %v1096, 4
      %v1098 = vadd.f32 %v1096, %v1097
      %v1099 = vrot.slane %v1098, 2
      %v1100 = vadd.f32 %v1098, %v1099
      %v1101 = vrot.slane %v1100, 1
      %v1102 = vadd.f32 %v1100, %v1101
      %v1103 = vmul.f32 %v1001, %v1001
      %v1104 = vmul.f32 %v1002, %v1002
      %v1105 = vmul.f32 %v1003, %v1003
      %v1106 = vmul.f32 %v1004, %v1004
      %v1107 = vmul.f32 %v1005, %v1005
      %v1108 = vmul.f32 %v1006, %v1006
      %v1109 = vmul.f32 %v1007, %v1007
      %v1110 = vmul.f32 %v1008, %v1008
      %v1111 = vmul.f32 %v1009, %v1009
      %v1112 = vmul.f32 %v1010, %v1010
      %v1113 = vmul.f32 %v1011, %v1011
      %v1114 = vmul.f32 %v1012, %v1012
      %v1115 = vmul.f32 %v1013, %v1013
      %v1116 = vmul.f32 %v1014, %v1014
      %v1117 = vmul.f32 %v1015, %v1015
      %v1118 = vmul.f32 %v1016, %v1016
      %v1119 = vmul.f32 %v1017, %v1017
      %v1120 = vmul.f32 %v1018, %v1018
      %v1121 = vmul.f32 %v1019, %v1019
      %v1122 = vmul.f32 %v1020, %v1020
      %v1123 = vmul.f32 %v1021, %v1021
      %v1124 = vmul.f32 %v1022, %v1022
      %v1125 = vmul.f32 %v1023, %v1023
      %v1126 = vmul.f32 %v1024, %v1024
      %v1127 = vmul.f32 %v1025, %v1025
      %v1128 = vmul.f32 %v1026, %v1026
      %v1129 = vmul.f32 %v1027, %v1027
      %v1130 = vmul.f32 %v1028, %v1028
      %v1131 = vmul.f32 %v1029, %v1029
      %v1132 = vmul.f32 %v1030, %v1030
      %v1133 = vmul.f32 %v1031, %v1031
      %v1134 = vmul.f32 %v1032, %v1032
      %v1135 = vsel %vm1033, %v1103, 0.0
      %v1136 = vsel %vm1033, %v1104, 0.0
      %v1137 = vadd.f32 %v1135, %v1136
      %v1138 = vsel %vm1033, %v1105, 0.0
      %v1139 = vadd.f32 %v1137, %v1138
      %v1140 = vsel %vm1033, %v1106, 0.0
      %v1141 = vadd.f32 %v1139, %v1140
      %v1142 = vsel %vm1033, %v1107, 0.0
      %v1143 = vadd.f32 %v1141, %v1142
      %v1144 = vsel %vm1033, %v1108, 0.0
      %v1145 = vadd.f32 %v1143, %v1144
      %v1146 = vsel %vm1033, %v1109, 0.0
      %v1147 = vadd.f32 %v1145, %v1146
      %v1148 = vsel %vm1033, %v1110, 0.0
      %v1149 = vadd.f32 %v1147, %v1148
      %v1150 = vsel %vm1033, %v1111, 0.0
      %v1151 = vadd.f32 %v1149, %v1150
      %v1152 = vsel %vm1033, %v1112, 0.0
      %v1153 = vadd.f32 %v1151, %v1152
      %v1154 = vsel %vm1033, %v1113, 0.0
      %v1155 = vadd.f32 %v1153, %v1154
      %v1156 = vsel %vm1033, %v1114, 0.0
      %v1157 = vadd.f32 %v1155, %v1156
      %v1158 = vsel %vm1033, %v1115, 0.0
      %v1159 = vadd.f32 %v1157, %v1158
      %v1160 = vsel %vm1033, %v1116, 0.0
      %v1161 = vadd.f32 %v1159, %v1160
      %v1162 = vsel %vm1033, %v1117, 0.0
      %v1163 = vadd.f32 %v1161, %v1162
      %v1164 = vsel %vm1033, %v1118, 0.0
      %v1165 = vadd.f32 %v1163, %v1164
      %v1166 = vsel %vm1033, %v1119, 0.0
      %v1167 = vadd.f32 %v1165, %v1166
      %v1168 = vsel %vm1033, %v1120, 0.0
      %v1169 = vadd.f32 %v1167, %v1168
      %v1170 = vsel %vm1033, %v1121, 0.0
      %v1171 = vadd.f32 %v1169, %v1170
      %v1172 = vsel %vm1033, %v1122, 0.0
      %v1173 = vadd.f32 %v1171, %v1172
      %v1174 = vsel %vm1033, %v1123, 0.0
      %v1175 = vadd.f32 %v1173, %v1174
      %v1176 = vsel %vm1033, %v1124, 0.0
      %v1177 = vadd.f32 %v1175, %v1176
      %v1178 = vsel %vm1033, %v1125, 0.0
      %v1179 = vadd.f32 %v1177, %v1178
      %v1180 = vsel %vm1033, %v1126, 0.0
      %v1181 = vadd.f32 %v1179, %v1180
      %v1182 = vsel %vm1033, %v1127, 0.0
      %v1183 = vadd.f32 %v1181, %v1182
      %v1184 = vsel %vm1033, %v1128, 0.0
      %v1185 = vadd.f32 %v1183, %v1184
      %v1186 = vsel %vm1033, %v1129, 0.0
      %v1187 = vadd.f32 %v1185, %v1186
      %v1188 = vsel %vm1033, %v1130, 0.0
      %v1189 = vadd.f32 %v1187, %v1188
      %v1190 = vsel %vm1033, %v1131, 0.0
      %v1191 = vadd.f32 %v1189, %v1190
      %v1192 = vsel %vm1033, %v1132, 0.0
      %v1193 = vadd.f32 %v1191, %v1192
      %v1194 = vsel %vm1033, %v1133, 0.0
      %v1195 = vadd.f32 %v1193, %v1194
      %v1196 = vsel %vm1033, %v1134, 0.0
      %v1197 = vadd.f32 %v1195, %v1196
      %v1198 = vrot.slane %v1197, 4
      %v1199 = vadd.f32 %v1197, %v1198
      %v1200 = vrot.slane %v1199, 2
      %v1201 = vadd.f32 %v1199, %v1200
      %v1202 = vrot.slane %v1201, 1
      %v1203 = vadd.f32 %v1201, %v1202
      %v1205 = vsel %vm1033, %v1102, 0
      %vm1207 = vcmask 1043456
      %v1209 = vsel %vm1207, %v791, 0
      %1211 = vmatprep.subr.mxu0 0.0
      %1212 = vmatpush1.msra.mxu0 0.0
      %1213 = vmatprep.subr.mxu0 0.0
      %1214 = vmatpush1.msra.mxu0 0.0
      %1215 = vmatprep.subr.mxu0 0.0
      %1216 = vmatpush1.msra.mxu0 0.0
      %1217 = vmatprep.subr.mxu0 0.0
      %1218 = vmatpush1.msra.mxu0 0.0
      %1219 = vmatprep.subr.mxu0 0.0
      %1220 = vmatpush1.msra.mxu0 0.0
      %1221 = vmatprep.subr.mxu0 0.0
      %1222 = vmatpush1.msra.mxu0 0.0
      %1223 = vmatprep.subr.mxu0 0.0
      %1224 = vmatpush1.msra.mxu0 0.0
      %1225 = vmatprep.subr.mxu0 0.0
      %1226 = vmatpush1.msra.mxu0 0.0
      %1227 = vmatprep.subr.mxu0 0.0
      %1228 = vmatpush1.msra.mxu0 0.0
      %1229 = vmatprep.subr.mxu0 0.0
      %1230 = vmatpush1.msra.mxu0 0.0
      %1231 = vmatprep.subr.mxu0 0.0
      %1232 = vmatpush1.msra.mxu0 0.0
      %1233 = vmatprep.subr.mxu0 0.0
      %1234 = vmatpush1.msra.mxu0 0.0
      %1235 = vmatprep.subr.mxu0 0.0
      %1236 = vmatpush1.msra.mxu0 0.0
      %1237 = vmatprep.subr.mxu0 0.0
      %1238 = vmatpush1.msra.mxu0 0.0
      %1239 = vmatprep.subr.mxu0 0.0
      %1240 = vmatpush1.msra.mxu0 0.0
      %1241 = vmatprep.subr.mxu0 0.0
      %1242 = vmatpush1.msra.mxu0 %v1209
      %1243 = vmatprep.subr.mxu0 0.0
      %1244 = vmatpush2.msra.mxu0 0.0
      %1245 = vmatprep.subr.mxu0 0.0
      %1246 = vmatpush2.msra.mxu0 0.0
      %1247 = vmatprep.subr.mxu0 0.0
      %1248 = vmatpush2.msra.mxu0 0.0
      %1249 = vmatprep.subr.mxu0 0.0
      %1250 = vmatpush2.msra.mxu0 0.0
      %1251 = vmatprep.subr.mxu0 0.0
      %1252 = vmatpush2.msra.mxu0 0.0
      %1253 = vmatprep.subr.mxu0 0.0
      %1254 = vmatpush2.msra.mxu0 0.0
      %1255 = vmatprep.subr.mxu0 0.0
      %1256 = vmatpush2.msra.mxu0 0.0
      %1257 = vmatprep.subr.mxu0 0.0
      %1258 = vmatpush2.msra.mxu0 0.0
      %1259 = vmatprep.subr.mxu0 0.0
      %1260 = vmatpush2.msra.mxu0 0.0
      %1261 = vmatprep.subr.mxu0 0.0
      %1262 = vmatpush2.msra.mxu0 0.0
      %1263 = vmatprep.subr.mxu0 0.0
      %1264 = vmatpush2.msra.mxu0 0.0
      %1265 = vmatprep.subr.mxu0 0.0
      %1266 = vmatpush2.msra.mxu0 0.0
      %1267 = vmatprep.subr.mxu0 0.0
      %1268 = vmatpush2.msra.mxu0 0.0
      %1269 = vmatprep.subr.mxu0 0.0
      %1270 = vmatpush2.msra.mxu0 0.0
      %1271 = vmatprep.subr.mxu0 0.0
      %1272 = vmatpush2.msra.mxu0 0.0
      %1273 = vmatprep.subr.mxu0 0.0
      %1274 = vmatpush2.msra.mxu0 0.0
      %1275 = vmatprep.mubr.f32.mxu0 0.0
      %1276 = vmatmul.mubr.f32.gmra.mxu0 %v1205
      %v1277 = vpop.f32.mrf.mxu0
      %v1278 = vadd.f32 0.0, %v1277
      %v1279 = vpop.f32.mrf.mxu0
      %1280 = vdwg.mxu0
      %v1282 = vsel %vm1033, %v1203, 0
      %1284 = vmatprep.subr.mxu0 0.0
      %1285 = vmatpush1.msra.mxu0 0.0
      %1286 = vmatprep.subr.mxu0 0.0
      %1287 = vmatpush1.msra.mxu0 0.0
      %1288 = vmatprep.subr.mxu0 0.0
      %1289 = vmatpush1.msra.mxu0 0.0
      %1290 = vmatprep.subr.mxu0 0.0
      %1291 = vmatpush1.msra.mxu0 0.0
      %1292 = vmatprep.subr.mxu0 0.0
      %1293 = vmatpush1.msra.mxu0 0.0
      %1294 = vmatprep.subr.mxu0 0.0
      %1295 = vmatpush1.msra.mxu0 0.0
      %1296 = vmatprep.subr.mxu0 0.0
      %1297 = vmatpush1.msra.mxu0 0.0
      %1298 = vmatprep.subr.mxu0 0.0
      %1299 = vmatpush1.msra.mxu0 0.0
      %1300 = vmatprep.subr.mxu0 0.0
      %1301 = vmatpush1.msra.mxu0 0.0
      %1302 = vmatprep.subr.mxu0 0.0
      %1303 = vmatpush1.msra.mxu0 0.0
      %1304 = vmatprep.subr.mxu0 0.0
      %1305 = vmatpush1.msra.mxu0 0.0
      %1306 = vmatprep.subr.mxu0 0.0
      %1307 = vmatpush1.msra.mxu0 0.0
      %1308 = vmatprep.subr.mxu0 0.0
      %1309 = vmatpush1.msra.mxu0 0.0
      %1310 = vmatprep.subr.mxu0 0.0
      %1311 = vmatpush1.msra.mxu0 0.0
      %1312 = vmatprep.subr.mxu0 0.0
      %1313 = vmatpush1.msra.mxu0 0.0
      %1314 = vmatprep.subr.mxu0 0.0
      %1315 = vmatpush1.msra.mxu0 %v1209
      %1316 = vmatprep.subr.mxu0 0.0
      %1317 = vmatpush2.msra.mxu0 0.0
      %1318 = vmatprep.subr.mxu0 0.0
      %1319 = vmatpush2.msra.mxu0 0.0
      %1320 = vmatprep.subr.mxu0 0.0
      %1321 = vmatpush2.msra.mxu0 0.0
      %1322 = vmatprep.subr.mxu0 0.0
      %1323 = vmatpush2.msra.mxu0 0.0
      %1324 = vmatprep.subr.mxu0 0.0
      %1325 = vmatpush2.msra.mxu0 0.0
      %1326 = vmatprep.subr.mxu0 0.0
      %1327 = vmatpush2.msra.mxu0 0.0
      %1328 = vmatprep.subr.mxu0 0.0
      %1329 = vmatpush2.msra.mxu0 0.0
      %1330 = vmatprep.subr.mxu0 0.0
      %1331 = vmatpush2.msra.mxu0 0.0
      %1332 = vmatprep.subr.mxu0 0.0
      %1333 = vmatpush2.msra.mxu0 0.0
      %1334 = vmatprep.subr.mxu0 0.0
      %1335 = vmatpush2.msra.mxu0 0.0
      %1336 = vmatprep.subr.mxu0 0.0
      %1337 = vmatpush2.msra.mxu0 0.0
      %1338 = vmatprep.subr.mxu0 0.0
      %1339 = vmatpush2.msra.mxu0 0.0
      %1340 = vmatprep.subr.mxu0 0.0
      %1341 = vmatpush2.msra.mxu0 0.0
      %1342 = vmatprep.subr.mxu0 0.0
      %1343 = vmatpush2.msra.mxu0 0.0
      %1344 = vmatprep.subr.mxu0 0.0
      %1345 = vmatpush2.msra.mxu0 0.0
      %1346 = vmatprep.subr.mxu0 0.0
      %1347 = vmatpush2.msra.mxu0 0.0
      %1348 = vmatprep.mubr.f32.mxu0 0.0
      %1349 = vmatmul.mubr.f32.gmra.mxu0 %v1282
      %v1350 = vpop.f32.mrf.mxu0
      %v1351 = vadd.f32 0.0, %v1350
      %v1352 = vpop.f32.mrf.mxu0
      %1353 = vdwg.mxu0
      %v1354 = vmul.f32 %v1278, %v1278
      %v1355 = vsub.f32 %v1351, %v1354
      %v1356 = vmax.f32 %v1355, 0.0
      %v1357 = vadd.f32 %v1356, 1e-05
      %v1358 = vrsqrt.pop %v1357
      %v1359 = vld [vmem:[%s682] sm:$0x1]
      %v1360 = vmul.f32 %v1358, %v1359
      %v1361 = vlaneseq
      %v1362 = vshrl.u32 %v1361, 7
      %v1363 = vsub.s32 0, %v1362
      %v1364 = vrot.slane %v1278, %v1363
      %v1365 = vsub.f32 %v1001, %v1364
      %v1366 = vsub.f32 %v1002, %v1364
      %v1367 = vsub.f32 %v1003, %v1364
      %v1368 = vsub.f32 %v1004, %v1364
      %v1369 = vsub.f32 %v1005, %v1364
      %v1370 = vsub.f32 %v1006, %v1364
      %v1371 = vsub.f32 %v1007, %v1364
      %v1372 = vsub.f32 %v1008, %v1364
      %v1373 = vsub.f32 %v1009, %v1364
      %v1374 = vsub.f32 %v1010, %v1364
      %v1375 = vsub.f32 %v1011, %v1364
      %v1376 = vsub.f32 %v1012, %v1364
      %v1377 = vsub.f32 %v1013, %v1364
      %v1378 = vsub.f32 %v1014, %v1364
      %v1379 = vsub.f32 %v1015, %v1364
      %v1380 = vsub.f32 %v1016, %v1364
      %v1381 = vsub.f32 %v1017, %v1364
      %v1382 = vsub.f32 %v1018, %v1364
      %v1383 = vsub.f32 %v1019, %v1364
      %v1384 = vsub.f32 %v1020, %v1364
      %v1385 = vsub.f32 %v1021, %v1364
      %v1386 = vsub.f32 %v1022, %v1364
      %v1387 = vsub.f32 %v1023, %v1364
      %v1388 = vsub.f32 %v1024, %v1364
      %v1389 = vsub.f32 %v1025, %v1364
      %v1390 = vsub.f32 %v1026, %v1364
      %v1391 = vsub.f32 %v1027, %v1364
      %v1392 = vsub.f32 %v1028, %v1364
      %v1393 = vsub.f32 %v1029, %v1364
      %v1394 = vsub.f32 %v1030, %v1364
      %v1395 = vsub.f32 %v1031, %v1364
      %v1396 = vsub.f32 %v1032, %v1364
      %v1397 = vlaneseq
      %v1398 = vshrl.u32 %v1397, 7
      %v1399 = vsub.s32 0, %v1398
      %v1400 = vrot.slane %v1360, %v1399
      %v1401 = vmul.f32 %v1365, %v1400
      %v1402 = vmul.f32 %v1366, %v1400
      %v1403 = vmul.f32 %v1367, %v1400
      %v1404 = vmul.f32 %v1368, %v1400
      %v1405 = vmul.f32 %v1369, %v1400
      %v1406 = vmul.f32 %v1370, %v1400
      %v1407 = vmul.f32 %v1371, %v1400
      %v1408 = vmul.f32 %v1372, %v1400
      %v1409 = vmul.f32 %v1373, %v1400
      %v1410 = vmul.f32 %v1374, %v1400
      %v1411 = vmul.f32 %v1375, %v1400
      %v1412 = vmul.f32 %v1376, %v1400
      %v1413 = vmul.f32 %v1377, %v1400
      %v1414 = vmul.f32 %v1378, %v1400
      %v1415 = vmul.f32 %v1379, %v1400
      %v1416 = vmul.f32 %v1380, %v1400
      %v1417 = vmul.f32 %v1381, %v1400
      %v1418 = vmul.f32 %v1382, %v1400
      %v1419 = vmul.f32 %v1383, %v1400
      %v1420 = vmul.f32 %v1384, %v1400
      %v1421 = vmul.f32 %v1385, %v1400
      %v1422 = vmul.f32 %v1386, %v1400
      %v1423 = vmul.f32 %v1387, %v1400
      %v1424 = vmul.f32 %v1388, %v1400
      %v1425 = vmul.f32 %v1389, %v1400
      %v1426 = vmul.f32 %v1390, %v1400
      %v1427 = vmul.f32 %v1391, %v1400
      %v1428 = vmul.f32 %v1392, %v1400
      %v1429 = vmul.f32 %v1393, %v1400
      %v1430 = vmul.f32 %v1394, %v1400
      %v1431 = vmul.f32 %v1395, %v1400
      %v1432 = vmul.f32 %v1396, %v1400
      %v1433 = vld [vmem:[%s685] sm:$0x1]
      %v1435 = vlaneseq
      %v1436 = vshrl.u32 %v1435, 7
      %v1437 = vsub.s32 0, %v1436
      %v1438 = vrot.slane %v1433, %v1437
      %v1440 = vadd.f32 %v1401, %v1438
      %v1441 = vadd.f32 %v1402, %v1438
      %v1442 = vadd.f32 %v1403, %v1438
      %v1443 = vadd.f32 %v1404, %v1438
      %v1444 = vadd.f32 %v1405, %v1438
      %v1445 = vadd.f32 %v1406, %v1438
      %v1446 = vadd.f32 %v1407, %v1438
      %v1447 = vadd.f32 %v1408, %v1438
      %v1448 = vadd.f32 %v1409, %v1438
      %v1449 = vadd.f32 %v1410, %v1438
      %v1450 = vadd.f32 %v1411, %v1438
      %v1451 = vadd.f32 %v1412, %v1438
      %v1452 = vadd.f32 %v1413, %v1438
      %v1453 = vadd.f32 %v1414, %v1438
      %v1454 = vadd.f32 %v1415, %v1438
      %v1455 = vadd.f32 %v1416, %v1438
      %v1456 = vadd.f32 %v1417, %v1438
      %v1457 = vadd.f32 %v1418, %v1438
      %v1458 = vadd.f32 %v1419, %v1438
      %v1459 = vadd.f32 %v1420, %v1438
      %v1460 = vadd.f32 %v1421, %v1438
      %v1461 = vadd.f32 %v1422, %v1438
      %v1462 = vadd.f32 %v1423, %v1438
      %v1463 = vadd.f32 %v1424, %v1438
      %v1464 = vadd.f32 %v1425, %v1438
      %v1465 = vadd.f32 %v1426, %v1438
      %v1466 = vadd.f32 %v1427, %v1438
      %v1467 = vadd.f32 %v1428, %v1438
      %v1468 = vadd.f32 %v1429, %v1438
      %v1469 = vadd.f32 %v1430, %v1438
      %v1470 = vadd.f32 %v1431, %v1438
      %v1471 = vadd.f32 %v1432, %v1438
      %v1472 = vsub.f32 0.0, %v1440
      %v1473 = vsub.f32 0.0, %v1441
      %v1474 = vsub.f32 0.0, %v1442
      %v1475 = vsub.f32 0.0, %v1443
      %v1476 = vsub.f32 0.0, %v1444
      %v1477 = vsub.f32 0.0, %v1445
      %v1478 = vsub.f32 0.0, %v1446
      %v1479 = vsub.f32 0.0, %v1447
      %v1480 = vsub.f32 0.0, %v1448
      %v1481 = vsub.f32 0.0, %v1449
      %v1482 = vsub.f32 0.0, %v1450
      %v1483 = vsub.f32 0.0, %v1451
      %v1484 = vsub.f32 0.0, %v1452
      %v1485 = vsub.f32 0.0, %v1453
      %v1486 = vsub.f32 0.0, %v1454
      %v1487 = vsub.f32 0.0, %v1455
      %v1488 = vsub.f32 0.0, %v1456
      %v1489 = vsub.f32 0.0, %v1457
      %v1490 = vsub.f32 0.0, %v1458
      %v1491 = vsub.f32 0.0, %v1459
      %v1492 = vsub.f32 0.0, %v1460
      %v1493 = vsub.f32 0.0, %v1461
      %v1494 = vsub.f32 0.0, %v1462
      %v1495 = vsub.f32 0.0, %v1463
      %v1496 = vsub.f32 0.0, %v1464
      %v1497 = vsub.f32 0.0, %v1465
      %v1498 = vsub.f32 0.0, %v1466
      %v1499 = vsub.f32 0.0, %v1467
      %v1500 = vsub.f32 0.0, %v1468
      %v1501 = vsub.f32 0.0, %v1469
      %v1502 = vsub.f32 0.0, %v1470
      %v1503 = vsub.f32 0.0, %v1471
      %v1504 = vmul.f32 %v1472, 1.442695
      %v1505 = vpow.pop %v1504
      %v1506 = vmul.f32 %v1473, 1.442695
      %v1507 = vpow.pop %v1506
      %v1508 = vmul.f32 %v1474, 1.442695
      %v1509 = vpow.pop %v1508
      %v1510 = vmul.f32 %v1475, 1.442695
      %v1511 = vpow.pop %v1510
      %v1512 = vmul.f32 %v1476, 1.442695
      %v1513 = vpow.pop %v1512
      %v1514 = vmul.f32 %v1477, 1.442695
      %v1515 = vpow.pop %v1514
      %v1516 = vmul.f32 %v1478, 1.442695
      %v1517 = vpow.pop %v1516
      %v1518 = vmul.f32 %v1479, 1.442695
      %v1519 = vpow.pop %v1518
      %v1520 = vmul.f32 %v1480, 1.442695
      %v1521 = vpow.pop %v1520
      %v1522 = vmul.f32 %v1481, 1.442695
      %v1523 = vpow.pop %v1522
      %v1524 = vmul.f32 %v1482, 1.442695
      %v1525 = vpow.pop %v1524
      %v1526 = vmul.f32 %v1483, 1.442695
      %v1527 = vpow.pop %v1526
      %v1528 = vmul.f32 %v1484, 1.442695
      %v1529 = vpow.pop %v1528
      %v1530 = vmul.f32 %v1485, 1.442695
      %v1531 = vpow.pop %v1530
      %v1532 = vmul.f32 %v1486, 1.442695
      %v1533 = vpow.pop %v1532
      %v1534 = vmul.f32 %v1487, 1.442695
      %v1535 = vpow.pop %v1534
      %v1536 = vmul.f32 %v1488, 1.442695
      %v1537 = vpow.pop %v1536
      %v1538 = vmul.f32 %v1489, 1.442695
      %v1539 = vpow.pop %v1538
      %v1540 = vmul.f32 %v1490, 1.442695
      %v1541 = vpow.pop %v1540
      %v1542 = vmul.f32 %v1491, 1.442695
      %v1543 = vpow.pop %v1542
      %v1544 = vmul.f32 %v1492, 1.442695
      %v1545 = vpow.pop %v1544
      %v1546 = vmul.f32 %v1493, 1.442695
      %v1547 = vpow.pop %v1546
      %v1548 = vmul.f32 %v1494, 1.442695
      %v1549 = vpow.pop %v1548
      %v1550 = vmul.f32 %v1495, 1.442695
      %v1551 = vpow.pop %v1550
      %v1552 = vmul.f32 %v1496, 1.442695
      %v1553 = vpow.pop %v1552
      %v1554 = vmul.f32 %v1497, 1.442695
      %v1555 = vpow.pop %v1554
      %v1556 = vmul.f32 %v1498, 1.442695
      %v1557 = vpow.pop %v1556
      %v1558 = vmul.f32 %v1499, 1.442695
      %v1559 = vpow.pop %v1558
      %v1560 = vmul.f32 %v1500, 1.442695
      %v1561 = vpow.pop %v1560
      %v1562 = vmul.f32 %v1501, 1.442695
      %v1563 = vpow.pop %v1562
      %v1564 = vmul.f32 %v1502, 1.442695
      %v1565 = vpow.pop %v1564
      %v1566 = vmul.f32 %v1503, 1.442695
      %v1567 = vpow.pop %v1566
      %v1568 = vadd.f32 %v1505, 1.0
      %v1569 = vadd.f32 %v1507, 1.0
      %v1570 = vadd.f32 %v1509, 1.0
      %v1571 = vadd.f32 %v1511, 1.0
      %v1572 = vadd.f32 %v1513, 1.0
      %v1573 = vadd.f32 %v1515, 1.0
      %v1574 = vadd.f32 %v1517, 1.0
      %v1575 = vadd.f32 %v1519, 1.0
      %v1576 = vadd.f32 %v1521, 1.0
      %v1577 = vadd.f32 %v1523, 1.0
      %v1578 = vadd.f32 %v1525, 1.0
      %v1579 = vadd.f32 %v1527, 1.0
      %v1580 = vadd.f32 %v1529, 1.0
      %v1581 = vadd.f32 %v1531, 1.0
      %v1582 = vadd.f32 %v1533, 1.0
      %v1583 = vadd.f32 %v1535, 1.0
      %v1584 = vadd.f32 %v1537, 1.0
      %v1585 = vadd.f32 %v1539, 1.0
      %v1586 = vadd.f32 %v1541, 1.0
      %v1587 = vadd.f32 %v1543, 1.0
      %v1588 = vadd.f32 %v1545, 1.0
      %v1589 = vadd.f32 %v1547, 1.0
      %v1590 = vadd.f32 %v1549, 1.0
      %v1591 = vadd.f32 %v1551, 1.0
      %v1592 = vadd.f32 %v1553, 1.0
      %v1593 = vadd.f32 %v1555, 1.0
      %v1594 = vadd.f32 %v1557, 1.0
      %v1595 = vadd.f32 %v1559, 1.0
      %v1596 = vadd.f32 %v1561, 1.0
      %v1597 = vadd.f32 %v1563, 1.0
      %v1598 = vadd.f32 %v1565, 1.0
      %v1599 = vadd.f32 %v1567, 1.0
      %v1600 = vrcp.pop %v1568
      %v1601 = vrcp.pop %v1569
      %v1602 = vrcp.pop %v1570
      %v1603 = vrcp.pop %v1571
      %v1604 = vrcp.pop %v1572
      %v1605 = vrcp.pop %v1573
      %v1606 = vrcp.pop %v1574
      %v1607 = vrcp.pop %v1575
      %v1608 = vrcp.pop %v1576
      %v1609 = vrcp.pop %v1577
      %v1610 = vrcp.pop %v1578
      %v1611 = vrcp.pop %v1579
      %v1612 = vrcp.pop %v1580
      %v1613 = vrcp.pop %v1581
      %v1614 = vrcp.pop %v1582
      %v1615 = vrcp.pop %v1583
      %v1616 = vrcp.pop %v1584
      %v1617 = vrcp.pop %v1585
      %v1618 = vrcp.pop %v1586
      %v1619 = vrcp.pop %v1587
      %v1620 = vrcp.pop %v1588
      %v1621 = vrcp.pop %v1589
      %v1622 = vrcp.pop %v1590
      %v1623 = vrcp.pop %v1591
      %v1624 = vrcp.pop %v1592
      %v1625 = vrcp.pop %v1593
      %v1626 = vrcp.pop %v1594
      %v1627 = vrcp.pop %v1595
      %v1628 = vrcp.pop %v1596
      %v1629 = vrcp.pop %v1597
      %v1630 = vrcp.pop %v1598
      %v1631 = vrcp.pop %v1599
      %v1632 = vmul.f32 %v1440, %v1600
      %v1633 = vmul.f32 %v1441, %v1601
      %v1634 = vmul.f32 %v1442, %v1602
      %v1635 = vmul.f32 %v1443, %v1603
      %v1636 = vmul.f32 %v1444, %v1604
      %v1637 = vmul.f32 %v1445, %v1605
      %v1638 = vmul.f32 %v1446, %v1606
      %v1639 = vmul.f32 %v1447, %v1607
      %v1640 = vmul.f32 %v1448, %v1608
      %v1641 = vmul.f32 %v1449, %v1609
      %v1642 = vmul.f32 %v1450, %v1610
      %v1643 = vmul.f32 %v1451, %v1611
      %v1644 = vmul.f32 %v1452, %v1612
      %v1645 = vmul.f32 %v1453, %v1613
      %v1646 = vmul.f32 %v1454, %v1614
      %v1647 = vmul.f32 %v1455, %v1615
      %v1648 = vmul.f32 %v1456, %v1616
      %v1649 = vmul.f32 %v1457, %v1617
      %v1650 = vmul.f32 %v1458, %v1618
      %v1651 = vmul.f32 %v1459, %v1619
      %v1652 = vmul.f32 %v1460, %v1620
      %v1653 = vmul.f32 %v1461, %v1621
      %v1654 = vmul.f32 %v1462, %v1622
      %v1655 = vmul.f32 %v1463, %v1623
      %v1656 = vmul.f32 %v1464, %v1624
      %v1657 = vmul.f32 %v1465, %v1625
      %v1658 = vmul.f32 %v1466, %v1626
      %v1659 = vmul.f32 %v1467, %v1627
      %v1660 = vmul.f32 %v1468, %v1628
      %v1661 = vmul.f32 %v1469, %v1629
      %v1662 = vmul.f32 %v1470, %v1630
      %v1663 = vmul.f32 %v1471, %v1631
      %v1664 = vrot.slane %v1632, 7
      %v1665 = vrot.slane %v1633, 7
      %v1666 = vrot.slane %v1634, 7
      %v1667 = vrot.slane %v1635, 7
      %v1668 = vrot.slane %v1636, 7
      %v1669 = vrot.slane %v1637, 7
      %v1670 = vrot.slane %v1638, 7
      %v1671 = vrot.slane %v1639, 7
      %v1672 = vrot.slane %v1640, 7
      %v1673 = vrot.slane %v1641, 7
      %v1674 = vrot.slane %v1642, 7
      %v1675 = vrot.slane %v1643, 7
      %v1676 = vrot.slane %v1644, 7
      %v1677 = vrot.slane %v1645, 7
      %v1678 = vrot.slane %v1646, 7
      %v1679 = vrot.slane %v1647, 7
      %v1680 = vrot.slane %v1648, 7
      %v1681 = vrot.slane %v1649, 7
      %v1682 = vrot.slane %v1650, 7
      %v1683 = vrot.slane %v1651, 7
      %v1684 = vrot.slane %v1652, 7
      %v1685 = vrot.slane %v1653, 7
      %v1686 = vrot.slane %v1654, 7
      %v1687 = vrot.slane %v1655, 7
      %v1688 = vrot.slane %v1656, 7
      %v1689 = vrot.slane %v1657, 7
      %v1690 = vrot.slane %v1658, 7
      %v1691 = vrot.slane %v1659, 7
      %v1692 = vrot.slane %v1660, 7
      %v1693 = vrot.slane %v1661, 7
      %v1694 = vrot.slane %v1662, 7
      %v1695 = vrot.slane %v1663, 7
      %v1696 = vlaneseq
      %v1697 = vshrl.u32 %v1696, 7
      %vm1698 = vcmp.lt.s32.totalorder %v1697, 1
      %v1699 = vsel %vm1698, %v1694, %v1695
      %v1700 = vsel %vm1698, %v1693, %v1694
      %v1701 = vsel %vm1698, %v1692, %v1693
      %v1702 = vsel %vm1698, %v1691, %v1692
      %v1703 = vsel %vm1698, %v1690, %v1691
      %v1704 = vsel %vm1698, %v1689, %v1690
      %v1705 = vsel %vm1698, %v1688, %v1689
      %v1706 = vsel %vm1698, %v1687, %v1688
      %v1707 = vsel %vm1698, %v1686, %v1687
      %v1708 = vsel %vm1698, %v1685, %v1686
      %v1709 = vsel %vm1698, %v1684, %v1685
      %v1710 = vsel %vm1698, %v1683, %v1684
      %v1711 = vsel %vm1698, %v1682, %v1683
      %v1712 = vsel %vm1698, %v1681, %v1682
      %v1713 = vsel %vm1698, %v1680, %v1681
      %v1714 = vsel %vm1698, %v1679, %v1680
      %v1715 = vsel %vm1698, %v1678, %v1679
      %v1716 = vsel %vm1698, %v1677, %v1678
      %v1717 = vsel %vm1698, %v1676, %v1677
      %v1718 = vsel %vm1698, %v1675, %v1676
      %v1719 = vsel %vm1698, %v1674, %v1675
      %v1720 = vsel %vm1698, %v1673, %v1674
      %v1721 = vsel %vm1698, %v1672, %v1673
      %v1722 = vsel %vm1698, %v1671, %v1672
      %v1723 = vsel %vm1698, %v1670, %v1671
      %v1724 = vsel %vm1698, %v1669, %v1670
      %v1725 = vsel %vm1698, %v1668, %v1669
      %v1726 = vsel %vm1698, %v1667, %v1668
      %v1727 = vsel %vm1698, %v1666, %v1667
      %v1728 = vsel %vm1698, %v1665, %v1666
      %v1729 = vsel %vm1698, %v1664, %v1665
      %v1730 = vsel %vm1698, %v1695, %v1664
      %1732 = vset.pattern.permute.xlu0 0
      %1733 = vperm.xlu0 %1732, %v792
      %v1734 = vpop.permute.xlu0 %1733
      %1737 = vset.pattern.permute.xlu0 0
      %1738 = vperm.xlu0 %1737, %v793
      %v1739 = vpop.permute.xlu0 %1738
      %1742 = vset.pattern.permute.xlu0 0
      %1743 = vperm.xlu0 %1742, %v794
      %v1744 = vpop.permute.xlu0 %1743
      %1747 = vset.pattern.permute.xlu0 0
      %1748 = vperm.xlu0 %1747, %v795
      %v1749 = vpop.permute.xlu0 %1748
      %1752 = vset.pattern.permute.xlu0 0
      %1753 = vperm.xlu0 %1752, %v796
      %v1754 = vpop.permute.xlu0 %1753
      %1757 = vset.pattern.permute.xlu0 0
      %1758 = vperm.xlu0 %1757, %v797
      %v1759 = vpop.permute.xlu0 %1758
      %1762 = vset.pattern.permute.xlu0 0
      %1763 = vperm.xlu0 %1762, %v798
      %v1764 = vpop.permute.xlu0 %1763
      %1767 = vset.pattern.permute.xlu0 0
      %1768 = vperm.xlu0 %1767, %v799
      %v1769 = vpop.permute.xlu0 %1768
      %1772 = vset.pattern.permute.xlu0 0
      %1773 = vperm.xlu0 %1772, %v800
      %v1774 = vpop.permute.xlu0 %1773
      %1777 = vset.pattern.permute.xlu0 0
      %1778 = vperm.xlu0 %1777, %v801
      %v1779 = vpop.permute.xlu0 %1778
      %1782 = vset.pattern.permute.xlu0 0
      %1783 = vperm.xlu0 %1782, %v802
      %v1784 = vpop.permute.xlu0 %1783
      %1787 = vset.pattern.permute.xlu0 0
      %1788 = vperm.xlu0 %1787, %v803
      %v1789 = vpop.permute.xlu0 %1788
      %1792 = vset.pattern.permute.xlu0 0
      %1793 = vperm.xlu0 %1792, %v804
      %v1794 = vpop.permute.xlu0 %1793
      %1797 = vset.pattern.permute.xlu0 0
      %1798 = vperm.xlu0 %1797, %v805
      %v1799 = vpop.permute.xlu0 %1798
      %1802 = vset.pattern.permute.xlu0 0
      %1803 = vperm.xlu0 %1802, %v806
      %v1804 = vpop.permute.xlu0 %1803
      %1807 = vset.pattern.permute.xlu0 0
      %1808 = vperm.xlu0 %1807, %v807
      %v1809 = vpop.permute.xlu0 %1808
      %1812 = vset.pattern.permute.xlu0 0
      %1813 = vperm.xlu0 %1812, %v808
      %v1814 = vpop.permute.xlu0 %1813
      %1817 = vset.pattern.permute.xlu0 0
      %1818 = vperm.xlu0 %1817, %v809
      %v1819 = vpop.permute.xlu0 %1818
      %1822 = vset.pattern.permute.xlu0 0
      %1823 = vperm.xlu0 %1822, %v810
      %v1824 = vpop.permute.xlu0 %1823
      %1827 = vset.pattern.permute.xlu0 0
      %1828 = vperm.xlu0 %1827, %v811
      %v1829 = vpop.permute.xlu0 %1828
      %1832 = vset.pattern.permute.xlu0 0
      %1833 = vperm.xlu0 %1832, %v812
      %v1834 = vpop.permute.xlu0 %1833
      %1837 = vset.pattern.permute.xlu0 0
      %1838 = vperm.xlu0 %1837, %v813
      %v1839 = vpop.permute.xlu0 %1838
      %1842 = vset.pattern.permute.xlu0 0
      %1843 = vperm.xlu0 %1842, %v814
      %v1844 = vpop.permute.xlu0 %1843
      %1847 = vset.pattern.permute.xlu0 0
      %1848 = vperm.xlu0 %1847, %v815
      %v1849 = vpop.permute.xlu0 %1848
      %1852 = vset.pattern.permute.xlu0 0
      %1853 = vperm.xlu0 %1852, %v816
      %v1854 = vpop.permute.xlu0 %1853
      %1857 = vset.pattern.permute.xlu0 0
      %1858 = vperm.xlu0 %1857, %v817
      %v1859 = vpop.permute.xlu0 %1858
      %1862 = vset.pattern.permute.xlu0 0
      %1863 = vperm.xlu0 %1862, %v818
      %v1864 = vpop.permute.xlu0 %1863
      %1867 = vset.pattern.permute.xlu0 0
      %1868 = vperm.xlu0 %1867, %v819
      %v1869 = vpop.permute.xlu0 %1868
      %1872 = vset.pattern.permute.xlu0 0
      %1873 = vperm.xlu0 %1872, %v820
      %v1874 = vpop.permute.xlu0 %1873
      %1877 = vset.pattern.permute.xlu0 0
      %1878 = vperm.xlu0 %1877, %v821
      %v1879 = vpop.permute.xlu0 %1878
      %1882 = vset.pattern.permute.xlu0 0
      %1883 = vperm.xlu0 %1882, %v822
      %v1884 = vpop.permute.xlu0 %1883
      %1887 = vset.pattern.permute.xlu0 0
      %1888 = vperm.xlu0 %1887, %v823
      %v1889 = vpop.permute.xlu0 %1888
      %v1891 = vmul.f32 %v1734, %v1730
      %v1892 = vmul.f32 %v1739, %v1729
      %v1893 = vmul.f32 %v1744, %v1728
      %v1894 = vmul.f32 %v1749, %v1727
      %v1895 = vmul.f32 %v1754, %v1726
      %v1896 = vmul.f32 %v1759, %v1725
      %v1897 = vmul.f32 %v1764, %v1724
      %v1898 = vmul.f32 %v1769, %v1723
      %v1899 = vmul.f32 %v1774, %v1722
      %v1900 = vmul.f32 %v1779, %v1721
      %v1901 = vmul.f32 %v1784, %v1720
      %v1902 = vmul.f32 %v1789, %v1719
      %v1903 = vmul.f32 %v1794, %v1718
      %v1904 = vmul.f32 %v1799, %v1717
      %v1905 = vmul.f32 %v1804, %v1716
      %v1906 = vmul.f32 %v1809, %v1715
      %v1907 = vmul.f32 %v1814, %v1714
      %v1908 = vmul.f32 %v1819, %v1713
      %v1909 = vmul.f32 %v1824, %v1712
      %v1910 = vmul.f32 %v1829, %v1711
      %v1911 = vmul.f32 %v1834, %v1710
      %v1912 = vmul.f32 %v1839, %v1709
      %v1913 = vmul.f32 %v1844, %v1708
      %v1914 = vmul.f32 %v1849, %v1707
      %v1915 = vmul.f32 %v1854, %v1706
      %v1916 = vmul.f32 %v1859, %v1705
      %v1917 = vmul.f32 %v1864, %v1704
      %v1918 = vmul.f32 %v1869, %v1703
      %v1919 = vmul.f32 %v1874, %v1702
      %v1920 = vmul.f32 %v1879, %v1701
      %v1921 = vmul.f32 %v1884, %v1700
      %v1922 = vmul.f32 %v1889, %v1699
      %v1923 = vrot.slane %v1632, 1
      %v1924 = vrot.slane %v1633, 1
      %v1925 = vrot.slane %v1634, 1
      %v1926 = vrot.slane %v1635, 1
      %v1927 = vrot.slane %v1636, 1
      %v1928 = vrot.slane %v1637, 1
      %v1929 = vrot.slane %v1638, 1
      %v1930 = vrot.slane %v1639, 1
      %v1931 = vrot.slane %v1640, 1
      %v1932 = vrot.slane %v1641, 1
      %v1933 = vrot.slane %v1642, 1
      %v1934 = vrot.slane %v1643, 1
      %v1935 = vrot.slane %v1644, 1
      %v1936 = vrot.slane %v1645, 1
      %v1937 = vrot.slane %v1646, 1
      %v1938 = vrot.slane %v1647, 1
      %v1939 = vrot.slane %v1648, 1
      %v1940 = vrot.slane %v1649, 1
      %v1941 = vrot.slane %v1650, 1
      %v1942 = vrot.slane %v1651, 1
      %v1943 = vrot.slane %v1652, 1
      %v1944 = vrot.slane %v1653, 1
      %v1945 = vrot.slane %v1654, 1
      %v1946 = vrot.slane %v1655, 1
      %v1947 = vrot.slane %v1656, 1
      %v1948 = vrot.slane %v1657, 1
      %v1949 = vrot.slane %v1658, 1
      %v1950 = vrot.slane %v1659, 1
      %v1951 = vrot.slane %v1660, 1
      %v1952 = vrot.slane %v1661, 1
      %v1953 = vrot.slane %v1662, 1
      %v1954 = vrot.slane %v1663, 1
      %vm1955 = vcmp.lt.s32.totalorder %v1697, 7
      %v1956 = vsel %vm1955, %v1953, %v1954
      %v1957 = vsel %vm1955, %v1952, %v1953
      %v1958 = vsel %vm1955, %v1951, %v1952
      %v1959 = vsel %vm1955, %v1950, %v1951
      %v1960 = vsel %vm1955, %v1949, %v1950
      %v1961 = vsel %vm1955, %v1948, %v1949
      %v1962 = vsel %vm1955, %v1947, %v1948
      %v1963 = vsel %vm1955, %v1946, %v1947
      %v1964 = vsel %vm1955, %v1945, %v1946
      %v1965 = vsel %vm1955, %v1944, %v1945
      %v1966 = vsel %vm1955, %v1943, %v1944
      %v1967 = vsel %vm1955, %v1942, %v1943
      %v1968 = vsel %vm1955, %v1941, %v1942
      %v1969 = vsel %vm1955, %v1940, %v1941
      %v1970 = vsel %vm1955, %v1939, %v1940
      %v1971 = vsel %vm1955, %v1938, %v1939
      %v1972 = vsel %vm1955, %v1937, %v1938
      %v1973 = vsel %vm1955, %v1936, %v1937
      %v1974 = vsel %vm1955, %v1935, %v1936
      %v1975 = vsel %vm1955, %v1934, %v1935
      %v1976 = vsel %vm1955, %v1933, %v1934
      %v1977 = vsel %vm1955, %v1932, %v1933
      %v1978 = vsel %vm1955, %v1931, %v1932
      %v1979 = vsel %vm1955, %v1930, %v1931
      %v1980 = vsel %vm1955, %v1929, %v1930
      %v1981 = vsel %vm1955, %v1928, %v1929
      %v1982 = vsel %vm1955, %v1927, %v1928
      %v1983 = vsel %vm1955, %v1926, %v1927
      %v1984 = vsel %vm1955, %v1925, %v1926
      %v1985 = vsel %vm1955, %v1924, %v1925
      %v1986 = vsel %vm1955, %v1923, %v1924
      %v1987 = vsel %vm1955, %v1954, %v1923
      %1989 = vset.pattern.permute.xlu0 0
      %1990 = vperm.xlu0 %1989, %v825
      %v1991 = vpop.permute.xlu0 %1990
      %1994 = vset.pattern.permute.xlu0 0
      %1995 = vperm.xlu0 %1994, %v826
      %v1996 = vpop.permute.xlu0 %1995
      %1999 = vset.pattern.permute.xlu0 0
      %2000 = vperm.xlu0 %1999, %v827
      %v2001 = vpop.permute.xlu0 %2000
      %2004 = vset.pattern.permute.xlu0 0
      %2005 = vperm.xlu0 %2004, %v828
      %v2006 = vpop.permute.xlu0 %2005
      %2009 = vset.pattern.permute.xlu0 0
      %2010 = vperm.xlu0 %2009, %v829
      %v2011 = vpop.permute.xlu0 %2010
      %2014 = vset.pattern.permute.xlu0 0
      %2015 = vperm.xlu0 %2014, %v830
      %v2016 = vpop.permute.xlu0 %2015
      %2019 = vset.pattern.permute.xlu0 0
      %2020 = vperm.xlu0 %2019, %v831
      %v2021 = vpop.permute.xlu0 %2020
      %2024 = vset.pattern.permute.xlu0 0
      %2025 = vperm.xlu0 %2024, %v832
      %v2026 = vpop.permute.xlu0 %2025
      %2029 = vset.pattern.permute.xlu0 0
      %2030 = vperm.xlu0 %2029, %v833
      %v2031 = vpop.permute.xlu0 %2030
      %2034 = vset.pattern.permute.xlu0 0
      %2035 = vperm.xlu0 %2034, %v834
      %v2036 = vpop.permute.xlu0 %2035
      %2039 = vset.pattern.permute.xlu0 0
      %2040 = vperm.xlu0 %2039, %v835
      %v2041 = vpop.permute.xlu0 %2040
      %2044 = vset.pattern.permute.xlu0 0
      %2045 = vperm.xlu0 %2044, %v836
      %v2046 = vpop.permute.xlu0 %2045
      %2049 = vset.pattern.permute.xlu0 0
      %2050 = vperm.xlu0 %2049, %v837
      %v2051 = vpop.permute.xlu0 %2050
      %2054 = vset.pattern.permute.xlu0 0
      %2055 = vperm.xlu0 %2054, %v838
      %v2056 = vpop.permute.xlu0 %2055
      %2059 = vset.pattern.permute.xlu0 0
      %2060 = vperm.xlu0 %2059, %v839
      %v2061 = vpop.permute.xlu0 %2060
      %2064 = vset.pattern.permute.xlu0 0
      %2065 = vperm.xlu0 %2064, %v840
      %v2066 = vpop.permute.xlu0 %2065
      %2069 = vset.pattern.permute.xlu0 0
      %2070 = vperm.xlu0 %2069, %v841
      %v2071 = vpop.permute.xlu0 %2070
      %2074 = vset.pattern.permute.xlu0 0
      %2075 = vperm.xlu0 %2074, %v842
      %v2076 = vpop.permute.xlu0 %2075
      %2079 = vset.pattern.permute.xlu0 0
      %2080 = vperm.xlu0 %2079, %v843
      %v2081 = vpop.permute.xlu0 %2080
      %2084 = vset.pattern.permute.xlu0 0
      %2085 = vperm.xlu0 %2084, %v844
      %v2086 = vpop.permute.xlu0 %2085
      %2089 = vset.pattern.permute.xlu0 0
      %2090 = vperm.xlu0 %2089, %v845
      %v2091 = vpop.permute.xlu0 %2090
      %2094 = vset.pattern.permute.xlu0 0
      %2095 = vperm.xlu0 %2094, %v846
      %v2096 = vpop.permute.xlu0 %2095
      %2099 = vset.pattern.permute.xlu0 0
      %2100 = vperm.xlu0 %2099, %v847
      %v2101 = vpop.permute.xlu0 %2100
      %2104 = vset.pattern.permute.xlu0 0
      %2105 = vperm.xlu0 %2104, %v848
      %v2106 = vpop.permute.xlu0 %2105
      %2109 = vset.pattern.permute.xlu0 0
      %2110 = vperm.xlu0 %2109, %v849
      %v2111 = vpop.permute.xlu0 %2110
      %2114 = vset.pattern.permute.xlu0 0
      %2115 = vperm.xlu0 %2114, %v850
      %v2116 = vpop.permute.xlu0 %2115
      %2119 = vset.pattern.permute.xlu0 0
      %2120 = vperm.xlu0 %2119, %v851
      %v2121 = vpop.permute.xlu0 %2120
      %2124 = vset.pattern.permute.xlu0 0
      %2125 = vperm.xlu0 %2124, %v852
      %v2126 = vpop.permute.xlu0 %2125
      %2129 = vset.pattern.permute.xlu0 0
      %2130 = vperm.xlu0 %2129, %v853
      %v2131 = vpop.permute.xlu0 %2130
      %2134 = vset.pattern.permute.xlu0 0
      %2135 = vperm.xlu0 %2134, %v854
      %v2136 = vpop.permute.xlu0 %2135
      %2139 = vset.pattern.permute.xlu0 0
      %2140 = vperm.xlu0 %2139, %v855
      %v2141 = vpop.permute.xlu0 %2140
      %2144 = vset.pattern.permute.xlu0 0
      %2145 = vperm.xlu0 %2144, %v856
      %v2146 = vpop.permute.xlu0 %2145
      %v2148 = vmul.f32 %v1991, %v1986
      %v2149 = vmul.f32 %v1996, %v1985
      %v2150 = vmul.f32 %v2001, %v1984
      %v2151 = vmul.f32 %v2006, %v1983
      %v2152 = vmul.f32 %v2011, %v1982
      %v2153 = vmul.f32 %v2016, %v1981
      %v2154 = vmul.f32 %v2021, %v1980
      %v2155 = vmul.f32 %v2026, %v1979
      %v2156 = vmul.f32 %v2031, %v1978
      %v2157 = vmul.f32 %v2036, %v1977
      %v2158 = vmul.f32 %v2041, %v1976
      %v2159 = vmul.f32 %v2046, %v1975
      %v2160 = vmul.f32 %v2051, %v1974
      %v2161 = vmul.f32 %v2056, %v1973
      %v2162 = vmul.f32 %v2061, %v1972
      %v2163 = vmul.f32 %v2066, %v1971
      %v2164 = vmul.f32 %v2071, %v1970
      %v2165 = vmul.f32 %v2076, %v1969
      %v2166 = vmul.f32 %v2081, %v1968
      %v2167 = vmul.f32 %v2086, %v1967
      %v2168 = vmul.f32 %v2091, %v1966
      %v2169 = vmul.f32 %v2096, %v1965
      %v2170 = vmul.f32 %v2101, %v1964
      %v2171 = vmul.f32 %v2106, %v1963
      %v2172 = vmul.f32 %v2111, %v1962
      %v2173 = vmul.f32 %v2116, %v1961
      %v2174 = vmul.f32 %v2121, %v1960
      %v2175 = vmul.f32 %v2126, %v1959
      %v2176 = vmul.f32 %v2131, %v1958
      %v2177 = vmul.f32 %v2136, %v1957
      %v2178 = vmul.f32 %v2141, %v1956
      %v2179 = vmul.f32 %v2146, %v1987
      %2212 = vrot.lane.b32.xlu0 %v1632, 4
      %v2213 = vpop.permute.xlu0 %2212
      %2214 = vrot.lane.b32.xlu0 %v1633, 4
      %v2215 = vpop.permute.xlu0 %2214
      %2216 = vrot.lane.b32.xlu0 %v1634, 4
      %v2217 = vpop.permute.xlu0 %2216
      %2218 = vrot.lane.b32.xlu0 %v1635, 4
      %v2219 = vpop.permute.xlu0 %2218
      %2220 = vrot.lane.b32.xlu0 %v1636, 4
      %v2221 = vpop.permute.xlu0 %2220
      %2222 = vrot.lane.b32.xlu0 %v1637, 4
      %v2223 = vpop.permute.xlu0 %2222
      %2224 = vrot.lane.b32.xlu0 %v1638, 4
      %v2225 = vpop.permute.xlu0 %2224
      %2226 = vrot.lane.b32.xlu0 %v1639, 4
      %v2227 = vpop.permute.xlu0 %2226
      %2228 = vrot.lane.b32.xlu0 %v1640, 4
      %v2229 = vpop.permute.xlu0 %2228
      %2230 = vrot.lane.b32.xlu0 %v1641, 4
      %v2231 = vpop.permute.xlu0 %2230
      %2232 = vrot.lane.b32.xlu0 %v1642, 4
      %v2233 = vpop.permute.xlu0 %2232
      %2234 = vrot.lane.b32.xlu0 %v1643, 4
      %v2235 = vpop.permute.xlu0 %2234
      %2236 = vrot.lane.b32.xlu0 %v1644, 4
      %v2237 = vpop.permute.xlu0 %2236
      %2238 = vrot.lane.b32.xlu0 %v1645, 4
      %v2239 = vpop.permute.xlu0 %2238
      %2240 = vrot.lane.b32.xlu0 %v1646, 4
      %v2241 = vpop.permute.xlu0 %2240
      %2242 = vrot.lane.b32.xlu0 %v1647, 4
      %v2243 = vpop.permute.xlu0 %2242
      %2244 = vrot.lane.b32.xlu0 %v1648, 4
      %v2245 = vpop.permute.xlu0 %2244
      %2246 = vrot.lane.b32.xlu0 %v1649, 4
      %v2247 = vpop.permute.xlu0 %2246
      %2248 = vrot.lane.b32.xlu0 %v1650, 4
      %v2249 = vpop.permute.xlu0 %2248
      %2250 = vrot.lane.b32.xlu0 %v1651, 4
      %v2251 = vpop.permute.xlu0 %2250
      %2252 = vrot.lane.b32.xlu0 %v1652, 4
      %v2253 = vpop.permute.xlu0 %2252
      %2254 = vrot.lane.b32.xlu0 %v1653, 4
      %v2255 = vpop.permute.xlu0 %2254
      %2256 = vrot.lane.b32.xlu0 %v1654, 4
      %v2257 = vpop.permute.xlu0 %2256
      %2258 = vrot.lane.b32.xlu0 %v1655, 4
      %v2259 = vpop.permute.xlu0 %2258
      %2260 = vrot.lane.b32.xlu0 %v1656, 4
      %v2261 = vpop.permute.xlu0 %2260
      %2262 = vrot.lane.b32.xlu0 %v1657, 4
      %v2263 = vpop.permute.xlu0 %2262
      %2264 = vrot.lane.b32.xlu0 %v1658, 4
      %v2265 = vpop.permute.xlu0 %2264
      %2266 = vrot.lane.b32.xlu0 %v1659, 4
      %v2267 = vpop.permute.xlu0 %2266
      %2268 = vrot.lane.b32.xlu0 %v1660, 4
      %v2269 = vpop.permute.xlu0 %2268
      %2270 = vrot.lane.b32.xlu0 %v1661, 4
      %v2271 = vpop.permute.xlu0 %2270
      %2272 = vrot.lane.b32.xlu0 %v1662, 4
      %v2273 = vpop.permute.xlu0 %2272
      %2274 = vrot.lane.b32.xlu0 %v1663, 4
      %v2275 = vpop.permute.xlu0 %2274
      %2340 = vrot.lane.b32.xlu0 %v2148, 8
      %v2341 = vpop.permute.xlu0 %2340
      %2342 = vrot.lane.b32.xlu0 %v2149, 8
      %v2343 = vpop.permute.xlu0 %2342
      %2344 = vrot.lane.b32.xlu0 %v2150, 8
      %v2345 = vpop.permute.xlu0 %2344
      %2346 = vrot.lane.b32.xlu0 %v2151, 8
      %v2347 = vpop.permute.xlu0 %2346
      %2348 = vrot.lane.b32.xlu0 %v2152, 8
      %v2349 = vpop.permute.xlu0 %2348
      %2350 = vrot.lane.b32.xlu0 %v2153, 8
      %v2351 = vpop.permute.xlu0 %2350
      %2352 = vrot.lane.b32.xlu0 %v2154, 8
      %v2353 = vpop.permute.xlu0 %2352
      %2354 = vrot.lane.b32.xlu0 %v2155, 8
      %v2355 = vpop.permute.xlu0 %2354
      %2356 = vrot.lane.b32.xlu0 %v2156, 8
      %v2357 = vpop.permute.xlu0 %2356
      %2358 = vrot.lane.b32.xlu0 %v2157, 8
      %v2359 = vpop.permute.xlu0 %2358
      %2360 = vrot.lane.b32.xlu0 %v2158, 8
      %v2361 = vpop.permute.xlu0 %2360
      %2362 = vrot.lane.b32.xlu0 %v2159, 8
      %v2363 = vpop.permute.xlu0 %2362
      %2364 = vrot.lane.b32.xlu0 %v2160, 8
      %v2365 = vpop.permute.xlu0 %2364
      %2366 = vrot.lane.b32.xlu0 %v2161, 8
      %v2367 = vpop.permute.xlu0 %2366
      %2368 = vrot.lane.b32.xlu0 %v2162, 8
      %v2369 = vpop.permute.xlu0 %2368
      %2370 = vrot.lane.b32.xlu0 %v2163, 8
      %v2371 = vpop.permute.xlu0 %2370
      %2372 = vrot.lane.b32.xlu0 %v2164, 8
      %v2373 = vpop.permute.xlu0 %2372
      %2374 = vrot.lane.b32.xlu0 %v2165, 8
      %v2375 = vpop.permute.xlu0 %2374
      %2376 = vrot.lane.b32.xlu0 %v2166, 8
      %v2377 = vpop.permute.xlu0 %2376
      %2378 = vrot.lane.b32.xlu0 %v2167, 8
      %v2379 = vpop.permute.xlu0 %2378
      %2380 = vrot.lane.b32.xlu0 %v2168, 8
      %v2381 = vpop.permute.xlu0 %2380
      %2382 = vrot.lane.b32.xlu0 %v2169, 8
      %v2383 = vpop.permute.xlu0 %2382
      %2384 = vrot.lane.b32.xlu0 %v2170, 8
      %v2385 = vpop.permute.xlu0 %2384
      %2386 = vrot.lane.b32.xlu0 %v2171, 8
      %v2387 = vpop.permute.xlu0 %2386
      %2388 = vrot.lane.b32.xlu0 %v2172, 8
      %v2389 = vpop.permute.xlu0 %2388
      %2390 = vrot.lane.b32.xlu0 %v2173, 8
      %v2391 = vpop.permute.xlu0 %2390
      %2392 = vrot.lane.b32.xlu0 %v2174, 8
      %v2393 = vpop.permute.xlu0 %2392
      %2394 = vrot.lane.b32.xlu0 %v2175, 8
      %v2395 = vpop.permute.xlu0 %2394
      %2396 = vrot.lane.b32.xlu0 %v2176, 8
      %v2397 = vpop.permute.xlu0 %2396
      %2398 = vrot.lane.b32.xlu0 %v2177, 8
      %v2399 = vpop.permute.xlu0 %2398
      %2400 = vrot.lane.b32.xlu0 %v2178, 8
      %v2401 = vpop.permute.xlu0 %2400
      %2402 = vrot.lane.b32.xlu0 %v2179, 8
      %v2403 = vpop.permute.xlu0 %2402
      %v2436 = vsel %vm1033, %v1891, %v2213
      %v2437 = vsel %vm1033, %v1892, %v2215
      %v2438 = vsel %vm1033, %v1893, %v2217
      %v2439 = vsel %vm1033, %v1894, %v2219
      %v2440 = vsel %vm1033, %v1895, %v2221
      %v2441 = vsel %vm1033, %v1896, %v2223
      %v2442 = vsel %vm1033, %v1897, %v2225
      %v2443 = vsel %vm1033, %v1898, %v2227
      %v2444 = vsel %vm1033, %v1899, %v2229
      %v2445 = vsel %vm1033, %v1900, %v2231
      %v2446 = vsel %vm1033, %v1901, %v2233
      %v2447 = vsel %vm1033, %v1902, %v2235
      %v2448 = vsel %vm1033, %v1903, %v2237
      %v2449 = vsel %vm1033, %v1904, %v2239
      %v2450 = vsel %vm1033, %v1905, %v2241
      %v2451 = vsel %vm1033, %v1906, %v2243
      %v2452 = vsel %vm1033, %v1907, %v2245
      %v2453 = vsel %vm1033, %v1908, %v2247
      %v2454 = vsel %vm1033, %v1909, %v2249
      %v2455 = vsel %vm1033, %v1910, %v2251
      %v2456 = vsel %vm1033, %v1911, %v2253
      %v2457 = vsel %vm1033, %v1912, %v2255
      %v2458 = vsel %vm1033, %v1913, %v2257
      %v2459 = vsel %vm1033, %v1914, %v2259
      %v2460 = vsel %vm1033, %v1915, %v2261
      %v2461 = vsel %vm1033, %v1916, %v2263
      %v2462 = vsel %vm1033, %v1917, %v2265
      %v2463 = vsel %vm1033, %v1918, %v2267
      %v2464 = vsel %vm1033, %v1919, %v2269
      %v2465 = vsel %vm1033, %v1920, %v2271
      %v2466 = vsel %vm1033, %v1921, %v2273
      %v2467 = vsel %vm1033, %v1922, %v2275
      %vm2468 = vcmask 64512
      %v2469 = vsel %vm2468, %v2436, %v2341
      %v2470 = vsel %vm2468, %v2437, %v2343
      %v2471 = vsel %vm2468, %v2438, %v2345
      %v2472 = vsel %vm2468, %v2439, %v2347
      %v2473 = vsel %vm2468, %v2440, %v2349
      %v2474 = vsel %vm2468, %v2441, %v2351
      %v2475 = vsel %vm2468, %v2442, %v2353
      %v2476 = vsel %vm2468, %v2443, %v2355
      %v2477 = vsel %vm2468, %v2444, %v2357
      %v2478 = vsel %vm2468, %v2445, %v2359
      %v2479 = vsel %vm2468, %v2446, %v2361
      %v2480 = vsel %vm2468, %v2447, %v2363
      %v2481 = vsel %vm2468, %v2448, %v2365
      %v2482 = vsel %vm2468, %v2449, %v2367
      %v2483 = vsel %vm2468, %v2450, %v2369
      %v2484 = vsel %vm2468, %v2451, %v2371
      %v2485 = vsel %vm2468, %v2452, %v2373
      %v2486 = vsel %vm2468, %v2453, %v2375
      %v2487 = vsel %vm2468, %v2454, %v2377
      %v2488 = vsel %vm2468, %v2455, %v2379
      %v2489 = vsel %vm2468, %v2456, %v2381
      %v2490 = vsel %vm2468, %v2457, %v2383
      %v2491 = vsel %vm2468, %v2458, %v2385
      %v2492 = vsel %vm2468, %v2459, %v2387
      %v2493 = vsel %vm2468, %v2460, %v2389
      %v2494 = vsel %vm2468, %v2461, %v2391
      %v2495 = vsel %vm2468, %v2462, %v2393
      %v2496 = vsel %vm2468, %v2463, %v2395
      %v2497 = vsel %vm2468, %v2464, %v2397
      %v2498 = vsel %vm2468, %v2465, %v2399
      %v2499 = vsel %vm2468, %v2466, %v2401
      %v2500 = vsel %vm2468, %v2467, %v2403
      %2502 = vset.pattern.permute.xlu0 0
      %2503 = vperm.xlu0 %2502, %v858
      %v2504 = vpop.permute.xlu0 %2503
      %2507 = vset.pattern.permute.xlu0 0
      %2508 = vperm.xlu0 %2507, %v859
      %v2509 = vpop.permute.xlu0 %2508
      %2512 = vset.pattern.permute.xlu0 0
      %2513 = vperm.xlu0 %2512, %v860
      %v2514 = vpop.permute.xlu0 %2513
      %2517 = vset.pattern.permute.xlu0 0
      %2518 = vperm.xlu0 %2517, %v861
      %v2519 = vpop.permute.xlu0 %2518
      %2522 = vset.pattern.permute.xlu0 0
      %2523 = vperm.xlu0 %2522, %v862
      %v2524 = vpop.permute.xlu0 %2523
      %2527 = vset.pattern.permute.xlu0 0
      %2528 = vperm.xlu0 %2527, %v863
      %v2529 = vpop.permute.xlu0 %2528
      %2532 = vset.pattern.permute.xlu0 0
      %2533 = vperm.xlu0 %2532, %v864
      %v2534 = vpop.permute.xlu0 %2533
      %2537 = vset.pattern.permute.xlu0 0
      %2538 = vperm.xlu0 %2537, %v865
      %v2539 = vpop.permute.xlu0 %2538
      %2542 = vset.pattern.permute.xlu0 0
      %2543 = vperm.xlu0 %2542, %v866
      %v2544 = vpop.permute.xlu0 %2543
      %2547 = vset.pattern.permute.xlu0 0
      %2548 = vperm.xlu0 %2547, %v867
      %v2549 = vpop.permute.xlu0 %2548
      %2552 = vset.pattern.permute.xlu0 0
      %2553 = vperm.xlu0 %2552, %v868
      %v2554 = vpop.permute.xlu0 %2553
      %2557 = vset.pattern.permute.xlu0 0
      %2558 = vperm.xlu0 %2557, %v869
      %v2559 = vpop.permute.xlu0 %2558
      %2562 = vset.pattern.permute.xlu0 0
      %2563 = vperm.xlu0 %2562, %v870
      %v2564 = vpop.permute.xlu0 %2563
      %2567 = vset.pattern.permute.xlu0 0
      %2568 = vperm.xlu0 %2567, %v871
      %v2569 = vpop.permute.xlu0 %2568
      %2572 = vset.pattern.permute.xlu0 0
      %2573 = vperm.xlu0 %2572, %v872
      %v2574 = vpop.permute.xlu0 %2573
      %2577 = vset.pattern.permute.xlu0 0
      %2578 = vperm.xlu0 %2577, %v873
      %v2579 = vpop.permute.xlu0 %2578
      %2582 = vset.pattern.permute.xlu0 0
      %2583 = vperm.xlu0 %2582, %v874
      %v2584 = vpop.permute.xlu0 %2583
      %2587 = vset.pattern.permute.xlu0 0
      %2588 = vperm.xlu0 %2587, %v875
      %v2589 = vpop.permute.xlu0 %2588
      %2592 = vset.pattern.permute.xlu0 0
      %2593 = vperm.xlu0 %2592, %v876
      %v2594 = vpop.permute.xlu0 %2593
      %2597 = vset.pattern.permute.xlu0 0
      %2598 = vperm.xlu0 %2597, %v877
      %v2599 = vpop.permute.xlu0 %2598
      %2602 = vset.pattern.permute.xlu0 0
      %2603 = vperm.xlu0 %2602, %v878
      %v2604 = vpop.permute.xlu0 %2603
      %2607 = vset.pattern.permute.xlu0 0
      %2608 = vperm.xlu0 %2607, %v879
      %v2609 = vpop.permute.xlu0 %2608
      %2612 = vset.pattern.permute.xlu0 0
      %2613 = vperm.xlu0 %2612, %v880
      %v2614 = vpop.permute.xlu0 %2613
      %2617 = vset.pattern.permute.xlu0 0
      %2618 = vperm.xlu0 %2617, %v881
      %v2619 = vpop.permute.xlu0 %2618
      %2622 = vset.pattern.permute.xlu0 0
      %2623 = vperm.xlu0 %2622, %v882
      %v2624 = vpop.permute.xlu0 %2623
      %2627 = vset.pattern.permute.xlu0 0
      %2628 = vperm.xlu0 %2627, %v883
      %v2629 = vpop.permute.xlu0 %2628
      %2632 = vset.pattern.permute.xlu0 0
      %2633 = vperm.xlu0 %2632, %v884
      %v2634 = vpop.permute.xlu0 %2633
      %2637 = vset.pattern.permute.xlu0 0
      %2638 = vperm.xlu0 %2637, %v885
      %v2639 = vpop.permute.xlu0 %2638
      %2642 = vset.pattern.permute.xlu0 0
      %2643 = vperm.xlu0 %2642, %v886
      %v2644 = vpop.permute.xlu0 %2643
      %2647 = vset.pattern.permute.xlu0 0
      %2648 = vperm.xlu0 %2647, %v887
      %v2649 = vpop.permute.xlu0 %2648
      %2652 = vset.pattern.permute.xlu0 0
      %2653 = vperm.xlu0 %2652, %v888
      %v2654 = vpop.permute.xlu0 %2653
      %2657 = vset.pattern.permute.xlu0 0
      %2658 = vperm.xlu0 %2657, %v889
      %v2659 = vpop.permute.xlu0 %2658
      %v2661 = vmul.f32 %v2504, %v2499
      %v2662 = vmul.f32 %v2509, %v2500
      %v2663 = vmul.f32 %v2514, %v2469
      %v2664 = vmul.f32 %v2519, %v2470
      %v2665 = vmul.f32 %v2524, %v2471
      %v2666 = vmul.f32 %v2529, %v2472
      %v2667 = vmul.f32 %v2534, %v2473
      %v2668 = vmul.f32 %v2539, %v2474
      %v2669 = vmul.f32 %v2544, %v2475
      %v2670 = vmul.f32 %v2549, %v2476
      %v2671 = vmul.f32 %v2554, %v2477
      %v2672 = vmul.f32 %v2559, %v2478
      %v2673 = vmul.f32 %v2564, %v2479
      %v2674 = vmul.f32 %v2569, %v2480
      %v2675 = vmul.f32 %v2574, %v2481
      %v2676 = vmul.f32 %v2579, %v2482
      %v2677 = vmul.f32 %v2584, %v2483
      %v2678 = vmul.f32 %v2589, %v2484
      %v2679 = vmul.f32 %v2594, %v2485
      %v2680 = vmul.f32 %v2599, %v2486
      %v2681 = vmul.f32 %v2604, %v2487
      %v2682 = vmul.f32 %v2609, %v2488
      %v2683 = vmul.f32 %v2614, %v2489
      %v2684 = vmul.f32 %v2619, %v2490
      %v2685 = vmul.f32 %v2624, %v2491
      %v2686 = vmul.f32 %v2629, %v2492
      %v2687 = vmul.f32 %v2634, %v2493
      %v2688 = vmul.f32 %v2639, %v2494
      %v2689 = vmul.f32 %v2644, %v2495
      %v2690 = vmul.f32 %v2649, %v2496
      %v2691 = vmul.f32 %v2654, %v2497
      %v2692 = vmul.f32 %v2659, %v2498
      %2694 = vset.pattern.permute.xlu0 0
      %2695 = vperm.xlu0 %2694, %v891
      %v2696 = vpop.permute.xlu0 %2695
      %2699 = vset.pattern.permute.xlu0 0
      %2700 = vperm.xlu0 %2699, %v892
      %v2701 = vpop.permute.xlu0 %2700
      %2704 = vset.pattern.permute.xlu0 0
      %2705 = vperm.xlu0 %2704, %v893
      %v2706 = vpop.permute.xlu0 %2705
      %2709 = vset.pattern.permute.xlu0 0
      %2710 = vperm.xlu0 %2709, %v894
      %v2711 = vpop.permute.xlu0 %2710
      %2714 = vset.pattern.permute.xlu0 0
      %2715 = vperm.xlu0 %2714, %v895
      %v2716 = vpop.permute.xlu0 %2715
      %2719 = vset.pattern.permute.xlu0 0
      %2720 = vperm.xlu0 %2719, %v896
      %v2721 = vpop.permute.xlu0 %2720
      %2724 = vset.pattern.permute.xlu0 0
      %2725 = vperm.xlu0 %2724, %v897
      %v2726 = vpop.permute.xlu0 %2725
      %2729 = vset.pattern.permute.xlu0 0
      %2730 = vperm.xlu0 %2729, %v898
      %v2731 = vpop.permute.xlu0 %2730
      %2734 = vset.pattern.permute.xlu0 0
      %2735 = vperm.xlu0 %2734, %v899
      %v2736 = vpop.permute.xlu0 %2735
      %2739 = vset.pattern.permute.xlu0 0
      %2740 = vperm.xlu0 %2739, %v900
      %v2741 = vpop.permute.xlu0 %2740
      %2744 = vset.pattern.permute.xlu0 0
      %2745 = vperm.xlu0 %2744, %v901
      %v2746 = vpop.permute.xlu0 %2745
      %2749 = vset.pattern.permute.xlu0 0
      %2750 = vperm.xlu0 %2749, %v902
      %v2751 = vpop.permute.xlu0 %2750
      %2754 = vset.pattern.permute.xlu0 0
      %2755 = vperm.xlu0 %2754, %v903
      %v2756 = vpop.permute.xlu0 %2755
      %2759 = vset.pattern.permute.xlu0 0
      %2760 = vperm.xlu0 %2759, %v904
      %v2761 = vpop.permute.xlu0 %2760
      %2764 = vset.pattern.permute.xlu0 0
      %2765 = vperm.xlu0 %2764, %v905
      %v2766 = vpop.permute.xlu0 %2765
      %2769 = vset.pattern.permute.xlu0 0
      %2770 = vperm.xlu0 %2769, %v906
      %v2771 = vpop.permute.xlu0 %2770
      %2774 = vset.pattern.permute.xlu0 0
      %2775 = vperm.xlu0 %2774, %v907
      %v2776 = vpop.permute.xlu0 %2775
      %2779 = vset.pattern.permute.xlu0 0
      %2780 = vperm.xlu0 %2779, %v908
      %v2781 = vpop.permute.xlu0 %2780
      %2784 = vset.pattern.permute.xlu0 0
      %2785 = vperm.xlu0 %2784, %v909
      %v2786 = vpop.permute.xlu0 %2785
      %2789 = vset.pattern.permute.xlu0 0
      %2790 = vperm.xlu0 %2789, %v910
      %v2791 = vpop.permute.xlu0 %2790
      %2794 = vset.pattern.permute.xlu0 0
      %2795 = vperm.xlu0 %2794, %v911
      %v2796 = vpop.permute.xlu0 %2795
      %2799 = vset.pattern.permute.xlu0 0
      %2800 = vperm.xlu0 %2799, %v912
      %v2801 = vpop.permute.xlu0 %2800
      %2804 = vset.pattern.permute.xlu0 0
      %2805 = vperm.xlu0 %2804, %v913
      %v2806 = vpop.permute.xlu0 %2805
      %2809 = vset.pattern.permute.xlu0 0
      %2810 = vperm.xlu0 %2809, %v914
      %v2811 = vpop.permute.xlu0 %2810
      %2814 = vset.pattern.permute.xlu0 0
      %2815 = vperm.xlu0 %2814, %v915
      %v2816 = vpop.permute.xlu0 %2815
      %2819 = vset.pattern.permute.xlu0 0
      %2820 = vperm.xlu0 %2819, %v916
      %v2821 = vpop.permute.xlu0 %2820
      %2824 = vset.pattern.permute.xlu0 0
      %2825 = vperm.xlu0 %2824, %v917
      %v2826 = vpop.permute.xlu0 %2825
      %2829 = vset.pattern.permute.xlu0 0
      %2830 = vperm.xlu0 %2829, %v918
      %v2831 = vpop.permute.xlu0 %2830
      %2834 = vset.pattern.permute.xlu0 0
      %2835 = vperm.xlu0 %2834, %v919
      %v2836 = vpop.permute.xlu0 %2835
      %2839 = vset.pattern.permute.xlu0 0
      %2840 = vperm.xlu0 %2839, %v920
      %v2841 = vpop.permute.xlu0 %2840
      %2844 = vset.pattern.permute.xlu0 0
      %2845 = vperm.xlu0 %2844, %v921
      %v2846 = vpop.permute.xlu0 %2845
      %2849 = vset.pattern.permute.xlu0 0
      %2850 = vperm.xlu0 %2849, %v922
      %v2851 = vpop.permute.xlu0 %2850
      %v2853 = vmul.f32 %v2696, %v2471
      %v2854 = vmul.f32 %v2701, %v2472
      %v2855 = vmul.f32 %v2706, %v2473
      %v2856 = vmul.f32 %v2711, %v2474
      %v2857 = vmul.f32 %v2716, %v2475
      %v2858 = vmul.f32 %v2721, %v2476
      %v2859 = vmul.f32 %v2726, %v2477
      %v2860 = vmul.f32 %v2731, %v2478
      %v2861 = vmul.f32 %v2736, %v2479
      %v2862 = vmul.f32 %v2741, %v2480
      %v2863 = vmul.f32 %v2746, %v2481
      %v2864 = vmul.f32 %v2751, %v2482
      %v2865 = vmul.f32 %v2756, %v2483
      %v2866 = vmul.f32 %v2761, %v2484
      %v2867 = vmul.f32 %v2766, %v2485
      %v2868 = vmul.f32 %v2771, %v2486
      %v2869 = vmul.f32 %v2776, %v2487
      %v2870 = vmul.f32 %v2781, %v2488
      %v2871 = vmul.f32 %v2786, %v2489
      %v2872 = vmul.f32 %v2791, %v2490
      %v2873 = vmul.f32 %v2796, %v2491
      %v2874 = vmul.f32 %v2801, %v2492
      %v2875 = vmul.f32 %v2806, %v2493
      %v2876 = vmul.f32 %v2811, %v2494
      %v2877 = vmul.f32 %v2816, %v2495
      %v2878 = vmul.f32 %v2821, %v2496
      %v2879 = vmul.f32 %v2826, %v2497
      %v2880 = vmul.f32 %v2831, %v2498
      %v2881 = vmul.f32 %v2836, %v2499
      %v2882 = vmul.f32 %v2841, %v2500
      %v2883 = vmul.f32 %v2846, %v2469
      %v2884 = vmul.f32 %v2851, %v2470
      %v2885 = vpack.c.bf16 %v2662, %v2661
      %v2886 = vpack.c.bf16 %v2664, %v2663
      %v2887 = vpack.c.bf16 %v2666, %v2665
      %v2888 = vpack.c.bf16 %v2668, %v2667
      %v2889 = vpack.c.bf16 %v2670, %v2669
      %v2890 = vpack.c.bf16 %v2672, %v2671
      %v2891 = vpack.c.bf16 %v2674, %v2673
      %v2892 = vpack.c.bf16 %v2676, %v2675
      %v2893 = vpack.c.bf16 %v2678, %v2677
      %v2894 = vpack.c.bf16 %v2680, %v2679
      %v2895 = vpack.c.bf16 %v2682, %v2681
      %v2896 = vpack.c.bf16 %v2684, %v2683
      %v2897 = vpack.c.bf16 %v2686, %v2685
      %v2898 = vpack.c.bf16 %v2688, %v2687
      %v2899 = vpack.c.bf16 %v2690, %v2689
      %v2900 = vpack.c.bf16 %v2692, %v2691
      %v2901 = vld [vmem:[%s690] sm:$0xf]
      %v2902 = vld [vmem:[%s690 + $0x4] sm:$0x3]
      %v2903 = vpack.c.bf16 %v2470, %v2469
      %v2904 = vpack.c.bf16 %v2472, %v2471
      %v2905 = vpack.c.bf16 %v2474, %v2473
      %v2906 = vpack.c.bf16 %v2476, %v2475
      %v2907 = vpack.c.bf16 %v2478, %v2477
      %v2908 = vpack.c.bf16 %v2480, %v2479
      %v2909 = vpack.c.bf16 %v2482, %v2481
      %v2910 = vpack.c.bf16 %v2484, %v2483
      %v2911 = vpack.c.bf16 %v2486, %v2485
      %v2912 = vpack.c.bf16 %v2488, %v2487
      %v2913 = vpack.c.bf16 %v2490, %v2489
      %v2914 = vpack.c.bf16 %v2492, %v2491
      %v2915 = vpack.c.bf16 %v2494, %v2493
      %v2916 = vpack.c.bf16 %v2496, %v2495
      %v2917 = vpack.c.bf16 %v2498, %v2497
      %v2918 = vpack.c.bf16 %v2500, %v2499
      %s2919 = scalar_lea.vmem %s690, 8
      %v2920 = vld [vmem:[%s2919] sm:$0xf]
      %v2921 = vld [vmem:[%s2919 + $0x4] sm:$0x3]
      %v2924 = vunpack.c.l.b16 %v2920
      %v2925 = vunpack.c.l.b16 %v2921
      %v2926 = vpack.c.b16 %v2925, %v2924
      %vm2927 = vcmask 97280
      %v2929 = vsel %vm2927, %v2903, 0
      %v2932 = vsel %vm2927, %v2904, 0
      %v2935 = vsel %vm2927, %v2905, 0
      %v2938 = vsel %vm2927, %v2906, 0
      %v2941 = vsel %vm2927, %v2907, 0
      %v2944 = vsel %vm2927, %v2908, 0
      %v2947 = vsel %vm2927, %v2909, 0
      %v2950 = vsel %vm2927, %v2910, 0
      %v2953 = vsel %vm2927, %v2911, 0
      %v2956 = vsel %vm2927, %v2912, 0
      %v2959 = vsel %vm2927, %v2913, 0
      %v2962 = vsel %vm2927, %v2914, 0
      %v2965 = vsel %vm2927, %v2915, 0
      %v2968 = vsel %vm2927, %v2916, 0
      %v2971 = vsel %vm2927, %v2917, 0
      %v2974 = vsel %vm2927, %v2918, 0
      %vm2976 = vcmask 1045504
      %v2978 = vsel %vm2976, %v2926, 0
      %2980 = vmatprep.subr.bf16.mxu0 0
      %2981 = vmatpush1.bf16.msra.mxu0 0
      %2982 = vmatprep.subr.bf16.mxu0 0
      %2983 = vmatpush1.bf16.msra.mxu0 0
      %2984 = vmatprep.subr.bf16.mxu0 0
      %2985 = vmatpush1.bf16.msra.mxu0 0
      %2986 = vmatprep.subr.bf16.mxu0 0
      %2987 = vmatpush1.bf16.msra.mxu0 0
      %2988 = vmatprep.subr.bf16.mxu0 0
      %2989 = vmatpush1.bf16.msra.mxu0 0
      %2990 = vmatprep.subr.bf16.mxu0 0
      %2991 = vmatpush1.bf16.msra.mxu0 0
      %2992 = vmatprep.subr.bf16.mxu0 0
      %2993 = vmatpush1.bf16.msra.mxu0 0
      %2994 = vmatprep.subr.bf16.mxu0 0
      %2995 = vmatpush1.bf16.msra.mxu0 %v2978
      %2996 = vmatprep.subr.bf16.mxu0 0
      %2997 = vmatpush2.bf16.msra.mxu0 0
      %2998 = vmatprep.subr.bf16.mxu0 0
      %2999 = vmatpush2.bf16.msra.mxu0 0
      %3000 = vmatprep.subr.bf16.mxu0 0
      %3001 = vmatpush2.bf16.msra.mxu0 0
      %3002 = vmatprep.subr.bf16.mxu0 0
      %3003 = vmatpush2.bf16.msra.mxu0 0
      %3004 = vmatprep.subr.bf16.mxu0 0
      %3005 = vmatpush2.bf16.msra.mxu0 0
      %3006 = vmatprep.subr.bf16.mxu0 0
      %3007 = vmatpush2.bf16.msra.mxu0 0
      %3008 = vmatprep.subr.bf16.mxu0 0
      %3009 = vmatpush2.bf16.msra.mxu0 0
      %3010 = vmatprep.subr.bf16.mxu0 0
      %3011 = vmatpush2.bf16.msra.mxu0 0
      %3012 = vmatprep.mubr.bf16.mxu0 0
      %3013 = vmatmul.mubr.bf16.gmra.mxu0 %v2929
      %v3014 = vpop.f32.mrf.mxu0
      %v3015 = vadd.f32 0.0, %v3014
      %v3016 = vpop.f32.mrf.mxu0
      %v3017 = vpop.f32.mrf.mxu0
      %v3018 = vadd.f32 0.0, %v3017
      %v3019 = vpop.f32.mrf.mxu0
      %3020 = vmatprep.mubr.bf16.mxu0 0
      %3021 = vmatmul.mubr.bf16.gmra.mxu0 %v2932
      %v3022 = vpop.f32.mrf.mxu0
      %v3023 = vadd.f32 0.0, %v3022
      %v3024 = vpop.f32.mrf.mxu0
      %v3025 = vpop.f32.mrf.mxu0
      %v3026 = vadd.f32 0.0, %v3025
      %v3027 = vpop.f32.mrf.mxu0
      %3028 = vmatprep.mubr.bf16.mxu0 0
      %3029 = vmatmul.mubr.bf16.gmra.mxu0 %v2935
      %v3030 = vpop.f32.mrf.mxu0
      %v3031 = vadd.f32 0.0, %v3030
      %v3032 = vpop.f32.mrf.mxu0
      %v3033 = vpop.f32.mrf.mxu0
      %v3034 = vadd.f32 0.0, %v3033
      %v3035 = vpop.f32.mrf.mxu0
      %3036 = vmatprep.mubr.bf16.mxu0 0
      %3037 = vmatmul.mubr.bf16.gmra.mxu0 %v2938
      %v3038 = vpop.f32.mrf.mxu0
      %v3039 = vadd.f32 0.0, %v3038
      %v3040 = vpop.f32.mrf.mxu0
      %v3041 = vpop.f32.mrf.mxu0
      %v3042 = vadd.f32 0.0, %v3041
      %v3043 = vpop.f32.mrf.mxu0
      %3044 = vmatprep.mubr.bf16.mxu0 0
      %3045 = vmatmul.mubr.bf16.gmra.mxu0 %v2941
      %v3046 = vpop.f32.mrf.mxu0
      %v3047 = vadd.f32 0.0, %v3046
      %v3048 = vpop.f32.mrf.mxu0
      %v3049 = vpop.f32.mrf.mxu0
      %v3050 = vadd.f32 0.0, %v3049
      %v3051 = vpop.f32.mrf.mxu0
      %3052 = vmatprep.mubr.bf16.mxu0 0
      %3053 = vmatmul.mubr.bf16.gmra.mxu0 %v2944
      %v3054 = vpop.f32.mrf.mxu0
      %v3055 = vadd.f32 0.0, %v3054
      %v3056 = vpop.f32.mrf.mxu0
      %v3057 = vpop.f32.mrf.mxu0
      %v3058 = vadd.f32 0.0, %v3057
      %v3059 = vpop.f32.mrf.mxu0
      %3060 = vmatprep.mubr.bf16.mxu0 0
      %3061 = vmatmul.mubr.bf16.gmra.mxu0 %v2947
      %v3062 = vpop.f32.mrf.mxu0
      %v3063 = vadd.f32 0.0, %v3062
      %v3064 = vpop.f32.mrf.mxu0
      %v3065 = vpop.f32.mrf.mxu0
      %v3066 = vadd.f32 0.0, %v3065
      %v3067 = vpop.f32.mrf.mxu0
      %3068 = vmatprep.mubr.bf16.mxu0 0
      %3069 = vmatmul.mubr.bf16.gmra.mxu0 %v2950
      %v3070 = vpop.f32.mrf.mxu0
      %v3071 = vadd.f32 0.0, %v3070
      %v3072 = vpop.f32.mrf.mxu0
      %v3073 = vpop.f32.mrf.mxu0
      %v3074 = vadd.f32 0.0, %v3073
      %v3075 = vpop.f32.mrf.mxu0
      %3076 = vmatprep.mubr.bf16.mxu0 0
      %3077 = vmatmul.mubr.bf16.gmra.mxu0 %v2953
      %v3078 = vpop.f32.mrf.mxu0
      %v3079 = vadd.f32 0.0, %v3078
      %v3080 = vpop.f32.mrf.mxu0
      %v3081 = vpop.f32.mrf.mxu0
      %v3082 = vadd.f32 0.0, %v3081
      %v3083 = vpop.f32.mrf.mxu0
      %3084 = vmatprep.mubr.bf16.mxu0 0
      %3085 = vmatmul.mubr.bf16.gmra.mxu0 %v2956
      %v3086 = vpop.f32.mrf.mxu0
      %v3087 = vadd.f32 0.0, %v3086
      %v3088 = vpop.f32.mrf.mxu0
      %v3089 = vpop.f32.mrf.mxu0
      %v3090 = vadd.f32 0.0, %v3089
      %v3091 = vpop.f32.mrf.mxu0
      %3092 = vmatprep.mubr.bf16.mxu0 0
      %3093 = vmatmul.mubr.bf16.gmra.mxu0 %v2959
      %v3094 = vpop.f32.mrf.mxu0
      %v3095 = vadd.f32 0.0, %v3094
      %v3096 = vpop.f32.mrf.mxu0
      %v3097 = vpop.f32.mrf.mxu0
      %v3098 = vadd.f32 0.0, %v3097
      %v3099 = vpop.f32.mrf.mxu0
      %3100 = vmatprep.mubr.bf16.mxu0 0
      %3101 = vmatmul.mubr.bf16.gmra.mxu0 %v2962
      %v3102 = vpop.f32.mrf.mxu0
      %v3103 = vadd.f32 0.0, %v3102
      %v3104 = vpop.f32.mrf.mxu0
      %v3105 = vpop.f32.mrf.mxu0
      %v3106 = vadd.f32 0.0, %v3105
      %v3107 = vpop.f32.mrf.mxu0
      %3108 = vmatprep.mubr.bf16.mxu0 0
      %3109 = vmatmul.mubr.bf16.gmra.mxu0 %v2965
      %v3110 = vpop.f32.mrf.mxu0
      %v3111 = vadd.f32 0.0, %v3110
      %v3112 = vpop.f32.mrf.mxu0
      %v3113 = vpop.f32.mrf.mxu0
      %v3114 = vadd.f32 0.0, %v3113
      %v3115 = vpop.f32.mrf.mxu0
      %3116 = vmatprep.mubr.bf16.mxu0 0
      %3117 = vmatmul.mubr.bf16.gmra.mxu0 %v2968
      %v3118 = vpop.f32.mrf.mxu0
      %v3119 = vadd.f32 0.0, %v3118
      %v3120 = vpop.f32.mrf.mxu0
      %v3121 = vpop.f32.mrf.mxu0
      %v3122 = vadd.f32 0.0, %v3121
      %v3123 = vpop.f32.mrf.mxu0
      %3124 = vmatprep.mubr.bf16.mxu0 0
      %3125 = vmatmul.mubr.bf16.gmra.mxu0 %v2971
      %v3126 = vpop.f32.mrf.mxu0
      %v3127 = vadd.f32 0.0, %v3126
      %v3128 = vpop.f32.mrf.mxu0
      %v3129 = vpop.f32.mrf.mxu0
      %v3130 = vadd.f32 0.0, %v3129
      %v3131 = vpop.f32.mrf.mxu0
      %3132 = vmatprep.mubr.bf16.mxu0 0
      %3133 = vmatmul.mubr.bf16.gmra.mxu0 %v2974
      %v3134 = vpop.f32.mrf.mxu0
      %v3135 = vadd.f32 0.0, %v3134
      %v3136 = vpop.f32.mrf.mxu0
      %v3137 = vpop.f32.mrf.mxu0
      %v3138 = vadd.f32 0.0, %v3137
      %v3139 = vpop.f32.mrf.mxu0
      %3140 = vdwg.mxu0
      %v3143 = vunpack.c.l.b16 %v2901
      %v3144 = vunpack.c.l.b16 %v2902
      %v3145 = vpack.c.b16 %v3144, %v3143
      %v3147 = vsel %vm2927, %v2885, 0
      %v3150 = vsel %vm2927, %v2886, 0
      %v3153 = vsel %vm2927, %v2887, 0
      %v3156 = vsel %vm2927, %v2888, 0
      %v3159 = vsel %vm2927, %v2889, 0
      %v3162 = vsel %vm2927, %v2890, 0
      %v3165 = vsel %vm2927, %v2891, 0
      %v3168 = vsel %vm2927, %v2892, 0
      %v3171 = vsel %vm2927, %v2893, 0
      %v3174 = vsel %vm2927, %v2894, 0
      %v3177 = vsel %vm2927, %v2895, 0
      %v3180 = vsel %vm2927, %v2896, 0
      %v3183 = vsel %vm2927, %v2897, 0
      %v3186 = vsel %vm2927, %v2898, 0
      %v3189 = vsel %vm2927, %v2899, 0
      %v3192 = vsel %vm2927, %v2900, 0
      %v3195 = vsel %vm2976, %v3145, 0
      %3197 = vmatprep.subr.bf16.mxu0 0
      %3198 = vmatpush1.bf16.msra.mxu0 0
      %3199 = vmatprep.subr.bf16.mxu0 0
      %3200 = vmatpush1.bf16.msra.mxu0 0
      %3201 = vmatprep.subr.bf16.mxu0 0
      %3202 = vmatpush1.bf16.msra.mxu0 0
      %3203 = vmatprep.subr.bf16.mxu0 0
      %3204 = vmatpush1.bf16.msra.mxu0 0
      %3205 = vmatprep.subr.bf16.mxu0 0
      %3206 = vmatpush1.bf16.msra.mxu0 0
      %3207 = vmatprep.subr.bf16.mxu0 0
      %3208 = vmatpush1.bf16.msra.mxu0 0
      %3209 = vmatprep.subr.bf16.mxu0 0
      %3210 = vmatpush1.bf16.msra.mxu0 0
      %3211 = vmatprep.subr.bf16.mxu0 0
      %3212 = vmatpush1.bf16.msra.mxu0 %v3195
      %3213 = vmatprep.subr.bf16.mxu0 0
      %3214 = vmatpush2.bf16.msra.mxu0 0
      %3215 = vmatprep.subr.bf16.mxu0 0
      %3216 = vmatpush2.bf16.msra.mxu0 0
      %3217 = vmatprep.subr.bf16.mxu0 0
      %3218 = vmatpush2.bf16.msra.mxu0 0
      %3219 = vmatprep.subr.bf16.mxu0 0
      %3220 = vmatpush2.bf16.msra.mxu0 0
      %3221 = vmatprep.subr.bf16.mxu0 0
      %3222 = vmatpush2.bf16.msra.mxu0 0
      %3223 = vmatprep.subr.bf16.mxu0 0
      %3224 = vmatpush2.bf16.msra.mxu0 0
      %3225 = vmatprep.subr.bf16.mxu0 0
      %3226 = vmatpush2.bf16.msra.mxu0 0
      %3227 = vmatprep.subr.bf16.mxu0 0
      %3228 = vmatpush2.bf16.msra.mxu0 0
      %3229 = vmatprep.mubr.bf16.mxu0 0
      %3230 = vmatmul.mubr.bf16.gmra.mxu0 %v3147
      %v3231 = vpop.f32.mrf.mxu0
      %v3232 = vadd.f32 %v3015, %v3231
      %v3233 = vpop.f32.mrf.mxu0
      %v3234 = vpop.f32.mrf.mxu0
      %v3235 = vadd.f32 %v3018, %v3234
      %v3236 = vpop.f32.mrf.mxu0
      %3237 = vmatprep.mubr.bf16.mxu0 0
      %3238 = vmatmul.mubr.bf16.gmra.mxu0 %v3150
      %v3239 = vpop.f32.mrf.mxu0
      %v3240 = vadd.f32 %v3023, %v3239
      %v3241 = vpop.f32.mrf.mxu0
      %v3242 = vpop.f32.mrf.mxu0
      %v3243 = vadd.f32 %v3026, %v3242
      %v3244 = vpop.f32.mrf.mxu0
      %3245 = vmatprep.mubr.bf16.mxu0 0
      %3246 = vmatmul.mubr.bf16.gmra.mxu0 %v3153
      %v3247 = vpop.f32.mrf.mxu0
      %v3248 = vadd.f32 %v3031, %v3247
      %v3249 = vpop.f32.mrf.mxu0
      %v3250 = vpop.f32.mrf.mxu0
      %v3251 = vadd.f32 %v3034, %v3250
      %v3252 = vpop.f32.mrf.mxu0
      %3253 = vmatprep.mubr.bf16.mxu0 0
      %3254 = vmatmul.mubr.bf16.gmra.mxu0 %v3156
      %v3255 = vpop.f32.mrf.mxu0
      %v3256 = vadd.f32 %v3039, %v3255
      %v3257 = vpop.f32.mrf.mxu0
      %v3258 = vpop.f32.mrf.mxu0
      %v3259 = vadd.f32 %v3042, %v3258
      %v3260 = vpop.f32.mrf.mxu0
      %3261 = vmatprep.mubr.bf16.mxu0 0
      %3262 = vmatmul.mubr.bf16.gmra.mxu0 %v3159
      %v3263 = vpop.f32.mrf.mxu0
      %v3264 = vadd.f32 %v3047, %v3263
      %v3265 = vpop.f32.mrf.mxu0
      %v3266 = vpop.f32.mrf.mxu0
      %v3267 = vadd.f32 %v3050, %v3266
      %v3268 = vpop.f32.mrf.mxu0
      %3269 = vmatprep.mubr.bf16.mxu0 0
      %3270 = vmatmul.mubr.bf16.gmra.mxu0 %v3162
      %v3271 = vpop.f32.mrf.mxu0
      %v3272 = vadd.f32 %v3055, %v3271
      %v3273 = vpop.f32.mrf.mxu0
      %v3274 = vpop.f32.mrf.mxu0
      %v3275 = vadd.f32 %v3058, %v3274
      %v3276 = vpop.f32.mrf.mxu0
      %3277 = vmatprep.mubr.bf16.mxu0 0
      %3278 = vmatmul.mubr.bf16.gmra.mxu0 %v3165
      %v3279 = vpop.f32.mrf.mxu0
      %v3280 = vadd.f32 %v3063, %v3279
      %v3281 = vpop.f32.mrf.mxu0
      %v3282 = vpop.f32.mrf.mxu0
      %v3283 = vadd.f32 %v3066, %v3282
      %v3284 = vpop.f32.mrf.mxu0
      %3285 = vmatprep.mubr.bf16.mxu0 0
      %3286 = vmatmul.mubr.bf16.gmra.mxu0 %v3168
      %v3287 = vpop.f32.mrf.mxu0
      %v3288 = vadd.f32 %v3071, %v3287
      %v3289 = vpop.f32.mrf.mxu0
      %v3290 = vpop.f32.mrf.mxu0
      %v3291 = vadd.f32 %v3074, %v3290
      %v3292 = vpop.f32.mrf.mxu0
      %3293 = vmatprep.mubr.bf16.mxu0 0
      %3294 = vmatmul.mubr.bf16.gmra.mxu0 %v3171
      %v3295 = vpop.f32.mrf.mxu0
      %v3296 = vadd.f32 %v3079, %v3295
      %v3297 = vpop.f32.mrf.mxu0
      %v3298 = vpop.f32.mrf.mxu0
      %v3299 = vadd.f32 %v3082, %v3298
      %v3300 = vpop.f32.mrf.mxu0
      %3301 = vmatprep.mubr.bf16.mxu0 0
      %3302 = vmatmul.mubr.bf16.gmra.mxu0 %v3174
      %v3303 = vpop.f32.mrf.mxu0
      %v3304 = vadd.f32 %v3087, %v3303
      %v3305 = vpop.f32.mrf.mxu0
      %v3306 = vpop.f32.mrf.mxu0
      %v3307 = vadd.f32 %v3090, %v3306
      %v3308 = vpop.f32.mrf.mxu0
      %3309 = vmatprep.mubr.bf16.mxu0 0
      %3310 = vmatmul.mubr.bf16.gmra.mxu0 %v3177
      %v3311 = vpop.f32.mrf.mxu0
      %v3312 = vadd.f32 %v3095, %v3311
      %v3313 = vpop.f32.mrf.mxu0
      %v3314 = vpop.f32.mrf.mxu0
      %v3315 = vadd.f32 %v3098, %v3314
      %v3316 = vpop.f32.mrf.mxu0
      %3317 = vmatprep.mubr.bf16.mxu0 0
      %3318 = vmatmul.mubr.bf16.gmra.mxu0 %v3180
      %v3319 = vpop.f32.mrf.mxu0
      %v3320 = vadd.f32 %v3103, %v3319
      %v3321 = vpop.f32.mrf.mxu0
      %v3322 = vpop.f32.mrf.mxu0
      %v3323 = vadd.f32 %v3106, %v3322
      %v3324 = vpop.f32.mrf.mxu0
      %3325 = vmatprep.mubr.bf16.mxu0 0
      %3326 = vmatmul.mubr.bf16.gmra.mxu0 %v3183
      %v3327 = vpop.f32.mrf.mxu0
      %v3328 = vadd.f32 %v3111, %v3327
      %v3329 = vpop.f32.mrf.mxu0
      %v3330 = vpop.f32.mrf.mxu0
      %v3331 = vadd.f32 %v3114, %v3330
      %v3332 = vpop.f32.mrf.mxu0
      %3333 = vmatprep.mubr.bf16.mxu0 0
      %3334 = vmatmul.mubr.bf16.gmra.mxu0 %v3186
      %v3335 = vpop.f32.mrf.mxu0
      %v3336 = vadd.f32 %v3119, %v3335
      %v3337 = vpop.f32.mrf.mxu0
      %v3338 = vpop.f32.mrf.mxu0
      %v3339 = vadd.f32 %v3122, %v3338
      %v3340 = vpop.f32.mrf.mxu0
      %3341 = vmatprep.mubr.bf16.mxu0 0
      %3342 = vmatmul.mubr.bf16.gmra.mxu0 %v3189
      %v3343 = vpop.f32.mrf.mxu0
      %v3344 = vadd.f32 %v3127, %v3343
      %v3345 = vpop.f32.mrf.mxu0
      %v3346 = vpop.f32.mrf.mxu0
      %v3347 = vadd.f32 %v3130, %v3346
      %v3348 = vpop.f32.mrf.mxu0
      %3349 = vmatprep.mubr.bf16.mxu0 0
      %3350 = vmatmul.mubr.bf16.gmra.mxu0 %v3192
      %v3351 = vpop.f32.mrf.mxu0
      %v3352 = vadd.f32 %v3135, %v3351
      %v3353 = vpop.f32.mrf.mxu0
      %v3354 = vpop.f32.mrf.mxu0
      %v3355 = vadd.f32 %v3138, %v3354
      %v3356 = vpop.f32.mrf.mxu0
      %3357 = vdwg.mxu0
      %v3358 = vpack.c.bf16 %v2854, %v2853
      %v3359 = vpack.c.bf16 %v2856, %v2855
      %v3360 = vpack.c.bf16 %v2858, %v2857
      %v3361 = vpack.c.bf16 %v2860, %v2859
      %v3362 = vpack.c.bf16 %v2862, %v2861
      %v3363 = vpack.c.bf16 %v2864, %v2863
      %v3364 = vpack.c.bf16 %v2866, %v2865
      %v3365 = vpack.c.bf16 %v2868, %v2867
      %v3366 = vpack.c.bf16 %v2870, %v2869
      %v3367 = vpack.c.bf16 %v2872, %v2871
      %v3368 = vpack.c.bf16 %v2874, %v2873
      %v3369 = vpack.c.bf16 %v2876, %v2875
      %v3370 = vpack.c.bf16 %v2878, %v2877
      %v3371 = vpack.c.bf16 %v2880, %v2879
      %v3372 = vpack.c.bf16 %v2882, %v2881
      %v3373 = vpack.c.bf16 %v2884, %v2883
      %s3374 = scalar_lea.vmem %s690, 16
      %v3375 = vld [vmem:[%s3374] sm:$0xf]
      %v3376 = vld [vmem:[%s3374 + $0x4] sm:$0x3]
      %v3379 = vunpack.c.l.b16 %v3375
      %v3380 = vunpack.c.l.b16 %v3376
      %v3381 = vpack.c.b16 %v3380, %v3379
      %v3383 = vsel %vm2927, %v3358, 0
      %v3386 = vsel %vm2927, %v3359, 0
      %v3389 = vsel %vm2927, %v3360, 0
      %v3392 = vsel %vm2927, %v3361, 0
      %v3395 = vsel %vm2927, %v3362, 0
      %v3398 = vsel %vm2927, %v3363, 0
      %v3401 = vsel %vm2927, %v3364, 0
      %v3404 = vsel %vm2927, %v3365, 0
      %v3407 = vsel %vm2927, %v3366, 0
      %v3410 = vsel %vm2927, %v3367, 0
      %v3413 = vsel %vm2927, %v3368, 0
      %v3416 = vsel %vm2927, %v3369, 0
      %v3419 = vsel %vm2927, %v3370, 0
      %v3422 = vsel %vm2927, %v3371, 0
      %v3425 = vsel %vm2927, %v3372, 0
      %v3428 = vsel %vm2927, %v3373, 0
      %v3431 = vsel %vm2976, %v3381, 0
      %3433 = vmatprep.subr.bf16.mxu0 0
      %3434 = vmatpush1.bf16.msra.mxu0 0
      %3435 = vmatprep.subr.bf16.mxu0 0
      %3436 = vmatpush1.bf16.msra.mxu0 0
      %3437 = vmatprep.subr.bf16.mxu0 0
      %3438 = vmatpush1.bf16.msra.mxu0 0
      %3439 = vmatprep.subr.bf16.mxu0 0
      %3440 = vmatpush1.bf16.msra.mxu0 0
      %3441 = vmatprep.subr.bf16.mxu0 0
      %3442 = vmatpush1.bf16.msra.mxu0 0
      %3443 = vmatprep.subr.bf16.mxu0 0
      %3444 = vmatpush1.bf16.msra.mxu0 0
      %3445 = vmatprep.subr.bf16.mxu0 0
      %3446 = vmatpush1.bf16.msra.mxu0 0
      %3447 = vmatprep.subr.bf16.mxu0 0
      %3448 = vmatpush1.bf16.msra.mxu0 %v3431
      %3449 = vmatprep.subr.bf16.mxu0 0
      %3450 = vmatpush2.bf16.msra.mxu0 0
      %3451 = vmatprep.subr.bf16.mxu0 0
      %3452 = vmatpush2.bf16.msra.mxu0 0
      %3453 = vmatprep.subr.bf16.mxu0 0
      %3454 = vmatpush2.bf16.msra.mxu0 0
      %3455 = vmatprep.subr.bf16.mxu0 0
      %3456 = vmatpush2.bf16.msra.mxu0 0
      %3457 = vmatprep.subr.bf16.mxu0 0
      %3458 = vmatpush2.bf16.msra.mxu0 0
      %3459 = vmatprep.subr.bf16.mxu0 0
      %3460 = vmatpush2.bf16.msra.mxu0 0
      %3461 = vmatprep.subr.bf16.mxu0 0
      %3462 = vmatpush2.bf16.msra.mxu0 0
      %3463 = vmatprep.subr.bf16.mxu0 0
      %3464 = vmatpush2.bf16.msra.mxu0 0
      %3465 = vmatprep.mubr.bf16.mxu0 0
      %3466 = vmatmul.mubr.bf16.gmra.mxu0 %v3383
      %v3467 = vpop.f32.mrf.mxu0
      %v3468 = vadd.f32 0.0, %v3467
      %v3469 = vpop.f32.mrf.mxu0
      %v3470 = vpop.f32.mrf.mxu0
      %v3471 = vadd.f32 0.0, %v3470
      %v3472 = vpop.f32.mrf.mxu0
      %3473 = vmatprep.mubr.bf16.mxu0 0
      %3474 = vmatmul.mubr.bf16.gmra.mxu0 %v3386
      %v3475 = vpop.f32.mrf.mxu0
      %v3476 = vadd.f32 0.0, %v3475
      %v3477 = vpop.f32.mrf.mxu0
      %v3478 = vpop.f32.mrf.mxu0
      %v3479 = vadd.f32 0.0, %v3478
      %v3480 = vpop.f32.mrf.mxu0
      %3481 = vmatprep.mubr.bf16.mxu0 0
      %3482 = vmatmul.mubr.bf16.gmra.mxu0 %v3389
      %v3483 = vpop.f32.mrf.mxu0
      %v3484 = vadd.f32 0.0, %v3483
      %v3485 = vpop.f32.mrf.mxu0
      %v3486 = vpop.f32.mrf.mxu0
      %v3487 = vadd.f32 0.0, %v3486
      %v3488 = vpop.f32.mrf.mxu0
      %3489 = vmatprep.mubr.bf16.mxu0 0
      %3490 = vmatmul.mubr.bf16.gmra.mxu0 %v3392
      %v3491 = vpop.f32.mrf.mxu0
      %v3492 = vadd.f32 0.0, %v3491
      %v3493 = vpop.f32.mrf.mxu0
      %v3494 = vpop.f32.mrf.mxu0
      %v3495 = vadd.f32 0.0, %v3494
      %v3496 = vpop.f32.mrf.mxu0
      %3497 = vmatprep.mubr.bf16.mxu0 0
      %3498 = vmatmul.mubr.bf16.gmra.mxu0 %v3395
      %v3499 = vpop.f32.mrf.mxu0
      %v3500 = vadd.f32 0.0, %v3499
      %v3501 = vpop.f32.mrf.mxu0
      %v3502 = vpop.f32.mrf.mxu0
      %v3503 = vadd.f32 0.0, %v3502
      %v3504 = vpop.f32.mrf.mxu0
      %3505 = vmatprep.mubr.bf16.mxu0 0
      %3506 = vmatmul.mubr.bf16.gmra.mxu0 %v3398
      %v3507 = vpop.f32.mrf.mxu0
      %v3508 = vadd.f32 0.0, %v3507
      %v3509 = vpop.f32.mrf.mxu0
      %v3510 = vpop.f32.mrf.mxu0
      %v3511 = vadd.f32 0.0, %v3510
      %v3512 = vpop.f32.mrf.mxu0
      %3513 = vmatprep.mubr.bf16.mxu0 0
      %3514 = vmatmul.mubr.bf16.gmra.mxu0 %v3401
      %v3515 = vpop.f32.mrf.mxu0
      %v3516 = vadd.f32 0.0, %v3515
      %v3517 = vpop.f32.mrf.mxu0
      %v3518 = vpop.f32.mrf.mxu0
      %v3519 = vadd.f32 0.0, %v3518
      %v3520 = vpop.f32.mrf.mxu0
      %3521 = vmatprep.mubr.bf16.mxu0 0
      %3522 = vmatmul.mubr.bf16.gmra.mxu0 %v3404
      %v3523 = vpop.f32.mrf.mxu0
      %v3524 = vadd.f32 0.0, %v3523
      %v3525 = vpop.f32.mrf.mxu0
      %v3526 = vpop.f32.mrf.mxu0
      %v3527 = vadd.f32 0.0, %v3526
      %v3528 = vpop.f32.mrf.mxu0
      %3529 = vmatprep.mubr.bf16.mxu0 0
      %3530 = vmatmul.mubr.bf16.gmra.mxu0 %v3407
      %v3531 = vpop.f32.mrf.mxu0
      %v3532 = vadd.f32 0.0, %v3531
      %v3533 = vpop.f32.mrf.mxu0
      %v3534 = vpop.f32.mrf.mxu0
      %v3535 = vadd.f32 0.0, %v3534
      %v3536 = vpop.f32.mrf.mxu0
      %3537 = vmatprep.mubr.bf16.mxu0 0
      %3538 = vmatmul.mubr.bf16.gmra.mxu0 %v3410
      %v3539 = vpop.f32.mrf.mxu0
      %v3540 = vadd.f32 0.0, %v3539
      %v3541 = vpop.f32.mrf.mxu0
      %v3542 = vpop.f32.mrf.mxu0
      %v3543 = vadd.f32 0.0, %v3542
      %v3544 = vpop.f32.mrf.mxu0
      %3545 = vmatprep.mubr.bf16.mxu0 0
      %3546 = vmatmul.mubr.bf16.gmra.mxu0 %v3413
      %v3547 = vpop.f32.mrf.mxu0
      %v3548 = vadd.f32 0.0, %v3547
      %v3549 = vpop.f32.mrf.mxu0
      %v3550 = vpop.f32.mrf.mxu0
      %v3551 = vadd.f32 0.0, %v3550
      %v3552 = vpop.f32.mrf.mxu0
      %3553 = vmatprep.mubr.bf16.mxu0 0
      %3554 = vmatmul.mubr.bf16.gmra.mxu0 %v3416
      %v3555 = vpop.f32.mrf.mxu0
      %v3556 = vadd.f32 0.0, %v3555
      %v3557 = vpop.f32.mrf.mxu0
      %v3558 = vpop.f32.mrf.mxu0
      %v3559 = vadd.f32 0.0, %v3558
      %v3560 = vpop.f32.mrf.mxu0
      %3561 = vmatprep.mubr.bf16.mxu0 0
      %3562 = vmatmul.mubr.bf16.gmra.mxu0 %v3419
      %v3563 = vpop.f32.mrf.mxu0
      %v3564 = vadd.f32 0.0, %v3563
      %v3565 = vpop.f32.mrf.mxu0
      %v3566 = vpop.f32.mrf.mxu0
      %v3567 = vadd.f32 0.0, %v3566
      %v3568 = vpop.f32.mrf.mxu0
      %3569 = vmatprep.mubr.bf16.mxu0 0
      %3570 = vmatmul.mubr.bf16.gmra.mxu0 %v3422
      %v3571 = vpop.f32.mrf.mxu0
      %v3572 = vadd.f32 0.0, %v3571
      %v3573 = vpop.f32.mrf.mxu0
      %v3574 = vpop.f32.mrf.mxu0
      %v3575 = vadd.f32 0.0, %v3574
      %v3576 = vpop.f32.mrf.mxu0
      %3577 = vmatprep.mubr.bf16.mxu0 0
      %3578 = vmatmul.mubr.bf16.gmra.mxu0 %v3425
      %v3579 = vpop.f32.mrf.mxu0
      %v3580 = vadd.f32 0.0, %v3579
      %v3581 = vpop.f32.mrf.mxu0
      %v3582 = vpop.f32.mrf.mxu0
      %v3583 = vadd.f32 0.0, %v3582
      %v3584 = vpop.f32.mrf.mxu0
      %3585 = vmatprep.mubr.bf16.mxu0 0
      %3586 = vmatmul.mubr.bf16.gmra.mxu0 %v3428
      %v3587 = vpop.f32.mrf.mxu0
      %v3588 = vadd.f32 0.0, %v3587
      %v3589 = vpop.f32.mrf.mxu0
      %v3590 = vpop.f32.mrf.mxu0
      %v3591 = vadd.f32 0.0, %v3590
      %v3592 = vpop.f32.mrf.mxu0
      %3593 = vdwg.mxu0
      %v3594 = vadd.f32 %v3232, %v3468
      %v3595 = vadd.f32 %v3235, %v3471
      %v3596 = vadd.f32 %v3240, %v3476
      %v3597 = vadd.f32 %v3243, %v3479
      %v3598 = vadd.f32 %v3248, %v3484
      %v3599 = vadd.f32 %v3251, %v3487
      %v3600 = vadd.f32 %v3256, %v3492
      %v3601 = vadd.f32 %v3259, %v3495
      %v3602 = vadd.f32 %v3264, %v3500
      %v3603 = vadd.f32 %v3267, %v3503
      %v3604 = vadd.f32 %v3272, %v3508
      %v3605 = vadd.f32 %v3275, %v3511
      %v3606 = vadd.f32 %v3280, %v3516
      %v3607 = vadd.f32 %v3283, %v3519
      %v3608 = vadd.f32 %v3288, %v3524
      %v3609 = vadd.f32 %v3291, %v3527
      %v3610 = vadd.f32 %v3296, %v3532
      %v3611 = vadd.f32 %v3299, %v3535
      %v3612 = vadd.f32 %v3304, %v3540
      %v3613 = vadd.f32 %v3307, %v3543
      %v3614 = vadd.f32 %v3312, %v3548
      %v3615 = vadd.f32 %v3315, %v3551
      %v3616 = vadd.f32 %v3320, %v3556
      %v3617 = vadd.f32 %v3323, %v3559
      %v3618 = vadd.f32 %v3328, %v3564
      %v3619 = vadd.f32 %v3331, %v3567
      %v3620 = vadd.f32 %v3336, %v3572
      %v3621 = vadd.f32 %v3339, %v3575
      %v3622 = vadd.f32 %v3344, %v3580
      %v3623 = vadd.f32 %v3347, %v3583
      %v3624 = vadd.f32 %v3352, %v3588
      %v3625 = vadd.f32 %v3355, %v3591
      %v3626 = vld [vmem:[%s693] sm:$0x1]
      %v3628 = vlaneseq
      %v3629 = vshrl.u32 %v3628, 7
      %v3630 = vsub.s32 0, %v3629
      %v3631 = vrot.slane %v3626, %v3630
      %v3633 = vadd.f32 %v3594, %v3631
      %v3634 = vadd.f32 %v3595, %v3631
      %v3635 = vadd.f32 %v3596, %v3631
      %v3636 = vadd.f32 %v3597, %v3631
      %v3637 = vadd.f32 %v3598, %v3631
      %v3638 = vadd.f32 %v3599, %v3631
      %v3639 = vadd.f32 %v3600, %v3631
      %v3640 = vadd.f32 %v3601, %v3631
      %v3641 = vadd.f32 %v3602, %v3631
      %v3642 = vadd.f32 %v3603, %v3631
      %v3643 = vadd.f32 %v3604, %v3631
      %v3644 = vadd.f32 %v3605, %v3631
      %v3645 = vadd.f32 %v3606, %v3631
      %v3646 = vadd.f32 %v3607, %v3631
      %v3647 = vadd.f32 %v3608, %v3631
      %v3648 = vadd.f32 %v3609, %v3631
      %v3649 = vadd.f32 %v3610, %v3631
      %v3650 = vadd.f32 %v3611, %v3631
      %v3651 = vadd.f32 %v3612, %v3631
      %v3652 = vadd.f32 %v3613, %v3631
      %v3653 = vadd.f32 %v3614, %v3631
      %v3654 = vadd.f32 %v3615, %v3631
      %v3655 = vadd.f32 %v3616, %v3631
      %v3656 = vadd.f32 %v3617, %v3631
      %v3657 = vadd.f32 %v3618, %v3631
      %v3658 = vadd.f32 %v3619, %v3631
      %v3659 = vadd.f32 %v3620, %v3631
      %v3660 = vadd.f32 %v3621, %v3631
      %v3661 = vadd.f32 %v3622, %v3631
      %v3662 = vadd.f32 %v3623, %v3631
      %v3663 = vadd.f32 %v3624, %v3631
      %v3664 = vadd.f32 %v3625, %v3631
      %v3665 = vsel %vm1033, %v3633, 0.0
      %v3666 = vsel %vm1033, %v3634, 0.0
      %v3667 = vadd.f32 %v3665, %v3666
      %v3668 = vsel %vm1033, %v3635, 0.0
      %v3669 = vadd.f32 %v3667, %v3668
      %v3670 = vsel %vm1033, %v3636, 0.0
      %v3671 = vadd.f32 %v3669, %v3670
      %v3672 = vsel %vm1033, %v3637, 0.0
      %v3673 = vadd.f32 %v3671, %v3672
      %v3674 = vsel %vm1033, %v3638, 0.0
      %v3675 = vadd.f32 %v3673, %v3674
      %v3676 = vsel %vm1033, %v3639, 0.0
      %v3677 = vadd.f32 %v3675, %v3676
      %v3678 = vsel %vm1033, %v3640, 0.0
      %v3679 = vadd.f32 %v3677, %v3678
      %v3680 = vsel %vm1033, %v3641, 0.0
      %v3681 = vadd.f32 %v3679, %v3680
      %v3682 = vsel %vm1033, %v3642, 0.0
      %v3683 = vadd.f32 %v3681, %v3682
      %v3684 = vsel %vm1033, %v3643, 0.0
      %v3685 = vadd.f32 %v3683, %v3684
      %v3686 = vsel %vm1033, %v3644, 0.0
      %v3687 = vadd.f32 %v3685, %v3686
      %v3688 = vsel %vm1033, %v3645, 0.0
      %v3689 = vadd.f32 %v3687, %v3688
      %v3690 = vsel %vm1033, %v3646, 0.0
      %v3691 = vadd.f32 %v3689, %v3690
      %v3692 = vsel %vm1033, %v3647, 0.0
      %v3693 = vadd.f32 %v3691, %v3692
      %v3694 = vsel %vm1033, %v3648, 0.0
      %v3695 = vadd.f32 %v3693, %v3694
      %v3696 = vsel %vm1033, %v3649, 0.0
      %v3697 = vadd.f32 %v3695, %v3696
      %v3698 = vsel %vm1033, %v3650, 0.0
      %v3699 = vadd.f32 %v3697, %v3698
      %v3700 = vsel %vm1033, %v3651, 0.0
      %v3701 = vadd.f32 %v3699, %v3700
      %v3702 = vsel %vm1033, %v3652, 0.0
      %v3703 = vadd.f32 %v3701, %v3702
      %v3704 = vsel %vm1033, %v3653, 0.0
      %v3705 = vadd.f32 %v3703, %v3704
      %v3706 = vsel %vm1033, %v3654, 0.0
      %v3707 = vadd.f32 %v3705, %v3706
      %v3708 = vsel %vm1033, %v3655, 0.0
      %v3709 = vadd.f32 %v3707, %v3708
      %v3710 = vsel %vm1033, %v3656, 0.0
      %v3711 = vadd.f32 %v3709, %v3710
      %v3712 = vsel %vm1033, %v3657, 0.0
      %v3713 = vadd.f32 %v3711, %v3712
      %v3714 = vsel %vm1033, %v3658, 0.0
      %v3715 = vadd.f32 %v3713, %v3714
      %v3716 = vsel %vm1033, %v3659, 0.0
      %v3717 = vadd.f32 %v3715, %v3716
      %v3718 = vsel %vm1033, %v3660, 0.0
      %v3719 = vadd.f32 %v3717, %v3718
      %v3720 = vsel %vm1033, %v3661, 0.0
      %v3721 = vadd.f32 %v3719, %v3720
      %v3722 = vsel %vm1033, %v3662, 0.0
      %v3723 = vadd.f32 %v3721, %v3722
      %v3724 = vsel %vm1033, %v3663, 0.0
      %v3725 = vadd.f32 %v3723, %v3724
      %v3726 = vsel %vm1033, %v3664, 0.0
      %v3727 = vadd.f32 %v3725, %v3726
      %v3728 = vrot.slane %v3727, 4
      %v3729 = vadd.f32 %v3727, %v3728
      %v3730 = vrot.slane %v3729, 2
      %v3731 = vadd.f32 %v3729, %v3730
      %v3732 = vrot.slane %v3731, 1
      %v3733 = vadd.f32 %v3731, %v3732
      %v3734 = vmul.f32 %v3633, %v3633
      %v3735 = vmul.f32 %v3634, %v3634
      %v3736 = vmul.f32 %v3635, %v3635
      %v3737 = vmul.f32 %v3636, %v3636
      %v3738 = vmul.f32 %v3637, %v3637
      %v3739 = vmul.f32 %v3638, %v3638
      %v3740 = vmul.f32 %v3639, %v3639
      %v3741 = vmul.f32 %v3640, %v3640
      %v3742 = vmul.f32 %v3641, %v3641
      %v3743 = vmul.f32 %v3642, %v3642
      %v3744 = vmul.f32 %v3643, %v3643
      %v3745 = vmul.f32 %v3644, %v3644
      %v3746 = vmul.f32 %v3645, %v3645
      %v3747 = vmul.f32 %v3646, %v3646
      %v3748 = vmul.f32 %v3647, %v3647
      %v3749 = vmul.f32 %v3648, %v3648
      %v3750 = vmul.f32 %v3649, %v3649
      %v3751 = vmul.f32 %v3650, %v3650
      %v3752 = vmul.f32 %v3651, %v3651
      %v3753 = vmul.f32 %v3652, %v3652
      %v3754 = vmul.f32 %v3653, %v3653
      %v3755 = vmul.f32 %v3654, %v3654
      %v3756 = vmul.f32 %v3655, %v3655
      %v3757 = vmul.f32 %v3656, %v3656
      %v3758 = vmul.f32 %v3657, %v3657
      %v3759 = vmul.f32 %v3658, %v3658
      %v3760 = vmul.f32 %v3659, %v3659
      %v3761 = vmul.f32 %v3660, %v3660
      %v3762 = vmul.f32 %v3661, %v3661
      %v3763 = vmul.f32 %v3662, %v3662
      %v3764 = vmul.f32 %v3663, %v3663
      %v3765 = vmul.f32 %v3664, %v3664
      %v3766 = vsel %vm1033, %v3734, 0.0
      %v3767 = vsel %vm1033, %v3735, 0.0
      %v3768 = vadd.f32 %v3766, %v3767
      %v3769 = vsel %vm1033, %v3736, 0.0
      %v3770 = vadd.f32 %v3768, %v3769
      %v3771 = vsel %vm1033, %v3737, 0.0
      %v3772 = vadd.f32 %v3770, %v3771
      %v3773 = vsel %vm1033, %v3738, 0.0
      %v3774 = vadd.f32 %v3772, %v3773
      %v3775 = vsel %vm1033, %v3739, 0.0
      %v3776 = vadd.f32 %v3774, %v3775
      %v3777 = vsel %vm1033, %v3740, 0.0
      %v3778 = vadd.f32 %v3776, %v3777
      %v3779 = vsel %vm1033, %v3741, 0.0
      %v3780 = vadd.f32 %v3778, %v3779
      %v3781 = vsel %vm1033, %v3742, 0.0
      %v3782 = vadd.f32 %v3780, %v3781
      %v3783 = vsel %vm1033, %v3743, 0.0
      %v3784 = vadd.f32 %v3782, %v3783
      %v3785 = vsel %vm1033, %v3744, 0.0
      %v3786 = vadd.f32 %v3784, %v3785
      %v3787 = vsel %vm1033, %v3745, 0.0
      %v3788 = vadd.f32 %v3786, %v3787
      %v3789 = vsel %vm1033, %v3746, 0.0
      %v3790 = vadd.f32 %v3788, %v3789
      %v3791 = vsel %vm1033, %v3747, 0.0
      %v3792 = vadd.f32 %v3790, %v3791
      %v3793 = vsel %vm1033, %v3748, 0.0
      %v3794 = vadd.f32 %v3792, %v3793
      %v3795 = vsel %vm1033, %v3749, 0.0
      %v3796 = vadd.f32 %v3794, %v3795
      %v3797 = vsel %vm1033, %v3750, 0.0
      %v3798 = vadd.f32 %v3796, %v3797
      %v3799 = vsel %vm1033, %v3751, 0.0
      %v3800 = vadd.f32 %v3798, %v3799
      %v3801 = vsel %vm1033, %v3752, 0.0
      %v3802 = vadd.f32 %v3800, %v3801
      %v3803 = vsel %vm1033, %v3753, 0.0
      %v3804 = vadd.f32 %v3802, %v3803
      %v3805 = vsel %vm1033, %v3754, 0.0
      %v3806 = vadd.f32 %v3804, %v3805
      %v3807 = vsel %vm1033, %v3755, 0.0
      %v3808 = vadd.f32 %v3806, %v3807
      %v3809 = vsel %vm1033, %v3756, 0.0
      %v3810 = vadd.f32 %v3808, %v3809
      %v3811 = vsel %vm1033, %v3757, 0.0
      %v3812 = vadd.f32 %v3810, %v3811
      %v3813 = vsel %vm1033, %v3758, 0.0
      %v3814 = vadd.f32 %v3812, %v3813
      %v3815 = vsel %vm1033, %v3759, 0.0
      %v3816 = vadd.f32 %v3814, %v3815
      %v3817 = vsel %vm1033, %v3760, 0.0
      %v3818 = vadd.f32 %v3816, %v3817
      %v3819 = vsel %vm1033, %v3761, 0.0
      %v3820 = vadd.f32 %v3818, %v3819
      %v3821 = vsel %vm1033, %v3762, 0.0
      %v3822 = vadd.f32 %v3820, %v3821
      %v3823 = vsel %vm1033, %v3763, 0.0
      %v3824 = vadd.f32 %v3822, %v3823
      %v3825 = vsel %vm1033, %v3764, 0.0
      %v3826 = vadd.f32 %v3824, %v3825
      %v3827 = vsel %vm1033, %v3765, 0.0
      %v3828 = vadd.f32 %v3826, %v3827
      %v3829 = vrot.slane %v3828, 4
      %v3830 = vadd.f32 %v3828, %v3829
      %v3831 = vrot.slane %v3830, 2
      %v3832 = vadd.f32 %v3830, %v3831
      %v3833 = vrot.slane %v3832, 1
      %v3834 = vadd.f32 %v3832, %v3833
      %v3836 = vsel %vm1033, %v3733, 0
      %3838 = vmatprep.subr.mxu0 0.0
      %3839 = vmatpush1.msra.mxu0 0.0
      %3840 = vmatprep.subr.mxu0 0.0
      %3841 = vmatpush1.msra.mxu0 0.0
      %3842 = vmatprep.subr.mxu0 0.0
      %3843 = vmatpush1.msra.mxu0 0.0
      %3844 = vmatprep.subr.mxu0 0.0
      %3845 = vmatpush1.msra.mxu0 0.0
      %3846 = vmatprep.subr.mxu0 0.0
      %3847 = vmatpush1.msra.mxu0 0.0
      %3848 = vmatprep.subr.mxu0 0.0
      %3849 = vmatpush1.msra.mxu0 0.0
      %3850 = vmatprep.subr.mxu0 0.0
      %3851 = vmatpush1.msra.mxu0 0.0
      %3852 = vmatprep.subr.mxu0 0.0
      %3853 = vmatpush1.msra.mxu0 0.0
      %3854 = vmatprep.subr.mxu0 0.0
      %3855 = vmatpush1.msra.mxu0 0.0
      %3856 = vmatprep.subr.mxu0 0.0
      %3857 = vmatpush1.msra.mxu0 0.0
      %3858 = vmatprep.subr.mxu0 0.0
      %3859 = vmatpush1.msra.mxu0 0.0
      %3860 = vmatprep.subr.mxu0 0.0
      %3861 = vmatpush1.msra.mxu0 0.0
      %3862 = vmatprep.subr.mxu0 0.0
      %3863 = vmatpush1.msra.mxu0 0.0
      %3864 = vmatprep.subr.mxu0 0.0
      %3865 = vmatpush1.msra.mxu0 0.0
      %3866 = vmatprep.subr.mxu0 0.0
      %3867 = vmatpush1.msra.mxu0 0.0
      %3868 = vmatprep.subr.mxu0 0.0
      %3869 = vmatpush1.msra.mxu0 %v1209
      %3870 = vmatprep.subr.mxu0 0.0
      %3871 = vmatpush2.msra.mxu0 0.0
      %3872 = vmatprep.subr.mxu0 0.0
      %3873 = vmatpush2.msra.mxu0 0.0
      %3874 = vmatprep.subr.mxu0 0.0
      %3875 = vmatpush2.msra.mxu0 0.0
      %3876 = vmatprep.subr.mxu0 0.0
      %3877 = vmatpush2.msra.mxu0 0.0
      %3878 = vmatprep.subr.mxu0 0.0
      %3879 = vmatpush2.msra.mxu0 0.0
      %3880 = vmatprep.subr.mxu0 0.0
      %3881 = vmatpush2.msra.mxu0 0.0
      %3882 = vmatprep.subr.mxu0 0.0
      %3883 = vmatpush2.msra.mxu0 0.0
      %3884 = vmatprep.subr.mxu0 0.0
      %3885 = vmatpush2.msra.mxu0 0.0
      %3886 = vmatprep.subr.mxu0 0.0
      %3887 = vmatpush2.msra.mxu0 0.0
      %3888 = vmatprep.subr.mxu0 0.0
      %3889 = vmatpush2.msra.mxu0 0.0
      %3890 = vmatprep.subr.mxu0 0.0
      %3891 = vmatpush2.msra.mxu0 0.0
      %3892 = vmatprep.subr.mxu0 0.0
      %3893 = vmatpush2.msra.mxu0 0.0
      %3894 = vmatprep.subr.mxu0 0.0
      %3895 = vmatpush2.msra.mxu0 0.0
      %3896 = vmatprep.subr.mxu0 0.0
      %3897 = vmatpush2.msra.mxu0 0.0
      %3898 = vmatprep.subr.mxu0 0.0
      %3899 = vmatpush2.msra.mxu0 0.0
      %3900 = vmatprep.subr.mxu0 0.0
      %3901 = vmatpush2.msra.mxu0 0.0
      %3902 = vmatprep.mubr.f32.mxu0 0.0
      %3903 = vmatmul.mubr.f32.gmra.mxu0 %v3836
      %v3904 = vpop.f32.mrf.mxu0
      %v3905 = vadd.f32 0.0, %v3904
      %v3906 = vpop.f32.mrf.mxu0
      %3907 = vdwg.mxu0
      %v3909 = vsel %vm1033, %v3834, 0
      %3911 = vmatprep.subr.mxu0 0.0
      %3912 = vmatpush1.msra.mxu0 0.0
      %3913 = vmatprep.subr.mxu0 0.0
      %3914 = vmatpush1.msra.mxu0 0.0
      %3915 = vmatprep.subr.mxu0 0.0
      %3916 = vmatpush1.msra.mxu0 0.0
      %3917 = vmatprep.subr.mxu0 0.0
      %3918 = vmatpush1.msra.mxu0 0.0
      %3919 = vmatprep.subr.mxu0 0.0
      %3920 = vmatpush1.msra.mxu0 0.0
      %3921 = vmatprep.subr.mxu0 0.0
      %3922 = vmatpush1.msra.mxu0 0.0
      %3923 = vmatprep.subr.mxu0 0.0
      %3924 = vmatpush1.msra.mxu0 0.0
      %3925 = vmatprep.subr.mxu0 0.0
      %3926 = vmatpush1.msra.mxu0 0.0
      %3927 = vmatprep.subr.mxu0 0.0
      %3928 = vmatpush1.msra.mxu0 0.0
      %3929 = vmatprep.subr.mxu0 0.0
      %3930 = vmatpush1.msra.mxu0 0.0
      %3931 = vmatprep.subr.mxu0 0.0
      %3932 = vmatpush1.msra.mxu0 0.0
      %3933 = vmatprep.subr.mxu0 0.0
      %3934 = vmatpush1.msra.mxu0 0.0
      %3935 = vmatprep.subr.mxu0 0.0
      %3936 = vmatpush1.msra.mxu0 0.0
      %3937 = vmatprep.subr.mxu0 0.0
      %3938 = vmatpush1.msra.mxu0 0.0
      %3939 = vmatprep.subr.mxu0 0.0
      %3940 = vmatpush1.msra.mxu0 0.0
      %3941 = vmatprep.subr.mxu0 0.0
      %3942 = vmatpush1.msra.mxu0 %v1209
      %3943 = vmatprep.subr.mxu0 0.0
      %3944 = vmatpush2.msra.mxu0 0.0
      %3945 = vmatprep.subr.mxu0 0.0
      %3946 = vmatpush2.msra.mxu0 0.0
      %3947 = vmatprep.subr.mxu0 0.0
      %3948 = vmatpush2.msra.mxu0 0.0
      %3949 = vmatprep.subr.mxu0 0.0
      %3950 = vmatpush2.msra.mxu0 0.0
      %3951 = vmatprep.subr.mxu0 0.0
      %3952 = vmatpush2.msra.mxu0 0.0
      %3953 = vmatprep.subr.mxu0 0.0
      %3954 = vmatpush2.msra.mxu0 0.0
      %3955 = vmatprep.subr.mxu0 0.0
      %3956 = vmatpush2.msra.mxu0 0.0
      %3957 = vmatprep.subr.mxu0 0.0
      %3958 = vmatpush2.msra.mxu0 0.0
      %3959 = vmatprep.subr.mxu0 0.0
      %3960 = vmatpush2.msra.mxu0 0.0
      %3961 = vmatprep.subr.mxu0 0.0
      %3962 = vmatpush2.msra.mxu0 0.0
      %3963 = vmatprep.subr.mxu0 0.0
      %3964 = vmatpush2.msra.mxu0 0.0
      %3965 = vmatprep.subr.mxu0 0.0
      %3966 = vmatpush2.msra.mxu0 0.0
      %3967 = vmatprep.subr.mxu0 0.0
      %3968 = vmatpush2.msra.mxu0 0.0
      %3969 = vmatprep.subr.mxu0 0.0
      %3970 = vmatpush2.msra.mxu0 0.0
      %3971 = vmatprep.subr.mxu0 0.0
      %3972 = vmatpush2.msra.mxu0 0.0
      %3973 = vmatprep.subr.mxu0 0.0
      %3974 = vmatpush2.msra.mxu0 0.0
      %3975 = vmatprep.mubr.f32.mxu0 0.0
      %3976 = vmatmul.mubr.f32.gmra.mxu0 %v3909
      %v3977 = vpop.f32.mrf.mxu0
      %v3978 = vadd.f32 0.0, %v3977
      %v3979 = vpop.f32.mrf.mxu0
      %3980 = vdwg.mxu0
      %v3981 = vmul.f32 %v3905, %v3905
      %v3982 = vsub.f32 %v3978, %v3981
      %v3983 = vmax.f32 %v3982, 0.0
      %v3984 = vadd.f32 %v3983, 1e-05
      %v3985 = vrsqrt.pop %v3984
      %v3986 = vld [vmem:[%s696] sm:$0x1]
      %v3987 = vmul.f32 %v3985, %v3986
      %v3988 = vlaneseq
      %v3989 = vshrl.u32 %v3988, 7
      %v3990 = vsub.s32 0, %v3989
      %v3991 = vrot.slane %v3905, %v3990
      %v3992 = vsub.f32 %v3633, %v3991
      %v3993 = vsub.f32 %v3634, %v3991
      %v3994 = vsub.f32 %v3635, %v3991
      %v3995 = vsub.f32 %v3636, %v3991
      %v3996 = vsub.f32 %v3637, %v3991
      %v3997 = vsub.f32 %v3638, %v3991
      %v3998 = vsub.f32 %v3639, %v3991
      %v3999 = vsub.f32 %v3640, %v3991
      %v4000 = vsub.f32 %v3641, %v3991
      %v4001 = vsub.f32 %v3642, %v3991
      %v4002 = vsub.f32 %v3643, %v3991
      %v4003 = vsub.f32 %v3644, %v3991
      %v4004 = vsub.f32 %v3645, %v3991
      %v4005 = vsub.f32 %v3646, %v3991
      %v4006 = vsub.f32 %v3647, %v3991
      %v4007 = vsub.f32 %v3648, %v3991
      %v4008 = vsub.f32 %v3649, %v3991
      %v4009 = vsub.f32 %v3650, %v3991
      %v4010 = vsub.f32 %v3651, %v3991
      %v4011 = vsub.f32 %v3652, %v3991
      %v4012 = vsub.f32 %v3653, %v3991
      %v4013 = vsub.f32 %v3654, %v3991
      %v4014 = vsub.f32 %v3655, %v3991
      %v4015 = vsub.f32 %v3656, %v3991
      %v4016 = vsub.f32 %v3657, %v3991
      %v4017 = vsub.f32 %v3658, %v3991
      %v4018 = vsub.f32 %v3659, %v3991
      %v4019 = vsub.f32 %v3660, %v3991
      %v4020 = vsub.f32 %v3661, %v3991
      %v4021 = vsub.f32 %v3662, %v3991
      %v4022 = vsub.f32 %v3663, %v3991
      %v4023 = vsub.f32 %v3664, %v3991
      %v4024 = vlaneseq
      %v4025 = vshrl.u32 %v4024, 7
      %v4026 = vsub.s32 0, %v4025
      %v4027 = vrot.slane %v3987, %v4026
      %v4028 = vmul.f32 %v3992, %v4027
      %v4029 = vmul.f32 %v3993, %v4027
      %v4030 = vmul.f32 %v3994, %v4027
      %v4031 = vmul.f32 %v3995, %v4027
      %v4032 = vmul.f32 %v3996, %v4027
      %v4033 = vmul.f32 %v3997, %v4027
      %v4034 = vmul.f32 %v3998, %v4027
      %v4035 = vmul.f32 %v3999, %v4027
      %v4036 = vmul.f32 %v4000, %v4027
      %v4037 = vmul.f32 %v4001, %v4027
      %v4038 = vmul.f32 %v4002, %v4027
      %v4039 = vmul.f32 %v4003, %v4027
      %v4040 = vmul.f32 %v4004, %v4027
      %v4041 = vmul.f32 %v4005, %v4027
      %v4042 = vmul.f32 %v4006, %v4027
      %v4043 = vmul.f32 %v4007, %v4027
      %v4044 = vmul.f32 %v4008, %v4027
      %v4045 = vmul.f32 %v4009, %v4027
      %v4046 = vmul.f32 %v4010, %v4027
      %v4047 = vmul.f32 %v4011, %v4027
      %v4048 = vmul.f32 %v4012, %v4027
      %v4049 = vmul.f32 %v4013, %v4027
      %v4050 = vmul.f32 %v4014, %v4027
      %v4051 = vmul.f32 %v4015, %v4027
      %v4052 = vmul.f32 %v4016, %v4027
      %v4053 = vmul.f32 %v4017, %v4027
      %v4054 = vmul.f32 %v4018, %v4027
      %v4055 = vmul.f32 %v4019, %v4027
      %v4056 = vmul.f32 %v4020, %v4027
      %v4057 = vmul.f32 %v4021, %v4027
      %v4058 = vmul.f32 %v4022, %v4027
      %v4059 = vmul.f32 %v4023, %v4027
      %v4060 = vld [vmem:[%s699] sm:$0x1]
      %v4062 = vlaneseq
      %v4063 = vshrl.u32 %v4062, 7
      %v4064 = vsub.s32 0, %v4063
      %v4065 = vrot.slane %v4060, %v4064
      %v4067 = vadd.f32 %v4028, %v4065
      %v4068 = vadd.f32 %v4029, %v4065
      %v4069 = vadd.f32 %v4030, %v4065
      %v4070 = vadd.f32 %v4031, %v4065
      %v4071 = vadd.f32 %v4032, %v4065
      %v4072 = vadd.f32 %v4033, %v4065
      %v4073 = vadd.f32 %v4034, %v4065
      %v4074 = vadd.f32 %v4035, %v4065
      %v4075 = vadd.f32 %v4036, %v4065
      %v4076 = vadd.f32 %v4037, %v4065
      %v4077 = vadd.f32 %v4038, %v4065
      %v4078 = vadd.f32 %v4039, %v4065
      %v4079 = vadd.f32 %v4040, %v4065
      %v4080 = vadd.f32 %v4041, %v4065
      %v4081 = vadd.f32 %v4042, %v4065
      %v4082 = vadd.f32 %v4043, %v4065
      %v4083 = vadd.f32 %v4044, %v4065
      %v4084 = vadd.f32 %v4045, %v4065
      %v4085 = vadd.f32 %v4046, %v4065
      %v4086 = vadd.f32 %v4047, %v4065
      %v4087 = vadd.f32 %v4048, %v4065
      %v4088 = vadd.f32 %v4049, %v4065
      %v4089 = vadd.f32 %v4050, %v4065
      %v4090 = vadd.f32 %v4051, %v4065
      %v4091 = vadd.f32 %v4052, %v4065
      %v4092 = vadd.f32 %v4053, %v4065
      %v4093 = vadd.f32 %v4054, %v4065
      %v4094 = vadd.f32 %v4055, %v4065
      %v4095 = vadd.f32 %v4056, %v4065
      %v4096 = vadd.f32 %v4057, %v4065
      %v4097 = vadd.f32 %v4058, %v4065
      %v4098 = vadd.f32 %v4059, %v4065
      %v4099 = vsub.f32 0.0, %v4067
      %v4100 = vsub.f32 0.0, %v4068
      %v4101 = vsub.f32 0.0, %v4069
      %v4102 = vsub.f32 0.0, %v4070
      %v4103 = vsub.f32 0.0, %v4071
      %v4104 = vsub.f32 0.0, %v4072
      %v4105 = vsub.f32 0.0, %v4073
      %v4106 = vsub.f32 0.0, %v4074
      %v4107 = vsub.f32 0.0, %v4075
      %v4108 = vsub.f32 0.0, %v4076
      %v4109 = vsub.f32 0.0, %v4077
      %v4110 = vsub.f32 0.0, %v4078
      %v4111 = vsub.f32 0.0, %v4079
      %v4112 = vsub.f32 0.0, %v4080
      %v4113 = vsub.f32 0.0, %v4081
      %v4114 = vsub.f32 0.0, %v4082
      %v4115 = vsub.f32 0.0, %v4083
      %v4116 = vsub.f32 0.0, %v4084
      %v4117 = vsub.f32 0.0, %v4085
      %v4118 = vsub.f32 0.0, %v4086
      %v4119 = vsub.f32 0.0, %v4087
      %v4120 = vsub.f32 0.0, %v4088
      %v4121 = vsub.f32 0.0, %v4089
      %v4122 = vsub.f32 0.0, %v4090
      %v4123 = vsub.f32 0.0, %v4091
      %v4124 = vsub.f32 0.0, %v4092
      %v4125 = vsub.f32 0.0, %v4093
      %v4126 = vsub.f32 0.0, %v4094
      %v4127 = vsub.f32 0.0, %v4095
      %v4128 = vsub.f32 0.0, %v4096
      %v4129 = vsub.f32 0.0, %v4097
      %v4130 = vsub.f32 0.0, %v4098
      %v4131 = vmul.f32 %v4099, 1.442695
      %v4132 = vpow.pop %v4131
      %v4133 = vmul.f32 %v4100, 1.442695
      %v4134 = vpow.pop %v4133
      %v4135 = vmul.f32 %v4101, 1.442695
      %v4136 = vpow.pop %v4135
      %v4137 = vmul.f32 %v4102, 1.442695
      %v4138 = vpow.pop %v4137
      %v4139 = vmul.f32 %v4103, 1.442695
      %v4140 = vpow.pop %v4139
      %v4141 = vmul.f32 %v4104, 1.442695
      %v4142 = vpow.pop %v4141
      %v4143 = vmul.f32 %v4105, 1.442695
      %v4144 = vpow.pop %v4143
      %v4145 = vmul.f32 %v4106, 1.442695
      %v4146 = vpow.pop %v4145
      %v4147 = vmul.f32 %v4107, 1.442695
      %v4148 = vpow.pop %v4147
      %v4149 = vmul.f32 %v4108, 1.442695
      %v4150 = vpow.pop %v4149
      %v4151 = vmul.f32 %v4109, 1.442695
      %v4152 = vpow.pop %v4151
      %v4153 = vmul.f32 %v4110, 1.442695
      %v4154 = vpow.pop %v4153
      %v4155 = vmul.f32 %v4111, 1.442695
      %v4156 = vpow.pop %v4155
      %v4157 = vmul.f32 %v4112, 1.442695
      %v4158 = vpow.pop %v4157
      %v4159 = vmul.f32 %v4113, 1.442695
      %v4160 = vpow.pop %v4159
      %v4161 = vmul.f32 %v4114, 1.442695
      %v4162 = vpow.pop %v4161
      %v4163 = vmul.f32 %v4115, 1.442695
      %v4164 = vpow.pop %v4163
      %v4165 = vmul.f32 %v4116, 1.442695
      %v4166 = vpow.pop %v4165
      %v4167 = vmul.f32 %v4117, 1.442695
      %v4168 = vpow.pop %v4167
      %v4169 = vmul.f32 %v4118, 1.442695
      %v4170 = vpow.pop %v4169
      %v4171 = vmul.f32 %v4119, 1.442695
      %v4172 = vpow.pop %v4171
      %v4173 = vmul.f32 %v4120, 1.442695
      %v4174 = vpow.pop %v4173
      %v4175 = vmul.f32 %v4121, 1.442695
      %v4176 = vpow.pop %v4175
      %v4177 = vmul.f32 %v4122, 1.442695
      %v4178 = vpow.pop %v4177
      %v4179 = vmul.f32 %v4123, 1.442695
      %v4180 = vpow.pop %v4179
      %v4181 = vmul.f32 %v4124, 1.442695
      %v4182 = vpow.pop %v4181
      %v4183 = vmul.f32 %v4125, 1.442695
      %v4184 = vpow.pop %v4183
      %v4185 = vmul.f32 %v4126, 1.442695
      %v4186 = vpow.pop %v4185
      %v4187 = vmul.f32 %v4127, 1.442695
      %v4188 = vpow.pop %v4187
      %v4189 = vmul.f32 %v4128, 1.442695
      %v4190 = vpow.pop %v4189
      %v4191 = vmul.f32 %v4129, 1.442695
      %v4192 = vpow.pop %v4191
      %v4193 = vmul.f32 %v4130, 1.442695
      %v4194 = vpow.pop %v4193
      %v4195 = vadd.f32 %v4132, 1.0
      %v4196 = vadd.f32 %v4134, 1.0
      %v4197 = vadd.f32 %v4136, 1.0
      %v4198 = vadd.f32 %v4138, 1.0
      %v4199 = vadd.f32 %v4140, 1.0
      %v4200 = vadd.f32 %v4142, 1.0
      %v4201 = vadd.f32 %v4144, 1.0
      %v4202 = vadd.f32 %v4146, 1.0
      %v4203 = vadd.f32 %v4148, 1.0
      %v4204 = vadd.f32 %v4150, 1.0
      %v4205 = vadd.f32 %v4152, 1.0
      %v4206 = vadd.f32 %v4154, 1.0
      %v4207 = vadd.f32 %v4156, 1.0
      %v4208 = vadd.f32 %v4158, 1.0
      %v4209 = vadd.f32 %v4160, 1.0
      %v4210 = vadd.f32 %v4162, 1.0
      %v4211 = vadd.f32 %v4164, 1.0
      %v4212 = vadd.f32 %v4166, 1.0
      %v4213 = vadd.f32 %v4168, 1.0
      %v4214 = vadd.f32 %v4170, 1.0
      %v4215 = vadd.f32 %v4172, 1.0
      %v4216 = vadd.f32 %v4174, 1.0
      %v4217 = vadd.f32 %v4176, 1.0
      %v4218 = vadd.f32 %v4178, 1.0
      %v4219 = vadd.f32 %v4180, 1.0
      %v4220 = vadd.f32 %v4182, 1.0
      %v4221 = vadd.f32 %v4184, 1.0
      %v4222 = vadd.f32 %v4186, 1.0
      %v4223 = vadd.f32 %v4188, 1.0
      %v4224 = vadd.f32 %v4190, 1.0
      %v4225 = vadd.f32 %v4192, 1.0
      %v4226 = vadd.f32 %v4194, 1.0
      %v4227 = vrcp.pop %v4195
      %v4228 = vrcp.pop %v4196
      %v4229 = vrcp.pop %v4197
      %v4230 = vrcp.pop %v4198
      %v4231 = vrcp.pop %v4199
      %v4232 = vrcp.pop %v4200
      %v4233 = vrcp.pop %v4201
      %v4234 = vrcp.pop %v4202
      %v4235 = vrcp.pop %v4203
      %v4236 = vrcp.pop %v4204
      %v4237 = vrcp.pop %v4205
      %v4238 = vrcp.pop %v4206
      %v4239 = vrcp.pop %v4207
      %v4240 = vrcp.pop %v4208
      %v4241 = vrcp.pop %v4209
      %v4242 = vrcp.pop %v4210
      %v4243 = vrcp.pop %v4211
      %v4244 = vrcp.pop %v4212
      %v4245 = vrcp.pop %v4213
      %v4246 = vrcp.pop %v4214
      %v4247 = vrcp.pop %v4215
      %v4248 = vrcp.pop %v4216
      %v4249 = vrcp.pop %v4217
      %v4250 = vrcp.pop %v4218
      %v4251 = vrcp.pop %v4219
      %v4252 = vrcp.pop %v4220
      %v4253 = vrcp.pop %v4221
      %v4254 = vrcp.pop %v4222
      %v4255 = vrcp.pop %v4223
      %v4256 = vrcp.pop %v4224
      %v4257 = vrcp.pop %v4225
      %v4258 = vrcp.pop %v4226
      %v4259 = vmul.f32 %v4067, %v4227
      %v4260 = vmul.f32 %v4068, %v4228
      %v4261 = vmul.f32 %v4069, %v4229
      %v4262 = vmul.f32 %v4070, %v4230
      %v4263 = vmul.f32 %v4071, %v4231
      %v4264 = vmul.f32 %v4072, %v4232
      %v4265 = vmul.f32 %v4073, %v4233
      %v4266 = vmul.f32 %v4074, %v4234
      %v4267 = vmul.f32 %v4075, %v4235
      %v4268 = vmul.f32 %v4076, %v4236
      %v4269 = vmul.f32 %v4077, %v4237
      %v4270 = vmul.f32 %v4078, %v4238
      %v4271 = vmul.f32 %v4079, %v4239
      %v4272 = vmul.f32 %v4080, %v4240
      %v4273 = vmul.f32 %v4081, %v4241
      %v4274 = vmul.f32 %v4082, %v4242
      %v4275 = vmul.f32 %v4083, %v4243
      %v4276 = vmul.f32 %v4084, %v4244
      %v4277 = vmul.f32 %v4085, %v4245
      %v4278 = vmul.f32 %v4086, %v4246
      %v4279 = vmul.f32 %v4087, %v4247
      %v4280 = vmul.f32 %v4088, %v4248
      %v4281 = vmul.f32 %v4089, %v4249
      %v4282 = vmul.f32 %v4090, %v4250
      %v4283 = vmul.f32 %v4091, %v4251
      %v4284 = vmul.f32 %v4092, %v4252
      %v4285 = vmul.f32 %v4093, %v4253
      %v4286 = vmul.f32 %v4094, %v4254
      %v4287 = vmul.f32 %v4095, %v4255
      %v4288 = vmul.f32 %v4096, %v4256
      %v4289 = vmul.f32 %v4097, %v4257
      %v4290 = vmul.f32 %v4098, %v4258
      %v4291 = vrot.slane %v4259, 7
      %v4292 = vrot.slane %v4260, 7
      %v4293 = vrot.slane %v4261, 7
      %v4294 = vrot.slane %v4262, 7
      %v4295 = vrot.slane %v4263, 7
      %v4296 = vrot.slane %v4264, 7
      %v4297 = vrot.slane %v4265, 7
      %v4298 = vrot.slane %v4266, 7
      %v4299 = vrot.slane %v4267, 7
      %v4300 = vrot.slane %v4268, 7
      %v4301 = vrot.slane %v4269, 7
      %v4302 = vrot.slane %v4270, 7
      %v4303 = vrot.slane %v4271, 7
      %v4304 = vrot.slane %v4272, 7
      %v4305 = vrot.slane %v4273, 7
      %v4306 = vrot.slane %v4274, 7
      %v4307 = vrot.slane %v4275, 7
      %v4308 = vrot.slane %v4276, 7
      %v4309 = vrot.slane %v4277, 7
      %v4310 = vrot.slane %v4278, 7
      %v4311 = vrot.slane %v4279, 7
      %v4312 = vrot.slane %v4280, 7
      %v4313 = vrot.slane %v4281, 7
      %v4314 = vrot.slane %v4282, 7
      %v4315 = vrot.slane %v4283, 7
      %v4316 = vrot.slane %v4284, 7
      %v4317 = vrot.slane %v4285, 7
      %v4318 = vrot.slane %v4286, 7
      %v4319 = vrot.slane %v4287, 7
      %v4320 = vrot.slane %v4288, 7
      %v4321 = vrot.slane %v4289, 7
      %v4322 = vrot.slane %v4290, 7
      %v4323 = vsel %vm1698, %v4321, %v4322
      %v4324 = vsel %vm1698, %v4320, %v4321
      %v4325 = vsel %vm1698, %v4319, %v4320
      %v4326 = vsel %vm1698, %v4318, %v4319
      %v4327 = vsel %vm1698, %v4317, %v4318
      %v4328 = vsel %vm1698, %v4316, %v4317
      %v4329 = vsel %vm1698, %v4315, %v4316
      %v4330 = vsel %vm1698, %v4314, %v4315
      %v4331 = vsel %vm1698, %v4313, %v4314
      %v4332 = vsel %vm1698, %v4312, %v4313
      %v4333 = vsel %vm1698, %v4311, %v4312
      %v4334 = vsel %vm1698, %v4310, %v4311
      %v4335 = vsel %vm1698, %v4309, %v4310
      %v4336 = vsel %vm1698, %v4308, %v4309
      %v4337 = vsel %vm1698, %v4307, %v4308
      %v4338 = vsel %vm1698, %v4306, %v4307
      %v4339 = vsel %vm1698, %v4305, %v4306
      %v4340 = vsel %vm1698, %v4304, %v4305
      %v4341 = vsel %vm1698, %v4303, %v4304
      %v4342 = vsel %vm1698, %v4302, %v4303
      %v4343 = vsel %vm1698, %v4301, %v4302
      %v4344 = vsel %vm1698, %v4300, %v4301
      %v4345 = vsel %vm1698, %v4299, %v4300
      %v4346 = vsel %vm1698, %v4298, %v4299
      %v4347 = vsel %vm1698, %v4297, %v4298
      %v4348 = vsel %vm1698, %v4296, %v4297
      %v4349 = vsel %vm1698, %v4295, %v4296
      %v4350 = vsel %vm1698, %v4294, %v4295
      %v4351 = vsel %vm1698, %v4293, %v4294
      %v4352 = vsel %vm1698, %v4292, %v4293
      %v4353 = vsel %vm1698, %v4291, %v4292
      %v4354 = vsel %vm1698, %v4322, %v4291
      %v4355 = vmul.f32 %v1734, %v4354
      %v4356 = vmul.f32 %v1739, %v4353
      %v4357 = vmul.f32 %v1744, %v4352
      %v4358 = vmul.f32 %v1749, %v4351
      %v4359 = vmul.f32 %v1754, %v4350
      %v4360 = vmul.f32 %v1759, %v4349
      %v4361 = vmul.f32 %v1764, %v4348
      %v4362 = vmul.f32 %v1769, %v4347
      %v4363 = vmul.f32 %v1774, %v4346
      %v4364 = vmul.f32 %v1779, %v4345
      %v4365 = vmul.f32 %v1784, %v4344
      %v4366 = vmul.f32 %v1789, %v4343
      %v4367 = vmul.f32 %v1794, %v4342
      %v4368 = vmul.f32 %v1799, %v4341
      %v4369 = vmul.f32 %v1804, %v4340
      %v4370 = vmul.f32 %v1809, %v4339
      %v4371 = vmul.f32 %v1814, %v4338
      %v4372 = vmul.f32 %v1819, %v4337
      %v4373 = vmul.f32 %v1824, %v4336
      %v4374 = vmul.f32 %v1829, %v4335
      %v4375 = vmul.f32 %v1834, %v4334
      %v4376 = vmul.f32 %v1839, %v4333
      %v4377 = vmul.f32 %v1844, %v4332
      %v4378 = vmul.f32 %v1849, %v4331
      %v4379 = vmul.f32 %v1854, %v4330
      %v4380 = vmul.f32 %v1859, %v4329
      %v4381 = vmul.f32 %v1864, %v4328
      %v4382 = vmul.f32 %v1869, %v4327
      %v4383 = vmul.f32 %v1874, %v4326
      %v4384 = vmul.f32 %v1879, %v4325
      %v4385 = vmul.f32 %v1884, %v4324
      %v4386 = vmul.f32 %v1889, %v4323
      %v4387 = vrot.slane %v4259, 1
      %v4388 = vrot.slane %v4260, 1
      %v4389 = vrot.slane %v4261, 1
      %v4390 = vrot.slane %v4262, 1
      %v4391 = vrot.slane %v4263, 1
      %v4392 = vrot.slane %v4264, 1
      %v4393 = vrot.slane %v4265, 1
      %v4394 = vrot.slane %v4266, 1
      %v4395 = vrot.slane %v4267, 1
      %v4396 = vrot.slane %v4268, 1
      %v4397 = vrot.slane %v4269, 1
      %v4398 = vrot.slane %v4270, 1
      %v4399 = vrot.slane %v4271, 1
      %v4400 = vrot.slane %v4272, 1
      %v4401 = vrot.slane %v4273, 1
      %v4402 = vrot.slane %v4274, 1
      %v4403 = vrot.slane %v4275, 1
      %v4404 = vrot.slane %v4276, 1
      %v4405 = vrot.slane %v4277, 1
      %v4406 = vrot.slane %v4278, 1
      %v4407 = vrot.slane %v4279, 1
      %v4408 = vrot.slane %v4280, 1
      %v4409 = vrot.slane %v4281, 1
      %v4410 = vrot.slane %v4282, 1
      %v4411 = vrot.slane %v4283, 1
      %v4412 = vrot.slane %v4284, 1
      %v4413 = vrot.slane %v4285, 1
      %v4414 = vrot.slane %v4286, 1
      %v4415 = vrot.slane %v4287, 1
      %v4416 = vrot.slane %v4288, 1
      %v4417 = vrot.slane %v4289, 1
      %v4418 = vrot.slane %v4290, 1
      %v4419 = vsel %vm1955, %v4417, %v4418
      %v4420 = vsel %vm1955, %v4416, %v4417
      %v4421 = vsel %vm1955, %v4415, %v4416
      %v4422 = vsel %vm1955, %v4414, %v4415
      %v4423 = vsel %vm1955, %v4413, %v4414
      %v4424 = vsel %vm1955, %v4412, %v4413
      %v4425 = vsel %vm1955, %v4411, %v4412
      %v4426 = vsel %vm1955, %v4410, %v4411
      %v4427 = vsel %vm1955, %v4409, %v4410
      %v4428 = vsel %vm1955, %v4408, %v4409
      %v4429 = vsel %vm1955, %v4407, %v4408
      %v4430 = vsel %vm1955, %v4406, %v4407
      %v4431 = vsel %vm1955, %v4405, %v4406
      %v4432 = vsel %vm1955, %v4404, %v4405
      %v4433 = vsel %vm1955, %v4403, %v4404
      %v4434 = vsel %vm1955, %v4402, %v4403
      %v4435 = vsel %vm1955, %v4401, %v4402
      %v4436 = vsel %vm1955, %v4400, %v4401
      %v4437 = vsel %vm1955, %v4399, %v4400
      %v4438 = vsel %vm1955, %v4398, %v4399
      %v4439 = vsel %vm1955, %v4397, %v4398
      %v4440 = vsel %vm1955, %v4396, %v4397
      %v4441 = vsel %vm1955, %v4395, %v4396
      %v4442 = vsel %vm1955, %v4394, %v4395
      %v4443 = vsel %vm1955, %v4393, %v4394
      %v4444 = vsel %vm1955, %v4392, %v4393
      %v4445 = vsel %vm1955, %v4391, %v4392
      %v4446 = vsel %vm1955, %v4390, %v4391
      %v4447 = vsel %vm1955, %v4389, %v4390
      %v4448 = vsel %vm1955, %v4388, %v4389
      %v4449 = vsel %vm1955, %v4387, %v4388
      %v4450 = vsel %vm1955, %v4418, %v4387
      %v4451 = vmul.f32 %v1991, %v4449
      %v4452 = vmul.f32 %v1996, %v4448
      %v4453 = vmul.f32 %v2001, %v4447
      %v4454 = vmul.f32 %v2006, %v4446
      %v4455 = vmul.f32 %v2011, %v4445
      %v4456 = vmul.f32 %v2016, %v4444
      %v4457 = vmul.f32 %v2021, %v4443
      %v4458 = vmul.f32 %v2026, %v4442
      %v4459 = vmul.f32 %v2031, %v4441
      %v4460 = vmul.f32 %v2036, %v4440
      %v4461 = vmul.f32 %v2041, %v4439
      %v4462 = vmul.f32 %v2046, %v4438
      %v4463 = vmul.f32 %v2051, %v4437
      %v4464 = vmul.f32 %v2056, %v4436
      %v4465 = vmul.f32 %v2061, %v4435
      %v4466 = vmul.f32 %v2066, %v4434
      %v4467 = vmul.f32 %v2071, %v4433
      %v4468 = vmul.f32 %v2076, %v4432
      %v4469 = vmul.f32 %v2081, %v4431
      %v4470 = vmul.f32 %v2086, %v4430
      %v4471 = vmul.f32 %v2091, %v4429
      %v4472 = vmul.f32 %v2096, %v4428
      %v4473 = vmul.f32 %v2101, %v4427
      %v4474 = vmul.f32 %v2106, %v4426
      %v4475 = vmul.f32 %v2111, %v4425
      %v4476 = vmul.f32 %v2116, %v4424
      %v4477 = vmul.f32 %v2121, %v4423
      %v4478 = vmul.f32 %v2126, %v4422
      %v4479 = vmul.f32 %v2131, %v4421
      %v4480 = vmul.f32 %v2136, %v4420
      %v4481 = vmul.f32 %v2141, %v4419
      %v4482 = vmul.f32 %v2146, %v4450
      %4515 = vrot.lane.b32.xlu0 %v4259, 4
      %v4516 = vpop.permute.xlu0 %4515
      %4517 = vrot.lane.b32.xlu0 %v4260, 4
      %v4518 = vpop.permute.xlu0 %4517
      %4519 = vrot.lane.b32.xlu0 %v4261, 4
      %v4520 = vpop.permute.xlu0 %4519
      %4521 = vrot.lane.b32.xlu0 %v4262, 4
      %v4522 = vpop.permute.xlu0 %4521
      %4523 = vrot.lane.b32.xlu0 %v4263, 4
      %v4524 = vpop.permute.xlu0 %4523
      %4525 = vrot.lane.b32.xlu0 %v4264, 4
      %v4526 = vpop.permute.xlu0 %4525
      %4527 = vrot.lane.b32.xlu0 %v4265, 4
      %v4528 = vpop.permute.xlu0 %4527
      %4529 = vrot.lane.b32.xlu0 %v4266, 4
      %v4530 = vpop.permute.xlu0 %4529
      %4531 = vrot.lane.b32.xlu0 %v4267, 4
      %v4532 = vpop.permute.xlu0 %4531
      %4533 = vrot.lane.b32.xlu0 %v4268, 4
      %v4534 = vpop.permute.xlu0 %4533
      %4535 = vrot.lane.b32.xlu0 %v4269, 4
      %v4536 = vpop.permute.xlu0 %4535
      %4537 = vrot.lane.b32.xlu0 %v4270, 4
      %v4538 = vpop.permute.xlu0 %4537
      %4539 = vrot.lane.b32.xlu0 %v4271, 4
      %v4540 = vpop.permute.xlu0 %4539
      %4541 = vrot.lane.b32.xlu0 %v4272, 4
      %v4542 = vpop.permute.xlu0 %4541
      %4543 = vrot.lane.b32.xlu0 %v4273, 4
      %v4544 = vpop.permute.xlu0 %4543
      %4545 = vrot.lane.b32.xlu0 %v4274, 4
      %v4546 = vpop.permute.xlu0 %4545
      %4547 = vrot.lane.b32.xlu0 %v4275, 4
      %v4548 = vpop.permute.xlu0 %4547
      %4549 = vrot.lane.b32.xlu0 %v4276, 4
      %v4550 = vpop.permute.xlu0 %4549
      %4551 = vrot.lane.b32.xlu0 %v4277, 4
      %v4552 = vpop.permute.xlu0 %4551
      %4553 = vrot.lane.b32.xlu0 %v4278, 4
      %v4554 = vpop.permute.xlu0 %4553
      %4555 = vrot.lane.b32.xlu0 %v4279, 4
      %v4556 = vpop.permute.xlu0 %4555
      %4557 = vrot.lane.b32.xlu0 %v4280, 4
      %v4558 = vpop.permute.xlu0 %4557
      %4559 = vrot.lane.b32.xlu0 %v4281, 4
      %v4560 = vpop.permute.xlu0 %4559
      %4561 = vrot.lane.b32.xlu0 %v4282, 4
      %v4562 = vpop.permute.xlu0 %4561
      %4563 = vrot.lane.b32.xlu0 %v4283, 4
      %v4564 = vpop.permute.xlu0 %4563
      %4565 = vrot.lane.b32.xlu0 %v4284, 4
      %v4566 = vpop.permute.xlu0 %4565
      %4567 = vrot.lane.b32.xlu0 %v4285, 4
      %v4568 = vpop.permute.xlu0 %4567
      %4569 = vrot.lane.b32.xlu0 %v4286, 4
      %v4570 = vpop.permute.xlu0 %4569
      %4571 = vrot.lane.b32.xlu0 %v4287, 4
      %v4572 = vpop.permute.xlu0 %4571
      %4573 = vrot.lane.b32.xlu0 %v4288, 4
      %v4574 = vpop.permute.xlu0 %4573
      %4575 = vrot.lane.b32.xlu0 %v4289, 4
      %v4576 = vpop.permute.xlu0 %4575
      %4577 = vrot.lane.b32.xlu0 %v4290, 4
      %v4578 = vpop.permute.xlu0 %4577
      %4643 = vrot.lane.b32.xlu0 %v4451, 8
      %v4644 = vpop.permute.xlu0 %4643
      %4645 = vrot.lane.b32.xlu0 %v4452, 8
      %v4646 = vpop.permute.xlu0 %4645
      %4647 = vrot.lane.b32.xlu0 %v4453, 8
      %v4648 = vpop.permute.xlu0 %4647
      %4649 = vrot.lane.b32.xlu0 %v4454, 8
      %v4650 = vpop.permute.xlu0 %4649
      %4651 = vrot.lane.b32.xlu0 %v4455, 8
      %v4652 = vpop.permute.xlu0 %4651
      %4653 = vrot.lane.b32.xlu0 %v4456, 8
      %v4654 = vpop.permute.xlu0 %4653
      %4655 = vrot.lane.b32.xlu0 %v4457, 8
      %v4656 = vpop.permute.xlu0 %4655
      %4657 = vrot.lane.b32.xlu0 %v4458, 8
      %v4658 = vpop.permute.xlu0 %4657
      %4659 = vrot.lane.b32.xlu0 %v4459, 8
      %v4660 = vpop.permute.xlu0 %4659
      %4661 = vrot.lane.b32.xlu0 %v4460, 8
      %v4662 = vpop.permute.xlu0 %4661
      %4663 = vrot.lane.b32.xlu0 %v4461, 8
      %v4664 = vpop.permute.xlu0 %4663
      %4665 = vrot.lane.b32.xlu0 %v4462, 8
      %v4666 = vpop.permute.xlu0 %4665
      %4667 = vrot.lane.b32.xlu0 %v4463, 8
      %v4668 = vpop.permute.xlu0 %4667
      %4669 = vrot.lane.b32.xlu0 %v4464, 8
      %v4670 = vpop.permute.xlu0 %4669
      %4671 = vrot.lane.b32.xlu0 %v4465, 8
      %v4672 = vpop.permute.xlu0 %4671
      %4673 = vrot.lane.b32.xlu0 %v4466, 8
      %v4674 = vpop.permute.xlu0 %4673
      %4675 = vrot.lane.b32.xlu0 %v4467, 8
      %v4676 = vpop.permute.xlu0 %4675
      %4677 = vrot.lane.b32.xlu0 %v4468, 8
      %v4678 = vpop.permute.xlu0 %4677
      %4679 = vrot.lane.b32.xlu0 %v4469, 8
      %v4680 = vpop.permute.xlu0 %4679
      %4681 = vrot.lane.b32.xlu0 %v4470, 8
      %v4682 = vpop.permute.xlu0 %4681
      %4683 = vrot.lane.b32.xlu0 %v4471, 8
      %v4684 = vpop.permute.xlu0 %4683
      %4685 = vrot.lane.b32.xlu0 %v4472, 8
      %v4686 = vpop.permute.xlu0 %4685
      %4687 = vrot.lane.b32.xlu0 %v4473, 8
      %v4688 = vpop.permute.xlu0 %4687
      %4689 = vrot.lane.b32.xlu0 %v4474, 8
      %v4690 = vpop.permute.xlu0 %4689
      %4691 = vrot.lane.b32.xlu0 %v4475, 8
      %v4692 = vpop.permute.xlu0 %4691
      %4693 = vrot.lane.b32.xlu0 %v4476, 8
      %v4694 = vpop.permute.xlu0 %4693
      %4695 = vrot.lane.b32.xlu0 %v4477, 8
      %v4696 = vpop.permute.xlu0 %4695
      %4697 = vrot.lane.b32.xlu0 %v4478, 8
      %v4698 = vpop.permute.xlu0 %4697
      %4699 = vrot.lane.b32.xlu0 %v4479, 8
      %v4700 = vpop.permute.xlu0 %4699
      %4701 = vrot.lane.b32.xlu0 %v4480, 8
      %v4702 = vpop.permute.xlu0 %4701
      %4703 = vrot.lane.b32.xlu0 %v4481, 8
      %v4704 = vpop.permute.xlu0 %4703
      %4705 = vrot.lane.b32.xlu0 %v4482, 8
      %v4706 = vpop.permute.xlu0 %4705
      %v4739 = vsel %vm1033, %v4355, %v4516
      %v4740 = vsel %vm1033, %v4356, %v4518
      %v4741 = vsel %vm1033, %v4357, %v4520
      %v4742 = vsel %vm1033, %v4358, %v4522
      %v4743 = vsel %vm1033, %v4359, %v4524
      %v4744 = vsel %vm1033, %v4360, %v4526
      %v4745 = vsel %vm1033, %v4361, %v4528
      %v4746 = vsel %vm1033, %v4362, %v4530
      %v4747 = vsel %vm1033, %v4363, %v4532
      %v4748 = vsel %vm1033, %v4364, %v4534
      %v4749 = vsel %vm1033, %v4365, %v4536
      %v4750 = vsel %vm1033, %v4366, %v4538
      %v4751 = vsel %vm1033, %v4367, %v4540
      %v4752 = vsel %vm1033, %v4368, %v4542
      %v4753 = vsel %vm1033, %v4369, %v4544
      %v4754 = vsel %vm1033, %v4370, %v4546
      %v4755 = vsel %vm1033, %v4371, %v4548
      %v4756 = vsel %vm1033, %v4372, %v4550
      %v4757 = vsel %vm1033, %v4373, %v4552
      %v4758 = vsel %vm1033, %v4374, %v4554
      %v4759 = vsel %vm1033, %v4375, %v4556
      %v4760 = vsel %vm1033, %v4376, %v4558
      %v4761 = vsel %vm1033, %v4377, %v4560
      %v4762 = vsel %vm1033, %v4378, %v4562
      %v4763 = vsel %vm1033, %v4379, %v4564
      %v4764 = vsel %vm1033, %v4380, %v4566
      %v4765 = vsel %vm1033, %v4381, %v4568
      %v4766 = vsel %vm1033, %v4382, %v4570
      %v4767 = vsel %vm1033, %v4383, %v4572
      %v4768 = vsel %vm1033, %v4384, %v4574
      %v4769 = vsel %vm1033, %v4385, %v4576
      %v4770 = vsel %vm1033, %v4386, %v4578
      %v4771 = vsel %vm2468, %v4739, %v4644
      %v4772 = vsel %vm2468, %v4740, %v4646
      %v4773 = vsel %vm2468, %v4741, %v4648
      %v4774 = vsel %vm2468, %v4742, %v4650
      %v4775 = vsel %vm2468, %v4743, %v4652
      %v4776 = vsel %vm2468, %v4744, %v4654
      %v4777 = vsel %vm2468, %v4745, %v4656
      %v4778 = vsel %vm2468, %v4746, %v4658
      %v4779 = vsel %vm2468, %v4747, %v4660
      %v4780 = vsel %vm2468, %v4748, %v4662
      %v4781 = vsel %vm2468, %v4749, %v4664
      %v4782 = vsel %vm2468, %v4750, %v4666
      %v4783 = vsel %vm2468, %v4751, %v4668
      %v4784 = vsel %vm2468, %v4752, %v4670
      %v4785 = vsel %vm2468, %v4753, %v4672
      %v4786 = vsel %vm2468, %v4754, %v4674
      %v4787 = vsel %vm2468, %v4755, %v4676
      %v4788 = vsel %vm2468, %v4756, %v4678
      %v4789 = vsel %vm2468, %v4757, %v4680
      %v4790 = vsel %vm2468, %v4758, %v4682
      %v4791 = vsel %vm2468, %v4759, %v4684
      %v4792 = vsel %vm2468, %v4760, %v4686
      %v4793 = vsel %vm2468, %v4761, %v4688
      %v4794 = vsel %vm2468, %v4762, %v4690
      %v4795 = vsel %vm2468, %v4763, %v4692
      %v4796 = vsel %vm2468, %v4764, %v4694
      %v4797 = vsel %vm2468, %v4765, %v4696
      %v4798 = vsel %vm2468, %v4766, %v4698
      %v4799 = vsel %vm2468, %v4767, %v4700
      %v4800 = vsel %vm2468, %v4768, %v4702
      %v4801 = vsel %vm2468, %v4769, %v4704
      %v4802 = vsel %vm2468, %v4770, %v4706
      %v4803 = vmul.f32 %v2504, %v4801
      %v4804 = vmul.f32 %v2509, %v4802
      %v4805 = vmul.f32 %v2514, %v4771
      %v4806 = vmul.f32 %v2519, %v4772
      %v4807 = vmul.f32 %v2524, %v4773
      %v4808 = vmul.f32 %v2529, %v4774
      %v4809 = vmul.f32 %v2534, %v4775
      %v4810 = vmul.f32 %v2539, %v4776
      %v4811 = vmul.f32 %v2544, %v4777
      %v4812 = vmul.f32 %v2549, %v4778
      %v4813 = vmul.f32 %v2554, %v4779
      %v4814 = vmul.f32 %v2559, %v4780
      %v4815 = vmul.f32 %v2564, %v4781
      %v4816 = vmul.f32 %v2569, %v4782
      %v4817 = vmul.f32 %v2574, %v4783
      %v4818 = vmul.f32 %v2579, %v4784
      %v4819 = vmul.f32 %v2584, %v4785
      %v4820 = vmul.f32 %v2589, %v4786
      %v4821 = vmul.f32 %v2594, %v4787
      %v4822 = vmul.f32 %v2599, %v4788
      %v4823 = vmul.f32 %v2604, %v4789
      %v4824 = vmul.f32 %v2609, %v4790
      %v4825 = vmul.f32 %v2614, %v4791
      %v4826 = vmul.f32 %v2619, %v4792
      %v4827 = vmul.f32 %v2624, %v4793
      %v4828 = vmul.f32 %v2629, %v4794
      %v4829 = vmul.f32 %v2634, %v4795
      %v4830 = vmul.f32 %v2639, %v4796
      %v4831 = vmul.f32 %v2644, %v4797
      %v4832 = vmul.f32 %v2649, %v4798
      %v4833 = vmul.f32 %v2654, %v4799
      %v4834 = vmul.f32 %v2659, %v4800
      %v4835 = vmul.f32 %v2696, %v4773
      %v4836 = vmul.f32 %v2701, %v4774
      %v4837 = vmul.f32 %v2706, %v4775
      %v4838 = vmul.f32 %v2711, %v4776
      %v4839 = vmul.f32 %v2716, %v4777
      %v4840 = vmul.f32 %v2721, %v4778
      %v4841 = vmul.f32 %v2726, %v4779
      %v4842 = vmul.f32 %v2731, %v4780
      %v4843 = vmul.f32 %v2736, %v4781
      %v4844 = vmul.f32 %v2741, %v4782
      %v4845 = vmul.f32 %v2746, %v4783
      %v4846 = vmul.f32 %v2751, %v4784
      %v4847 = vmul.f32 %v2756, %v4785
      %v4848 = vmul.f32 %v2761, %v4786
      %v4849 = vmul.f32 %v2766, %v4787
      %v4850 = vmul.f32 %v2771, %v4788
      %v4851 = vmul.f32 %v2776, %v4789
      %v4852 = vmul.f32 %v2781, %v4790
      %v4853 = vmul.f32 %v2786, %v4791
      %v4854 = vmul.f32 %v2791, %v4792
      %v4855 = vmul.f32 %v2796, %v4793
      %v4856 = vmul.f32 %v2801, %v4794
      %v4857 = vmul.f32 %v2806, %v4795
      %v4858 = vmul.f32 %v2811, %v4796
      %v4859 = vmul.f32 %v2816, %v4797
      %v4860 = vmul.f32 %v2821, %v4798
      %v4861 = vmul.f32 %v2826, %v4799
      %v4862 = vmul.f32 %v2831, %v4800
      %v4863 = vmul.f32 %v2836, %v4801
      %v4864 = vmul.f32 %v2841, %v4802
      %v4865 = vmul.f32 %v2846, %v4771
      %v4866 = vmul.f32 %v2851, %v4772
      %v4867 = vpack.c.bf16 %v4804, %v4803
      %v4868 = vpack.c.bf16 %v4806, %v4805
      %v4869 = vpack.c.bf16 %v4808, %v4807
      %v4870 = vpack.c.bf16 %v4810, %v4809
      %v4871 = vpack.c.bf16 %v4812, %v4811
      %v4872 = vpack.c.bf16 %v4814, %v4813
      %v4873 = vpack.c.bf16 %v4816, %v4815
      %v4874 = vpack.c.bf16 %v4818, %v4817
      %v4875 = vpack.c.bf16 %v4820, %v4819
      %v4876 = vpack.c.bf16 %v4822, %v4821
      %v4877 = vpack.c.bf16 %v4824, %v4823
      %v4878 = vpack.c.bf16 %v4826, %v4825
      %v4879 = vpack.c.bf16 %v4828, %v4827
      %v4880 = vpack.c.bf16 %v4830, %v4829
      %v4881 = vpack.c.bf16 %v4832, %v4831
      %v4882 = vpack.c.bf16 %v4834, %v4833
      %v4883 = vld [vmem:[%s704] sm:$0xf]
      %v4884 = vld [vmem:[%s704 + $0x4] sm:$0x3]
      %v4885 = vpack.c.bf16 %v4772, %v4771
      %v4886 = vpack.c.bf16 %v4774, %v4773
      %v4887 = vpack.c.bf16 %v4776, %v4775
      %v4888 = vpack.c.bf16 %v4778, %v4777
      %v4889 = vpack.c.bf16 %v4780, %v4779
      %v4890 = vpack.c.bf16 %v4782, %v4781
      %v4891 = vpack.c.bf16 %v4784, %v4783
      %v4892 = vpack.c.bf16 %v4786, %v4785
      %v4893 = vpack.c.bf16 %v4788, %v4787
      %v4894 = vpack.c.bf16 %v4790, %v4789
      %v4895 = vpack.c.bf16 %v4792, %v4791
      %v4896 = vpack.c.bf16 %v4794, %v4793
      %v4897 = vpack.c.bf16 %v4796, %v4795
      %v4898 = vpack.c.bf16 %v4798, %v4797
      %v4899 = vpack.c.bf16 %v4800, %v4799
      %v4900 = vpack.c.bf16 %v4802, %v4801
      %s4901 = scalar_lea.vmem %s704, 8
      %v4902 = vld [vmem:[%s4901] sm:$0xf]
      %v4903 = vld [vmem:[%s4901 + $0x4] sm:$0x3]
      %v4906 = vunpack.c.l.b16 %v4902
      %v4907 = vunpack.c.l.b16 %v4903
      %v4908 = vpack.c.b16 %v4907, %v4906
      %v4910 = vsel %vm2927, %v4885, 0
      %v4913 = vsel %vm2927, %v4886, 0
      %v4916 = vsel %vm2927, %v4887, 0
      %v4919 = vsel %vm2927, %v4888, 0
      %v4922 = vsel %vm2927, %v4889, 0
      %v4925 = vsel %vm2927, %v4890, 0
      %v4928 = vsel %vm2927, %v4891, 0
      %v4931 = vsel %vm2927, %v4892, 0
      %v4934 = vsel %vm2927, %v4893, 0
      %v4937 = vsel %vm2927, %v4894, 0
      %v4940 = vsel %vm2927, %v4895, 0
      %v4943 = vsel %vm2927, %v4896, 0
      %v4946 = vsel %vm2927, %v4897, 0
      %v4949 = vsel %vm2927, %v4898, 0
      %v4952 = vsel %vm2927, %v4899, 0
      %v4955 = vsel %vm2927, %v4900, 0
      %v4958 = vsel %vm2976, %v4908, 0
      %4960 = vmatprep.subr.bf16.mxu0 0
      %4961 = vmatpush1.bf16.msra.mxu0 0
      %4962 = vmatprep.subr.bf16.mxu0 0
      %4963 = vmatpush1.bf16.msra.mxu0 0
      %4964 = vmatprep.subr.bf16.mxu0 0
      %4965 = vmatpush1.bf16.msra.mxu0 0
      %4966 = vmatprep.subr.bf16.mxu0 0
      %4967 = vmatpush1.bf16.msra.mxu0 0
      %4968 = vmatprep.subr.bf16.mxu0 0
      %4969 = vmatpush1.bf16.msra.mxu0 0
      %4970 = vmatprep.subr.bf16.mxu0 0
      %4971 = vmatpush1.bf16.msra.mxu0 0
      %4972 = vmatprep.subr.bf16.mxu0 0
      %4973 = vmatpush1.bf16.msra.mxu0 0
      %4974 = vmatprep.subr.bf16.mxu0 0
      %4975 = vmatpush1.bf16.msra.mxu0 %v4958
      %4976 = vmatprep.subr.bf16.mxu0 0
      %4977 = vmatpush2.bf16.msra.mxu0 0
      %4978 = vmatprep.subr.bf16.mxu0 0
      %4979 = vmatpush2.bf16.msra.mxu0 0
      %4980 = vmatprep.subr.bf16.mxu0 0
      %4981 = vmatpush2.bf16.msra.mxu0 0
      %4982 = vmatprep.subr.bf16.mxu0 0
      %4983 = vmatpush2.bf16.msra.mxu0 0
      %4984 = vmatprep.subr.bf16.mxu0 0
      %4985 = vmatpush2.bf16.msra.mxu0 0
      %4986 = vmatprep.subr.bf16.mxu0 0
      %4987 = vmatpush2.bf16.msra.mxu0 0
      %4988 = vmatprep.subr.bf16.mxu0 0
      %4989 = vmatpush2.bf16.msra.mxu0 0
      %4990 = vmatprep.subr.bf16.mxu0 0
      %4991 = vmatpush2.bf16.msra.mxu0 0
      %4992 = vmatprep.mubr.bf16.mxu0 0
      %4993 = vmatmul.mubr.bf16.gmra.mxu0 %v4910
      %v4994 = vpop.f32.mrf.mxu0
      %v4995 = vadd.f32 0.0, %v4994
      %v4996 = vpop.f32.mrf.mxu0
      %v4997 = vpop.f32.mrf.mxu0
      %v4998 = vadd.f32 0.0, %v4997
      %v4999 = vpop.f32.mrf.mxu0
      %5000 = vmatprep.mubr.bf16.mxu0 0
      %5001 = vmatmul.mubr.bf16.gmra.mxu0 %v4913
      %v5002 = vpop.f32.mrf.mxu0
      %v5003 = vadd.f32 0.0, %v5002
      %v5004 = vpop.f32.mrf.mxu0
      %v5005 = vpop.f32.mrf.mxu0
      %v5006 = vadd.f32 0.0, %v5005
      %v5007 = vpop.f32.mrf.mxu0
      %5008 = vmatprep.mubr.bf16.mxu0 0
      %5009 = vmatmul.mubr.bf16.gmra.mxu0 %v4916
      %v5010 = vpop.f32.mrf.mxu0
      %v5011 = vadd.f32 0.0, %v5010
      %v5012 = vpop.f32.mrf.mxu0
      %v5013 = vpop.f32.mrf.mxu0
      %v5014 = vadd.f32 0.0, %v5013
      %v5015 = vpop.f32.mrf.mxu0
      %5016 = vmatprep.mubr.bf16.mxu0 0
      %5017 = vmatmul.mubr.bf16.gmra.mxu0 %v4919
      %v5018 = vpop.f32.mrf.mxu0
      %v5019 = vadd.f32 0.0, %v5018
      %v5020 = vpop.f32.mrf.mxu0
      %v5021 = vpop.f32.mrf.mxu0
      %v5022 = vadd.f32 0.0, %v5021
      %v5023 = vpop.f32.mrf.mxu0
      %5024 = vmatprep.mubr.bf16.mxu0 0
      %5025 = vmatmul.mubr.bf16.gmra.mxu0 %v4922
      %v5026 = vpop.f32.mrf.mxu0
      %v5027 = vadd.f32 0.0, %v5026
      %v5028 = vpop.f32.mrf.mxu0
      %v5029 = vpop.f32.mrf.mxu0
      %v5030 = vadd.f32 0.0, %v5029
      %v5031 = vpop.f32.mrf.mxu0
      %5032 = vmatprep.mubr.bf16.mxu0 0
      %5033 = vmatmul.mubr.bf16.gmra.mxu0 %v4925
      %v5034 = vpop.f32.mrf.mxu0
      %v5035 = vadd.f32 0.0, %v5034
      %v5036 = vpop.f32.mrf.mxu0
      %v5037 = vpop.f32.mrf.mxu0
      %v5038 = vadd.f32 0.0, %v5037
      %v5039 = vpop.f32.mrf.mxu0
      %5040 = vmatprep.mubr.bf16.mxu0 0
      %5041 = vmatmul.mubr.bf16.gmra.mxu0 %v4928
      %v5042 = vpop.f32.mrf.mxu0
      %v5043 = vadd.f32 0.0, %v5042
      %v5044 = vpop.f32.mrf.mxu0
      %v5045 = vpop.f32.mrf.mxu0
      %v5046 = vadd.f32 0.0, %v5045
      %v5047 = vpop.f32.mrf.mxu0
      %5048 = vmatprep.mubr.bf16.mxu0 0
      %5049 = vmatmul.mubr.bf16.gmra.mxu0 %v4931
      %v5050 = vpop.f32.mrf.mxu0
      %v5051 = vadd.f32 0.0, %v5050
      %v5052 = vpop.f32.mrf.mxu0
      %v5053 = vpop.f32.mrf.mxu0
      %v5054 = vadd.f32 0.0, %v5053
      %v5055 = vpop.f32.mrf.mxu0
      %5056 = vmatprep.mubr.bf16.mxu0 0
      %5057 = vmatmul.mubr.bf16.gmra.mxu0 %v4934
      %v5058 = vpop.f32.mrf.mxu0
      %v5059 = vadd.f32 0.0, %v5058
      %v5060 = vpop.f32.mrf.mxu0
      %v5061 = vpop.f32.mrf.mxu0
      %v5062 = vadd.f32 0.0, %v5061
      %v5063 = vpop.f32.mrf.mxu0
      %5064 = vmatprep.mubr.bf16.mxu0 0
      %5065 = vmatmul.mubr.bf16.gmra.mxu0 %v4937
      %v5066 = vpop.f32.mrf.mxu0
      %v5067 = vadd.f32 0.0, %v5066
      %v5068 = vpop.f32.mrf.mxu0
      %v5069 = vpop.f32.mrf.mxu0
      %v5070 = vadd.f32 0.0, %v5069
      %v5071 = vpop.f32.mrf.mxu0
      %5072 = vmatprep.mubr.bf16.mxu0 0
      %5073 = vmatmul.mubr.bf16.gmra.mxu0 %v4940
      %v5074 = vpop.f32.mrf.mxu0
      %v5075 = vadd.f32 0.0, %v5074
      %v5076 = vpop.f32.mrf.mxu0
      %v5077 = vpop.f32.mrf.mxu0
      %v5078 = vadd.f32 0.0, %v5077
      %v5079 = vpop.f32.mrf.mxu0
      %5080 = vmatprep.mubr.bf16.mxu0 0
      %5081 = vmatmul.mubr.bf16.gmra.mxu0 %v4943
      %v5082 = vpop.f32.mrf.mxu0
      %v5083 = vadd.f32 0.0, %v5082
      %v5084 = vpop.f32.mrf.mxu0
      %v5085 = vpop.f32.mrf.mxu0
      %v5086 = vadd.f32 0.0, %v5085
      %v5087 = vpop.f32.mrf.mxu0
      %5088 = vmatprep.mubr.bf16.mxu0 0
      %5089 = vmatmul.mubr.bf16.gmra.mxu0 %v4946
      %v5090 = vpop.f32.mrf.mxu0
      %v5091 = vadd.f32 0.0, %v5090
      %v5092 = vpop.f32.mrf.mxu0
      %v5093 = vpop.f32.mrf.mxu0
      %v5094 = vadd.f32 0.0, %v5093
      %v5095 = vpop.f32.mrf.mxu0
      %5096 = vmatprep.mubr.bf16.mxu0 0
      %5097 = vmatmul.mubr.bf16.gmra.mxu0 %v4949
      %v5098 = vpop.f32.mrf.mxu0
      %v5099 = vadd.f32 0.0, %v5098
      %v5100 = vpop.f32.mrf.mxu0
      %v5101 = vpop.f32.mrf.mxu0
      %v5102 = vadd.f32 0.0, %v5101
      %v5103 = vpop.f32.mrf.mxu0
      %5104 = vmatprep.mubr.bf16.mxu0 0
      %5105 = vmatmul.mubr.bf16.gmra.mxu0 %v4952
      %v5106 = vpop.f32.mrf.mxu0
      %v5107 = vadd.f32 0.0, %v5106
      %v5108 = vpop.f32.mrf.mxu0
      %v5109 = vpop.f32.mrf.mxu0
      %v5110 = vadd.f32 0.0, %v5109
      %v5111 = vpop.f32.mrf.mxu0
      %5112 = vmatprep.mubr.bf16.mxu0 0
      %5113 = vmatmul.mubr.bf16.gmra.mxu0 %v4955
      %v5114 = vpop.f32.mrf.mxu0
      %v5115 = vadd.f32 0.0, %v5114
      %v5116 = vpop.f32.mrf.mxu0
      %v5117 = vpop.f32.mrf.mxu0
      %v5118 = vadd.f32 0.0, %v5117
      %v5119 = vpop.f32.mrf.mxu0
      %5120 = vdwg.mxu0
      %v5123 = vunpack.c.l.b16 %v4883
      %v5124 = vunpack.c.l.b16 %v4884
      %v5125 = vpack.c.b16 %v5124, %v5123
      %v5127 = vsel %vm2927, %v4867, 0
      %v5130 = vsel %vm2927, %v4868, 0
      %v5133 = vsel %vm2927, %v4869, 0
      %v5136 = vsel %vm2927, %v4870, 0
      %v5139 = vsel %vm2927, %v4871, 0
      %v5142 = vsel %vm2927, %v4872, 0
      %v5145 = vsel %vm2927, %v4873, 0
      %v5148 = vsel %vm2927, %v4874, 0
      %v5151 = vsel %vm2927, %v4875, 0
      %v5154 = vsel %vm2927, %v4876, 0
      %v5157 = vsel %vm2927, %v4877, 0
      %v5160 = vsel %vm2927, %v4878, 0
      %v5163 = vsel %vm2927, %v4879, 0
      %v5166 = vsel %vm2927, %v4880, 0
      %v5169 = vsel %vm2927, %v4881, 0
      %v5172 = vsel %vm2927, %v4882, 0
      %v5175 = vsel %vm2976, %v5125, 0
      %5177 = vmatprep.subr.bf16.mxu0 0
      %5178 = vmatpush1.bf16.msra.mxu0 0
      %5179 = vmatprep.subr.bf16.mxu0 0
      %5180 = vmatpush1.bf16.msra.mxu0 0
      %5181 = vmatprep.subr.bf16.mxu0 0
      %5182 = vmatpush1.bf16.msra.mxu0 0
      %5183 = vmatprep.subr.bf16.mxu0 0
      %5184 = vmatpush1.bf16.msra.mxu0 0
      %5185 = vmatprep.subr.bf16.mxu0 0
      %5186 = vmatpush1.bf16.msra.mxu0 0
      %5187 = vmatprep.subr.bf16.mxu0 0
      %5188 = vmatpush1.bf16.msra.mxu0 0
      %5189 = vmatprep.subr.bf16.mxu0 0
      %5190 = vmatpush1.bf16.msra.mxu0 0
      %5191 = vmatprep.subr.bf16.mxu0 0
      %5192 = vmatpush1.bf16.msra.mxu0 %v5175
      %5193 = vmatprep.subr.bf16.mxu0 0
      %5194 = vmatpush2.bf16.msra.mxu0 0
      %5195 = vmatprep.subr.bf16.mxu0 0
      %5196 = vmatpush2.bf16.msra.mxu0 0
      %5197 = vmatprep.subr.bf16.mxu0 0
      %5198 = vmatpush2.bf16.msra.mxu0 0
      %5199 = vmatprep.subr.bf16.mxu0 0
      %5200 = vmatpush2.bf16.msra.mxu0 0
      %5201 = vmatprep.subr.bf16.mxu0 0
      %5202 = vmatpush2.bf16.msra.mxu0 0
      %5203 = vmatprep.subr.bf16.mxu0 0
      %5204 = vmatpush2.bf16.msra.mxu0 0
      %5205 = vmatprep.subr.bf16.mxu0 0
      %5206 = vmatpush2.bf16.msra.mxu0 0
      %5207 = vmatprep.subr.bf16.mxu0 0
      %5208 = vmatpush2.bf16.msra.mxu0 0
      %5209 = vmatprep.mubr.bf16.mxu0 0
      %5210 = vmatmul.mubr.bf16.gmra.mxu0 %v5127
      %v5211 = vpop.f32.mrf.mxu0
      %v5212 = vadd.f32 %v4995, %v5211
      %v5213 = vpop.f32.mrf.mxu0
      %v5214 = vpop.f32.mrf.mxu0
      %v5215 = vadd.f32 %v4998, %v5214
      %v5216 = vpop.f32.mrf.mxu0
      %5217 = vmatprep.mubr.bf16.mxu0 0
      %5218 = vmatmul.mubr.bf16.gmra.mxu0 %v5130
      %v5219 = vpop.f32.mrf.mxu0
      %v5220 = vadd.f32 %v5003, %v5219
      %v5221 = vpop.f32.mrf.mxu0
      %v5222 = vpop.f32.mrf.mxu0
      %v5223 = vadd.f32 %v5006, %v5222
      %v5224 = vpop.f32.mrf.mxu0
      %5225 = vmatprep.mubr.bf16.mxu0 0
      %5226 = vmatmul.mubr.bf16.gmra.mxu0 %v5133
      %v5227 = vpop.f32.mrf.mxu0
      %v5228 = vadd.f32 %v5011, %v5227
      %v5229 = vpop.f32.mrf.mxu0
      %v5230 = vpop.f32.mrf.mxu0
      %v5231 = vadd.f32 %v5014, %v5230
      %v5232 = vpop.f32.mrf.mxu0
      %5233 = vmatprep.mubr.bf16.mxu0 0
      %5234 = vmatmul.mubr.bf16.gmra.mxu0 %v5136
      %v5235 = vpop.f32.mrf.mxu0
      %v5236 = vadd.f32 %v5019, %v5235
      %v5237 = vpop.f32.mrf.mxu0
      %v5238 = vpop.f32.mrf.mxu0
      %v5239 = vadd.f32 %v5022, %v5238
      %v5240 = vpop.f32.mrf.mxu0
      %5241 = vmatprep.mubr.bf16.mxu0 0
      %5242 = vmatmul.mubr.bf16.gmra.mxu0 %v5139
      %v5243 = vpop.f32.mrf.mxu0
      %v5244 = vadd.f32 %v5027, %v5243
      %v5245 = vpop.f32.mrf.mxu0
      %v5246 = vpop.f32.mrf.mxu0
      %v5247 = vadd.f32 %v5030, %v5246
      %v5248 = vpop.f32.mrf.mxu0
      %5249 = vmatprep.mubr.bf16.mxu0 0
      %5250 = vmatmul.mubr.bf16.gmra.mxu0 %v5142
      %v5251 = vpop.f32.mrf.mxu0
      %v5252 = vadd.f32 %v5035, %v5251
      %v5253 = vpop.f32.mrf.mxu0
      %v5254 = vpop.f32.mrf.mxu0
      %v5255 = vadd.f32 %v5038, %v5254
      %v5256 = vpop.f32.mrf.mxu0
      %5257 = vmatprep.mubr.bf16.mxu0 0
      %5258 = vmatmul.mubr.bf16.gmra.mxu0 %v5145
      %v5259 = vpop.f32.mrf.mxu0
      %v5260 = vadd.f32 %v5043, %v5259
      %v5261 = vpop.f32.mrf.mxu0
      %v5262 = vpop.f32.mrf.mxu0
      %v5263 = vadd.f32 %v5046, %v5262
      %v5264 = vpop.f32.mrf.mxu0
      %5265 = vmatprep.mubr.bf16.mxu0 0
      %5266 = vmatmul.mubr.bf16.gmra.mxu0 %v5148
      %v5267 = vpop.f32.mrf.mxu0
      %v5268 = vadd.f32 %v5051, %v5267
      %v5269 = vpop.f32.mrf.mxu0
      %v5270 = vpop.f32.mrf.mxu0
      %v5271 = vadd.f32 %v5054, %v5270
      %v5272 = vpop.f32.mrf.mxu0
      %5273 = vmatprep.mubr.bf16.mxu0 0
      %5274 = vmatmul.mubr.bf16.gmra.mxu0 %v5151
      %v5275 = vpop.f32.mrf.mxu0
      %v5276 = vadd.f32 %v5059, %v5275
      %v5277 = vpop.f32.mrf.mxu0
      %v5278 = vpop.f32.mrf.mxu0
      %v5279 = vadd.f32 %v5062, %v5278
      %v5280 = vpop.f32.mrf.mxu0
      %5281 = vmatprep.mubr.bf16.mxu0 0
      %5282 = vmatmul.mubr.bf16.gmra.mxu0 %v5154
      %v5283 = vpop.f32.mrf.mxu0
      %v5284 = vadd.f32 %v5067, %v5283
      %v5285 = vpop.f32.mrf.mxu0
      %v5286 = vpop.f32.mrf.mxu0
      %v5287 = vadd.f32 %v5070, %v5286
      %v5288 = vpop.f32.mrf.mxu0
      %5289 = vmatprep.mubr.bf16.mxu0 0
      %5290 = vmatmul.mubr.bf16.gmra.mxu0 %v5157
      %v5291 = vpop.f32.mrf.mxu0
      %v5292 = vadd.f32 %v5075, %v5291
      %v5293 = vpop.f32.mrf.mxu0
      %v5294 = vpop.f32.mrf.mxu0
      %v5295 = vadd.f32 %v5078, %v5294
      %v5296 = vpop.f32.mrf.mxu0
      %5297 = vmatprep.mubr.bf16.mxu0 0
      %5298 = vmatmul.mubr.bf16.gmra.mxu0 %v5160
      %v5299 = vpop.f32.mrf.mxu0
      %v5300 = vadd.f32 %v5083, %v5299
      %v5301 = vpop.f32.mrf.mxu0
      %v5302 = vpop.f32.mrf.mxu0
      %v5303 = vadd.f32 %v5086, %v5302
      %v5304 = vpop.f32.mrf.mxu0
      %5305 = vmatprep.mubr.bf16.mxu0 0
      %5306 = vmatmul.mubr.bf16.gmra.mxu0 %v5163
      %v5307 = vpop.f32.mrf.mxu0
      %v5308 = vadd.f32 %v5091, %v5307
      %v5309 = vpop.f32.mrf.mxu0
      %v5310 = vpop.f32.mrf.mxu0
      %v5311 = vadd.f32 %v5094, %v5310
      %v5312 = vpop.f32.mrf.mxu0
      %5313 = vmatprep.mubr.bf16.mxu0 0
      %5314 = vmatmul.mubr.bf16.gmra.mxu0 %v5166
      %v5315 = vpop.f32.mrf.mxu0
      %v5316 = vadd.f32 %v5099, %v5315
      %v5317 = vpop.f32.mrf.mxu0
      %v5318 = vpop.f32.mrf.mxu0
      %v5319 = vadd.f32 %v5102, %v5318
      %v5320 = vpop.f32.mrf.mxu0
      %5321 = vmatprep.mubr.bf16.mxu0 0
      %5322 = vmatmul.mubr.bf16.gmra.mxu0 %v5169
      %v5323 = vpop.f32.mrf.mxu0
      %v5324 = vadd.f32 %v5107, %v5323
      %v5325 = vpop.f32.mrf.mxu0
      %v5326 = vpop.f32.mrf.mxu0
      %v5327 = vadd.f32 %v5110, %v5326
      %v5328 = vpop.f32.mrf.mxu0
      %5329 = vmatprep.mubr.bf16.mxu0 0
      %5330 = vmatmul.mubr.bf16.gmra.mxu0 %v5172
      %v5331 = vpop.f32.mrf.mxu0
      %v5332 = vadd.f32 %v5115, %v5331
      %v5333 = vpop.f32.mrf.mxu0
      %v5334 = vpop.f32.mrf.mxu0
      %v5335 = vadd.f32 %v5118, %v5334
      %v5336 = vpop.f32.mrf.mxu0
      %5337 = vdwg.mxu0
      %v5338 = vpack.c.bf16 %v4836, %v4835
      %v5339 = vpack.c.bf16 %v4838, %v4837
      %v5340 = vpack.c.bf16 %v4840, %v4839
      %v5341 = vpack.c.bf16 %v4842, %v4841
      %v5342 = vpack.c.bf16 %v4844, %v4843
      %v5343 = vpack.c.bf16 %v4846, %v4845
      %v5344 = vpack.c.bf16 %v4848, %v4847
      %v5345 = vpack.c.bf16 %v4850, %v4849
      %v5346 = vpack.c.bf16 %v4852, %v4851
      %v5347 = vpack.c.bf16 %v4854, %v4853
      %v5348 = vpack.c.bf16 %v4856, %v4855
      %v5349 = vpack.c.bf16 %v4858, %v4857
      %v5350 = vpack.c.bf16 %v4860, %v4859
      %v5351 = vpack.c.bf16 %v4862, %v4861
      %v5352 = vpack.c.bf16 %v4864, %v4863
      %v5353 = vpack.c.bf16 %v4866, %v4865
      %s5354 = scalar_lea.vmem %s704, 16
      %v5355 = vld [vmem:[%s5354] sm:$0xf]
      %v5356 = vld [vmem:[%s5354 + $0x4] sm:$0x3]
      %v5359 = vunpack.c.l.b16 %v5355
      %v5360 = vunpack.c.l.b16 %v5356
      %v5361 = vpack.c.b16 %v5360, %v5359
      %v5363 = vsel %vm2927, %v5338, 0
      %v5366 = vsel %vm2927, %v5339, 0
      %v5369 = vsel %vm2927, %v5340, 0
      %v5372 = vsel %vm2927, %v5341, 0
      %v5375 = vsel %vm2927, %v5342, 0
      %v5378 = vsel %vm2927, %v5343, 0
      %v5381 = vsel %vm2927, %v5344, 0
      %v5384 = vsel %vm2927, %v5345, 0
      %v5387 = vsel %vm2927, %v5346, 0
      %v5390 = vsel %vm2927, %v5347, 0
      %v5393 = vsel %vm2927, %v5348, 0
      %v5396 = vsel %vm2927, %v5349, 0
      %v5399 = vsel %vm2927, %v5350, 0
      %v5402 = vsel %vm2927, %v5351, 0
      %v5405 = vsel %vm2927, %v5352, 0
      %v5408 = vsel %vm2927, %v5353, 0
      %v5411 = vsel %vm2976, %v5361, 0
      %5413 = vmatprep.subr.bf16.mxu0 0
      %5414 = vmatpush1.bf16.msra.mxu0 0
      %5415 = vmatprep.subr.bf16.mxu0 0
      %5416 = vmatpush1.bf16.msra.mxu0 0
      %5417 = vmatprep.subr.bf16.mxu0 0
      %5418 = vmatpush1.bf16.msra.mxu0 0
      %5419 = vmatprep.subr.bf16.mxu0 0
      %5420 = vmatpush1.bf16.msra.mxu0 0
      %5421 = vmatprep.subr.bf16.mxu0 0
      %5422 = vmatpush1.bf16.msra.mxu0 0
      %5423 = vmatprep.subr.bf16.mxu0 0
      %5424 = vmatpush1.bf16.msra.mxu0 0
      %5425 = vmatprep.subr.bf16.mxu0 0
      %5426 = vmatpush1.bf16.msra.mxu0 0
      %5427 = vmatprep.subr.bf16.mxu0 0
      %5428 = vmatpush1.bf16.msra.mxu0 %v5411
      %5429 = vmatprep.subr.bf16.mxu0 0
      %5430 = vmatpush2.bf16.msra.mxu0 0
      %5431 = vmatprep.subr.bf16.mxu0 0
      %5432 = vmatpush2.bf16.msra.mxu0 0
      %5433 = vmatprep.subr.bf16.mxu0 0
      %5434 = vmatpush2.bf16.msra.mxu0 0
      %5435 = vmatprep.subr.bf16.mxu0 0
      %5436 = vmatpush2.bf16.msra.mxu0 0
      %5437 = vmatprep.subr.bf16.mxu0 0
      %5438 = vmatpush2.bf16.msra.mxu0 0
      %5439 = vmatprep.subr.bf16.mxu0 0
      %5440 = vmatpush2.bf16.msra.mxu0 0
      %5441 = vmatprep.subr.bf16.mxu0 0
      %5442 = vmatpush2.bf16.msra.mxu0 0
      %5443 = vmatprep.subr.bf16.mxu0 0
      %5444 = vmatpush2.bf16.msra.mxu0 0
      %5445 = vmatprep.mubr.bf16.mxu0 0
      %5446 = vmatmul.mubr.bf16.gmra.mxu0 %v5363
      %v5447 = vpop.f32.mrf.mxu0
      %v5448 = vadd.f32 0.0, %v5447
      %v5449 = vpop.f32.mrf.mxu0
      %v5450 = vpop.f32.mrf.mxu0
      %v5451 = vadd.f32 0.0, %v5450
      %v5452 = vpop.f32.mrf.mxu0
      %5453 = vmatprep.mubr.bf16.mxu0 0
      %5454 = vmatmul.mubr.bf16.gmra.mxu0 %v5366
      %v5455 = vpop.f32.mrf.mxu0
      %v5456 = vadd.f32 0.0, %v5455
      %v5457 = vpop.f32.mrf.mxu0
      %v5458 = vpop.f32.mrf.mxu0
      %v5459 = vadd.f32 0.0, %v5458
      %v5460 = vpop.f32.mrf.mxu0
      %5461 = vmatprep.mubr.bf16.mxu0 0
      %5462 = vmatmul.mubr.bf16.gmra.mxu0 %v5369
      %v5463 = vpop.f32.mrf.mxu0
      %v5464 = vadd.f32 0.0, %v5463
      %v5465 = vpop.f32.mrf.mxu0
      %v5466 = vpop.f32.mrf.mxu0
      %v5467 = vadd.f32 0.0, %v5466
      %v5468 = vpop.f32.mrf.mxu0
      %5469 = vmatprep.mubr.bf16.mxu0 0
      %5470 = vmatmul.mubr.bf16.gmra.mxu0 %v5372
      %v5471 = vpop.f32.mrf.mxu0
      %v5472 = vadd.f32 0.0, %v5471
      %v5473 = vpop.f32.mrf.mxu0
      %v5474 = vpop.f32.mrf.mxu0
      %v5475 = vadd.f32 0.0, %v5474
      %v5476 = vpop.f32.mrf.mxu0
      %5477 = vmatprep.mubr.bf16.mxu0 0
      %5478 = vmatmul.mubr.bf16.gmra.mxu0 %v5375
      %v5479 = vpop.f32.mrf.mxu0
      %v5480 = vadd.f32 0.0, %v5479
      %v5481 = vpop.f32.mrf.mxu0
      %v5482 = vpop.f32.mrf.mxu0
      %v5483 = vadd.f32 0.0, %v5482
      %v5484 = vpop.f32.mrf.mxu0
      %5485 = vmatprep.mubr.bf16.mxu0 0
      %5486 = vmatmul.mubr.bf16.gmra.mxu0 %v5378
      %v5487 = vpop.f32.mrf.mxu0
      %v5488 = vadd.f32 0.0, %v5487
      %v5489 = vpop.f32.mrf.mxu0
      %v5490 = vpop.f32.mrf.mxu0
      %v5491 = vadd.f32 0.0, %v5490
      %v5492 = vpop.f32.mrf.mxu0
      %5493 = vmatprep.mubr.bf16.mxu0 0
      %5494 = vmatmul.mubr.bf16.gmra.mxu0 %v5381
      %v5495 = vpop.f32.mrf.mxu0
      %v5496 = vadd.f32 0.0, %v5495
      %v5497 = vpop.f32.mrf.mxu0
      %v5498 = vpop.f32.mrf.mxu0
      %v5499 = vadd.f32 0.0, %v5498
      %v5500 = vpop.f32.mrf.mxu0
      %5501 = vmatprep.mubr.bf16.mxu0 0
      %5502 = vmatmul.mubr.bf16.gmra.mxu0 %v5384
      %v5503 = vpop.f32.mrf.mxu0
      %v5504 = vadd.f32 0.0, %v5503
      %v5505 = vpop.f32.mrf.mxu0
      %v5506 = vpop.f32.mrf.mxu0
      %v5507 = vadd.f32 0.0, %v5506
      %v5508 = vpop.f32.mrf.mxu0
      %5509 = vmatprep.mubr.bf16.mxu0 0
      %5510 = vmatmul.mubr.bf16.gmra.mxu0 %v5387
      %v5511 = vpop.f32.mrf.mxu0
      %v5512 = vadd.f32 0.0, %v5511
      %v5513 = vpop.f32.mrf.mxu0
      %v5514 = vpop.f32.mrf.mxu0
      %v5515 = vadd.f32 0.0, %v5514
      %v5516 = vpop.f32.mrf.mxu0
      %5517 = vmatprep.mubr.bf16.mxu0 0
      %5518 = vmatmul.mubr.bf16.gmra.mxu0 %v5390
      %v5519 = vpop.f32.mrf.mxu0
      %v5520 = vadd.f32 0.0, %v5519
      %v5521 = vpop.f32.mrf.mxu0
      %v5522 = vpop.f32.mrf.mxu0
      %v5523 = vadd.f32 0.0, %v5522
      %v5524 = vpop.f32.mrf.mxu0
      %5525 = vmatprep.mubr.bf16.mxu0 0
      %5526 = vmatmul.mubr.bf16.gmra.mxu0 %v5393
      %v5527 = vpop.f32.mrf.mxu0
      %v5528 = vadd.f32 0.0, %v5527
      %v5529 = vpop.f32.mrf.mxu0
      %v5530 = vpop.f32.mrf.mxu0
      %v5531 = vadd.f32 0.0, %v5530
      %v5532 = vpop.f32.mrf.mxu0
      %5533 = vmatprep.mubr.bf16.mxu0 0
      %5534 = vmatmul.mubr.bf16.gmra.mxu0 %v5396
      %v5535 = vpop.f32.mrf.mxu0
      %v5536 = vadd.f32 0.0, %v5535
      %v5537 = vpop.f32.mrf.mxu0
      %v5538 = vpop.f32.mrf.mxu0
      %v5539 = vadd.f32 0.0, %v5538
      %v5540 = vpop.f32.mrf.mxu0
      %5541 = vmatprep.mubr.bf16.mxu0 0
      %5542 = vmatmul.mubr.bf16.gmra.mxu0 %v5399
      %v5543 = vpop.f32.mrf.mxu0
      %v5544 = vadd.f32 0.0, %v5543
      %v5545 = vpop.f32.mrf.mxu0
      %v5546 = vpop.f32.mrf.mxu0
      %v5547 = vadd.f32 0.0, %v5546
      %v5548 = vpop.f32.mrf.mxu0
      %5549 = vmatprep.mubr.bf16.mxu0 0
      %5550 = vmatmul.mubr.bf16.gmra.mxu0 %v5402
      %v5551 = vpop.f32.mrf.mxu0
      %v5552 = vadd.f32 0.0, %v5551
      %v5553 = vpop.f32.mrf.mxu0
      %v5554 = vpop.f32.mrf.mxu0
      %v5555 = vadd.f32 0.0, %v5554
      %v5556 = vpop.f32.mrf.mxu0
      %5557 = vmatprep.mubr.bf16.mxu0 0
      %5558 = vmatmul.mubr.bf16.gmra.mxu0 %v5405
      %v5559 = vpop.f32.mrf.mxu0
      %v5560 = vadd.f32 0.0, %v5559
      %v5561 = vpop.f32.mrf.mxu0
      %v5562 = vpop.f32.mrf.mxu0
      %v5563 = vadd.f32 0.0, %v5562
      %v5564 = vpop.f32.mrf.mxu0
      %5565 = vmatprep.mubr.bf16.mxu0 0
      %5566 = vmatmul.mubr.bf16.gmra.mxu0 %v5408
      %v5567 = vpop.f32.mrf.mxu0
      %v5568 = vadd.f32 0.0, %v5567
      %v5569 = vpop.f32.mrf.mxu0
      %v5570 = vpop.f32.mrf.mxu0
      %v5571 = vadd.f32 0.0, %v5570
      %v5572 = vpop.f32.mrf.mxu0
      %5573 = vdwg.mxu0
      %v5574 = vadd.f32 %v5212, %v5448
      %v5575 = vadd.f32 %v5215, %v5451
      %v5576 = vadd.f32 %v5220, %v5456
      %v5577 = vadd.f32 %v5223, %v5459
      %v5578 = vadd.f32 %v5228, %v5464
      %v5579 = vadd.f32 %v5231, %v5467
      %v5580 = vadd.f32 %v5236, %v5472
      %v5581 = vadd.f32 %v5239, %v5475
      %v5582 = vadd.f32 %v5244, %v5480
      %v5583 = vadd.f32 %v5247, %v5483
      %v5584 = vadd.f32 %v5252, %v5488
      %v5585 = vadd.f32 %v5255, %v5491
      %v5586 = vadd.f32 %v5260, %v5496
      %v5587 = vadd.f32 %v5263, %v5499
      %v5588 = vadd.f32 %v5268, %v5504
      %v5589 = vadd.f32 %v5271, %v5507
      %v5590 = vadd.f32 %v5276, %v5512
      %v5591 = vadd.f32 %v5279, %v5515
      %v5592 = vadd.f32 %v5284, %v5520
      %v5593 = vadd.f32 %v5287, %v5523
      %v5594 = vadd.f32 %v5292, %v5528
      %v5595 = vadd.f32 %v5295, %v5531
      %v5596 = vadd.f32 %v5300, %v5536
      %v5597 = vadd.f32 %v5303, %v5539
      %v5598 = vadd.f32 %v5308, %v5544
      %v5599 = vadd.f32 %v5311, %v5547
      %v5600 = vadd.f32 %v5316, %v5552
      %v5601 = vadd.f32 %v5319, %v5555
      %v5602 = vadd.f32 %v5324, %v5560
      %v5603 = vadd.f32 %v5327, %v5563
      %v5604 = vadd.f32 %v5332, %v5568
      %v5605 = vadd.f32 %v5335, %v5571
      %v5606 = vld [vmem:[%s707] sm:$0x1]
      %v5608 = vlaneseq
      %v5609 = vshrl.u32 %v5608, 7
      %v5610 = vsub.s32 0, %v5609
      %v5611 = vrot.slane %v5606, %v5610
      %v5613 = vadd.f32 %v5574, %v5611
      %v5614 = vadd.f32 %v5575, %v5611
      %v5615 = vadd.f32 %v5576, %v5611
      %v5616 = vadd.f32 %v5577, %v5611
      %v5617 = vadd.f32 %v5578, %v5611
      %v5618 = vadd.f32 %v5579, %v5611
      %v5619 = vadd.f32 %v5580, %v5611
      %v5620 = vadd.f32 %v5581, %v5611
      %v5621 = vadd.f32 %v5582, %v5611
      %v5622 = vadd.f32 %v5583, %v5611
      %v5623 = vadd.f32 %v5584, %v5611
      %v5624 = vadd.f32 %v5585, %v5611
      %v5625 = vadd.f32 %v5586, %v5611
      %v5626 = vadd.f32 %v5587, %v5611
      %v5627 = vadd.f32 %v5588, %v5611
      %v5628 = vadd.f32 %v5589, %v5611
      %v5629 = vadd.f32 %v5590, %v5611
      %v5630 = vadd.f32 %v5591, %v5611
      %v5631 = vadd.f32 %v5592, %v5611
      %v5632 = vadd.f32 %v5593, %v5611
      %v5633 = vadd.f32 %v5594, %v5611
      %v5634 = vadd.f32 %v5595, %v5611
      %v5635 = vadd.f32 %v5596, %v5611
      %v5636 = vadd.f32 %v5597, %v5611
      %v5637 = vadd.f32 %v5598, %v5611
      %v5638 = vadd.f32 %v5599, %v5611
      %v5639 = vadd.f32 %v5600, %v5611
      %v5640 = vadd.f32 %v5601, %v5611
      %v5641 = vadd.f32 %v5602, %v5611
      %v5642 = vadd.f32 %v5603, %v5611
      %v5643 = vadd.f32 %v5604, %v5611
      %v5644 = vadd.f32 %v5605, %v5611
      %v5645 = vrot.slane %v1001, 7
      %v5646 = vrot.slane %v1002, 7
      %v5647 = vrot.slane %v1003, 7
      %v5648 = vrot.slane %v1004, 7
      %v5649 = vrot.slane %v1005, 7
      %v5650 = vrot.slane %v1006, 7
      %v5651 = vrot.slane %v1007, 7
      %v5652 = vrot.slane %v1008, 7
      %v5653 = vrot.slane %v1009, 7
      %v5654 = vrot.slane %v1010, 7
      %v5655 = vrot.slane %v1011, 7
      %v5656 = vrot.slane %v1012, 7
      %v5657 = vrot.slane %v1013, 7
      %v5658 = vrot.slane %v1014, 7
      %v5659 = vrot.slane %v1015, 7
      %v5660 = vrot.slane %v1016, 7
      %v5661 = vrot.slane %v1017, 7
      %v5662 = vrot.slane %v1018, 7
      %v5663 = vrot.slane %v1019, 7
      %v5664 = vrot.slane %v1020, 7
      %v5665 = vrot.slane %v1021, 7
      %v5666 = vrot.slane %v1022, 7
      %v5667 = vrot.slane %v1023, 7
      %v5668 = vrot.slane %v1024, 7
      %v5669 = vrot.slane %v1025, 7
      %v5670 = vrot.slane %v1026, 7
      %v5671 = vrot.slane %v1027, 7
      %v5672 = vrot.slane %v1028, 7
      %v5673 = vrot.slane %v1029, 7
      %v5674 = vrot.slane %v1030, 7
      %v5675 = vrot.slane %v1031, 7
      %v5676 = vrot.slane %v1032, 7
      %v5677 = vsel %vm1698, %v5675, %v5676
      %v5678 = vsel %vm1698, %v5674, %v5675
      %v5679 = vsel %vm1698, %v5673, %v5674
      %v5680 = vsel %vm1698, %v5672, %v5673
      %v5681 = vsel %vm1698, %v5671, %v5672
      %v5682 = vsel %vm1698, %v5670, %v5671
      %v5683 = vsel %vm1698, %v5669, %v5670
      %v5684 = vsel %vm1698, %v5668, %v5669
      %v5685 = vsel %vm1698, %v5667, %v5668
      %v5686 = vsel %vm1698, %v5666, %v5667
      %v5687 = vsel %vm1698, %v5665, %v5666
      %v5688 = vsel %vm1698, %v5664, %v5665
      %v5689 = vsel %vm1698, %v5663, %v5664
      %v5690 = vsel %vm1698, %v5662, %v5663
      %v5691 = vsel %vm1698, %v5661, %v5662
      %v5692 = vsel %vm1698, %v5660, %v5661
      %v5693 = vsel %vm1698, %v5659, %v5660
      %v5694 = vsel %vm1698, %v5658, %v5659
      %v5695 = vsel %vm1698, %v5657, %v5658
      %v5696 = vsel %vm1698, %v5656, %v5657
      %v5697 = vsel %vm1698, %v5655, %v5656
      %v5698 = vsel %vm1698, %v5654, %v5655
      %v5699 = vsel %vm1698, %v5653, %v5654
      %v5700 = vsel %vm1698, %v5652, %v5653
      %v5701 = vsel %vm1698, %v5651, %v5652
      %v5702 = vsel %vm1698, %v5650, %v5651
      %v5703 = vsel %vm1698, %v5649, %v5650
      %v5704 = vsel %vm1698, %v5648, %v5649
      %v5705 = vsel %vm1698, %v5647, %v5648
      %v5706 = vsel %vm1698, %v5646, %v5647
      %v5707 = vsel %vm1698, %v5645, %v5646
      %v5708 = vsel %vm1698, %v5676, %v5645
      %v5709 = vmul.f32 %v1734, %v5708
      %v5710 = vmul.f32 %v1739, %v5707
      %v5711 = vmul.f32 %v1744, %v5706
      %v5712 = vmul.f32 %v1749, %v5705
      %v5713 = vmul.f32 %v1754, %v5704
      %v5714 = vmul.f32 %v1759, %v5703
      %v5715 = vmul.f32 %v1764, %v5702
      %v5716 = vmul.f32 %v1769, %v5701
      %v5717 = vmul.f32 %v1774, %v5700
      %v5718 = vmul.f32 %v1779, %v5699
      %v5719 = vmul.f32 %v1784, %v5698
      %v5720 = vmul.f32 %v1789, %v5697
      %v5721 = vmul.f32 %v1794, %v5696
      %v5722 = vmul.f32 %v1799, %v5695
      %v5723 = vmul.f32 %v1804, %v5694
      %v5724 = vmul.f32 %v1809, %v5693
      %v5725 = vmul.f32 %v1814, %v5692
      %v5726 = vmul.f32 %v1819, %v5691
      %v5727 = vmul.f32 %v1824, %v5690
      %v5728 = vmul.f32 %v1829, %v5689
      %v5729 = vmul.f32 %v1834, %v5688
      %v5730 = vmul.f32 %v1839, %v5687
      %v5731 = vmul.f32 %v1844, %v5686
      %v5732 = vmul.f32 %v1849, %v5685
      %v5733 = vmul.f32 %v1854, %v5684
      %v5734 = vmul.f32 %v1859, %v5683
      %v5735 = vmul.f32 %v1864, %v5682
      %v5736 = vmul.f32 %v1869, %v5681
      %v5737 = vmul.f32 %v1874, %v5680
      %v5738 = vmul.f32 %v1879, %v5679
      %v5739 = vmul.f32 %v1884, %v5678
      %v5740 = vmul.f32 %v1889, %v5677
      %v5741 = vrot.slane %v1001, 1
      %v5742 = vrot.slane %v1002, 1
      %v5743 = vrot.slane %v1003, 1
      %v5744 = vrot.slane %v1004, 1
      %v5745 = vrot.slane %v1005, 1
      %v5746 = vrot.slane %v1006, 1
      %v5747 = vrot.slane %v1007, 1
      %v5748 = vrot.slane %v1008, 1
      %v5749 = vrot.slane %v1009, 1
      %v5750 = vrot.slane %v1010, 1
      %v5751 = vrot.slane %v1011, 1
      %v5752 = vrot.slane %v1012, 1
      %v5753 = vrot.slane %v1013, 1
      %v5754 = vrot.slane %v1014, 1
      %v5755 = vrot.slane %v1015, 1
      %v5756 = vrot.slane %v1016, 1
      %v5757 = vrot.slane %v1017, 1
      %v5758 = vrot.slane %v1018, 1
      %v5759 = vrot.slane %v1019, 1
      %v5760 = vrot.slane %v1020, 1
      %v5761 = vrot.slane %v1021, 1
      %v5762 = vrot.slane %v1022, 1
      %v5763 = vrot.slane %v1023, 1
      %v5764 = vrot.slane %v1024, 1
      %v5765 = vrot.slane %v1025, 1
      %v5766 = vrot.slane %v1026, 1
      %v5767 = vrot.slane %v1027, 1
      %v5768 = vrot.slane %v1028, 1
      %v5769 = vrot.slane %v1029, 1
      %v5770 = vrot.slane %v1030, 1
      %v5771 = vrot.slane %v1031, 1
      %v5772 = vrot.slane %v1032, 1
      %v5773 = vsel %vm1955, %v5771, %v5772
      %v5774 = vsel %vm1955, %v5770, %v5771
      %v5775 = vsel %vm1955, %v5769, %v5770
      %v5776 = vsel %vm1955, %v5768, %v5769
      %v5777 = vsel %vm1955, %v5767, %v5768
      %v5778 = vsel %vm1955, %v5766, %v5767
      %v5779 = vsel %vm1955, %v5765, %v5766
      %v5780 = vsel %vm1955, %v5764, %v5765
      %v5781 = vsel %vm1955, %v5763, %v5764
      %v5782 = vsel %vm1955, %v5762, %v5763
      %v5783 = vsel %vm1955, %v5761, %v5762
      %v5784 = vsel %vm1955, %v5760, %v5761
      %v5785 = vsel %vm1955, %v5759, %v5760
      %v5786 = vsel %vm1955, %v5758, %v5759
      %v5787 = vsel %vm1955, %v5757, %v5758
      %v5788 = vsel %vm1955, %v5756, %v5757
      %v5789 = vsel %vm1955, %v5755, %v5756
      %v5790 = vsel %vm1955, %v5754, %v5755
      %v5791 = vsel %vm1955, %v5753, %v5754
      %v5792 = vsel %vm1955, %v5752, %v5753
      %v5793 = vsel %vm1955, %v5751, %v5752
      %v5794 = vsel %vm1955, %v5750, %v5751
      %v5795 = vsel %vm1955, %v5749, %v5750
      %v5796 = vsel %vm1955, %v5748, %v5749
      %v5797 = vsel %vm1955, %v5747, %v5748
      %v5798 = vsel %vm1955, %v5746, %v5747
      %v5799 = vsel %vm1955, %v5745, %v5746
      %v5800 = vsel %vm1955, %v5744, %v5745
      %v5801 = vsel %vm1955, %v5743, %v5744
      %v5802 = vsel %vm1955, %v5742, %v5743
      %v5803 = vsel %vm1955, %v5741, %v5742
      %v5804 = vsel %vm1955, %v5772, %v5741
      %v5805 = vmul.f32 %v1991, %v5803
      %v5806 = vmul.f32 %v1996, %v5802
      %v5807 = vmul.f32 %v2001, %v5801
      %v5808 = vmul.f32 %v2006, %v5800
      %v5809 = vmul.f32 %v2011, %v5799
      %v5810 = vmul.f32 %v2016, %v5798
      %v5811 = vmul.f32 %v2021, %v5797
      %v5812 = vmul.f32 %v2026, %v5796
      %v5813 = vmul.f32 %v2031, %v5795
      %v5814 = vmul.f32 %v2036, %v5794
      %v5815 = vmul.f32 %v2041, %v5793
      %v5816 = vmul.f32 %v2046, %v5792
      %v5817 = vmul.f32 %v2051, %v5791
      %v5818 = vmul.f32 %v2056, %v5790
      %v5819 = vmul.f32 %v2061, %v5789
      %v5820 = vmul.f32 %v2066, %v5788
      %v5821 = vmul.f32 %v2071, %v5787
      %v5822 = vmul.f32 %v2076, %v5786
      %v5823 = vmul.f32 %v2081, %v5785
      %v5824 = vmul.f32 %v2086, %v5784
      %v5825 = vmul.f32 %v2091, %v5783
      %v5826 = vmul.f32 %v2096, %v5782
      %v5827 = vmul.f32 %v2101, %v5781
      %v5828 = vmul.f32 %v2106, %v5780
      %v5829 = vmul.f32 %v2111, %v5779
      %v5830 = vmul.f32 %v2116, %v5778
      %v5831 = vmul.f32 %v2121, %v5777
      %v5832 = vmul.f32 %v2126, %v5776
      %v5833 = vmul.f32 %v2131, %v5775
      %v5834 = vmul.f32 %v2136, %v5774
      %v5835 = vmul.f32 %v2141, %v5773
      %v5836 = vmul.f32 %v2146, %v5804
      %5869 = vrot.lane.b32.xlu0 %v1001, 4
      %v5870 = vpop.permute.xlu0 %5869
      %5871 = vrot.lane.b32.xlu0 %v1002, 4
      %v5872 = vpop.permute.xlu0 %5871
      %5873 = vrot.lane.b32.xlu0 %v1003, 4
      %v5874 = vpop.permute.xlu0 %5873
      %5875 = vrot.lane.b32.xlu0 %v1004, 4
      %v5876 = vpop.permute.xlu0 %5875
      %5877 = vrot.lane.b32.xlu0 %v1005, 4
      %v5878 = vpop.permute.xlu0 %5877
      %5879 = vrot.lane.b32.xlu0 %v1006, 4
      %v5880 = vpop.permute.xlu0 %5879
      %5881 = vrot.lane.b32.xlu0 %v1007, 4
      %v5882 = vpop.permute.xlu0 %5881
      %5883 = vrot.lane.b32.xlu0 %v1008, 4
      %v5884 = vpop.permute.xlu0 %5883
      %5885 = vrot.lane.b32.xlu0 %v1009, 4
      %v5886 = vpop.permute.xlu0 %5885
      %5887 = vrot.lane.b32.xlu0 %v1010, 4
      %v5888 = vpop.permute.xlu0 %5887
      %5889 = vrot.lane.b32.xlu0 %v1011, 4
      %v5890 = vpop.permute.xlu0 %5889
      %5891 = vrot.lane.b32.xlu0 %v1012, 4
      %v5892 = vpop.permute.xlu0 %5891
      %5893 = vrot.lane.b32.xlu0 %v1013, 4
      %v5894 = vpop.permute.xlu0 %5893
      %5895 = vrot.lane.b32.xlu0 %v1014, 4
      %v5896 = vpop.permute.xlu0 %5895
      %5897 = vrot.lane.b32.xlu0 %v1015, 4
      %v5898 = vpop.permute.xlu0 %5897
      %5899 = vrot.lane.b32.xlu0 %v1016, 4
      %v5900 = vpop.permute.xlu0 %5899
      %5901 = vrot.lane.b32.xlu0 %v1017, 4
      %v5902 = vpop.permute.xlu0 %5901
      %5903 = vrot.lane.b32.xlu0 %v1018, 4
      %v5904 = vpop.permute.xlu0 %5903
      %5905 = vrot.lane.b32.xlu0 %v1019, 4
      %v5906 = vpop.permute.xlu0 %5905
      %5907 = vrot.lane.b32.xlu0 %v1020, 4
      %v5908 = vpop.permute.xlu0 %5907
      %5909 = vrot.lane.b32.xlu0 %v1021, 4
      %v5910 = vpop.permute.xlu0 %5909
      %5911 = vrot.lane.b32.xlu0 %v1022, 4
      %v5912 = vpop.permute.xlu0 %5911
      %5913 = vrot.lane.b32.xlu0 %v1023, 4
      %v5914 = vpop.permute.xlu0 %5913
      %5915 = vrot.lane.b32.xlu0 %v1024, 4
      %v5916 = vpop.permute.xlu0 %5915
      %5917 = vrot.lane.b32.xlu0 %v1025, 4
      %v5918 = vpop.permute.xlu0 %5917
      %5919 = vrot.lane.b32.xlu0 %v1026, 4
      %v5920 = vpop.permute.xlu0 %5919
      %5921 = vrot.lane.b32.xlu0 %v1027, 4
      %v5922 = vpop.permute.xlu0 %5921
      %5923 = vrot.lane.b32.xlu0 %v1028, 4
      %v5924 = vpop.permute.xlu0 %5923
      %5925 = vrot.lane.b32.xlu0 %v1029, 4
      %v5926 = vpop.permute.xlu0 %5925
      %5927 = vrot.lane.b32.xlu0 %v1030, 4
      %v5928 = vpop.permute.xlu0 %5927
      %5929 = vrot.lane.b32.xlu0 %v1031, 4
      %v5930 = vpop.permute.xlu0 %5929
      %5931 = vrot.lane.b32.xlu0 %v1032, 4
      %v5932 = vpop.permute.xlu0 %5931
      %5997 = vrot.lane.b32.xlu0 %v5805, 8
      %v5998 = vpop.permute.xlu0 %5997
      %5999 = vrot.lane.b32.xlu0 %v5806, 8
      %v6000 = vpop.permute.xlu0 %5999
      %6001 = vrot.lane.b32.xlu0 %v5807, 8
      %v6002 = vpop.permute.xlu0 %6001
      %6003 = vrot.lane.b32.xlu0 %v5808, 8
      %v6004 = vpop.permute.xlu0 %6003
      %6005 = vrot.lane.b32.xlu0 %v5809, 8
      %v6006 = vpop.permute.xlu0 %6005
      %6007 = vrot.lane.b32.xlu0 %v5810, 8
      %v6008 = vpop.permute.xlu0 %6007
      %6009 = vrot.lane.b32.xlu0 %v5811, 8
      %v6010 = vpop.permute.xlu0 %6009
      %6011 = vrot.lane.b32.xlu0 %v5812, 8
      %v6012 = vpop.permute.xlu0 %6011
      %6013 = vrot.lane.b32.xlu0 %v5813, 8
      %v6014 = vpop.permute.xlu0 %6013
      %6015 = vrot.lane.b32.xlu0 %v5814, 8
      %v6016 = vpop.permute.xlu0 %6015
      %6017 = vrot.lane.b32.xlu0 %v5815, 8
      %v6018 = vpop.permute.xlu0 %6017
      %6019 = vrot.lane.b32.xlu0 %v5816, 8
      %v6020 = vpop.permute.xlu0 %6019
      %6021 = vrot.lane.b32.xlu0 %v5817, 8
      %v6022 = vpop.permute.xlu0 %6021
      %6023 = vrot.lane.b32.xlu0 %v5818, 8
      %v6024 = vpop.permute.xlu0 %6023
      %6025 = vrot.lane.b32.xlu0 %v5819, 8
      %v6026 = vpop.permute.xlu0 %6025
      %6027 = vrot.lane.b32.xlu0 %v5820, 8
      %v6028 = vpop.permute.xlu0 %6027
      %6029 = vrot.lane.b32.xlu0 %v5821, 8
      %v6030 = vpop.permute.xlu0 %6029
      %6031 = vrot.lane.b32.xlu0 %v5822, 8
      %v6032 = vpop.permute.xlu0 %6031
      %6033 = vrot.lane.b32.xlu0 %v5823, 8
      %v6034 = vpop.permute.xlu0 %6033
      %6035 = vrot.lane.b32.xlu0 %v5824, 8
      %v6036 = vpop.permute.xlu0 %6035
      %6037 = vrot.lane.b32.xlu0 %v5825, 8
      %v6038 = vpop.permute.xlu0 %6037
      %6039 = vrot.lane.b32.xlu0 %v5826, 8
      %v6040 = vpop.permute.xlu0 %6039
      %6041 = vrot.lane.b32.xlu0 %v5827, 8
      %v6042 = vpop.permute.xlu0 %6041
      %6043 = vrot.lane.b32.xlu0 %v5828, 8
      %v6044 = vpop.permute.xlu0 %6043
      %6045 = vrot.lane.b32.xlu0 %v5829, 8
      %v6046 = vpop.permute.xlu0 %6045
      %6047 = vrot.lane.b32.xlu0 %v5830, 8
      %v6048 = vpop.permute.xlu0 %6047
      %6049 = vrot.lane.b32.xlu0 %v5831, 8
      %v6050 = vpop.permute.xlu0 %6049
      %6051 = vrot.lane.b32.xlu0 %v5832, 8
      %v6052 = vpop.permute.xlu0 %6051
      %6053 = vrot.lane.b32.xlu0 %v5833, 8
      %v6054 = vpop.permute.xlu0 %6053
      %6055 = vrot.lane.b32.xlu0 %v5834, 8
      %v6056 = vpop.permute.xlu0 %6055
      %6057 = vrot.lane.b32.xlu0 %v5835, 8
      %v6058 = vpop.permute.xlu0 %6057
      %6059 = vrot.lane.b32.xlu0 %v5836, 8
      %v6060 = vpop.permute.xlu0 %6059
      %v6093 = vsel %vm1033, %v5709, %v5870
      %v6094 = vsel %vm1033, %v5710, %v5872
      %v6095 = vsel %vm1033, %v5711, %v5874
      %v6096 = vsel %vm1033, %v5712, %v5876
      %v6097 = vsel %vm1033, %v5713, %v5878
      %v6098 = vsel %vm1033, %v5714, %v5880
      %v6099 = vsel %vm1033, %v5715, %v5882
      %v6100 = vsel %vm1033, %v5716, %v5884
      %v6101 = vsel %vm1033, %v5717, %v5886
      %v6102 = vsel %vm1033, %v5718, %v5888
      %v6103 = vsel %vm1033, %v5719, %v5890
      %v6104 = vsel %vm1033, %v5720, %v5892
      %v6105 = vsel %vm1033, %v5721, %v5894
      %v6106 = vsel %vm1033, %v5722, %v5896
      %v6107 = vsel %vm1033, %v5723, %v5898
      %v6108 = vsel %vm1033, %v5724, %v5900
      %v6109 = vsel %vm1033, %v5725, %v5902
      %v6110 = vsel %vm1033, %v5726, %v5904
      %v6111 = vsel %vm1033, %v5727, %v5906
      %v6112 = vsel %vm1033, %v5728, %v5908
      %v6113 = vsel %vm1033, %v5729, %v5910
      %v6114 = vsel %vm1033, %v5730, %v5912
      %v6115 = vsel %vm1033, %v5731, %v5914
      %v6116 = vsel %vm1033, %v5732, %v5916
      %v6117 = vsel %vm1033, %v5733, %v5918
      %v6118 = vsel %vm1033, %v5734, %v5920
      %v6119 = vsel %vm1033, %v5735, %v5922
      %v6120 = vsel %vm1033, %v5736, %v5924
      %v6121 = vsel %vm1033, %v5737, %v5926
      %v6122 = vsel %vm1033, %v5738, %v5928
      %v6123 = vsel %vm1033, %v5739, %v5930
      %v6124 = vsel %vm1033, %v5740, %v5932
      %v6125 = vsel %vm2468, %v6093, %v5998
      %v6126 = vsel %vm2468, %v6094, %v6000
      %v6127 = vsel %vm2468, %v6095, %v6002
      %v6128 = vsel %vm2468, %v6096, %v6004
      %v6129 = vsel %vm2468, %v6097, %v6006
      %v6130 = vsel %vm2468, %v6098, %v6008
      %v6131 = vsel %vm2468, %v6099, %v6010
      %v6132 = vsel %vm2468, %v6100, %v6012
      %v6133 = vsel %vm2468, %v6101, %v6014
      %v6134 = vsel %vm2468, %v6102, %v6016
      %v6135 = vsel %vm2468, %v6103, %v6018
      %v6136 = vsel %vm2468, %v6104, %v6020
      %v6137 = vsel %vm2468, %v6105, %v6022
      %v6138 = vsel %vm2468, %v6106, %v6024
      %v6139 = vsel %vm2468, %v6107, %v6026
      %v6140 = vsel %vm2468, %v6108, %v6028
      %v6141 = vsel %vm2468, %v6109, %v6030
      %v6142 = vsel %vm2468, %v6110, %v6032
      %v6143 = vsel %vm2468, %v6111, %v6034
      %v6144 = vsel %vm2468, %v6112, %v6036
      %v6145 = vsel %vm2468, %v6113, %v6038
      %v6146 = vsel %vm2468, %v6114, %v6040
      %v6147 = vsel %vm2468, %v6115, %v6042
      %v6148 = vsel %vm2468, %v6116, %v6044
      %v6149 = vsel %vm2468, %v6117, %v6046
      %v6150 = vsel %vm2468, %v6118, %v6048
      %v6151 = vsel %vm2468, %v6119, %v6050
      %v6152 = vsel %vm2468, %v6120, %v6052
      %v6153 = vsel %vm2468, %v6121, %v6054
      %v6154 = vsel %vm2468, %v6122, %v6056
      %v6155 = vsel %vm2468, %v6123, %v6058
      %v6156 = vsel %vm2468, %v6124, %v6060
      %v6157 = vmul.f32 %v2504, %v6155
      %v6158 = vmul.f32 %v2509, %v6156
      %v6159 = vmul.f32 %v2514, %v6125
      %v6160 = vmul.f32 %v2519, %v6126
      %v6161 = vmul.f32 %v2524, %v6127
      %v6162 = vmul.f32 %v2529, %v6128
      %v6163 = vmul.f32 %v2534, %v6129
      %v6164 = vmul.f32 %v2539, %v6130
      %v6165 = vmul.f32 %v2544, %v6131
      %v6166 = vmul.f32 %v2549, %v6132
      %v6167 = vmul.f32 %v2554, %v6133
      %v6168 = vmul.f32 %v2559, %v6134
      %v6169 = vmul.f32 %v2564, %v6135
      %v6170 = vmul.f32 %v2569, %v6136
      %v6171 = vmul.f32 %v2574, %v6137
      %v6172 = vmul.f32 %v2579, %v6138
      %v6173 = vmul.f32 %v2584, %v6139
      %v6174 = vmul.f32 %v2589, %v6140
      %v6175 = vmul.f32 %v2594, %v6141
      %v6176 = vmul.f32 %v2599, %v6142
      %v6177 = vmul.f32 %v2604, %v6143
      %v6178 = vmul.f32 %v2609, %v6144
      %v6179 = vmul.f32 %v2614, %v6145
      %v6180 = vmul.f32 %v2619, %v6146
      %v6181 = vmul.f32 %v2624, %v6147
      %v6182 = vmul.f32 %v2629, %v6148
      %v6183 = vmul.f32 %v2634, %v6149
      %v6184 = vmul.f32 %v2639, %v6150
      %v6185 = vmul.f32 %v2644, %v6151
      %v6186 = vmul.f32 %v2649, %v6152
      %v6187 = vmul.f32 %v2654, %v6153
      %v6188 = vmul.f32 %v2659, %v6154
      %v6189 = vmul.f32 %v2696, %v6127
      %v6190 = vmul.f32 %v2701, %v6128
      %v6191 = vmul.f32 %v2706, %v6129
      %v6192 = vmul.f32 %v2711, %v6130
      %v6193 = vmul.f32 %v2716, %v6131
      %v6194 = vmul.f32 %v2721, %v6132
      %v6195 = vmul.f32 %v2726, %v6133
      %v6196 = vmul.f32 %v2731, %v6134
      %v6197 = vmul.f32 %v2736, %v6135
      %v6198 = vmul.f32 %v2741, %v6136
      %v6199 = vmul.f32 %v2746, %v6137
      %v6200 = vmul.f32 %v2751, %v6138
      %v6201 = vmul.f32 %v2756, %v6139
      %v6202 = vmul.f32 %v2761, %v6140
      %v6203 = vmul.f32 %v2766, %v6141
      %v6204 = vmul.f32 %v2771, %v6142
      %v6205 = vmul.f32 %v2776, %v6143
      %v6206 = vmul.f32 %v2781, %v6144
      %v6207 = vmul.f32 %v2786, %v6145
      %v6208 = vmul.f32 %v2791, %v6146
      %v6209 = vmul.f32 %v2796, %v6147
      %v6210 = vmul.f32 %v2801, %v6148
      %v6211 = vmul.f32 %v2806, %v6149
      %v6212 = vmul.f32 %v2811, %v6150
      %v6213 = vmul.f32 %v2816, %v6151
      %v6214 = vmul.f32 %v2821, %v6152
      %v6215 = vmul.f32 %v2826, %v6153
      %v6216 = vmul.f32 %v2831, %v6154
      %v6217 = vmul.f32 %v2836, %v6155
      %v6218 = vmul.f32 %v2841, %v6156
      %v6219 = vmul.f32 %v2846, %v6125
      %v6220 = vmul.f32 %v2851, %v6126
      %v6221 = vpack.c.bf16 %v6158, %v6157
      %v6222 = vpack.c.bf16 %v6160, %v6159
      %v6223 = vpack.c.bf16 %v6162, %v6161
      %v6224 = vpack.c.bf16 %v6164, %v6163
      %v6225 = vpack.c.bf16 %v6166, %v6165
      %v6226 = vpack.c.bf16 %v6168, %v6167
      %v6227 = vpack.c.bf16 %v6170, %v6169
      %v6228 = vpack.c.bf16 %v6172, %v6171
      %v6229 = vpack.c.bf16 %v6174, %v6173
      %v6230 = vpack.c.bf16 %v6176, %v6175
      %v6231 = vpack.c.bf16 %v6178, %v6177
      %v6232 = vpack.c.bf16 %v6180, %v6179
      %v6233 = vpack.c.bf16 %v6182, %v6181
      %v6234 = vpack.c.bf16 %v6184, %v6183
      %v6235 = vpack.c.bf16 %v6186, %v6185
      %v6236 = vpack.c.bf16 %v6188, %v6187
      %v6237 = vld [vmem:[%s712] sm:$0xf]
      %v6238 = vld [vmem:[%s712 + $0x4] sm:$0x3]
      %v6239 = vpack.c.bf16 %v6126, %v6125
      %v6240 = vpack.c.bf16 %v6128, %v6127
      %v6241 = vpack.c.bf16 %v6130, %v6129
      %v6242 = vpack.c.bf16 %v6132, %v6131
      %v6243 = vpack.c.bf16 %v6134, %v6133
      %v6244 = vpack.c.bf16 %v6136, %v6135
      %v6245 = vpack.c.bf16 %v6138, %v6137
      %v6246 = vpack.c.bf16 %v6140, %v6139
      %v6247 = vpack.c.bf16 %v6142, %v6141
      %v6248 = vpack.c.bf16 %v6144, %v6143
      %v6249 = vpack.c.bf16 %v6146, %v6145
      %v6250 = vpack.c.bf16 %v6148, %v6147
      %v6251 = vpack.c.bf16 %v6150, %v6149
      %v6252 = vpack.c.bf16 %v6152, %v6151
      %v6253 = vpack.c.bf16 %v6154, %v6153
      %v6254 = vpack.c.bf16 %v6156, %v6155
      %s6255 = scalar_lea.vmem %s712, 8
      %v6256 = vld [vmem:[%s6255] sm:$0xf]
      %v6257 = vld [vmem:[%s6255 + $0x4] sm:$0x3]
      %v6260 = vunpack.c.l.b16 %v6256
      %v6261 = vunpack.c.l.b16 %v6257
      %v6262 = vpack.c.b16 %v6261, %v6260
      %v6264 = vsel %vm2927, %v6239, 0
      %v6267 = vsel %vm2927, %v6240, 0
      %v6270 = vsel %vm2927, %v6241, 0
      %v6273 = vsel %vm2927, %v6242, 0
      %v6276 = vsel %vm2927, %v6243, 0
      %v6279 = vsel %vm2927, %v6244, 0
      %v6282 = vsel %vm2927, %v6245, 0
      %v6285 = vsel %vm2927, %v6246, 0
      %v6288 = vsel %vm2927, %v6247, 0
      %v6291 = vsel %vm2927, %v6248, 0
      %v6294 = vsel %vm2927, %v6249, 0
      %v6297 = vsel %vm2927, %v6250, 0
      %v6300 = vsel %vm2927, %v6251, 0
      %v6303 = vsel %vm2927, %v6252, 0
      %v6306 = vsel %vm2927, %v6253, 0
      %v6309 = vsel %vm2927, %v6254, 0
      %v6312 = vsel %vm2976, %v6262, 0
      %6314 = vmatprep.subr.bf16.mxu0 0
      %6315 = vmatpush1.bf16.msra.mxu0 0
      %6316 = vmatprep.subr.bf16.mxu0 0
      %6317 = vmatpush1.bf16.msra.mxu0 0
      %6318 = vmatprep.subr.bf16.mxu0 0
      %6319 = vmatpush1.bf16.msra.mxu0 0
      %6320 = vmatprep.subr.bf16.mxu0 0
      %6321 = vmatpush1.bf16.msra.mxu0 0
      %6322 = vmatprep.subr.bf16.mxu0 0
      %6323 = vmatpush1.bf16.msra.mxu0 0
      %6324 = vmatprep.subr.bf16.mxu0 0
      %6325 = vmatpush1.bf16.msra.mxu0 0
      %6326 = vmatprep.subr.bf16.mxu0 0
      %6327 = vmatpush1.bf16.msra.mxu0 0
      %6328 = vmatprep.subr.bf16.mxu0 0
      %6329 = vmatpush1.bf16.msra.mxu0 %v6312
      %6330 = vmatprep.subr.bf16.mxu0 0
      %6331 = vmatpush2.bf16.msra.mxu0 0
      %6332 = vmatprep.subr.bf16.mxu0 0
      %6333 = vmatpush2.bf16.msra.mxu0 0
      %6334 = vmatprep.subr.bf16.mxu0 0
      %6335 = vmatpush2.bf16.msra.mxu0 0
      %6336 = vmatprep.subr.bf16.mxu0 0
      %6337 = vmatpush2.bf16.msra.mxu0 0
      %6338 = vmatprep.subr.bf16.mxu0 0
      %6339 = vmatpush2.bf16.msra.mxu0 0
      %6340 = vmatprep.subr.bf16.mxu0 0
      %6341 = vmatpush2.bf16.msra.mxu0 0
      %6342 = vmatprep.subr.bf16.mxu0 0
      %6343 = vmatpush2.bf16.msra.mxu0 0
      %6344 = vmatprep.subr.bf16.mxu0 0
      %6345 = vmatpush2.bf16.msra.mxu0 0
      %6346 = vmatprep.mubr.bf16.mxu0 0
      %6347 = vmatmul.mubr.bf16.gmra.mxu0 %v6264
      %v6348 = vpop.f32.mrf.mxu0
      %v6349 = vadd.f32 0.0, %v6348
      %v6350 = vpop.f32.mrf.mxu0
      %v6351 = vpop.f32.mrf.mxu0
      %v6352 = vadd.f32 0.0, %v6351
      %v6353 = vpop.f32.mrf.mxu0
      %6354 = vmatprep.mubr.bf16.mxu0 0
      %6355 = vmatmul.mubr.bf16.gmra.mxu0 %v6267
      %v6356 = vpop.f32.mrf.mxu0
      %v6357 = vadd.f32 0.0, %v6356
      %v6358 = vpop.f32.mrf.mxu0
      %v6359 = vpop.f32.mrf.mxu0
      %v6360 = vadd.f32 0.0, %v6359
      %v6361 = vpop.f32.mrf.mxu0
      %6362 = vmatprep.mubr.bf16.mxu0 0
      %6363 = vmatmul.mubr.bf16.gmra.mxu0 %v6270
      %v6364 = vpop.f32.mrf.mxu0
      %v6365 = vadd.f32 0.0, %v6364
      %v6366 = vpop.f32.mrf.mxu0
      %v6367 = vpop.f32.mrf.mxu0
      %v6368 = vadd.f32 0.0, %v6367
      %v6369 = vpop.f32.mrf.mxu0
      %6370 = vmatprep.mubr.bf16.mxu0 0
      %6371 = vmatmul.mubr.bf16.gmra.mxu0 %v6273
      %v6372 = vpop.f32.mrf.mxu0
      %v6373 = vadd.f32 0.0, %v6372
      %v6374 = vpop.f32.mrf.mxu0
      %v6375 = vpop.f32.mrf.mxu0
      %v6376 = vadd.f32 0.0, %v6375
      %v6377 = vpop.f32.mrf.mxu0
      %6378 = vmatprep.mubr.bf16.mxu0 0
      %6379 = vmatmul.mubr.bf16.gmra.mxu0 %v6276
      %v6380 = vpop.f32.mrf.mxu0
      %v6381 = vadd.f32 0.0, %v6380
      %v6382 = vpop.f32.mrf.mxu0
      %v6383 = vpop.f32.mrf.mxu0
      %v6384 = vadd.f32 0.0, %v6383
      %v6385 = vpop.f32.mrf.mxu0
      %6386 = vmatprep.mubr.bf16.mxu0 0
      %6387 = vmatmul.mubr.bf16.gmra.mxu0 %v6279
      %v6388 = vpop.f32.mrf.mxu0
      %v6389 = vadd.f32 0.0, %v6388
      %v6390 = vpop.f32.mrf.mxu0
      %v6391 = vpop.f32.mrf.mxu0
      %v6392 = vadd.f32 0.0, %v6391
      %v6393 = vpop.f32.mrf.mxu0
      %6394 = vmatprep.mubr.bf16.mxu0 0
      %6395 = vmatmul.mubr.bf16.gmra.mxu0 %v6282
      %v6396 = vpop.f32.mrf.mxu0
      %v6397 = vadd.f32 0.0, %v6396
      %v6398 = vpop.f32.mrf.mxu0
      %v6399 = vpop.f32.mrf.mxu0
      %v6400 = vadd.f32 0.0, %v6399
      %v6401 = vpop.f32.mrf.mxu0
      %6402 = vmatprep.mubr.bf16.mxu0 0
      %6403 = vmatmul.mubr.bf16.gmra.mxu0 %v6285
      %v6404 = vpop.f32.mrf.mxu0
      %v6405 = vadd.f32 0.0, %v6404
      %v6406 = vpop.f32.mrf.mxu0
      %v6407 = vpop.f32.mrf.mxu0
      %v6408 = vadd.f32 0.0, %v6407
      %v6409 = vpop.f32.mrf.mxu0
      %6410 = vmatprep.mubr.bf16.mxu0 0
      %6411 = vmatmul.mubr.bf16.gmra.mxu0 %v6288
      %v6412 = vpop.f32.mrf.mxu0
      %v6413 = vadd.f32 0.0, %v6412
      %v6414 = vpop.f32.mrf.mxu0
      %v6415 = vpop.f32.mrf.mxu0
      %v6416 = vadd.f32 0.0, %v6415
      %v6417 = vpop.f32.mrf.mxu0
      %6418 = vmatprep.mubr.bf16.mxu0 0
      %6419 = vmatmul.mubr.bf16.gmra.mxu0 %v6291
      %v6420 = vpop.f32.mrf.mxu0
      %v6421 = vadd.f32 0.0, %v6420
      %v6422 = vpop.f32.mrf.mxu0
      %v6423 = vpop.f32.mrf.mxu0
      %v6424 = vadd.f32 0.0, %v6423
      %v6425 = vpop.f32.mrf.mxu0
      %6426 = vmatprep.mubr.bf16.mxu0 0
      %6427 = vmatmul.mubr.bf16.gmra.mxu0 %v6294
      %v6428 = vpop.f32.mrf.mxu0
      %v6429 = vadd.f32 0.0, %v6428
      %v6430 = vpop.f32.mrf.mxu0
      %v6431 = vpop.f32.mrf.mxu0
      %v6432 = vadd.f32 0.0, %v6431
      %v6433 = vpop.f32.mrf.mxu0
      %6434 = vmatprep.mubr.bf16.mxu0 0
      %6435 = vmatmul.mubr.bf16.gmra.mxu0 %v6297
      %v6436 = vpop.f32.mrf.mxu0
      %v6437 = vadd.f32 0.0, %v6436
      %v6438 = vpop.f32.mrf.mxu0
      %v6439 = vpop.f32.mrf.mxu0
      %v6440 = vadd.f32 0.0, %v6439
      %v6441 = vpop.f32.mrf.mxu0
      %6442 = vmatprep.mubr.bf16.mxu0 0
      %6443 = vmatmul.mubr.bf16.gmra.mxu0 %v6300
      %v6444 = vpop.f32.mrf.mxu0
      %v6445 = vadd.f32 0.0, %v6444
      %v6446 = vpop.f32.mrf.mxu0
      %v6447 = vpop.f32.mrf.mxu0
      %v6448 = vadd.f32 0.0, %v6447
      %v6449 = vpop.f32.mrf.mxu0
      %6450 = vmatprep.mubr.bf16.mxu0 0
      %6451 = vmatmul.mubr.bf16.gmra.mxu0 %v6303
      %v6452 = vpop.f32.mrf.mxu0
      %v6453 = vadd.f32 0.0, %v6452
      %v6454 = vpop.f32.mrf.mxu0
      %v6455 = vpop.f32.mrf.mxu0
      %v6456 = vadd.f32 0.0, %v6455
      %v6457 = vpop.f32.mrf.mxu0
      %6458 = vmatprep.mubr.bf16.mxu0 0
      %6459 = vmatmul.mubr.bf16.gmra.mxu0 %v6306
      %v6460 = vpop.f32.mrf.mxu0
      %v6461 = vadd.f32 0.0, %v6460
      %v6462 = vpop.f32.mrf.mxu0
      %v6463 = vpop.f32.mrf.mxu0
      %v6464 = vadd.f32 0.0, %v6463
      %v6465 = vpop.f32.mrf.mxu0
      %6466 = vmatprep.mubr.bf16.mxu0 0
      %6467 = vmatmul.mubr.bf16.gmra.mxu0 %v6309
      %v6468 = vpop.f32.mrf.mxu0
      %v6469 = vadd.f32 0.0, %v6468
      %v6470 = vpop.f32.mrf.mxu0
      %v6471 = vpop.f32.mrf.mxu0
      %v6472 = vadd.f32 0.0, %v6471
      %v6473 = vpop.f32.mrf.mxu0
      %6474 = vdwg.mxu0
      %v6477 = vunpack.c.l.b16 %v6237
      %v6478 = vunpack.c.l.b16 %v6238
      %v6479 = vpack.c.b16 %v6478, %v6477
      %v6481 = vsel %vm2927, %v6221, 0
      %v6484 = vsel %vm2927, %v6222, 0
      %v6487 = vsel %vm2927, %v6223, 0
      %v6490 = vsel %vm2927, %v6224, 0
      %v6493 = vsel %vm2927, %v6225, 0
      %v6496 = vsel %vm2927, %v6226, 0
      %v6499 = vsel %vm2927, %v6227, 0
      %v6502 = vsel %vm2927, %v6228, 0
      %v6505 = vsel %vm2927, %v6229, 0
      %v6508 = vsel %vm2927, %v6230, 0
      %v6511 = vsel %vm2927, %v6231, 0
      %v6514 = vsel %vm2927, %v6232, 0
      %v6517 = vsel %vm2927, %v6233, 0
      %v6520 = vsel %vm2927, %v6234, 0
      %v6523 = vsel %vm2927, %v6235, 0
      %v6526 = vsel %vm2927, %v6236, 0
      %v6529 = vsel %vm2976, %v6479, 0
      %6531 = vmatprep.subr.bf16.mxu0 0
      %6532 = vmatpush1.bf16.msra.mxu0 0
      %6533 = vmatprep.subr.bf16.mxu0 0
      %6534 = vmatpush1.bf16.msra.mxu0 0
      %6535 = vmatprep.subr.bf16.mxu0 0
      %6536 = vmatpush1.bf16.msra.mxu0 0
      %6537 = vmatprep.subr.bf16.mxu0 0
      %6538 = vmatpush1.bf16.msra.mxu0 0
      %6539 = vmatprep.subr.bf16.mxu0 0
      %6540 = vmatpush1.bf16.msra.mxu0 0
      %6541 = vmatprep.subr.bf16.mxu0 0
      %6542 = vmatpush1.bf16.msra.mxu0 0
      %6543 = vmatprep.subr.bf16.mxu0 0
      %6544 = vmatpush1.bf16.msra.mxu0 0
      %6545 = vmatprep.subr.bf16.mxu0 0
      %6546 = vmatpush1.bf16.msra.mxu0 %v6529
      %6547 = vmatprep.subr.bf16.mxu0 0
      %6548 = vmatpush2.bf16.msra.mxu0 0
      %6549 = vmatprep.subr.bf16.mxu0 0
      %6550 = vmatpush2.bf16.msra.mxu0 0
      %6551 = vmatprep.subr.bf16.mxu0 0
      %6552 = vmatpush2.bf16.msra.mxu0 0
      %6553 = vmatprep.subr.bf16.mxu0 0
      %6554 = vmatpush2.bf16.msra.mxu0 0
      %6555 = vmatprep.subr.bf16.mxu0 0
      %6556 = vmatpush2.bf16.msra.mxu0 0
      %6557 = vmatprep.subr.bf16.mxu0 0
      %6558 = vmatpush2.bf16.msra.mxu0 0
      %6559 = vmatprep.subr.bf16.mxu0 0
      %6560 = vmatpush2.bf16.msra.mxu0 0
      %6561 = vmatprep.subr.bf16.mxu0 0
      %6562 = vmatpush2.bf16.msra.mxu0 0
      %6563 = vmatprep.mubr.bf16.mxu0 0
      %6564 = vmatmul.mubr.bf16.gmra.mxu0 %v6481
      %v6565 = vpop.f32.mrf.mxu0
      %v6566 = vadd.f32 %v6349, %v6565
      %v6567 = vpop.f32.mrf.mxu0
      %v6568 = vpop.f32.mrf.mxu0
      %v6569 = vadd.f32 %v6352, %v6568
      %v6570 = vpop.f32.mrf.mxu0
      %6571 = vmatprep.mubr.bf16.mxu0 0
      %6572 = vmatmul.mubr.bf16.gmra.mxu0 %v6484
      %v6573 = vpop.f32.mrf.mxu0
      %v6574 = vadd.f32 %v6357, %v6573
      %v6575 = vpop.f32.mrf.mxu0
      %v6576 = vpop.f32.mrf.mxu0
      %v6577 = vadd.f32 %v6360, %v6576
      %v6578 = vpop.f32.mrf.mxu0
      %6579 = vmatprep.mubr.bf16.mxu0 0
      %6580 = vmatmul.mubr.bf16.gmra.mxu0 %v6487
      %v6581 = vpop.f32.mrf.mxu0
      %v6582 = vadd.f32 %v6365, %v6581
      %v6583 = vpop.f32.mrf.mxu0
      %v6584 = vpop.f32.mrf.mxu0
      %v6585 = vadd.f32 %v6368, %v6584
      %v6586 = vpop.f32.mrf.mxu0
      %6587 = vmatprep.mubr.bf16.mxu0 0
      %6588 = vmatmul.mubr.bf16.gmra.mxu0 %v6490
      %v6589 = vpop.f32.mrf.mxu0
      %v6590 = vadd.f32 %v6373, %v6589
      %v6591 = vpop.f32.mrf.mxu0
      %v6592 = vpop.f32.mrf.mxu0
      %v6593 = vadd.f32 %v6376, %v6592
      %v6594 = vpop.f32.mrf.mxu0
      %6595 = vmatprep.mubr.bf16.mxu0 0
      %6596 = vmatmul.mubr.bf16.gmra.mxu0 %v6493
      %v6597 = vpop.f32.mrf.mxu0
      %v6598 = vadd.f32 %v6381, %v6597
      %v6599 = vpop.f32.mrf.mxu0
      %v6600 = vpop.f32.mrf.mxu0
      %v6601 = vadd.f32 %v6384, %v6600
      %v6602 = vpop.f32.mrf.mxu0
      %6603 = vmatprep.mubr.bf16.mxu0 0
      %6604 = vmatmul.mubr.bf16.gmra.mxu0 %v6496
      %v6605 = vpop.f32.mrf.mxu0
      %v6606 = vadd.f32 %v6389, %v6605
      %v6607 = vpop.f32.mrf.mxu0
      %v6608 = vpop.f32.mrf.mxu0
      %v6609 = vadd.f32 %v6392, %v6608
      %v6610 = vpop.f32.mrf.mxu0
      %6611 = vmatprep.mubr.bf16.mxu0 0
      %6612 = vmatmul.mubr.bf16.gmra.mxu0 %v6499
      %v6613 = vpop.f32.mrf.mxu0
      %v6614 = vadd.f32 %v6397, %v6613
      %v6615 = vpop.f32.mrf.mxu0
      %v6616 = vpop.f32.mrf.mxu0
      %v6617 = vadd.f32 %v6400, %v6616
      %v6618 = vpop.f32.mrf.mxu0
      %6619 = vmatprep.mubr.bf16.mxu0 0
      %6620 = vmatmul.mubr.bf16.gmra.mxu0 %v6502
      %v6621 = vpop.f32.mrf.mxu0
      %v6622 = vadd.f32 %v6405, %v6621
      %v6623 = vpop.f32.mrf.mxu0
      %v6624 = vpop.f32.mrf.mxu0
      %v6625 = vadd.f32 %v6408, %v6624
      %v6626 = vpop.f32.mrf.mxu0
      %6627 = vmatprep.mubr.bf16.mxu0 0
      %6628 = vmatmul.mubr.bf16.gmra.mxu0 %v6505
      %v6629 = vpop.f32.mrf.mxu0
      %v6630 = vadd.f32 %v6413, %v6629
      %v6631 = vpop.f32.mrf.mxu0
      %v6632 = vpop.f32.mrf.mxu0
      %v6633 = vadd.f32 %v6416, %v6632
      %v6634 = vpop.f32.mrf.mxu0
      %6635 = vmatprep.mubr.bf16.mxu0 0
      %6636 = vmatmul.mubr.bf16.gmra.mxu0 %v6508
      %v6637 = vpop.f32.mrf.mxu0
      %v6638 = vadd.f32 %v6421, %v6637
      %v6639 = vpop.f32.mrf.mxu0
      %v6640 = vpop.f32.mrf.mxu0
      %v6641 = vadd.f32 %v6424, %v6640
      %v6642 = vpop.f32.mrf.mxu0
      %6643 = vmatprep.mubr.bf16.mxu0 0
      %6644 = vmatmul.mubr.bf16.gmra.mxu0 %v6511
      %v6645 = vpop.f32.mrf.mxu0
      %v6646 = vadd.f32 %v6429, %v6645
      %v6647 = vpop.f32.mrf.mxu0
      %v6648 = vpop.f32.mrf.mxu0
      %v6649 = vadd.f32 %v6432, %v6648
      %v6650 = vpop.f32.mrf.mxu0
      %6651 = vmatprep.mubr.bf16.mxu0 0
      %6652 = vmatmul.mubr.bf16.gmra.mxu0 %v6514
      %v6653 = vpop.f32.mrf.mxu0
      %v6654 = vadd.f32 %v6437, %v6653
      %v6655 = vpop.f32.mrf.mxu0
      %v6656 = vpop.f32.mrf.mxu0
      %v6657 = vadd.f32 %v6440, %v6656
      %v6658 = vpop.f32.mrf.mxu0
      %6659 = vmatprep.mubr.bf16.mxu0 0
      %6660 = vmatmul.mubr.bf16.gmra.mxu0 %v6517
      %v6661 = vpop.f32.mrf.mxu0
      %v6662 = vadd.f32 %v6445, %v6661
      %v6663 = vpop.f32.mrf.mxu0
      %v6664 = vpop.f32.mrf.mxu0
      %v6665 = vadd.f32 %v6448, %v6664
      %v6666 = vpop.f32.mrf.mxu0
      %6667 = vmatprep.mubr.bf16.mxu0 0
      %6668 = vmatmul.mubr.bf16.gmra.mxu0 %v6520
      %v6669 = vpop.f32.mrf.mxu0
      %v6670 = vadd.f32 %v6453, %v6669
      %v6671 = vpop.f32.mrf.mxu0
      %v6672 = vpop.f32.mrf.mxu0
      %v6673 = vadd.f32 %v6456, %v6672
      %v6674 = vpop.f32.mrf.mxu0
      %6675 = vmatprep.mubr.bf16.mxu0 0
      %6676 = vmatmul.mubr.bf16.gmra.mxu0 %v6523
      %v6677 = vpop.f32.mrf.mxu0
      %v6678 = vadd.f32 %v6461, %v6677
      %v6679 = vpop.f32.mrf.mxu0
      %v6680 = vpop.f32.mrf.mxu0
      %v6681 = vadd.f32 %v6464, %v6680
      %v6682 = vpop.f32.mrf.mxu0
      %6683 = vmatprep.mubr.bf16.mxu0 0
      %6684 = vmatmul.mubr.bf16.gmra.mxu0 %v6526
      %v6685 = vpop.f32.mrf.mxu0
      %v6686 = vadd.f32 %v6469, %v6685
      %v6687 = vpop.f32.mrf.mxu0
      %v6688 = vpop.f32.mrf.mxu0
      %v6689 = vadd.f32 %v6472, %v6688
      %v6690 = vpop.f32.mrf.mxu0
      %6691 = vdwg.mxu0
      %v6692 = vpack.c.bf16 %v6190, %v6189
      %v6693 = vpack.c.bf16 %v6192, %v6191
      %v6694 = vpack.c.bf16 %v6194, %v6193
      %v6695 = vpack.c.bf16 %v6196, %v6195
      %v6696 = vpack.c.bf16 %v6198, %v6197
      %v6697 = vpack.c.bf16 %v6200, %v6199
      %v6698 = vpack.c.bf16 %v6202, %v6201
      %v6699 = vpack.c.bf16 %v6204, %v6203
      %v6700 = vpack.c.bf16 %v6206, %v6205
      %v6701 = vpack.c.bf16 %v6208, %v6207
      %v6702 = vpack.c.bf16 %v6210, %v6209
      %v6703 = vpack.c.bf16 %v6212, %v6211
      %v6704 = vpack.c.bf16 %v6214, %v6213
      %v6705 = vpack.c.bf16 %v6216, %v6215
      %v6706 = vpack.c.bf16 %v6218, %v6217
      %v6707 = vpack.c.bf16 %v6220, %v6219
      %s6708 = scalar_lea.vmem %s712, 16
      %v6709 = vld [vmem:[%s6708] sm:$0xf]
      %v6710 = vld [vmem:[%s6708 + $0x4] sm:$0x3]
      %v6713 = vunpack.c.l.b16 %v6709
      %v6714 = vunpack.c.l.b16 %v6710
      %v6715 = vpack.c.b16 %v6714, %v6713
      %v6717 = vsel %vm2927, %v6692, 0
      %v6720 = vsel %vm2927, %v6693, 0
      %v6723 = vsel %vm2927, %v6694, 0
      %v6726 = vsel %vm2927, %v6695, 0
      %v6729 = vsel %vm2927, %v6696, 0
      %v6732 = vsel %vm2927, %v6697, 0
      %v6735 = vsel %vm2927, %v6698, 0
      %v6738 = vsel %vm2927, %v6699, 0
      %v6741 = vsel %vm2927, %v6700, 0
      %v6744 = vsel %vm2927, %v6701, 0
      %v6747 = vsel %vm2927, %v6702, 0
      %v6750 = vsel %vm2927, %v6703, 0
      %v6753 = vsel %vm2927, %v6704, 0
      %v6756 = vsel %vm2927, %v6705, 0
      %v6759 = vsel %vm2927, %v6706, 0
      %v6762 = vsel %vm2927, %v6707, 0
      %v6765 = vsel %vm2976, %v6715, 0
      %6767 = vmatprep.subr.bf16.mxu0 0
      %6768 = vmatpush1.bf16.msra.mxu0 0
      %6769 = vmatprep.subr.bf16.mxu0 0
      %6770 = vmatpush1.bf16.msra.mxu0 0
      %6771 = vmatprep.subr.bf16.mxu0 0
      %6772 = vmatpush1.bf16.msra.mxu0 0
      %6773 = vmatprep.subr.bf16.mxu0 0
      %6774 = vmatpush1.bf16.msra.mxu0 0
      %6775 = vmatprep.subr.bf16.mxu0 0
      %6776 = vmatpush1.bf16.msra.mxu0 0
      %6777 = vmatprep.subr.bf16.mxu0 0
      %6778 = vmatpush1.bf16.msra.mxu0 0
      %6779 = vmatprep.subr.bf16.mxu0 0
      %6780 = vmatpush1.bf16.msra.mxu0 0
      %6781 = vmatprep.subr.bf16.mxu0 0
      %6782 = vmatpush1.bf16.msra.mxu0 %v6765
      %6783 = vmatprep.subr.bf16.mxu0 0
      %6784 = vmatpush2.bf16.msra.mxu0 0
      %6785 = vmatprep.subr.bf16.mxu0 0
      %6786 = vmatpush2.bf16.msra.mxu0 0
      %6787 = vmatprep.subr.bf16.mxu0 0
      %6788 = vmatpush2.bf16.msra.mxu0 0
      %6789 = vmatprep.subr.bf16.mxu0 0
      %6790 = vmatpush2.bf16.msra.mxu0 0
      %6791 = vmatprep.subr.bf16.mxu0 0
      %6792 = vmatpush2.bf16.msra.mxu0 0
      %6793 = vmatprep.subr.bf16.mxu0 0
      %6794 = vmatpush2.bf16.msra.mxu0 0
      %6795 = vmatprep.subr.bf16.mxu0 0
      %6796 = vmatpush2.bf16.msra.mxu0 0
      %6797 = vmatprep.subr.bf16.mxu0 0
      %6798 = vmatpush2.bf16.msra.mxu0 0
      %6799 = vmatprep.mubr.bf16.mxu0 0
      %6800 = vmatmul.mubr.bf16.gmra.mxu0 %v6717
      %v6801 = vpop.f32.mrf.mxu0
      %v6802 = vadd.f32 0.0, %v6801
      %v6803 = vpop.f32.mrf.mxu0
      %v6804 = vpop.f32.mrf.mxu0
      %v6805 = vadd.f32 0.0, %v6804
      %v6806 = vpop.f32.mrf.mxu0
      %6807 = vmatprep.mubr.bf16.mxu0 0
      %6808 = vmatmul.mubr.bf16.gmra.mxu0 %v6720
      %v6809 = vpop.f32.mrf.mxu0
      %v6810 = vadd.f32 0.0, %v6809
      %v6811 = vpop.f32.mrf.mxu0
      %v6812 = vpop.f32.mrf.mxu0
      %v6813 = vadd.f32 0.0, %v6812
      %v6814 = vpop.f32.mrf.mxu0
      %6815 = vmatprep.mubr.bf16.mxu0 0
      %6816 = vmatmul.mubr.bf16.gmra.mxu0 %v6723
      %v6817 = vpop.f32.mrf.mxu0
      %v6818 = vadd.f32 0.0, %v6817
      %v6819 = vpop.f32.mrf.mxu0
      %v6820 = vpop.f32.mrf.mxu0
      %v6821 = vadd.f32 0.0, %v6820
      %v6822 = vpop.f32.mrf.mxu0
      %6823 = vmatprep.mubr.bf16.mxu0 0
      %6824 = vmatmul.mubr.bf16.gmra.mxu0 %v6726
      %v6825 = vpop.f32.mrf.mxu0
      %v6826 = vadd.f32 0.0, %v6825
      %v6827 = vpop.f32.mrf.mxu0
      %v6828 = vpop.f32.mrf.mxu0
      %v6829 = vadd.f32 0.0, %v6828
      %v6830 = vpop.f32.mrf.mxu0
      %6831 = vmatprep.mubr.bf16.mxu0 0
      %6832 = vmatmul.mubr.bf16.gmra.mxu0 %v6729
      %v6833 = vpop.f32.mrf.mxu0
      %v6834 = vadd.f32 0.0, %v6833
      %v6835 = vpop.f32.mrf.mxu0
      %v6836 = vpop.f32.mrf.mxu0
      %v6837 = vadd.f32 0.0, %v6836
      %v6838 = vpop.f32.mrf.mxu0
      %6839 = vmatprep.mubr.bf16.mxu0 0
      %6840 = vmatmul.mubr.bf16.gmra.mxu0 %v6732
      %v6841 = vpop.f32.mrf.mxu0
      %v6842 = vadd.f32 0.0, %v6841
      %v6843 = vpop.f32.mrf.mxu0
      %v6844 = vpop.f32.mrf.mxu0
      %v6845 = vadd.f32 0.0, %v6844
      %v6846 = vpop.f32.mrf.mxu0
      %6847 = vmatprep.mubr.bf16.mxu0 0
      %6848 = vmatmul.mubr.bf16.gmra.mxu0 %v6735
      %v6849 = vpop.f32.mrf.mxu0
      %v6850 = vadd.f32 0.0, %v6849
      %v6851 = vpop.f32.mrf.mxu0
      %v6852 = vpop.f32.mrf.mxu0
      %v6853 = vadd.f32 0.0, %v6852
      %v6854 = vpop.f32.mrf.mxu0
      %6855 = vmatprep.mubr.bf16.mxu0 0
      %6856 = vmatmul.mubr.bf16.gmra.mxu0 %v6738
      %v6857 = vpop.f32.mrf.mxu0
      %v6858 = vadd.f32 0.0, %v6857
      %v6859 = vpop.f32.mrf.mxu0
      %v6860 = vpop.f32.mrf.mxu0
      %v6861 = vadd.f32 0.0, %v6860
      %v6862 = vpop.f32.mrf.mxu0
      %6863 = vmatprep.mubr.bf16.mxu0 0
      %6864 = vmatmul.mubr.bf16.gmra.mxu0 %v6741
      %v6865 = vpop.f32.mrf.mxu0
      %v6866 = vadd.f32 0.0, %v6865
      %v6867 = vpop.f32.mrf.mxu0
      %v6868 = vpop.f32.mrf.mxu0
      %v6869 = vadd.f32 0.0, %v6868
      %v6870 = vpop.f32.mrf.mxu0
      %6871 = vmatprep.mubr.bf16.mxu0 0
      %6872 = vmatmul.mubr.bf16.gmra.mxu0 %v6744
      %v6873 = vpop.f32.mrf.mxu0
      %v6874 = vadd.f32 0.0, %v6873
      %v6875 = vpop.f32.mrf.mxu0
      %v6876 = vpop.f32.mrf.mxu0
      %v6877 = vadd.f32 0.0, %v6876
      %v6878 = vpop.f32.mrf.mxu0
      %6879 = vmatprep.mubr.bf16.mxu0 0
      %6880 = vmatmul.mubr.bf16.gmra.mxu0 %v6747
      %v6881 = vpop.f32.mrf.mxu0
      %v6882 = vadd.f32 0.0, %v6881
      %v6883 = vpop.f32.mrf.mxu0
      %v6884 = vpop.f32.mrf.mxu0
      %v6885 = vadd.f32 0.0, %v6884
      %v6886 = vpop.f32.mrf.mxu0
      %6887 = vmatprep.mubr.bf16.mxu0 0
      %6888 = vmatmul.mubr.bf16.gmra.mxu0 %v6750
      %v6889 = vpop.f32.mrf.mxu0
      %v6890 = vadd.f32 0.0, %v6889
      %v6891 = vpop.f32.mrf.mxu0
      %v6892 = vpop.f32.mrf.mxu0
      %v6893 = vadd.f32 0.0, %v6892
      %v6894 = vpop.f32.mrf.mxu0
      %6895 = vmatprep.mubr.bf16.mxu0 0
      %6896 = vmatmul.mubr.bf16.gmra.mxu0 %v6753
      %v6897 = vpop.f32.mrf.mxu0
      %v6898 = vadd.f32 0.0, %v6897
      %v6899 = vpop.f32.mrf.mxu0
      %v6900 = vpop.f32.mrf.mxu0
      %v6901 = vadd.f32 0.0, %v6900
      %v6902 = vpop.f32.mrf.mxu0
      %6903 = vmatprep.mubr.bf16.mxu0 0
      %6904 = vmatmul.mubr.bf16.gmra.mxu0 %v6756
      %v6905 = vpop.f32.mrf.mxu0
      %v6906 = vadd.f32 0.0, %v6905
      %v6907 = vpop.f32.mrf.mxu0
      %v6908 = vpop.f32.mrf.mxu0
      %v6909 = vadd.f32 0.0, %v6908
      %v6910 = vpop.f32.mrf.mxu0
      %6911 = vmatprep.mubr.bf16.mxu0 0
      %6912 = vmatmul.mubr.bf16.gmra.mxu0 %v6759
      %v6913 = vpop.f32.mrf.mxu0
      %v6914 = vadd.f32 0.0, %v6913
      %v6915 = vpop.f32.mrf.mxu0
      %v6916 = vpop.f32.mrf.mxu0
      %v6917 = vadd.f32 0.0, %v6916
      %v6918 = vpop.f32.mrf.mxu0
      %6919 = vmatprep.mubr.bf16.mxu0 0
      %6920 = vmatmul.mubr.bf16.gmra.mxu0 %v6762
      %v6921 = vpop.f32.mrf.mxu0
      %v6922 = vadd.f32 0.0, %v6921
      %v6923 = vpop.f32.mrf.mxu0
      %v6924 = vpop.f32.mrf.mxu0
      %v6925 = vadd.f32 0.0, %v6924
      %v6926 = vpop.f32.mrf.mxu0
      %6927 = vdwg.mxu0
      %v6928 = vadd.f32 %v6566, %v6802
      %v6929 = vadd.f32 %v6569, %v6805
      %v6930 = vadd.f32 %v6574, %v6810
      %v6931 = vadd.f32 %v6577, %v6813
      %v6932 = vadd.f32 %v6582, %v6818
      %v6933 = vadd.f32 %v6585, %v6821
      %v6934 = vadd.f32 %v6590, %v6826
      %v6935 = vadd.f32 %v6593, %v6829
      %v6936 = vadd.f32 %v6598, %v6834
      %v6937 = vadd.f32 %v6601, %v6837
      %v6938 = vadd.f32 %v6606, %v6842
      %v6939 = vadd.f32 %v6609, %v6845
      %v6940 = vadd.f32 %v6614, %v6850
      %v6941 = vadd.f32 %v6617, %v6853
      %v6942 = vadd.f32 %v6622, %v6858
      %v6943 = vadd.f32 %v6625, %v6861
      %v6944 = vadd.f32 %v6630, %v6866
      %v6945 = vadd.f32 %v6633, %v6869
      %v6946 = vadd.f32 %v6638, %v6874
      %v6947 = vadd.f32 %v6641, %v6877
      %v6948 = vadd.f32 %v6646, %v6882
      %v6949 = vadd.f32 %v6649, %v6885
      %v6950 = vadd.f32 %v6654, %v6890
      %v6951 = vadd.f32 %v6657, %v6893
      %v6952 = vadd.f32 %v6662, %v6898
      %v6953 = vadd.f32 %v6665, %v6901
      %v6954 = vadd.f32 %v6670, %v6906
      %v6955 = vadd.f32 %v6673, %v6909
      %v6956 = vadd.f32 %v6678, %v6914
      %v6957 = vadd.f32 %v6681, %v6917
      %v6958 = vadd.f32 %v6686, %v6922
      %v6959 = vadd.f32 %v6689, %v6925
      %v6960 = vld [vmem:[%s715] sm:$0x1]
      %v6962 = vlaneseq
      %v6963 = vshrl.u32 %v6962, 7
      %v6964 = vsub.s32 0, %v6963
      %v6965 = vrot.slane %v6960, %v6964
      %v6967 = vadd.f32 %v6928, %v6965
      %v6968 = vadd.f32 %v6929, %v6965
      %v6969 = vadd.f32 %v6930, %v6965
      %v6970 = vadd.f32 %v6931, %v6965
      %v6971 = vadd.f32 %v6932, %v6965
      %v6972 = vadd.f32 %v6933, %v6965
      %v6973 = vadd.f32 %v6934, %v6965
      %v6974 = vadd.f32 %v6935, %v6965
      %v6975 = vadd.f32 %v6936, %v6965
      %v6976 = vadd.f32 %v6937, %v6965
      %v6977 = vadd.f32 %v6938, %v6965
      %v6978 = vadd.f32 %v6939, %v6965
      %v6979 = vadd.f32 %v6940, %v6965
      %v6980 = vadd.f32 %v6941, %v6965
      %v6981 = vadd.f32 %v6942, %v6965
      %v6982 = vadd.f32 %v6943, %v6965
      %v6983 = vadd.f32 %v6944, %v6965
      %v6984 = vadd.f32 %v6945, %v6965
      %v6985 = vadd.f32 %v6946, %v6965
      %v6986 = vadd.f32 %v6947, %v6965
      %v6987 = vadd.f32 %v6948, %v6965
      %v6988 = vadd.f32 %v6949, %v6965
      %v6989 = vadd.f32 %v6950, %v6965
      %v6990 = vadd.f32 %v6951, %v6965
      %v6991 = vadd.f32 %v6952, %v6965
      %v6992 = vadd.f32 %v6953, %v6965
      %v6993 = vadd.f32 %v6954, %v6965
      %v6994 = vadd.f32 %v6955, %v6965
      %v6995 = vadd.f32 %v6956, %v6965
      %v6996 = vadd.f32 %v6957, %v6965
      %v6997 = vadd.f32 %v6958, %v6965
      %v6998 = vadd.f32 %v6959, %v6965
      %v6999 = vadd.f32 %v5613, %v6967
      %v7000 = vadd.f32 %v5614, %v6968
      %v7001 = vadd.f32 %v5615, %v6969
      %v7002 = vadd.f32 %v5616, %v6970
      %v7003 = vadd.f32 %v5617, %v6971
      %v7004 = vadd.f32 %v5618, %v6972
      %v7005 = vadd.f32 %v5619, %v6973
      %v7006 = vadd.f32 %v5620, %v6974
      %v7007 = vadd.f32 %v5621, %v6975
      %v7008 = vadd.f32 %v5622, %v6976
      %v7009 = vadd.f32 %v5623, %v6977
      %v7010 = vadd.f32 %v5624, %v6978
      %v7011 = vadd.f32 %v5625, %v6979
      %v7012 = vadd.f32 %v5626, %v6980
      %v7013 = vadd.f32 %v5627, %v6981
      %v7014 = vadd.f32 %v5628, %v6982
      %v7015 = vadd.f32 %v5629, %v6983
      %v7016 = vadd.f32 %v5630, %v6984
      %v7017 = vadd.f32 %v5631, %v6985
      %v7018 = vadd.f32 %v5632, %v6986
      %v7019 = vadd.f32 %v5633, %v6987
      %v7020 = vadd.f32 %v5634, %v6988
      %v7021 = vadd.f32 %v5635, %v6989
      %v7022 = vadd.f32 %v5636, %v6990
      %v7023 = vadd.f32 %v5637, %v6991
      %v7024 = vadd.f32 %v5638, %v6992
      %v7025 = vadd.f32 %v5639, %v6993
      %v7026 = vadd.f32 %v5640, %v6994
      %v7027 = vadd.f32 %v5641, %v6995
      %v7028 = vadd.f32 %v5642, %v6996
      %v7029 = vadd.f32 %v5643, %v6997
      %v7030 = vadd.f32 %v5644, %v6998
      %7031 = vst.msk [vmem:[%s720] sm:$0xff] %vm1033, %v6999
      %7032 = vst.msk [vmem:[%s720 + $0x8] sm:$0xff] %vm1033, %v7000
      %7033 = vst.msk [vmem:[%s720 + $0x10] sm:$0xff] %vm1033, %v7001
      %7034 = vst.msk [vmem:[%s720 + $0x18] sm:$0xff] %vm1033, %v7002
      %7035 = vst.msk [vmem:[%s720 + $0x20] sm:$0xff] %vm1033, %v7003
      %7036 = vst.msk [vmem:[%s720 + $0x28] sm:$0xff] %vm1033, %v7004
      %7037 = vst.msk [vmem:[%s720 + $0x30] sm:$0xff] %vm1033, %v7005
      %7038 = vst.msk [vmem:[%s720 + $0x38] sm:$0xff] %vm1033, %v7006
      %7039 = vst.msk [vmem:[%s720 + $0x40] sm:$0xff] %vm1033, %v7007
      %7040 = vst.msk [vmem:[%s720 + $0x48] sm:$0xff] %vm1033, %v7008
      %7041 = vst.msk [vmem:[%s720 + $0x50] sm:$0xff] %vm1033, %v7009
      %7042 = vst.msk [vmem:[%s720 + $0x58] sm:$0xff] %vm1033, %v7010
      %7043 = vst.msk [vmem:[%s720 + $0x60] sm:$0xff] %vm1033, %v7011
      %7044 = vst.msk [vmem:[%s720 + $0x68] sm:$0xff] %vm1033, %v7012
      %7045 = vst.msk [vmem:[%s720 + $0x70] sm:$0xff] %vm1033, %v7013
      %7046 = vst.msk [vmem:[%s720 + $0x78] sm:$0xff] %vm1033, %v7014
      %7047 = vst.msk [vmem:[%s720 + $0x80] sm:$0xff] %vm1033, %v7015
      %7048 = vst.msk [vmem:[%s720 + $0x88] sm:$0xff] %vm1033, %v7016
      %7049 = vst.msk [vmem:[%s720 + $0x90] sm:$0xff] %vm1033, %v7017
      %7050 = vst.msk [vmem:[%s720 + $0x98] sm:$0xff] %vm1033, %v7018
      %7051 = vst.msk [vmem:[%s720 + $0xa0] sm:$0xff] %vm1033, %v7019
      %7052 = vst.msk [vmem:[%s720 + $0xa8] sm:$0xff] %vm1033, %v7020
      %7053 = vst.msk [vmem:[%s720 + $0xb0] sm:$0xff] %vm1033, %v7021
      %7054 = vst.msk [vmem:[%s720 + $0xb8] sm:$0xff] %vm1033, %v7022
      %7055 = vst.msk [vmem:[%s720 + $0xc0] sm:$0xff] %vm1033, %v7023
      %7056 = vst.msk [vmem:[%s720 + $0xc8] sm:$0xff] %vm1033, %v7024
      %7057 = vst.msk [vmem:[%s720 + $0xd0] sm:$0xff] %vm1033, %v7025
      %7058 = vst.msk [vmem:[%s720 + $0xd8] sm:$0xff] %vm1033, %v7026
      %7059 = vst.msk [vmem:[%s720 + $0xe0] sm:$0xff] %vm1033, %v7027
      %7060 = vst.msk [vmem:[%s720 + $0xe8] sm:$0xff] %vm1033, %v7028
      %7061 = vst.msk [vmem:[%s720 + $0xf0] sm:$0xff] %vm1033, %v7029
      %7062 = vst.msk [vmem:[%s720 + $0xf8] sm:$0xff] %vm1033, %v7030
      %p7063 = scmp.lt.s32.totalorder %s30, 1
      %s7064 = scalar_select %p7063, %s30, 1
      %s7065 = smul.addr %s7064, 32
      %s7066 = smul.addr %s7065, 8
      %s7067 = scalar_lea.vmem %s15, %s7066
      // Predicated region
      $region85: #{tpu_custom_call.1} parent=79 // pred_check
        %p7068 = pneg %p440
      $region86: #{tpu_custom_call.1} parent=79 // pred_check_branch
        %7070 = sbr.rel (%p7068) target = $region88
      $region87: #{tpu_custom_call.1} parent=79 // pred_region
        _
      $region88: #{tpu_custom_call.1} parent=79 // pred_fallthru
        _
    $region80: #{tpu_custom_call.1} parent=5 // pred_fallthru
      _
    %p7071 = scmp.le.s32.totalorder 2, %s21
    // Predicated region
    $region89: #{tpu_custom_call.1} parent=5 // pred_check
      %p7072 = pneg %p7071
    $region90: #{tpu_custom_call.1} parent=5 // pred_check_branch
      %7074 = sbr.rel (%p7072) target = $region92
    $region91: #{tpu_custom_call.1} parent=5 // pred_region
      %s7075 = ssub.s32 %s21, 2
      // Predicated region
      $region93: #{tpu_custom_call.1} parent=91 // pred_check
        %p7076 = pneg %p446
      $region94: #{tpu_custom_call.1} parent=91 // pred_check_branch
        %7078 = sbr.rel (%p7076) target = $region96
      $region95: #{tpu_custom_call.1} parent=91 // pred_region
        %p7079 = scmp.lt.s32.totalorder %s32, 1
        %s7080 = scalar_select %p7079, %s32, 1
        %s7081 = smul.addr %s7080, 32
        %s7082 = smul.addr %s7081, 8
        %s7083 = scalar_lea.vmem %s15, %s7082
      $region96: #{tpu_custom_call.1} parent=91 // pred_fallthru
        _
    $region92: #{tpu_custom_call.1} parent=5 // pred_fallthru
      _
  $region6: #{tpu_custom_call.1} parent=0 // loop_footer
    %s25 = sadd.s32 1, %s21
  $region7: #{tpu_custom_call.1} parent=0 // loop_footer_branch
    %20 = sbr.rel target = $region3
  $region8: #{tpu_custom_call.1} parent=0 // loop_exit
    _

</llo_original>
